<compile_context>
chip_gen: v5e
topology: v5e:2x2
jax: 0.10.0
libtpu: 0.0.40
codegen_flags: <defaults>
</compile_context>

<pallas_src>
import functools
import math

import jax
import jax.numpy as jnp
import numpy as np
from jax import lax
from jax.experimental import pallas as pl
from jax.experimental.pallas import tpu as pltpu

_NEG_INF = -1e30


def _round_up(x, m):
    return ((x + m - 1) // m) * m


# ----------------------------------------------------------------------------
# Kernel 1: MemoryReader — flash-style online softmax over the T*H*W memory axis
# ----------------------------------------------------------------------------
def _memory_reader_kernel(mk_ref, qk_ref, mv_ref, out_ref, m_sc, l_sc, acc_sc,
                          *, scale, thw_valid, mask_needed):
    k = pl.program_id(2)

    @pl.when(k == 0)
    def _():
        m_sc[...] = jnp.full(m_sc.shape, _NEG_INF, m_sc.dtype)
        l_sc[...] = jnp.zeros(l_sc.shape, l_sc.dtype)
        acc_sc[...] = jnp.zeros(acc_sc.shape, acc_sc.dtype)

    mk = mk_ref[0]                     # (CK, tk)  bf16
    qk = qk_ref[0]                     # (CK, tq)  bf16
    mv = mv_ref[0]                     # (CV, tk)  bf16
    tk = mk.shape[1]

    # affinity (tk, tq): contract CK on both operands (no relayout of mk needed), f32 accum
    aff = lax.dot_general(mk, qk, (((0,), (0,)), ((), ())),
                          preferred_element_type=jnp.float32) * scale
    if mask_needed:
        row = k * tk + lax.broadcasted_iota(jnp.int32, aff.shape, 0)
        aff = jnp.where(row < thw_valid, aff, _NEG_INF)

    # online softmax statistics (all f32)
    m_prev = m_sc[...]
    m_new = jnp.maximum(m_prev, jnp.max(aff, axis=0, keepdims=True))      # (1, tq)
    alpha = jnp.exp(m_prev - m_new)
    e = jnp.exp(aff - m_new)                                              # (tk, tq) f32
    l_sc[...] = alpha * l_sc[...] + jnp.sum(e, axis=0, keepdims=True)
    # readout on the MXU with bf16 operands; normalize AFTER the matmul
    acc_sc[...] = alpha * acc_sc[...] + jnp.dot(mv, e.astype(mv.dtype),
                                                preferred_element_type=jnp.float32)
    m_sc[...] = m_new

    @pl.when(k == pl.num_programs(2) - 1)
    def _():
        out_ref[0] = (acc_sc[...] * pl.reciprocal(l_sc[...], approx=True)
                      ).astype(out_ref.dtype)


def memory_read_pallas(mk, mv, qk, qv, *, tq=256, tk=256):
    """mk:(B,CK,T,H,W) mv:(B,CV,T,H,W) qk:(B,CK,H,W) qv:(B,CV,H,W) -> (B,2*CV,H,W)."""
    B, CK, T, H, W = mk.shape
    CV = mv.shape[1]
    THW, HW = T * H * W, H * W
    tq = min(tq, _round_up(HW, 128))
    tk = min(tk, _round_up(THW, 128))
    HWp = _round_up(HW, tq)
    THWp = _round_up(THW, tk)

    # bf16 in HBM for the two biggest tensors (and qk); softmax stats remain f32 in-kernel
    mk2 = mk.reshape(B, CK, THW).astype(jnp.bfloat16)
    mv2 = mv.reshape(B, CV, THW).astype(jnp.bfloat16)
    qk2 = qk.reshape(B, CK, HW).astype(jnp.bfloat16)
    if THWp != THW:
        mk2 = jnp.pad(mk2, ((0, 0), (0, 0), (0, THWp - THW)))
        mv2 = jnp.pad(mv2, ((0, 0), (0, 0), (0, THWp - THW)))
    if HWp != HW:
        qk2 = jnp.pad(qk2, ((0, 0), (0, 0), (0, HWp - HW)))

    kernel = functools.partial(_memory_reader_kernel, scale=1.0 / math.sqrt(CK),
                               thw_valid=THW, mask_needed=(THWp != THW))
    mem = pl.pallas_call(
        kernel,
        out_shape=jax.ShapeDtypeStruct((B, CV, HWp), jnp.float32),
        grid=(B, HWp // tq, THWp // tk),
        in_specs=[
            pl.BlockSpec((1, CK, tk), lambda b, q, k: (b, 0, k)),
            pl.BlockSpec((1, CK, tq), lambda b, q, k: (b, 0, q)),
            pl.BlockSpec((1, CV, tk), lambda b, q, k: (b, 0, k)),
        ],
        out_specs=pl.BlockSpec((1, CV, tq), lambda b, q, k: (b, 0, q)),
        scratch_shapes=[
            pltpu.VMEM((1, tq), jnp.float32),      # running max
            pltpu.VMEM((1, tq), jnp.float32),      # running sum
            pltpu.VMEM((CV, tq), jnp.float32),     # readout accumulator
        ],
        compiler_params=pltpu.CompilerParams(
            dimension_semantics=("parallel", "parallel", "arbitrary"),
            vmem_limit_bytes=32 * 1024 * 1024),
    )(mk2, qk2, mv2)
    mem = mem[:, :, :HW].reshape(B, CV, H, W)
    # qv pass-through handled in glue (no HBM round trip through the kernel)
    return jnp.concatenate([mem, qv.astype(jnp.float32)], axis=1)


# ----------------------------------------------------------------------------
# Kernel 2: concat_conv gating  —  f16 * sigmoid(conv3x3(cat([f16, mask])))
# conv done as 9 shifted-tap VPU accumulations over a padded input (no im2col slab)
# ----------------------------------------------------------------------------
def _concat_gate_kernel(xpad_ref, w_ref, b_ref, f16_ref, out_ref):
    H = f16_ref.shape[2]
    W = f16_ref.shape[3]
    acc = jnp.zeros((H, W), jnp.float32)
    for ky in range(3):
        for kx in range(3):
            tap = xpad_ref[0, :, ky:ky + H, kx:kx + W]          # (Cin, H, W)
            wk = w_ref[:, ky:ky + 1, kx:kx + 1]                 # (Cin, 1, 1)
            acc = acc + jnp.sum(tap * wk, axis=0)               # channel reduce on VPU
    gate = jax.nn.sigmoid(acc + b_ref[0])                       # bias from SMEM scalar
    out_ref[0] = f16_ref[0] * gate[None, :, :]


def concat_gate_pallas(f16, mask_rs, weight, bias):
    """f16:(B,C,H,W) mask_rs:(B,1,H,W) weight:(1,C+1,3,3) bias:(1,) -> gated f16."""
    B, C, H, W = f16.shape
    Cin = C + 1
    x = jnp.concatenate([f16, mask_rs], axis=1).astype(jnp.float32)     # (B, Cin, H, W)
    xpad = jnp.pad(x, ((0, 0), (0, 0), (1, 1), (1, 1)))                 # SAME pad for 3x3
    w = weight.reshape(Cin, 3, 3).astype(jnp.float32)                   # out-channel 1 squeezed
    b = bias.reshape(1).astype(jnp.float32)
    gated = pl.pallas_call(
        _concat_gate_kernel,
        out_shape=jax.ShapeDtypeStruct((B, C, H, W), jnp.float32),
        grid=(B,),
        in_specs=[
            pl.BlockSpec((1, Cin, H + 2, W + 2), lambda b_: (b_, 0, 0, 0)),
            pl.BlockSpec((Cin, 3, 3), lambda b_: (0, 0, 0)),
            pl.BlockSpec(memory_space=pltpu.MemorySpace.SMEM),
            pl.BlockSpec((1, C, H, W), lambda b_: (b_, 0, 0, 0)),
        ],
        out_specs=pl.BlockSpec((1, C, H, W), lambda b_: (b_, 0, 0, 0)),
        compiler_params=pltpu.CompilerParams(
            dimension_semantics=("parallel",),
            vmem_limit_bytes=32 * 1024 * 1024),
    )(xpad, w, b, f16.astype(jnp.float32))
    return gated


# ----------------------------------------------------------------------------
# Kernel 3: aggregate()  +  final softmax over objects (no in-kernel concat)
# ----------------------------------------------------------------------------
def _aggregate_kernel(prob_ref, logits_ref, probout_ref):
    p = prob_ref[0]                                             # (K, tile)
    bg = jnp.clip(jnp.prod(1.0 - p, axis=0, keepdims=True), 1e-7, 1.0 - 1e-7)
    fg = jnp.clip(p, 1e-7, 1.0 - 1e-7)
    bg_logit = jnp.log(bg / (1.0 - bg))                         # (1, tile)
    fg_logit = jnp.log(fg / (1.0 - fg))                         # (K, tile)
    logits_ref[0, :1, :] = bg_logit
    logits_ref[0, 1:, :] = fg_logit
    m = jnp.maximum(bg_logit, jnp.max(fg_logit, axis=0, keepdims=True))
    e_bg = jnp.exp(bg_logit - m)
    e_fg = jnp.exp(fg_logit - m)
    inv = pl.reciprocal(e_bg + jnp.sum(e_fg, axis=0, keepdims=True), approx=True)
    probout_ref[0] = e_fg * inv                                 # softmax(...)[:, 1:]


def aggregate_pallas(prob, *, tile_hw=2048):
    """prob:(B,K,H,W) -> (logits:(B,K+1,H,W), prob_out:(B,K,H,W))."""
    B, K, H, W = prob.shape
    HW = H * W
    tile = min(tile_hw, _round_up(HW, 128))
    HWp = _round_up(HW, tile)
    p2 = prob.reshape(B, K, HW).astype(jnp.float32)
    if HWp != HW:
        p2 = jnp.pad(p2, ((0, 0), (0, 0), (0, HWp - HW)))
    logits, prob_out = pl.pallas_call(
        _aggregate_kernel,
        out_shape=(
            jax.ShapeDtypeStruct((B, K + 1, HWp), jnp.float32),
            jax.ShapeDtypeStruct((B, K, HWp), jnp.float32),
        ),
        grid=(B, HWp // tile),
        in_specs=[pl.BlockSpec((1, K, tile), lambda b, q: (b, 0, q))],
        out_specs=(
            pl.BlockSpec((1, K + 1, tile), lambda b, q: (b, 0, q)),
            pl.BlockSpec((1, K, tile), lambda b, q: (b, 0, q)),
        ),
        compiler_params=pltpu.CompilerParams(
            dimension_semantics=("parallel", "parallel"),
            vmem_limit_bytes=32 * 1024 * 1024),
    )(p2)
    logits = logits[:, :, :HW].reshape(B, K + 1, H, W)
    prob_out = prob_out[:, :, :HW].reshape(B, K, H, W)
    return logits, prob_out


# ----------------------------------------------------------------------------
# PropagationNetwork wrapper (single_object=True path)
# ----------------------------------------------------------------------------
class PropagationNetworkPallas:
    def __init__(self, c16=64, key=jax.random.PRNGKey(0)):
        self.single_object = True
        self.c16 = c16
        cin = c16 + 1
        kw, kb = jax.random.split(key)
        # concat_conv = nn.Conv2d(c16+1, 1, 3, 1, 1)  (original: 1025 -> 1)
        self.concat_w = jax.random.normal(kw, (1, cin, 3, 3), jnp.float32) / np.sqrt(cin * 9)
        self.concat_b = 0.01 * jax.random.normal(kb, (1,), jnp.float32)
        # TODO(synk): MaskRGBEncoder(SO), RGBEncoder, KeyValue, ASPP, Score and the Decoder's
        # ResBlock/UpsampleBlock are not defined in the provided source; their outputs are
        # treated as kernel inputs below.

    def memory(self, keys, values, qk, qv):
        return memory_read_pallas(keys, values, qk, qv)

    def aggregate(self, prob):
        return aggregate_pallas(prob)

    def segment(self, f16, keys, values, mask1, qk16, qv16):
        B, _, h, w = f16.shape
        # F.interpolate(mask, size=[h,w], mode='bilinear')  (glue)
        mask_rs = jax.image.resize(mask1, (B, 1, h, w), method="bilinear").astype(jnp.float32)
        concat_f16 = concat_gate_pallas(f16, mask_rs, self.concat_w, self.concat_b)
        # TODO(synk): kv_q_f16 (KeyValue) is undefined in the source; qk16/qv16 supplied directly.
        mem_out = self.memory(keys, values, qk16, qv16)
        # TODO(synk): ASPP + Decoder (ResBlock/UpsampleBlock) are undefined; decoder logits are
        # not reproduced here — aggregate() is exposed as its own kernel instead.
        return concat_f16, mem_out


# ----------------------------------------------------------------------------
# Pure-JAX references (for correctness checking of the kernels)
# ----------------------------------------------------------------------------
def _memory_ref(mk, mv, qk, qv):
    # inputs quantized to bf16 like the kernel does (MXU operands); math in f32
    B, CK, T, H, W = mk.shape
    CV = mv.shape[1]
    mkq = mk.astype(jnp.bfloat16).astype(jnp.float32)
    mvq = mv.astype(jnp.bfloat16).astype(jnp.float32)
    qkq = qk.astype(jnp.bfloat16).astype(jnp.float32)
    mi = jnp.transpose(mkq.reshape(B, CK, -1), (0, 2, 1))
    qi = qkq.reshape(B, CK, -1) / math.sqrt(CK)
    aff = jnp.einsum("bnc,bcm->bnm", mi, qi, precision="highest")
    aff = jax.nn.softmax(aff, axis=1)
    mem = jnp.einsum("bcn,bnm->bcm", mvq.reshape(B, CV, -1), aff, precision="highest")
    return jnp.concatenate([mem.reshape(B, CV, H, W), qv], axis=1)


def _concat_gate_ref(f16, mask_rs, w, b):
    x = jnp.concatenate([f16, mask_rs], axis=1)
    y = jax.lax.conv_general_dilated(
        x, w, (1, 1), "SAME", dimension_numbers=("NCHW", "OIHW", "NCHW"),
        precision="highest") + b.reshape(1, 1, 1, 1)
    return f16 * jax.nn.sigmoid(y)


def _aggregate_ref(prob):
    new_prob = jnp.concatenate([jnp.prod(1 - prob, axis=1, keepdims=True), prob], axis=1)
    new_prob = jnp.clip(new_prob, 1e-7, 1 - 1e-7)
    logits = jnp.log(new_prob / (1 - new_prob))
    return logits, jax.nn.softmax(logits, axis=1)[:, 1:]


if __name__ == "__main__":
    # H*W = 256 and 4H*4W = 4096 are multiples of 128 -> lane-dense blocks everywhere
    B, C16, CK, CV, T, H, W = 2, 64, 32, 64, 2, 16, 16
    key = jax.random.PRNGKey(0)
    ks = jax.random.split(key, 8)

    keys_ = jax.random.normal(ks[0], (B, CK, T, H, W), jnp.float32)
    values_ = jax.random.normal(ks[1], (B, CV, T, H, W), jnp.float32)
    qk16 = jax.random.normal(ks[2], (B, CK, H, W), jnp.float32)
    qv16 = jax.random.normal(ks[3], (B, CV, H, W), jnp.float32)
    f16 = jax.random.normal(ks[4], (B, C16, H, W), jnp.float32)
    mask1 = jax.nn.sigmoid(jax.random.normal(ks[5], (B, 1, 4 * H, 4 * W), jnp.float32))
    prob_demo = jax.nn.sigmoid(jax.random.normal(ks[6], (B, 1, 4 * H, 4 * W), jnp.float32))

    net = PropagationNetworkPallas(c16=C16, key=ks[7])

    concat_f16, mem_out = net.segment(f16, keys_, values_, mask1, qk16, qv16)
    logits, prob_out = net.aggregate(prob_demo)
    jax.block_until_ready((concat_f16, mem_out, logits, prob_out))

    # correctness checks against pure-JAX references
    mask_rs = jax.image.resize(mask1, (B, 1, H, W), method="bilinear")
    np.testing.assert_allclose(
        np.asarray(concat_f16),
        np.asarray(_concat_gate_ref(f16, mask_rs, net.concat_w, net.concat_b)),
        rtol=2e-3, atol=2e-3)
    # looser tolerance: bf16 MXU operands (incl. exp(p)->bf16 for the readout) + approx recip
    np.testing.assert_allclose(
        np.asarray(mem_out),
        np.asarray(_memory_ref(keys_, values_, qk16, qv16)),
        rtol=2e-2, atol=2e-2)
    ref_logits, ref_prob = _aggregate_ref(prob_demo)
    np.testing.assert_allclose(np.asarray(logits), np.asarray(ref_logits), rtol=2e-3, atol=2e-3)
    np.testing.assert_allclose(np.asarray(prob_out), np.asarray(ref_prob), rtol=2e-3, atol=2e-3)

    print("KERNEL_OK")
</pallas_src>

<mosaic_0001>
module attributes {stable_mosaic.version = 11 : i64} {
  func.func @_concat_gate_kernel(%arg0: i32, %arg1: memref<1x65x18x18xf32, #tpu.memory_space<vmem>>, %arg2: memref<65x3x3xf32, #tpu.memory_space<vmem>>, %arg3: memref<1xf32, #tpu.memory_space<smem>>, %arg4: memref<1x64x16x16xf32, #tpu.memory_space<vmem>>, %arg5: memref<1x64x16x16xf32, #tpu.memory_space<vmem>>) attributes {dimension_semantics = [#tpu.dimension_semantics<parallel>], iteration_bounds = array<i64: 2>, scalar_prefetch = 0 : i64, scratch_operands = 0 : i64, tpu.core_type = #tpu.core_type<tc>, window_params = [{transform_indices = @transform_0, window_bounds = array<i64: 1, 65, 18, 18>}, {pipeline_mode = #tpu.pipeline_mode<synchronous>, transform_indices = @transform_1, window_bounds = array<i64: 65, 3, 3>}, {transform_indices = @transform_2, window_bounds = array<i64: 1>}, {transform_indices = @transform_3, window_bounds = array<i64: 1, 64, 16, 16>}, {transform_indices = @transform_4, window_bounds = array<i64: 1, 64, 16, 16>}]} {
    %cst = arith.constant 0.000000e+00 : f32
    %0 = vector.broadcast %cst : f32 to vector<16x16xf32>
    %c0 = arith.constant 0 : index
    %c0_0 = arith.constant 0 : index
    %c0_1 = arith.constant 0 : index
    %c0_2 = arith.constant 0 : index
    %1 = vector.load %arg1[%c0, %c0_0, %c0_1, %c0_2] : memref<1x65x18x18xf32, #tpu.memory_space<vmem>>, vector<1x65x16x16xf32>
    %2 = vector.shape_cast %1 : vector<1x65x16x16xf32> to vector<65x16x16xf32>
    %c0_3 = arith.constant 0 : index
    %c0_4 = arith.constant 0 : index
    %c0_5 = arith.constant 0 : index
    %3 = vector.load %arg2[%c0_3, %c0_4, %c0_5] : memref<65x3x3xf32, #tpu.memory_space<vmem>>, vector<65x1x1xf32>
    %4 = vector.broadcast %3 : vector<65x1x1xf32> to vector<65x16x16xf32>
    %5 = arith.mulf %2, %4 : vector<65x16x16xf32>
    %cst_6 = arith.constant dense<0.000000e+00> : vector<16x16xf32>
    %6 = vector.multi_reduction <add>, %5, %cst_6 [0] : vector<65x16x16xf32> to vector<16x16xf32>
    %7 = arith.addf %0, %6 : vector<16x16xf32>
    %c0_7 = arith.constant 0 : index
    %c0_8 = arith.constant 0 : index
    %c0_9 = arith.constant 0 : index
    %c1 = arith.constant 1 : index
    %8 = vector.load %arg1[%c0_7, %c0_8, %c0_9, %c1] : memref<1x65x18x18xf32, #tpu.memory_space<vmem>>, vector<1x65x16x16xf32>
    %9 = vector.shape_cast %8 : vector<1x65x16x16xf32> to vector<65x16x16xf32>
    %c0_10 = arith.constant 0 : index
    %c0_11 = arith.constant 0 : index
    %c1_12 = arith.constant 1 : index
    %10 = vector.load %arg2[%c0_10, %c0_11, %c1_12] : memref<65x3x3xf32, #tpu.memory_space<vmem>>, vector<65x1x1xf32>
    %11 = vector.broadcast %10 : vector<65x1x1xf32> to vector<65x16x16xf32>
    %12 = arith.mulf %9, %11 : vector<65x16x16xf32>
    %cst_13 = arith.constant dense<0.000000e+00> : vector<16x16xf32>
    %13 = vector.multi_reduction <add>, %12, %cst_13 [0] : vector<65x16x16xf32> to vector<16x16xf32>
    %14 = arith.addf %7, %13 : vector<16x16xf32>
    %c0_14 = arith.constant 0 : index
    %c0_15 = arith.constant 0 : index
    %c0_16 = arith.constant 0 : index
    %c2 = arith.constant 2 : index
    %15 = vector.load %arg1[%c0_14, %c0_15, %c0_16, %c2] : memref<1x65x18x18xf32, #tpu.memory_space<vmem>>, vector<1x65x16x16xf32>
    %16 = vector.shape_cast %15 : vector<1x65x16x16xf32> to vector<65x16x16xf32>
    %c0_17 = arith.constant 0 : index
    %c0_18 = arith.constant 0 : index
    %c2_19 = arith.constant 2 : index
    %17 = vector.load %arg2[%c0_17, %c0_18, %c2_19] : memref<65x3x3xf32, #tpu.memory_space<vmem>>, vector<65x1x1xf32>
    %18 = vector.broadcast %17 : vector<65x1x1xf32> to vector<65x16x16xf32>
    %19 = arith.mulf %16, %18 : vector<65x16x16xf32>
    %cst_20 = arith.constant dense<0.000000e+00> : vector<16x16xf32>
    %20 = vector.multi_reduction <add>, %19, %cst_20 [0] : vector<65x16x16xf32> to vector<16x16xf32>
    %21 = arith.addf %14, %20 : vector<16x16xf32>
    %c0_21 = arith.constant 0 : index
    %c0_22 = arith.constant 0 : index
    %c1_23 = arith.constant 1 : index
    %c0_24 = arith.constant 0 : index
    %22 = vector.load %arg1[%c0_21, %c0_22, %c1_23, %c0_24] : memref<1x65x18x18xf32, #tpu.memory_space<vmem>>, vector<1x65x16x16xf32>
    %23 = vector.shape_cast %22 : vector<1x65x16x16xf32> to vector<65x16x16xf32>
    %c0_25 = arith.constant 0 : index
    %c1_26 = arith.constant 1 : index
    %c0_27 = arith.constant 0 : index
    %24 = vector.load %arg2[%c0_25, %c1_26, %c0_27] : memref<65x3x3xf32, #tpu.memory_space<vmem>>, vector<65x1x1xf32>
    %25 = vector.broadcast %24 : vector<65x1x1xf32> to vector<65x16x16xf32>
    %26 = arith.mulf %23, %25 : vector<65x16x16xf32>
    %cst_28 = arith.constant dense<0.000000e+00> : vector<16x16xf32>
    %27 = vector.multi_reduction <add>, %26, %cst_28 [0] : vector<65x16x16xf32> to vector<16x16xf32>
    %28 = arith.addf %21, %27 : vector<16x16xf32>
    %c0_29 = arith.constant 0 : index
    %c0_30 = arith.constant 0 : index
    %c1_31 = arith.constant 1 : index
    %c1_32 = arith.constant 1 : index
    %29 = vector.load %arg1[%c0_29, %c0_30, %c1_31, %c1_32] : memref<1x65x18x18xf32, #tpu.memory_space<vmem>>, vector<1x65x16x16xf32>
    %30 = vector.shape_cast %29 : vector<1x65x16x16xf32> to vector<65x16x16xf32>
    %c0_33 = arith.constant 0 : index
    %c1_34 = arith.constant 1 : index
    %c1_35 = arith.constant 1 : index
    %31 = vector.load %arg2[%c0_33, %c1_34, %c1_35] : memref<65x3x3xf32, #tpu.memory_space<vmem>>, vector<65x1x1xf32>
    %32 = vector.broadcast %31 : vector<65x1x1xf32> to vector<65x16x16xf32>
    %33 = arith.mulf %30, %32 : vector<65x16x16xf32>
    %cst_36 = arith.constant dense<0.000000e+00> : vector<16x16xf32>
    %34 = vector.multi_reduction <add>, %33, %cst_36 [0] : vector<65x16x16xf32> to vector<16x16xf32>
    %35 = arith.addf %28, %34 : vector<16x16xf32>
    %c0_37 = arith.constant 0 : index
    %c0_38 = arith.constant 0 : index
    %c1_39 = arith.constant 1 : index
    %c2_40 = arith.constant 2 : index
    %36 = vector.load %arg1[%c0_37, %c0_38, %c1_39, %c2_40] : memref<1x65x18x18xf32, #tpu.memory_space<vmem>>, vector<1x65x16x16xf32>
    %37 = vector.shape_cast %36 : vector<1x65x16x16xf32> to vector<65x16x16xf32>
    %c0_41 = arith.constant 0 : index
    %c1_42 = arith.constant 1 : index
    %c2_43 = arith.constant 2 : index
    %38 = vector.load %arg2[%c0_41, %c1_42, %c2_43] : memref<65x3x3xf32, #tpu.memory_space<vmem>>, vector<65x1x1xf32>
    %39 = vector.broadcast %38 : vector<65x1x1xf32> to vector<65x16x16xf32>
    %40 = arith.mulf %37, %39 : vector<65x16x16xf32>
    %cst_44 = arith.constant dense<0.000000e+00> : vector<16x16xf32>
    %41 = vector.multi_reduction <add>, %40, %cst_44 [0] : vector<65x16x16xf32> to vector<16x16xf32>
    %42 = arith.addf %35, %41 : vector<16x16xf32>
    %c0_45 = arith.constant 0 : index
    %c0_46 = arith.constant 0 : index
    %c2_47 = arith.constant 2 : index
    %c0_48 = arith.constant 0 : index
    %43 = vector.load %arg1[%c0_45, %c0_46, %c2_47, %c0_48] : memref<1x65x18x18xf32, #tpu.memory_space<vmem>>, vector<1x65x16x16xf32>
    %44 = vector.shape_cast %43 : vector<1x65x16x16xf32> to vector<65x16x16xf32>
    %c0_49 = arith.constant 0 : index
    %c2_50 = arith.constant 2 : index
    %c0_51 = arith.constant 0 : index
    %45 = vector.load %arg2[%c0_49, %c2_50, %c0_51] : memref<65x3x3xf32, #tpu.memory_space<vmem>>, vector<65x1x1xf32>
    %46 = vector.broadcast %45 : vector<65x1x1xf32> to vector<65x16x16xf32>
    %47 = arith.mulf %44, %46 : vector<65x16x16xf32>
    %cst_52 = arith.constant dense<0.000000e+00> : vector<16x16xf32>
    %48 = vector.multi_reduction <add>, %47, %cst_52 [0] : vector<65x16x16xf32> to vector<16x16xf32>
    %49 = arith.addf %42, %48 : vector<16x16xf32>
    %c0_53 = arith.constant 0 : index
    %c0_54 = arith.constant 0 : index
    %c2_55 = arith.constant 2 : index
    %c1_56 = arith.constant 1 : index
    %50 = vector.load %arg1[%c0_53, %c0_54, %c2_55, %c1_56] : memref<1x65x18x18xf32, #tpu.memory_space<vmem>>, vector<1x65x16x16xf32>
    %51 = vector.shape_cast %50 : vector<1x65x16x16xf32> to vector<65x16x16xf32>
    %c0_57 = arith.constant 0 : index
    %c2_58 = arith.constant 2 : index
    %c1_59 = arith.constant 1 : index
    %52 = vector.load %arg2[%c0_57, %c2_58, %c1_59] : memref<65x3x3xf32, #tpu.memory_space<vmem>>, vector<65x1x1xf32>
    %53 = vector.broadcast %52 : vector<65x1x1xf32> to vector<65x16x16xf32>
    %54 = arith.mulf %51, %53 : vector<65x16x16xf32>
    %cst_60 = arith.constant dense<0.000000e+00> : vector<16x16xf32>
    %55 = vector.multi_reduction <add>, %54, %cst_60 [0] : vector<65x16x16xf32> to vector<16x16xf32>
    %56 = arith.addf %49, %55 : vector<16x16xf32>
    %c0_61 = arith.constant 0 : index
    %c0_62 = arith.constant 0 : index
    %c2_63 = arith.constant 2 : index
    %c2_64 = arith.constant 2 : index
    %57 = vector.load %arg1[%c0_61, %c0_62, %c2_63, %c2_64] : memref<1x65x18x18xf32, #tpu.memory_space<vmem>>, vector<1x65x16x16xf32>
    %58 = vector.shape_cast %57 : vector<1x65x16x16xf32> to vector<65x16x16xf32>
    %c0_65 = arith.constant 0 : index
    %c2_66 = arith.constant 2 : index
    %c2_67 = arith.constant 2 : index
    %59 = vector.load %arg2[%c0_65, %c2_66, %c2_67] : memref<65x3x3xf32, #tpu.memory_space<vmem>>, vector<65x1x1xf32>
    %60 = vector.broadcast %59 : vector<65x1x1xf32> to vector<65x16x16xf32>
    %61 = arith.mulf %58, %60 : vector<65x16x16xf32>
    %cst_68 = arith.constant dense<0.000000e+00> : vector<16x16xf32>
    %62 = vector.multi_reduction <add>, %61, %cst_68 [0] : vector<65x16x16xf32> to vector<16x16xf32>
    %63 = arith.addf %56, %62 : vector<16x16xf32>
    %c0_69 = arith.constant 0 : index
    %64 = memref.load %arg3[%c0_69] : memref<1xf32, #tpu.memory_space<smem>>
    %65 = vector.broadcast %64 : f32 to vector<16x16xf32>
    %66 = arith.addf %63, %65 : vector<16x16xf32>
    %67 = arith.negf %66 : vector<16x16xf32>
    %68 = math.exp %67 : vector<16x16xf32>
    %cst_70 = arith.constant 1.000000e+00 : f32
    %69 = vector.broadcast %cst_70 : f32 to vector<16x16xf32>
    %70 = arith.addf %69, %68 : vector<16x16xf32>
    %71 = arith.divf %69, %70 : vector<16x16xf32>
    %c0_71 = arith.constant 0 : index
    %c0_72 = arith.constant 0 : index
    %c0_73 = arith.constant 0 : index
    %c0_74 = arith.constant 0 : index
    %72 = vector.load %arg4[%c0_71, %c0_72, %c0_73, %c0_74] : memref<1x64x16x16xf32, #tpu.memory_space<vmem>>, vector<1x64x16x16xf32>
    %73 = vector.shape_cast %72 : vector<1x64x16x16xf32> to vector<64x16x16xf32>
    %74 = vector.shape_cast %71 : vector<16x16xf32> to vector<1x16x16xf32>
    %75 = vector.broadcast %74 : vector<1x16x16xf32> to vector<64x16x16xf32>
    %76 = arith.mulf %73, %75 : vector<64x16x16xf32>
    %c0_75 = arith.constant 0 : index
    %c0_76 = arith.constant 0 : index
    %c0_77 = arith.constant 0 : index
    %c0_78 = arith.constant 0 : index
    %77 = vector.load %arg5[%c0_75, %c0_76, %c0_77, %c0_78] : memref<1x64x16x16xf32, #tpu.memory_space<vmem>>, vector<1x64x16x16xf32>
    %78 = vector.shape_cast %77 : vector<1x64x16x16xf32> to vector<64x16x16xf32>
    %79 = vector.shape_cast %76 : vector<64x16x16xf32> to vector<1x64x16x16xf32>
    tpu.vector_store %arg5[%c0_75, %c0_76, %c0_77, %c0_78], %79 {strides = array<i32>} : memref<1x64x16x16xf32, #tpu.memory_space<vmem>>, vector<1x64x16x16xf32>,
    return
  }
  func.func @transform_0(%arg0: i32) -> (i32, i32, i32, i32) {
    %c0_i32 = arith.constant 0 : i32
    %c0_i32_0 = arith.constant 0 : i32
    %c0_i32_1 = arith.constant 0 : i32
    %c0_i32_2 = arith.constant 0 : i32
    return %arg0, %c0_i32, %c0_i32_0, %c0_i32_1 : i32, i32, i32, i32
  }
  func.func @transform_1(%arg0: i32) -> (i32, i32, i32) {
    %c0_i32 = arith.constant 0 : i32
    %c0_i32_0 = arith.constant 0 : i32
    %c0_i32_1 = arith.constant 0 : i32
    %c0_i32_2 = arith.constant 0 : i32
    return %c0_i32, %c0_i32_0, %c0_i32_1 : i32, i32, i32
  }
  func.func @transform_2(%arg0: i32) -> i32 {
    %c0_i32 = arith.constant 0 : i32
    %c0_i32_0 = arith.constant 0 : i32
    return %c0_i32 : i32
  }
  func.func @transform_3(%arg0: i32) -> (i32, i32, i32, i32) {
    %c0_i32 = arith.constant 0 : i32
    %c0_i32_0 = arith.constant 0 : i32
    %c0_i32_1 = arith.constant 0 : i32
    %c0_i32_2 = arith.constant 0 : i32
    return %arg0, %c0_i32, %c0_i32_0, %c0_i32_1 : i32, i32, i32, i32
  }
  func.func @transform_4(%arg0: i32) -> (i32, i32, i32, i32) {
    %c0_i32 = arith.constant 0 : i32
    %c0_i32_0 = arith.constant 0 : i32
    %c0_i32_1 = arith.constant 0 : i32
    %c0_i32_2 = arith.constant 0 : i32
    return %arg0, %c0_i32, %c0_i32_0, %c0_i32_1 : i32, i32, i32, i32
  }
}

</mosaic_0001>

<llo_original>
// kernel: tpu_custom_call.1
$region0: #{tpu_custom_call.1}
  #allocation0 [shape = 'u32[]', space=smem, size = 0x4, offset = 0x4, fixed_abs, tag = 'smem constant byte address 0x4 - core index']
  #allocation1 [shape = 'u32[72,128]{1,0:T(1,128)}', space=vmem, size = 0x9000, scoped, tag = 'internal scratch']
  #allocation2 [shape = 'f32[1]{0:T(128)S(6)}', space=smem, size = 0x200, scoped, tag = 'scoped memory for tpu_custom_call.1']
  %s0 = inlined_call_operand.vmem [shape: f32[2,65,18,18], index: 0, kind: input, shape index: {}]
  %s1 = inlined_call_operand.vmem [shape: f32[65,3,3], index: 1, kind: input, shape index: {}]
  %s2 = inlined_call_operand.<no memory space> [shape: f32[1], index: 2, kind: input, shape index: {}]
  %s3 = inlined_call_operand.vmem [shape: f32[2,64,16,16], index: 3, kind: input, shape index: {}]
  %s4 = inlined_call_operand.vmem [shape: f32[2,64,16,16], index: 4, kind: output, shape index: {}]
  %s5 = sld [smem:[#allocation0]]
  $region49: #{tpu_custom_call.1} parent=0
    _
  %s7 = ssub.s32 1, %s5
  %s8 = scalar_select 0, %s7, %s5
  %9 = sst [smem:[#allocation2]] %s2
  loop: start=0, step=1, limit=4
  $region2: #{tpu_custom_call.1} parent=0 // loop_pre_header
    _
  $region3: #{tpu_custom_call.1} parent=0 // loop_header
    %s11 = sphi 0, %s15
    %p12 = scmp.ge.s32.totalorder %s11, 4
    %s21 = sphi 0, %s23
    %s24 = sphi 0, %s21
    %s25 = sphi 0, %s24
    %s41 = sphi 0, %s25
    %s45 = sphi 0, %s45
    %s47 = sphi 0, %s45
    %s48 = sphi 0, %s47
    %s62 = sphi 0, %s48
    %s66 = sphi 0, %s66
    %s68 = sphi 0, %s66
    %s69 = sphi 0, %s68
    %s83 = sphi 0, %s69
    %s89 = sphi 0, %s91
    %s92 = sphi 0, %s89
    %s93 = sphi 0, %s92
    %s109 = sphi 0, %s93
    %s115 = sphi 0, %s117
    %s118 = sphi 0, %s115
    %s119 = sphi 0, %s118
    %s135 = sphi 0, %s119
  $region4: #{tpu_custom_call.1} parent=0 // loop_header_branch
    %14 = sbr.rel (%p12) target = $region8
  $region5: #{tpu_custom_call.1} parent=0 // loop_body
    %s16 = ssub.s32 %s11, 1
    %s17 = ssub.s32 %s11, 2
    %s18 = sadd.s32 %s11, 1
    %s19 = ssub.s32 %s11, %s18
    %p20 = scmp.eq.s32.totalorder %s19, 0
    %s22 = sadd.s32 %s21, 1
    %s23 = scalar_select %p20, %s21, %s22
    %p26 = pneg %p20
    %p27 = scmp.eq.s32.totalorder %s11, 1
    %p28 = por %p26, %p27
    %p29 = scmp.ne.s32.totalorder %s21, %s24
    %p30 = scmp.eq.s32.totalorder %s11, 0
    %p31 = por %p29, %p30
    %p32 = scmp.ne.s32.totalorder %s21, %s24
    %p33 = scmp.eq.s32.totalorder %s16, 1
    %p34 = por %p32, %p33
    %p35 = scmp.ne.s32.totalorder %s24, %s25
    %p36 = scmp.eq.s32.totalorder %s16, 0
    %p37 = por %p35, %p36
    %p38 = scmp.ne.s32.totalorder %s24, %s25
    %p39 = scmp.eq.s32.totalorder %s17, 1
    %p40 = por %p38, %p39
    %p42 = scmp.ne.s32.totalorder %s25, %s41
    %p43 = scmp.eq.s32.totalorder %s17, 0
    %p44 = por %p42, %p43
    %s46 = sadd.s32 %s45, 1
    %p49 = scmp.eq.s32.totalorder %s11, 1
    %p50 = scmp.ne.s32.totalorder %s45, %s47
    %p51 = scmp.eq.s32.totalorder %s11, 0
    %p52 = por %p50, %p51
    %p53 = scmp.ne.s32.totalorder %s45, %s47
    %p54 = scmp.eq.s32.totalorder %s16, 1
    %p55 = por %p53, %p54
    %p56 = scmp.ne.s32.totalorder %s47, %s48
    %p57 = scmp.eq.s32.totalorder %s16, 0
    %p58 = por %p56, %p57
    %p59 = scmp.ne.s32.totalorder %s47, %s48
    %p60 = scmp.eq.s32.totalorder %s17, 1
    %p61 = por %p59, %p60
    %p63 = scmp.ne.s32.totalorder %s48, %s62
    %p64 = scmp.eq.s32.totalorder %s17, 0
    %p65 = por %p63, %p64
    %s67 = sadd.s32 %s66, 1
    %p70 = scmp.eq.s32.totalorder %s11, 1
    %p71 = scmp.ne.s32.totalorder %s66, %s68
    %p72 = scmp.eq.s32.totalorder %s11, 0
    %p73 = por %p71, %p72
    %p74 = scmp.ne.s32.totalorder %s66, %s68
    %p75 = scmp.eq.s32.totalorder %s16, 1
    %p76 = por %p74, %p75
    %p77 = scmp.ne.s32.totalorder %s68, %s69
    %p78 = scmp.eq.s32.totalorder %s16, 0
    %p79 = por %p77, %p78
    %p80 = scmp.ne.s32.totalorder %s68, %s69
    %p81 = scmp.eq.s32.totalorder %s17, 1
    %p82 = por %p80, %p81
    %p84 = scmp.ne.s32.totalorder %s69, %s83
    %p85 = scmp.eq.s32.totalorder %s17, 0
    %p86 = por %p84, %p85
    %s87 = ssub.s32 %s11, %s18
    %p88 = scmp.eq.s32.totalorder %s87, 0
    %s90 = sadd.s32 %s89, 1
    %s91 = scalar_select %p88, %s89, %s90
    %p94 = pneg %p88
    %p95 = scmp.eq.s32.totalorder %s11, 1
    %p96 = por %p94, %p95
    %p97 = scmp.ne.s32.totalorder %s89, %s92
    %p98 = scmp.eq.s32.totalorder %s11, 0
    %p99 = por %p97, %p98
    %p100 = scmp.ne.s32.totalorder %s89, %s92
    %p101 = scmp.eq.s32.totalorder %s16, 1
    %p102 = por %p100, %p101
    %p103 = scmp.ne.s32.totalorder %s92, %s93
    %p104 = scmp.eq.s32.totalorder %s16, 0
    %p105 = por %p103, %p104
    %p106 = scmp.ne.s32.totalorder %s92, %s93
    %p107 = scmp.eq.s32.totalorder %s17, 1
    %p108 = por %p106, %p107
    %p110 = scmp.ne.s32.totalorder %s93, %s109
    %p111 = scmp.eq.s32.totalorder %s17, 0
    %p112 = por %p110, %p111
    %s113 = ssub.s32 %s11, %s18
    %p114 = scmp.eq.s32.totalorder %s113, 0
    %s116 = sadd.s32 %s115, 1
    %s117 = scalar_select %p114, %s115, %s116
    %p120 = pneg %p114
    %p121 = scmp.eq.s32.totalorder %s11, 1
    %p122 = por %p120, %p121
    %p123 = scmp.ne.s32.totalorder %s115, %s118
    %p124 = scmp.eq.s32.totalorder %s11, 0
    %p125 = por %p123, %p124
    %p126 = scmp.ne.s32.totalorder %s115, %s118
    %p127 = scmp.eq.s32.totalorder %s16, 1
    %p128 = por %p126, %p127
    %p129 = scmp.ne.s32.totalorder %s118, %s119
    %p130 = scmp.eq.s32.totalorder %s16, 0
    %p131 = por %p129, %p130
    %p132 = scmp.ne.s32.totalorder %s118, %s119
    %p133 = scmp.eq.s32.totalorder %s17, 1
    %p134 = por %p132, %p133
    %p136 = scmp.ne.s32.totalorder %s119, %s135
    %p137 = scmp.eq.s32.totalorder %s17, 0
    %p138 = por %p136, %p137
    %p139 = scmp.le.s32.totalorder 1, %s11
    %p140 = scmp.lt.s32.totalorder %s11, 3
    %p141 = pnand %p139, %p140
    %p142 = pneg %p141
    // Predicated region
    $region9: #{tpu_custom_call.1} parent=5 // pred_check
      _
    $region10: #{tpu_custom_call.1} parent=5 // pred_check_branch
      %144 = sbr.rel (%p141) target = $region12
    $region11: #{tpu_custom_call.1} parent=5 // pred_region
      %s145 = ssub.s32 %s11, 1
      // Predicated region
      $region13: #{tpu_custom_call.1} parent=11 // pred_check
        %p146 = pneg %p58
      $region14: #{tpu_custom_call.1} parent=11 // pred_check_branch
        %148 = sbr.rel (%p146) target = $region16
      $region15: #{tpu_custom_call.1} parent=11 // pred_region
        _
      $region16: #{tpu_custom_call.1} parent=11 // pred_fallthru
        _
      // Predicated region
      $region17: #{tpu_custom_call.1} parent=11 // pred_check
        %p149 = pneg %p79
      $region18: #{tpu_custom_call.1} parent=11 // pred_check_branch
        %151 = sbr.rel (%p149) target = $region20
      $region19: #{tpu_custom_call.1} parent=11 // pred_region
        _
      $region20: #{tpu_custom_call.1} parent=11 // pred_fallthru
        _
    $region12: #{tpu_custom_call.1} parent=5 // pred_fallthru
      _
    %p152 = scmp.lt.s32.totalorder %s11, 2
    // Predicated region
    $region21: #{tpu_custom_call.1} parent=5 // pred_check
      %p153 = pneg %p152
    $region22: #{tpu_custom_call.1} parent=5 // pred_check_branch
      %155 = sbr.rel (%p153) target = $region24
    $region23: #{tpu_custom_call.1} parent=5 // pred_region
      // Predicated region
      $region25: #{tpu_custom_call.1} parent=23 // pred_check
        %p156 = pneg %p31
      $region26: #{tpu_custom_call.1} parent=23 // pred_check_branch
        %158 = sbr.rel (%p156) target = $region28
      $region27: #{tpu_custom_call.1} parent=23 // pred_region
        %p159 = scmp.lt.s32.totalorder %s11, 1
        %s160 = scalar_select %p159, %s11, 1
        %s161 = smul.addr %s160, 195
        %s162 = smul.addr %s161, 8
        %s163 = scalar_lea.vmem %s0, %s162
      $region28: #{tpu_custom_call.1} parent=23 // pred_fallthru
        _
      // Predicated region
      $region29: #{tpu_custom_call.1} parent=23 // pred_check
        %p164 = pneg %p99
      $region30: #{tpu_custom_call.1} parent=23 // pred_check_branch
        %166 = sbr.rel (%p164) target = $region32
      $region31: #{tpu_custom_call.1} parent=23 // pred_region
        %p167 = scmp.lt.s32.totalorder %s11, 1
        %s168 = scalar_select %p167, %s11, 1
        %s169 = smul.addr %s168, 128
        %s170 = smul.addr %s169, 8
        %s171 = scalar_lea.vmem %s3, %s170
      $region32: #{tpu_custom_call.1} parent=23 // pred_fallthru
        _
    $region24: #{tpu_custom_call.1} parent=5 // pred_fallthru
      _
    %p172 = scmp.le.s32.totalorder 1, %s11
    %p173 = scmp.lt.s32.totalorder %s11, 3
    %p174 = pnand %p172, %p173
    %p175 = pneg %p174
    // Predicated region
    $region33: #{tpu_custom_call.1} parent=5 // pred_check
      _
    $region34: #{tpu_custom_call.1} parent=5 // pred_check_branch
      %177 = sbr.rel (%p174) target = $region36
    $region35: #{tpu_custom_call.1} parent=5 // pred_region
      %s178 = ssub.s32 %s11, 1
      %p179 = scmp.lt.s32.totalorder %s16, 1
      %s180 = scalar_select %p179, %s16, 1
      %s181 = smul.addr %s180, 195
      %s182 = smul.addr %s181, 8
      %s183 = scalar_lea.vmem %s0, %s182
      %p184 = pneg %p37
      %p185 = pneg %p34
      %p186 = pneg %p58
      %p187 = pneg %p55
      %p188 = pneg %p79
      %p189 = pneg %p76
      %p190 = scmp.lt.s32.totalorder %s16, 1
      %s191 = scalar_select %p190, %s16, 1
      %s192 = smul.addr %s191, 128
      %s193 = smul.addr %s192, 8
      %s194 = scalar_lea.vmem %s3, %s193
      %p195 = pneg %p105
      %p196 = pneg %p102
      %p197 = pneg %p131
      %p198 = pneg %p128
      %p199 = scmp.lt.s32.totalorder %s16, 1
      %s200 = scalar_select %p199, %s16, 1
      %s201 = smul.addr %s200, 128
      %s202 = smul.addr %s201, 8
      %s203 = scalar_lea.vmem %s4, %s202
      %p204 = scmp.lt.s32.totalorder %s16, 1
      %s205 = scalar_select %p204, %s16, 1
      %s206 = smul.addr %s205, 195
      %s207 = smul.addr %s206, 8
      %s208 = scalar_lea.vmem %s0, %s207
      %p209 = scmp.lt.s32.totalorder %s16, 1
      %s210 = scalar_select %p209, %s16, 1
      %s211 = smul.addr %s210, 128
      %s212 = smul.addr %s211, 8
      %s213 = scalar_lea.vmem %s3, %s212
      %p214 = scmp.lt.s32.totalorder %s16, 1
      %s215 = scalar_select %p214, %s16, 1
      %s216 = smul.addr %s215, 128
      %s217 = smul.addr %s216, 8
      %s218 = scalar_lea.vmem %s4, %s217
      %v219 = vld [vmem:[%s208] sm:$0xff]
      %v220 = vld [vmem:[%s208 + $0x8] sm:$0xff]
      %v221 = vld [vmem:[%s208 + $0x18] sm:$0xff]
      %v222 = vld [vmem:[%s208 + $0x20] sm:$0xff]
      %v223 = vld [vmem:[%s208 + $0x30] sm:$0xff]
      %v224 = vld [vmem:[%s208 + $0x38] sm:$0xff]
      %v225 = vld [vmem:[%s208 + $0x48] sm:$0xff]
      %v226 = vld [vmem:[%s208 + $0x50] sm:$0xff]
      %v227 = vld [vmem:[%s208 + $0x60] sm:$0xff]
      %v228 = vld [vmem:[%s208 + $0x68] sm:$0xff]
      %v229 = vld [vmem:[%s208 + $0x78] sm:$0xff]
      %v230 = vld [vmem:[%s208 + $0x80] sm:$0xff]
      %v231 = vld [vmem:[%s208 + $0x90] sm:$0xff]
      %v232 = vld [vmem:[%s208 + $0x98] sm:$0xff]
      %v233 = vld [vmem:[%s208 + $0xa8] sm:$0xff]
      %v234 = vld [vmem:[%s208 + $0xb0] sm:$0xff]
      %v235 = vld [vmem:[%s208 + $0xc0] sm:$0xff]
      %v236 = vld [vmem:[%s208 + $0xc8] sm:$0xff]
      %v237 = vld [vmem:[%s208 + $0xd8] sm:$0xff]
      %v238 = vld [vmem:[%s208 + $0xe0] sm:$0xff]
      %v239 = vld [vmem:[%s208 + $0xf0] sm:$0xff]
      %v240 = vld [vmem:[%s208 + $0xf8] sm:$0xff]
      %v241 = vld [vmem:[%s208 + $0x108] sm:$0xff]
      %v242 = vld [vmem:[%s208 + $0x110] sm:$0xff]
      %v243 = vld [vmem:[%s208 + $0x120] sm:$0xff]
      %v244 = vld [vmem:[%s208 + $0x128] sm:$0xff]
      %v245 = vld [vmem:[%s208 + $0x138] sm:$0xff]
      %v246 = vld [vmem:[%s208 + $0x140] sm:$0xff]
      %v247 = vld [vmem:[%s208 + $0x150] sm:$0xff]
      %v248 = vld [vmem:[%s208 + $0x158] sm:$0xff]
      %v249 = vld [vmem:[%s208 + $0x168] sm:$0xff]
      %v250 = vld [vmem:[%s208 + $0x170] sm:$0xff]
      %v251 = vld [vmem:[%s208 + $0x180] sm:$0xff]
      %v252 = vld [vmem:[%s208 + $0x188] sm:$0xff]
      %v253 = vld [vmem:[%s208 + $0x198] sm:$0xff]
      %v254 = vld [vmem:[%s208 + $0x1a0] sm:$0xff]
      %v255 = vld [vmem:[%s208 + $0x1b0] sm:$0xff]
      %v256 = vld [vmem:[%s208 + $0x1b8] sm:$0xff]
      %v257 = vld [vmem:[%s208 + $0x1c8] sm:$0xff]
      %v258 = vld [vmem:[%s208 + $0x1d0] sm:$0xff]
      %v259 = vld [vmem:[%s208 + $0x1e0] sm:$0xff]
      %v260 = vld [vmem:[%s208 + $0x1e8] sm:$0xff]
      %v261 = vld [vmem:[%s208 + $0x1f8] sm:$0xff]
      %v262 = vld [vmem:[%s208 + $0x200] sm:$0xff]
      %v263 = vld [vmem:[%s208 + $0x210] sm:$0xff]
      %v264 = vld [vmem:[%s208 + $0x218] sm:$0xff]
      %v265 = vld [vmem:[%s208 + $0x228] sm:$0xff]
      %v266 = vld [vmem:[%s208 + $0x230] sm:$0xff]
      %v267 = vld [vmem:[%s208 + $0x240] sm:$0xff]
      %v268 = vld [vmem:[%s208 + $0x248] sm:$0xff]
      %v269 = vld [vmem:[%s208 + $0x258] sm:$0xff]
      %v270 = vld [vmem:[%s208 + $0x260] sm:$0xff]
      %v271 = vld [vmem:[%s208 + $0x270] sm:$0xff]
      %v272 = vld [vmem:[%s208 + $0x278] sm:$0xff]
      %v273 = vld [vmem:[%s208 + $0x288] sm:$0xff]
      %v274 = vld [vmem:[%s208 + $0x290] sm:$0xff]
      %v275 = vld [vmem:[%s208 + $0x2a0] sm:$0xff]
      %v276 = vld [vmem:[%s208 + $0x2a8] sm:$0xff]
      %v277 = vld [vmem:[%s208 + $0x2b8] sm:$0xff]
      %v278 = vld [vmem:[%s208 + $0x2c0] sm:$0xff]
      %v279 = vld [vmem:[%s208 + $0x2d0] sm:$0xff]
      %v280 = vld [vmem:[%s208 + $0x2d8] sm:$0xff]
      %v281 = vld [vmem:[%s208 + $0x2e8] sm:$0xff]
      %v282 = vld [vmem:[%s208 + $0x2f0] sm:$0xff]
      %v283 = vld [vmem:[%s208 + $0x300] sm:$0xff]
      %v284 = vld [vmem:[%s208 + $0x308] sm:$0xff]
      %v285 = vld [vmem:[%s208 + $0x318] sm:$0xff]
      %v286 = vld [vmem:[%s208 + $0x320] sm:$0xff]
      %v287 = vld [vmem:[%s208 + $0x330] sm:$0xff]
      %v288 = vld [vmem:[%s208 + $0x338] sm:$0xff]
      %v289 = vld [vmem:[%s208 + $0x348] sm:$0xff]
      %v290 = vld [vmem:[%s208 + $0x350] sm:$0xff]
      %v291 = vld [vmem:[%s208 + $0x360] sm:$0xff]
      %v292 = vld [vmem:[%s208 + $0x368] sm:$0xff]
      %v293 = vld [vmem:[%s208 + $0x378] sm:$0xff]
      %v294 = vld [vmem:[%s208 + $0x380] sm:$0xff]
      %v295 = vld [vmem:[%s208 + $0x390] sm:$0xff]
      %v296 = vld [vmem:[%s208 + $0x398] sm:$0xff]
      %v297 = vld [vmem:[%s208 + $0x3a8] sm:$0xff]
      %v298 = vld [vmem:[%s208 + $0x3b0] sm:$0xff]
      %v299 = vld [vmem:[%s208 + $0x3c0] sm:$0xff]
      %v300 = vld [vmem:[%s208 + $0x3c8] sm:$0xff]
      %v301 = vld [vmem:[%s208 + $0x3d8] sm:$0xff]
      %v302 = vld [vmem:[%s208 + $0x3e0] sm:$0xff]
      %v303 = vld [vmem:[%s208 + $0x3f0] sm:$0xff]
      %v304 = vld [vmem:[%s208 + $0x3f8] sm:$0xff]
      %v305 = vld [vmem:[%s208 + $0x408] sm:$0xff]
      %v306 = vld [vmem:[%s208 + $0x410] sm:$0xff]
      %v307 = vld [vmem:[%s208 + $0x420] sm:$0xff]
      %v308 = vld [vmem:[%s208 + $0x428] sm:$0xff]
      %v309 = vld [vmem:[%s208 + $0x438] sm:$0xff]
      %v310 = vld [vmem:[%s208 + $0x440] sm:$0xff]
      %v311 = vld [vmem:[%s208 + $0x450] sm:$0xff]
      %v312 = vld [vmem:[%s208 + $0x458] sm:$0xff]
      %v313 = vld [vmem:[%s208 + $0x468] sm:$0xff]
      %v314 = vld [vmem:[%s208 + $0x470] sm:$0xff]
      %v315 = vld [vmem:[%s208 + $0x480] sm:$0xff]
      %v316 = vld [vmem:[%s208 + $0x488] sm:$0xff]
      %v317 = vld [vmem:[%s208 + $0x498] sm:$0xff]
      %v318 = vld [vmem:[%s208 + $0x4a0] sm:$0xff]
      %v319 = vld [vmem:[%s208 + $0x4b0] sm:$0xff]
      %v320 = vld [vmem:[%s208 + $0x4b8] sm:$0xff]
      %v321 = vld [vmem:[%s208 + $0x4c8] sm:$0xff]
      %v322 = vld [vmem:[%s208 + $0x4d0] sm:$0xff]
      %v323 = vld [vmem:[%s208 + $0x4e0] sm:$0xff]
      %v324 = vld [vmem:[%s208 + $0x4e8] sm:$0xff]
      %v325 = vld [vmem:[%s208 + $0x4f8] sm:$0xff]
      %v326 = vld [vmem:[%s208 + $0x500] sm:$0xff]
      %v327 = vld [vmem:[%s208 + $0x510] sm:$0xff]
      %v328 = vld [vmem:[%s208 + $0x518] sm:$0xff]
      %v329 = vld [vmem:[%s208 + $0x528] sm:$0xff]
      %v330 = vld [vmem:[%s208 + $0x530] sm:$0xff]
      %v331 = vld [vmem:[%s208 + $0x540] sm:$0xff]
      %v332 = vld [vmem:[%s208 + $0x548] sm:$0xff]
      %v333 = vld [vmem:[%s208 + $0x558] sm:$0xff]
      %v334 = vld [vmem:[%s208 + $0x560] sm:$0xff]
      %v335 = vld [vmem:[%s208 + $0x570] sm:$0xff]
      %v336 = vld [vmem:[%s208 + $0x578] sm:$0xff]
      %v337 = vld [vmem:[%s208 + $0x588] sm:$0xff]
      %v338 = vld [vmem:[%s208 + $0x590] sm:$0xff]
      %v339 = vld [vmem:[%s208 + $0x5a0] sm:$0xff]
      %v340 = vld [vmem:[%s208 + $0x5a8] sm:$0xff]
      %v341 = vld [vmem:[%s208 + $0x5b8] sm:$0xff]
      %v342 = vld [vmem:[%s208 + $0x5c0] sm:$0xff]
      %v343 = vld [vmem:[%s208 + $0x5d0] sm:$0xff]
      %v344 = vld [vmem:[%s208 + $0x5d8] sm:$0xff]
      %v345 = vld [vmem:[%s208 + $0x5e8] sm:$0xff]
      %v346 = vld [vmem:[%s208 + $0x5f0] sm:$0xff]
      %v347 = vld [vmem:[%s208 + $0x600] sm:$0xff]
      %v348 = vld [vmem:[%s208 + $0x608] sm:$0xff]
      %v349 = vld [vmem:[%s1] sm:$0x1]
      %v350 = vld [vmem:[%s1 + $0x4] sm:$0x1]
      %v351 = vld [vmem:[%s1 + $0x8] sm:$0x1]
      %v352 = vld [vmem:[%s1 + $0xc] sm:$0x1]
      %v353 = vld [vmem:[%s1 + $0x10] sm:$0x1]
      %v354 = vld [vmem:[%s1 + $0x14] sm:$0x1]
      %v355 = vld [vmem:[%s1 + $0x18] sm:$0x1]
      %v356 = vld [vmem:[%s1 + $0x1c] sm:$0x1]
      %v357 = vld [vmem:[%s1 + $0x20] sm:$0x1]
      %v358 = vld [vmem:[%s1 + $0x24] sm:$0x1]
      %v359 = vld [vmem:[%s1 + $0x28] sm:$0x1]
      %v360 = vld [vmem:[%s1 + $0x2c] sm:$0x1]
      %v361 = vld [vmem:[%s1 + $0x30] sm:$0x1]
      %v362 = vld [vmem:[%s1 + $0x34] sm:$0x1]
      %v363 = vld [vmem:[%s1 + $0x38] sm:$0x1]
      %v364 = vld [vmem:[%s1 + $0x3c] sm:$0x1]
      %v365 = vld [vmem:[%s1 + $0x40] sm:$0x1]
      %v366 = vld [vmem:[%s1 + $0x44] sm:$0x1]
      %v367 = vld [vmem:[%s1 + $0x48] sm:$0x1]
      %v368 = vld [vmem:[%s1 + $0x4c] sm:$0x1]
      %v369 = vld [vmem:[%s1 + $0x50] sm:$0x1]
      %v370 = vld [vmem:[%s1 + $0x54] sm:$0x1]
      %v371 = vld [vmem:[%s1 + $0x58] sm:$0x1]
      %v372 = vld [vmem:[%s1 + $0x5c] sm:$0x1]
      %v373 = vld [vmem:[%s1 + $0x60] sm:$0x1]
      %v374 = vld [vmem:[%s1 + $0x64] sm:$0x1]
      %v375 = vld [vmem:[%s1 + $0x68] sm:$0x1]
      %v376 = vld [vmem:[%s1 + $0x6c] sm:$0x1]
      %v377 = vld [vmem:[%s1 + $0x70] sm:$0x1]
      %v378 = vld [vmem:[%s1 + $0x74] sm:$0x1]
      %v379 = vld [vmem:[%s1 + $0x78] sm:$0x1]
      %v380 = vld [vmem:[%s1 + $0x7c] sm:$0x1]
      %v381 = vld [vmem:[%s1 + $0x80] sm:$0x1]
      %v382 = vld [vmem:[%s1 + $0x84] sm:$0x1]
      %v383 = vld [vmem:[%s1 + $0x88] sm:$0x1]
      %v384 = vld [vmem:[%s1 + $0x8c] sm:$0x1]
      %v385 = vld [vmem:[%s1 + $0x90] sm:$0x1]
      %v386 = vld [vmem:[%s1 + $0x94] sm:$0x1]
      %v387 = vld [vmem:[%s1 + $0x98] sm:$0x1]
      %v388 = vld [vmem:[%s1 + $0x9c] sm:$0x1]
      %v389 = vld [vmem:[%s1 + $0xa0] sm:$0x1]
      %v390 = vld [vmem:[%s1 + $0xa4] sm:$0x1]
      %v391 = vld [vmem:[%s1 + $0xa8] sm:$0x1]
      %v392 = vld [vmem:[%s1 + $0xac] sm:$0x1]
      %v393 = vld [vmem:[%s1 + $0xb0] sm:$0x1]
      %v394 = vld [vmem:[%s1 + $0xb4] sm:$0x1]
      %v395 = vld [vmem:[%s1 + $0xb8] sm:$0x1]
      %v396 = vld [vmem:[%s1 + $0xbc] sm:$0x1]
      %v397 = vld [vmem:[%s1 + $0xc0] sm:$0x1]
      %v398 = vld [vmem:[%s1 + $0xc4] sm:$0x1]
      %v399 = vld [vmem:[%s1 + $0xc8] sm:$0x1]
      %v400 = vld [vmem:[%s1 + $0xcc] sm:$0x1]
      %v401 = vld [vmem:[%s1 + $0xd0] sm:$0x1]
      %v402 = vld [vmem:[%s1 + $0xd4] sm:$0x1]
      %v403 = vld [vmem:[%s1 + $0xd8] sm:$0x1]
      %v404 = vld [vmem:[%s1 + $0xdc] sm:$0x1]
      %v405 = vld [vmem:[%s1 + $0xe0] sm:$0x1]
      %v406 = vld [vmem:[%s1 + $0xe4] sm:$0x1]
      %v407 = vld [vmem:[%s1 + $0xe8] sm:$0x1]
      %v408 = vld [vmem:[%s1 + $0xec] sm:$0x1]
      %v409 = vld [vmem:[%s1 + $0xf0] sm:$0x1]
      %v410 = vld [vmem:[%s1 + $0xf4] sm:$0x1]
      %v411 = vld [vmem:[%s1 + $0xf8] sm:$0x1]
      %v412 = vld [vmem:[%s1 + $0xfc] sm:$0x1]
      %v413 = vld [vmem:[%s1 + $0x100] sm:$0x1]
      %s415 = vtos %v349
      %v416 = vstv %s415
      %s419 = vtos %v350
      %v420 = vstv %s419
      %s423 = vtos %v351
      %v424 = vstv %s423
      %s427 = vtos %v352
      %v428 = vstv %s427
      %s431 = vtos %v353
      %v432 = vstv %s431
      %s435 = vtos %v354
      %v436 = vstv %s435
      %s439 = vtos %v355
      %v440 = vstv %s439
      %s443 = vtos %v356
      %v444 = vstv %s443
      %s447 = vtos %v357
      %v448 = vstv %s447
      %s451 = vtos %v358
      %v452 = vstv %s451
      %s455 = vtos %v359
      %v456 = vstv %s455
      %s459 = vtos %v360
      %v460 = vstv %s459
      %s463 = vtos %v361
      %v464 = vstv %s463
      %s467 = vtos %v362
      %v468 = vstv %s467
      %s471 = vtos %v363
      %v472 = vstv %s471
      %s475 = vtos %v364
      %v476 = vstv %s475
      %s479 = vtos %v365
      %v480 = vstv %s479
      %s483 = vtos %v366
      %v484 = vstv %s483
      %s487 = vtos %v367
      %v488 = vstv %s487
      %s491 = vtos %v368
      %v492 = vstv %s491
      %s495 = vtos %v369
      %v496 = vstv %s495
      %s499 = vtos %v370
      %v500 = vstv %s499
      %s503 = vtos %v371
      %v504 = vstv %s503
      %s507 = vtos %v372
      %v508 = vstv %s507
      %s511 = vtos %v373
      %v512 = vstv %s511
      %s515 = vtos %v374
      %v516 = vstv %s515
      %s519 = vtos %v375
      %v520 = vstv %s519
      %s523 = vtos %v376
      %v524 = vstv %s523
      %s527 = vtos %v377
      %v528 = vstv %s527
      %s531 = vtos %v378
      %v532 = vstv %s531
      %s535 = vtos %v379
      %v536 = vstv %s535
      %s539 = vtos %v380
      %v540 = vstv %s539
      %s543 = vtos %v381
      %v544 = vstv %s543
      %s547 = vtos %v382
      %v548 = vstv %s547
      %s551 = vtos %v383
      %v552 = vstv %s551
      %s555 = vtos %v384
      %v556 = vstv %s555
      %s559 = vtos %v385
      %v560 = vstv %s559
      %s563 = vtos %v386
      %v564 = vstv %s563
      %s567 = vtos %v387
      %v568 = vstv %s567
      %s571 = vtos %v388
      %v572 = vstv %s571
      %s575 = vtos %v389
      %v576 = vstv %s575
      %s579 = vtos %v390
      %v580 = vstv %s579
      %s583 = vtos %v391
      %v584 = vstv %s583
      %s587 = vtos %v392
      %v588 = vstv %s587
      %s591 = vtos %v393
      %v592 = vstv %s591
      %s595 = vtos %v394
      %v596 = vstv %s595
      %s599 = vtos %v395
      %v600 = vstv %s599
      %s603 = vtos %v396
      %v604 = vstv %s603
      %s607 = vtos %v397
      %v608 = vstv %s607
      %s611 = vtos %v398
      %v612 = vstv %s611
      %s615 = vtos %v399
      %v616 = vstv %s615
      %s619 = vtos %v400
      %v620 = vstv %s619
      %s623 = vtos %v401
      %v624 = vstv %s623
      %s627 = vtos %v402
      %v628 = vstv %s627
      %s631 = vtos %v403
      %v632 = vstv %s631
      %s635 = vtos %v404
      %v636 = vstv %s635
      %s639 = vtos %v405
      %v640 = vstv %s639
      %s643 = vtos %v406
      %v644 = vstv %s643
      %s647 = vtos %v407
      %v648 = vstv %s647
      %s651 = vtos %v408
      %v652 = vstv %s651
      %s655 = vtos %v409
      %v656 = vstv %s655
      %s659 = vtos %v410
      %v660 = vstv %s659
      %s663 = vtos %v411
      %v664 = vstv %s663
      %s667 = vtos %v412
      %v668 = vstv %s667
      %s671 = vtos %v413
      %v672 = vstv %s671
      %v674 = vmul.f32 %v219, %v416
      %v675 = vmul.f32 %v220, %v416
      %v676 = vmul.f32 %v221, %v420
      %v677 = vmul.f32 %v222, %v420
      %v678 = vmul.f32 %v223, %v424
      %v679 = vmul.f32 %v224, %v424
      %v680 = vmul.f32 %v225, %v428
      %v681 = vmul.f32 %v226, %v428
      %v682 = vmul.f32 %v227, %v432
      %v683 = vmul.f32 %v228, %v432
      %v684 = vmul.f32 %v229, %v436
      %v685 = vmul.f32 %v230, %v436
      %v686 = vmul.f32 %v231, %v440
      %v687 = vmul.f32 %v232, %v440
      %v688 = vmul.f32 %v233, %v444
      %v689 = vmul.f32 %v234, %v444
      %v690 = vmul.f32 %v235, %v448
      %v691 = vmul.f32 %v236, %v448
      %v692 = vmul.f32 %v237, %v452
      %v693 = vmul.f32 %v238, %v452
      %v694 = vmul.f32 %v239, %v456
      %v695 = vmul.f32 %v240, %v456
      %v696 = vmul.f32 %v241, %v460
      %v697 = vmul.f32 %v242, %v460
      %v698 = vmul.f32 %v243, %v464
      %v699 = vmul.f32 %v244, %v464
      %v700 = vmul.f32 %v245, %v468
      %v701 = vmul.f32 %v246, %v468
      %v702 = vmul.f32 %v247, %v472
      %v703 = vmul.f32 %v248, %v472
      %v704 = vmul.f32 %v249, %v476
      %v705 = vmul.f32 %v250, %v476
      %v706 = vmul.f32 %v251, %v480
      %v707 = vmul.f32 %v252, %v480
      %v708 = vmul.f32 %v253, %v484
      %v709 = vmul.f32 %v254, %v484
      %v710 = vmul.f32 %v255, %v488
      %v711 = vmul.f32 %v256, %v488
      %v712 = vmul.f32 %v257, %v492
      %v713 = vmul.f32 %v258, %v492
      %v714 = vmul.f32 %v259, %v496
      %v715 = vmul.f32 %v260, %v496
      %v716 = vmul.f32 %v261, %v500
      %v717 = vmul.f32 %v262, %v500
      %v718 = vmul.f32 %v263, %v504
      %v719 = vmul.f32 %v264, %v504
      %v720 = vmul.f32 %v265, %v508
      %v721 = vmul.f32 %v266, %v508
      %v722 = vmul.f32 %v267, %v512
      %v723 = vmul.f32 %v268, %v512
      %v724 = vmul.f32 %v269, %v516
      %v725 = vmul.f32 %v270, %v516
      %v726 = vmul.f32 %v271, %v520
      %v727 = vmul.f32 %v272, %v520
      %v728 = vmul.f32 %v273, %v524
      %v729 = vmul.f32 %v274, %v524
      %v730 = vmul.f32 %v275, %v528
      %v731 = vmul.f32 %v276, %v528
      %v732 = vmul.f32 %v277, %v532
      %v733 = vmul.f32 %v278, %v532
      %v734 = vmul.f32 %v279, %v536
      %v735 = vmul.f32 %v280, %v536
      %v736 = vmul.f32 %v281, %v540
      %v737 = vmul.f32 %v282, %v540
      %v738 = vmul.f32 %v283, %v544
      %v739 = vmul.f32 %v284, %v544
      %v740 = vmul.f32 %v285, %v548
      %v741 = vmul.f32 %v286, %v548
      %v742 = vmul.f32 %v287, %v552
      %v743 = vmul.f32 %v288, %v552
      %v744 = vmul.f32 %v289, %v556
      %v745 = vmul.f32 %v290, %v556
      %v746 = vmul.f32 %v291, %v560
      %v747 = vmul.f32 %v292, %v560
      %v748 = vmul.f32 %v293, %v564
      %v749 = vmul.f32 %v294, %v564
      %v750 = vmul.f32 %v295, %v568
      %v751 = vmul.f32 %v296, %v568
      %v752 = vmul.f32 %v297, %v572
      %v753 = vmul.f32 %v298, %v572
      %v754 = vmul.f32 %v299, %v576
      %v755 = vmul.f32 %v300, %v576
      %v756 = vmul.f32 %v301, %v580
      %v757 = vmul.f32 %v302, %v580
      %v758 = vmul.f32 %v303, %v584
      %v759 = vmul.f32 %v304, %v584
      %v760 = vmul.f32 %v305, %v588
      %v761 = vmul.f32 %v306, %v588
      %v762 = vmul.f32 %v307, %v592
      %v763 = vmul.f32 %v308, %v592
      %v764 = vmul.f32 %v309, %v596
      %v765 = vmul.f32 %v310, %v596
      %v766 = vmul.f32 %v311, %v600
      %v767 = vmul.f32 %v312, %v600
      %v768 = vmul.f32 %v313, %v604
      %v769 = vmul.f32 %v314, %v604
      %v770 = vmul.f32 %v315, %v608
      %v771 = vmul.f32 %v316, %v608
      %v772 = vmul.f32 %v317, %v612
      %v773 = vmul.f32 %v318, %v612
      %v774 = vmul.f32 %v319, %v616
      %v775 = vmul.f32 %v320, %v616
      %v776 = vmul.f32 %v321, %v620
      %v777 = vmul.f32 %v322, %v620
      %v778 = vmul.f32 %v323, %v624
      %v779 = vmul.f32 %v324, %v624
      %v780 = vmul.f32 %v325, %v628
      %v781 = vmul.f32 %v326, %v628
      %v782 = vmul.f32 %v327, %v632
      %v783 = vmul.f32 %v328, %v632
      %v784 = vmul.f32 %v329, %v636
      %v785 = vmul.f32 %v330, %v636
      %v786 = vmul.f32 %v331, %v640
      %v787 = vmul.f32 %v332, %v640
      %v788 = vmul.f32 %v333, %v644
      %v789 = vmul.f32 %v334, %v644
      %v790 = vmul.f32 %v335, %v648
      %v791 = vmul.f32 %v336, %v648
      %v792 = vmul.f32 %v337, %v652
      %v793 = vmul.f32 %v338, %v652
      %v794 = vmul.f32 %v339, %v656
      %v795 = vmul.f32 %v340, %v656
      %v796 = vmul.f32 %v341, %v660
      %v797 = vmul.f32 %v342, %v660
      %v798 = vmul.f32 %v343, %v664
      %v799 = vmul.f32 %v344, %v664
      %v800 = vmul.f32 %v345, %v668
      %v801 = vmul.f32 %v346, %v668
      %v802 = vmul.f32 %v347, %v672
      %v803 = vmul.f32 %v348, %v672
      %vm804 = vcmask 130048
      %v805 = vsel %vm804, %v674, 0.0
      %v806 = vsel %vm804, %v676, 0.0
      %v807 = vadd.f32 %v805, %v806
      %v808 = vsel %vm804, %v678, 0.0
      %v809 = vadd.f32 %v807, %v808
      %v810 = vsel %vm804, %v680, 0.0
      %v811 = vadd.f32 %v809, %v810
      %v812 = vsel %vm804, %v682, 0.0
      %v813 = vadd.f32 %v811, %v812
      %v814 = vsel %vm804, %v684, 0.0
      %v815 = vadd.f32 %v813, %v814
      %v816 = vsel %vm804, %v686, 0.0
      %v817 = vadd.f32 %v815, %v816
      %v818 = vsel %vm804, %v688, 0.0
      %v819 = vadd.f32 %v817, %v818
      %v820 = vsel %vm804, %v690, 0.0
      %v821 = vadd.f32 %v819, %v820
      %v822 = vsel %vm804, %v692, 0.0
      %v823 = vadd.f32 %v821, %v822
      %v824 = vsel %vm804, %v694, 0.0
      %v825 = vadd.f32 %v823, %v824
      %v826 = vsel %vm804, %v696, 0.0
      %v827 = vadd.f32 %v825, %v826
      %v828 = vsel %vm804, %v698, 0.0
      %v829 = vadd.f32 %v827, %v828
      %v830 = vsel %vm804, %v700, 0.0
      %v831 = vadd.f32 %v829, %v830
      %v832 = vsel %vm804, %v702, 0.0
      %v833 = vadd.f32 %v831, %v832
      %v834 = vsel %vm804, %v704, 0.0
      %v835 = vadd.f32 %v833, %v834
      %v836 = vsel %vm804, %v706, 0.0
      %v837 = vadd.f32 %v835, %v836
      %v838 = vsel %vm804, %v708, 0.0
      %v839 = vadd.f32 %v837, %v838
      %v840 = vsel %vm804, %v710, 0.0
      %v841 = vadd.f32 %v839, %v840
      %v842 = vsel %vm804, %v712, 0.0
      %v843 = vadd.f32 %v841, %v842
      %v844 = vsel %vm804, %v714, 0.0
      %v845 = vadd.f32 %v843, %v844
      %v846 = vsel %vm804, %v716, 0.0
      %v847 = vadd.f32 %v845, %v846
      %v848 = vsel %vm804, %v718, 0.0
      %v849 = vadd.f32 %v847, %v848
      %v850 = vsel %vm804, %v720, 0.0
      %v851 = vadd.f32 %v849, %v850
      %v852 = vsel %vm804, %v722, 0.0
      %v853 = vadd.f32 %v851, %v852
      %v854 = vsel %vm804, %v724, 0.0
      %v855 = vadd.f32 %v853, %v854
      %v856 = vsel %vm804, %v726, 0.0
      %v857 = vadd.f32 %v855, %v856
      %v858 = vsel %vm804, %v728, 0.0
      %v859 = vadd.f32 %v857, %v858
      %v860 = vsel %vm804, %v730, 0.0
      %v861 = vadd.f32 %v859, %v860
      %v862 = vsel %vm804, %v732, 0.0
      %v863 = vadd.f32 %v861, %v862
      %v864 = vsel %vm804, %v734, 0.0
      %v865 = vadd.f32 %v863, %v864
      %v866 = vsel %vm804, %v736, 0.0
      %v867 = vadd.f32 %v865, %v866
      %v868 = vsel %vm804, %v738, 0.0
      %v869 = vadd.f32 %v867, %v868
      %v870 = vsel %vm804, %v740, 0.0
      %v871 = vadd.f32 %v869, %v870
      %v872 = vsel %vm804, %v742, 0.0
      %v873 = vadd.f32 %v871, %v872
      %v874 = vsel %vm804, %v744, 0.0
      %v875 = vadd.f32 %v873, %v874
      %v876 = vsel %vm804, %v746, 0.0
      %v877 = vadd.f32 %v875, %v876
      %v878 = vsel %vm804, %v748, 0.0
      %v879 = vadd.f32 %v877, %v878
      %v880 = vsel %vm804, %v750, 0.0
      %v881 = vadd.f32 %v879, %v880
      %v882 = vsel %vm804, %v752, 0.0
      %v883 = vadd.f32 %v881, %v882
      %v884 = vsel %vm804, %v754, 0.0
      %v885 = vadd.f32 %v883, %v884
      %v886 = vsel %vm804, %v756, 0.0
      %v887 = vadd.f32 %v885, %v886
      %v888 = vsel %vm804, %v758, 0.0
      %v889 = vadd.f32 %v887, %v888
      %v890 = vsel %vm804, %v760, 0.0
      %v891 = vadd.f32 %v889, %v890
      %v892 = vsel %vm804, %v762, 0.0
      %v893 = vadd.f32 %v891, %v892
      %v894 = vsel %vm804, %v764, 0.0
      %v895 = vadd.f32 %v893, %v894
      %v896 = vsel %vm804, %v766, 0.0
      %v897 = vadd.f32 %v895, %v896
      %v898 = vsel %vm804, %v768, 0.0
      %v899 = vadd.f32 %v897, %v898
      %v900 = vsel %vm804, %v770, 0.0
      %v901 = vadd.f32 %v899, %v900
      %v902 = vsel %vm804, %v772, 0.0
      %v903 = vadd.f32 %v901, %v902
      %v904 = vsel %vm804, %v774, 0.0
      %v905 = vadd.f32 %v903, %v904
      %v906 = vsel %vm804, %v776, 0.0
      %v907 = vadd.f32 %v905, %v906
      %v908 = vsel %vm804, %v778, 0.0
      %v909 = vadd.f32 %v907, %v908
      %v910 = vsel %vm804, %v780, 0.0
      %v911 = vadd.f32 %v909, %v910
      %v912 = vsel %vm804, %v782, 0.0
      %v913 = vadd.f32 %v911, %v912
      %v914 = vsel %vm804, %v784, 0.0
      %v915 = vadd.f32 %v913, %v914
      %v916 = vsel %vm804, %v786, 0.0
      %v917 = vadd.f32 %v915, %v916
      %v918 = vsel %vm804, %v788, 0.0
      %v919 = vadd.f32 %v917, %v918
      %v920 = vsel %vm804, %v790, 0.0
      %v921 = vadd.f32 %v919, %v920
      %v922 = vsel %vm804, %v792, 0.0
      %v923 = vadd.f32 %v921, %v922
      %v924 = vsel %vm804, %v794, 0.0
      %v925 = vadd.f32 %v923, %v924
      %v926 = vsel %vm804, %v796, 0.0
      %v927 = vadd.f32 %v925, %v926
      %v928 = vsel %vm804, %v798, 0.0
      %v929 = vadd.f32 %v927, %v928
      %v930 = vsel %vm804, %v800, 0.0
      %v931 = vadd.f32 %v929, %v930
      %v932 = vsel %vm804, %v802, 0.0
      %v933 = vadd.f32 %v931, %v932
      %v934 = vsel %vm804, %v675, 0.0
      %v935 = vsel %vm804, %v677, 0.0
      %v936 = vadd.f32 %v934, %v935
      %v937 = vsel %vm804, %v679, 0.0
      %v938 = vadd.f32 %v936, %v937
      %v939 = vsel %vm804, %v681, 0.0
      %v940 = vadd.f32 %v938, %v939
      %v941 = vsel %vm804, %v683, 0.0
      %v942 = vadd.f32 %v940, %v941
      %v943 = vsel %vm804, %v685, 0.0
      %v944 = vadd.f32 %v942, %v943
      %v945 = vsel %vm804, %v687, 0.0
      %v946 = vadd.f32 %v944, %v945
      %v947 = vsel %vm804, %v689, 0.0
      %v948 = vadd.f32 %v946, %v947
      %v949 = vsel %vm804, %v691, 0.0
      %v950 = vadd.f32 %v948, %v949
      %v951 = vsel %vm804, %v693, 0.0
      %v952 = vadd.f32 %v950, %v951
      %v953 = vsel %vm804, %v695, 0.0
      %v954 = vadd.f32 %v952, %v953
      %v955 = vsel %vm804, %v697, 0.0
      %v956 = vadd.f32 %v954, %v955
      %v957 = vsel %vm804, %v699, 0.0
      %v958 = vadd.f32 %v956, %v957
      %v959 = vsel %vm804, %v701, 0.0
      %v960 = vadd.f32 %v958, %v959
      %v961 = vsel %vm804, %v703, 0.0
      %v962 = vadd.f32 %v960, %v961
      %v963 = vsel %vm804, %v705, 0.0
      %v964 = vadd.f32 %v962, %v963
      %v965 = vsel %vm804, %v707, 0.0
      %v966 = vadd.f32 %v964, %v965
      %v967 = vsel %vm804, %v709, 0.0
      %v968 = vadd.f32 %v966, %v967
      %v969 = vsel %vm804, %v711, 0.0
      %v970 = vadd.f32 %v968, %v969
      %v971 = vsel %vm804, %v713, 0.0
      %v972 = vadd.f32 %v970, %v971
      %v973 = vsel %vm804, %v715, 0.0
      %v974 = vadd.f32 %v972, %v973
      %v975 = vsel %vm804, %v717, 0.0
      %v976 = vadd.f32 %v974, %v975
      %v977 = vsel %vm804, %v719, 0.0
      %v978 = vadd.f32 %v976, %v977
      %v979 = vsel %vm804, %v721, 0.0
      %v980 = vadd.f32 %v978, %v979
      %v981 = vsel %vm804, %v723, 0.0
      %v982 = vadd.f32 %v980, %v981
      %v983 = vsel %vm804, %v725, 0.0
      %v984 = vadd.f32 %v982, %v983
      %v985 = vsel %vm804, %v727, 0.0
      %v986 = vadd.f32 %v984, %v985
      %v987 = vsel %vm804, %v729, 0.0
      %v988 = vadd.f32 %v986, %v987
      %v989 = vsel %vm804, %v731, 0.0
      %v990 = vadd.f32 %v988, %v989
      %v991 = vsel %vm804, %v733, 0.0
      %v992 = vadd.f32 %v990, %v991
      %v993 = vsel %vm804, %v735, 0.0
      %v994 = vadd.f32 %v992, %v993
      %v995 = vsel %vm804, %v737, 0.0
      %v996 = vadd.f32 %v994, %v995
      %v997 = vsel %vm804, %v739, 0.0
      %v998 = vadd.f32 %v996, %v997
      %v999 = vsel %vm804, %v741, 0.0
      %v1000 = vadd.f32 %v998, %v999
      %v1001 = vsel %vm804, %v743, 0.0
      %v1002 = vadd.f32 %v1000, %v1001
      %v1003 = vsel %vm804, %v745, 0.0
      %v1004 = vadd.f32 %v1002, %v1003
      %v1005 = vsel %vm804, %v747, 0.0
      %v1006 = vadd.f32 %v1004, %v1005
      %v1007 = vsel %vm804, %v749, 0.0
      %v1008 = vadd.f32 %v1006, %v1007
      %v1009 = vsel %vm804, %v751, 0.0
      %v1010 = vadd.f32 %v1008, %v1009
      %v1011 = vsel %vm804, %v753, 0.0
      %v1012 = vadd.f32 %v1010, %v1011
      %v1013 = vsel %vm804, %v755, 0.0
      %v1014 = vadd.f32 %v1012, %v1013
      %v1015 = vsel %vm804, %v757, 0.0
      %v1016 = vadd.f32 %v1014, %v1015
      %v1017 = vsel %vm804, %v759, 0.0
      %v1018 = vadd.f32 %v1016, %v1017
      %v1019 = vsel %vm804, %v761, 0.0
      %v1020 = vadd.f32 %v1018, %v1019
      %v1021 = vsel %vm804, %v763, 0.0
      %v1022 = vadd.f32 %v1020, %v1021
      %v1023 = vsel %vm804, %v765, 0.0
      %v1024 = vadd.f32 %v1022, %v1023
      %v1025 = vsel %vm804, %v767, 0.0
      %v1026 = vadd.f32 %v1024, %v1025
      %v1027 = vsel %vm804, %v769, 0.0
      %v1028 = vadd.f32 %v1026, %v1027
      %v1029 = vsel %vm804, %v771, 0.0
      %v1030 = vadd.f32 %v1028, %v1029
      %v1031 = vsel %vm804, %v773, 0.0
      %v1032 = vadd.f32 %v1030, %v1031
      %v1033 = vsel %vm804, %v775, 0.0
      %v1034 = vadd.f32 %v1032, %v1033
      %v1035 = vsel %vm804, %v777, 0.0
      %v1036 = vadd.f32 %v1034, %v1035
      %v1037 = vsel %vm804, %v779, 0.0
      %v1038 = vadd.f32 %v1036, %v1037
      %v1039 = vsel %vm804, %v781, 0.0
      %v1040 = vadd.f32 %v1038, %v1039
      %v1041 = vsel %vm804, %v783, 0.0
      %v1042 = vadd.f32 %v1040, %v1041
      %v1043 = vsel %vm804, %v785, 0.0
      %v1044 = vadd.f32 %v1042, %v1043
      %v1045 = vsel %vm804, %v787, 0.0
      %v1046 = vadd.f32 %v1044, %v1045
      %v1047 = vsel %vm804, %v789, 0.0
      %v1048 = vadd.f32 %v1046, %v1047
      %v1049 = vsel %vm804, %v791, 0.0
      %v1050 = vadd.f32 %v1048, %v1049
      %v1051 = vsel %vm804, %v793, 0.0
      %v1052 = vadd.f32 %v1050, %v1051
      %v1053 = vsel %vm804, %v795, 0.0
      %v1054 = vadd.f32 %v1052, %v1053
      %v1055 = vsel %vm804, %v797, 0.0
      %v1056 = vadd.f32 %v1054, %v1055
      %v1057 = vsel %vm804, %v799, 0.0
      %v1058 = vadd.f32 %v1056, %v1057
      %v1059 = vsel %vm804, %v801, 0.0
      %v1060 = vadd.f32 %v1058, %v1059
      %v1061 = vsel %vm804, %v803, 0.0
      %v1062 = vadd.f32 %v1060, %v1061
      %v1063 = vadd.f32 %v933, 0.0
      %v1064 = vadd.f32 %v1062, 0.0
      %1065 = vrot.lane.b32.xlu0 %v349, 127
      %v1066 = vpop.permute.xlu0 %1065
      %1067 = vrot.lane.b32.xlu0 %v350, 127
      %v1068 = vpop.permute.xlu0 %1067
      %1069 = vrot.lane.b32.xlu0 %v351, 127
      %v1070 = vpop.permute.xlu0 %1069
      %1071 = vrot.lane.b32.xlu0 %v352, 127
      %v1072 = vpop.permute.xlu0 %1071
      %1073 = vrot.lane.b32.xlu0 %v353, 127
      %v1074 = vpop.permute.xlu0 %1073
      %1075 = vrot.lane.b32.xlu0 %v354, 127
      %v1076 = vpop.permute.xlu0 %1075
      %1077 = vrot.lane.b32.xlu0 %v355, 127
      %v1078 = vpop.permute.xlu0 %1077
      %1079 = vrot.lane.b32.xlu0 %v356, 127
      %v1080 = vpop.permute.xlu0 %1079
      %1081 = vrot.lane.b32.xlu0 %v357, 127
      %v1082 = vpop.permute.xlu0 %1081
      %1083 = vrot.lane.b32.xlu0 %v358, 127
      %v1084 = vpop.permute.xlu0 %1083
      %1085 = vrot.lane.b32.xlu0 %v359, 127
      %v1086 = vpop.permute.xlu0 %1085
      %1087 = vrot.lane.b32.xlu0 %v360, 127
      %v1088 = vpop.permute.xlu0 %1087
      %1089 = vrot.lane.b32.xlu0 %v361, 127
      %v1090 = vpop.permute.xlu0 %1089
      %1091 = vrot.lane.b32.xlu0 %v362, 127
      %v1092 = vpop.permute.xlu0 %1091
      %1093 = vrot.lane.b32.xlu0 %v363, 127
      %v1094 = vpop.permute.xlu0 %1093
      %1095 = vrot.lane.b32.xlu0 %v364, 127
      %v1096 = vpop.permute.xlu0 %1095
      %1097 = vrot.lane.b32.xlu0 %v365, 127
      %v1098 = vpop.permute.xlu0 %1097
      %1099 = vrot.lane.b32.xlu0 %v366, 127
      %v1100 = vpop.permute.xlu0 %1099
      %1101 = vrot.lane.b32.xlu0 %v367, 127
      %v1102 = vpop.permute.xlu0 %1101
      %1103 = vrot.lane.b32.xlu0 %v368, 127
      %v1104 = vpop.permute.xlu0 %1103
      %1105 = vrot.lane.b32.xlu0 %v369, 127
      %v1106 = vpop.permute.xlu0 %1105
      %1107 = vrot.lane.b32.xlu0 %v370, 127
      %v1108 = vpop.permute.xlu0 %1107
      %1109 = vrot.lane.b32.xlu0 %v371, 127
      %v1110 = vpop.permute.xlu0 %1109
      %1111 = vrot.lane.b32.xlu0 %v372, 127
      %v1112 = vpop.permute.xlu0 %1111
      %1113 = vrot.lane.b32.xlu0 %v373, 127
      %v1114 = vpop.permute.xlu0 %1113
      %1115 = vrot.lane.b32.xlu0 %v374, 127
      %v1116 = vpop.permute.xlu0 %1115
      %1117 = vrot.lane.b32.xlu0 %v375, 127
      %v1118 = vpop.permute.xlu0 %1117
      %1119 = vrot.lane.b32.xlu0 %v376, 127
      %v1120 = vpop.permute.xlu0 %1119
      %1121 = vrot.lane.b32.xlu0 %v377, 127
      %v1122 = vpop.permute.xlu0 %1121
      %1123 = vrot.lane.b32.xlu0 %v378, 127
      %v1124 = vpop.permute.xlu0 %1123
      %1125 = vrot.lane.b32.xlu0 %v379, 127
      %v1126 = vpop.permute.xlu0 %1125
      %1127 = vrot.lane.b32.xlu0 %v380, 127
      %v1128 = vpop.permute.xlu0 %1127
      %1129 = vrot.lane.b32.xlu0 %v381, 127
      %v1130 = vpop.permute.xlu0 %1129
      %1131 = vrot.lane.b32.xlu0 %v382, 127
      %v1132 = vpop.permute.xlu0 %1131
      %1133 = vrot.lane.b32.xlu0 %v383, 127
      %v1134 = vpop.permute.xlu0 %1133
      %1135 = vrot.lane.b32.xlu0 %v384, 127
      %v1136 = vpop.permute.xlu0 %1135
      %1137 = vrot.lane.b32.xlu0 %v385, 127
      %v1138 = vpop.permute.xlu0 %1137
      %1139 = vrot.lane.b32.xlu0 %v386, 127
      %v1140 = vpop.permute.xlu0 %1139
      %1141 = vrot.lane.b32.xlu0 %v387, 127
      %v1142 = vpop.permute.xlu0 %1141
      %1143 = vrot.lane.b32.xlu0 %v388, 127
      %v1144 = vpop.permute.xlu0 %1143
      %1145 = vrot.lane.b32.xlu0 %v389, 127
      %v1146 = vpop.permute.xlu0 %1145
      %1147 = vrot.lane.b32.xlu0 %v390, 127
      %v1148 = vpop.permute.xlu0 %1147
      %1149 = vrot.lane.b32.xlu0 %v391, 127
      %v1150 = vpop.permute.xlu0 %1149
      %1151 = vrot.lane.b32.xlu0 %v392, 127
      %v1152 = vpop.permute.xlu0 %1151
      %1153 = vrot.lane.b32.xlu0 %v393, 127
      %v1154 = vpop.permute.xlu0 %1153
      %1155 = vrot.lane.b32.xlu0 %v394, 127
      %v1156 = vpop.permute.xlu0 %1155
      %1157 = vrot.lane.b32.xlu0 %v395, 127
      %v1158 = vpop.permute.xlu0 %1157
      %1159 = vrot.lane.b32.xlu0 %v396, 127
      %v1160 = vpop.permute.xlu0 %1159
      %1161 = vrot.lane.b32.xlu0 %v397, 127
      %v1162 = vpop.permute.xlu0 %1161
      %1163 = vrot.lane.b32.xlu0 %v398, 127
      %v1164 = vpop.permute.xlu0 %1163
      %1165 = vrot.lane.b32.xlu0 %v399, 127
      %v1166 = vpop.permute.xlu0 %1165
      %1167 = vrot.lane.b32.xlu0 %v400, 127
      %v1168 = vpop.permute.xlu0 %1167
      %1169 = vrot.lane.b32.xlu0 %v401, 127
      %v1170 = vpop.permute.xlu0 %1169
      %1171 = vrot.lane.b32.xlu0 %v402, 127
      %v1172 = vpop.permute.xlu0 %1171
      %1173 = vrot.lane.b32.xlu0 %v403, 127
      %v1174 = vpop.permute.xlu0 %1173
      %1175 = vrot.lane.b32.xlu0 %v404, 127
      %v1176 = vpop.permute.xlu0 %1175
      %1177 = vrot.lane.b32.xlu0 %v405, 127
      %v1178 = vpop.permute.xlu0 %1177
      %1179 = vrot.lane.b32.xlu0 %v406, 127
      %v1180 = vpop.permute.xlu0 %1179
      %1181 = vrot.lane.b32.xlu0 %v407, 127
      %v1182 = vpop.permute.xlu0 %1181
      %1183 = vrot.lane.b32.xlu0 %v408, 127
      %v1184 = vpop.permute.xlu0 %1183
      %1185 = vrot.lane.b32.xlu0 %v409, 127
      %v1186 = vpop.permute.xlu0 %1185
      %1187 = vrot.lane.b32.xlu0 %v410, 127
      %v1188 = vpop.permute.xlu0 %1187
      %1189 = vrot.lane.b32.xlu0 %v411, 127
      %v1190 = vpop.permute.xlu0 %1189
      %1191 = vrot.lane.b32.xlu0 %v412, 127
      %v1192 = vpop.permute.xlu0 %1191
      %1193 = vrot.lane.b32.xlu0 %v413, 127
      %v1194 = vpop.permute.xlu0 %1193
      %s1195 = vtos %v1066
      %v1196 = vstv %s1195
      %s1198 = vtos %v1068
      %v1199 = vstv %s1198
      %s1201 = vtos %v1070
      %v1202 = vstv %s1201
      %s1204 = vtos %v1072
      %v1205 = vstv %s1204
      %s1207 = vtos %v1074
      %v1208 = vstv %s1207
      %s1210 = vtos %v1076
      %v1211 = vstv %s1210
      %s1213 = vtos %v1078
      %v1214 = vstv %s1213
      %s1216 = vtos %v1080
      %v1217 = vstv %s1216
      %s1219 = vtos %v1082
      %v1220 = vstv %s1219
      %s1222 = vtos %v1084
      %v1223 = vstv %s1222
      %s1225 = vtos %v1086
      %v1226 = vstv %s1225
      %s1228 = vtos %v1088
      %v1229 = vstv %s1228
      %s1231 = vtos %v1090
      %v1232 = vstv %s1231
      %s1234 = vtos %v1092
      %v1235 = vstv %s1234
      %s1237 = vtos %v1094
      %v1238 = vstv %s1237
      %s1240 = vtos %v1096
      %v1241 = vstv %s1240
      %s1243 = vtos %v1098
      %v1244 = vstv %s1243
      %s1246 = vtos %v1100
      %v1247 = vstv %s1246
      %s1249 = vtos %v1102
      %v1250 = vstv %s1249
      %s1252 = vtos %v1104
      %v1253 = vstv %s1252
      %s1255 = vtos %v1106
      %v1256 = vstv %s1255
      %s1258 = vtos %v1108
      %v1259 = vstv %s1258
      %s1261 = vtos %v1110
      %v1262 = vstv %s1261
      %s1264 = vtos %v1112
      %v1265 = vstv %s1264
      %s1267 = vtos %v1114
      %v1268 = vstv %s1267
      %s1270 = vtos %v1116
      %v1271 = vstv %s1270
      %s1273 = vtos %v1118
      %v1274 = vstv %s1273
      %s1276 = vtos %v1120
      %v1277 = vstv %s1276
      %s1279 = vtos %v1122
      %v1280 = vstv %s1279
      %s1282 = vtos %v1124
      %v1283 = vstv %s1282
      %s1285 = vtos %v1126
      %v1286 = vstv %s1285
      %s1288 = vtos %v1128
      %v1289 = vstv %s1288
      %s1291 = vtos %v1130
      %v1292 = vstv %s1291
      %s1294 = vtos %v1132
      %v1295 = vstv %s1294
      %s1297 = vtos %v1134
      %v1298 = vstv %s1297
      %s1300 = vtos %v1136
      %v1301 = vstv %s1300
      %s1303 = vtos %v1138
      %v1304 = vstv %s1303
      %s1306 = vtos %v1140
      %v1307 = vstv %s1306
      %s1309 = vtos %v1142
      %v1310 = vstv %s1309
      %s1312 = vtos %v1144
      %v1313 = vstv %s1312
      %s1315 = vtos %v1146
      %v1316 = vstv %s1315
      %s1318 = vtos %v1148
      %v1319 = vstv %s1318
      %s1321 = vtos %v1150
      %v1322 = vstv %s1321
      %s1324 = vtos %v1152
      %v1325 = vstv %s1324
      %s1327 = vtos %v1154
      %v1328 = vstv %s1327
      %s1330 = vtos %v1156
      %v1331 = vstv %s1330
      %s1333 = vtos %v1158
      %v1334 = vstv %s1333
      %s1336 = vtos %v1160
      %v1337 = vstv %s1336
      %s1339 = vtos %v1162
      %v1340 = vstv %s1339
      %s1342 = vtos %v1164
      %v1343 = vstv %s1342
      %s1345 = vtos %v1166
      %v1346 = vstv %s1345
      %s1348 = vtos %v1168
      %v1349 = vstv %s1348
      %s1351 = vtos %v1170
      %v1352 = vstv %s1351
      %s1354 = vtos %v1172
      %v1355 = vstv %s1354
      %s1357 = vtos %v1174
      %v1358 = vstv %s1357
      %s1360 = vtos %v1176
      %v1361 = vstv %s1360
      %s1363 = vtos %v1178
      %v1364 = vstv %s1363
      %s1366 = vtos %v1180
      %v1367 = vstv %s1366
      %s1369 = vtos %v1182
      %v1370 = vstv %s1369
      %s1372 = vtos %v1184
      %v1373 = vstv %s1372
      %s1375 = vtos %v1186
      %v1376 = vstv %s1375
      %s1378 = vtos %v1188
      %v1379 = vstv %s1378
      %s1381 = vtos %v1190
      %v1382 = vstv %s1381
      %s1384 = vtos %v1192
      %v1385 = vstv %s1384
      %s1387 = vtos %v1194
      %v1388 = vstv %s1387
      %v1390 = vmul.f32 %v219, %v1196
      %v1391 = vmul.f32 %v220, %v1196
      %v1392 = vmul.f32 %v221, %v1199
      %v1393 = vmul.f32 %v222, %v1199
      %v1394 = vmul.f32 %v223, %v1202
      %v1395 = vmul.f32 %v224, %v1202
      %v1396 = vmul.f32 %v225, %v1205
      %v1397 = vmul.f32 %v226, %v1205
      %v1398 = vmul.f32 %v227, %v1208
      %v1399 = vmul.f32 %v228, %v1208
      %v1400 = vmul.f32 %v229, %v1211
      %v1401 = vmul.f32 %v230, %v1211
      %v1402 = vmul.f32 %v231, %v1214
      %v1403 = vmul.f32 %v232, %v1214
      %v1404 = vmul.f32 %v233, %v1217
      %v1405 = vmul.f32 %v234, %v1217
      %v1406 = vmul.f32 %v235, %v1220
      %v1407 = vmul.f32 %v236, %v1220
      %v1408 = vmul.f32 %v237, %v1223
      %v1409 = vmul.f32 %v238, %v1223
      %v1410 = vmul.f32 %v239, %v1226
      %v1411 = vmul.f32 %v240, %v1226
      %v1412 = vmul.f32 %v241, %v1229
      %v1413 = vmul.f32 %v242, %v1229
      %v1414 = vmul.f32 %v243, %v1232
      %v1415 = vmul.f32 %v244, %v1232
      %v1416 = vmul.f32 %v245, %v1235
      %v1417 = vmul.f32 %v246, %v1235
      %v1418 = vmul.f32 %v247, %v1238
      %v1419 = vmul.f32 %v248, %v1238
      %v1420 = vmul.f32 %v249, %v1241
      %v1421 = vmul.f32 %v250, %v1241
      %v1422 = vmul.f32 %v251, %v1244
      %v1423 = vmul.f32 %v252, %v1244
      %v1424 = vmul.f32 %v253, %v1247
      %v1425 = vmul.f32 %v254, %v1247
      %v1426 = vmul.f32 %v255, %v1250
      %v1427 = vmul.f32 %v256, %v1250
      %v1428 = vmul.f32 %v257, %v1253
      %v1429 = vmul.f32 %v258, %v1253
      %v1430 = vmul.f32 %v259, %v1256
      %v1431 = vmul.f32 %v260, %v1256
      %v1432 = vmul.f32 %v261, %v1259
      %v1433 = vmul.f32 %v262, %v1259
      %v1434 = vmul.f32 %v263, %v1262
      %v1435 = vmul.f32 %v264, %v1262
      %v1436 = vmul.f32 %v265, %v1265
      %v1437 = vmul.f32 %v266, %v1265
      %v1438 = vmul.f32 %v267, %v1268
      %v1439 = vmul.f32 %v268, %v1268
      %v1440 = vmul.f32 %v269, %v1271
      %v1441 = vmul.f32 %v270, %v1271
      %v1442 = vmul.f32 %v271, %v1274
      %v1443 = vmul.f32 %v272, %v1274
      %v1444 = vmul.f32 %v273, %v1277
      %v1445 = vmul.f32 %v274, %v1277
      %v1446 = vmul.f32 %v275, %v1280
      %v1447 = vmul.f32 %v276, %v1280
      %v1448 = vmul.f32 %v277, %v1283
      %v1449 = vmul.f32 %v278, %v1283
      %v1450 = vmul.f32 %v279, %v1286
      %v1451 = vmul.f32 %v280, %v1286
      %v1452 = vmul.f32 %v281, %v1289
      %v1453 = vmul.f32 %v282, %v1289
      %v1454 = vmul.f32 %v283, %v1292
      %v1455 = vmul.f32 %v284, %v1292
      %v1456 = vmul.f32 %v285, %v1295
      %v1457 = vmul.f32 %v286, %v1295
      %v1458 = vmul.f32 %v287, %v1298
      %v1459 = vmul.f32 %v288, %v1298
      %v1460 = vmul.f32 %v289, %v1301
      %v1461 = vmul.f32 %v290, %v1301
      %v1462 = vmul.f32 %v291, %v1304
      %v1463 = vmul.f32 %v292, %v1304
      %v1464 = vmul.f32 %v293, %v1307
      %v1465 = vmul.f32 %v294, %v1307
      %v1466 = vmul.f32 %v295, %v1310
      %v1467 = vmul.f32 %v296, %v1310
      %v1468 = vmul.f32 %v297, %v1313
      %v1469 = vmul.f32 %v298, %v1313
      %v1470 = vmul.f32 %v299, %v1316
      %v1471 = vmul.f32 %v300, %v1316
      %v1472 = vmul.f32 %v301, %v1319
      %v1473 = vmul.f32 %v302, %v1319
      %v1474 = vmul.f32 %v303, %v1322
      %v1475 = vmul.f32 %v304, %v1322
      %v1476 = vmul.f32 %v305, %v1325
      %v1477 = vmul.f32 %v306, %v1325
      %v1478 = vmul.f32 %v307, %v1328
      %v1479 = vmul.f32 %v308, %v1328
      %v1480 = vmul.f32 %v309, %v1331
      %v1481 = vmul.f32 %v310, %v1331
      %v1482 = vmul.f32 %v311, %v1334
      %v1483 = vmul.f32 %v312, %v1334
      %v1484 = vmul.f32 %v313, %v1337
      %v1485 = vmul.f32 %v314, %v1337
      %v1486 = vmul.f32 %v315, %v1340
      %v1487 = vmul.f32 %v316, %v1340
      %v1488 = vmul.f32 %v317, %v1343
      %v1489 = vmul.f32 %v318, %v1343
      %v1490 = vmul.f32 %v319, %v1346
      %v1491 = vmul.f32 %v320, %v1346
      %v1492 = vmul.f32 %v321, %v1349
      %v1493 = vmul.f32 %v322, %v1349
      %v1494 = vmul.f32 %v323, %v1352
      %v1495 = vmul.f32 %v324, %v1352
      %v1496 = vmul.f32 %v325, %v1355
      %v1497 = vmul.f32 %v326, %v1355
      %v1498 = vmul.f32 %v327, %v1358
      %v1499 = vmul.f32 %v328, %v1358
      %v1500 = vmul.f32 %v329, %v1361
      %v1501 = vmul.f32 %v330, %v1361
      %v1502 = vmul.f32 %v331, %v1364
      %v1503 = vmul.f32 %v332, %v1364
      %v1504 = vmul.f32 %v333, %v1367
      %v1505 = vmul.f32 %v334, %v1367
      %v1506 = vmul.f32 %v335, %v1370
      %v1507 = vmul.f32 %v336, %v1370
      %v1508 = vmul.f32 %v337, %v1373
      %v1509 = vmul.f32 %v338, %v1373
      %v1510 = vmul.f32 %v339, %v1376
      %v1511 = vmul.f32 %v340, %v1376
      %v1512 = vmul.f32 %v341, %v1379
      %v1513 = vmul.f32 %v342, %v1379
      %v1514 = vmul.f32 %v343, %v1382
      %v1515 = vmul.f32 %v344, %v1382
      %v1516 = vmul.f32 %v345, %v1385
      %v1517 = vmul.f32 %v346, %v1385
      %v1518 = vmul.f32 %v347, %v1388
      %v1519 = vmul.f32 %v348, %v1388
      %vm1520 = vcmask 138248
      %v1521 = vsel %vm1520, %v1390, 0.0
      %v1522 = vsel %vm1520, %v1392, 0.0
      %v1523 = vadd.f32 %v1521, %v1522
      %v1524 = vsel %vm1520, %v1394, 0.0
      %v1525 = vadd.f32 %v1523, %v1524
      %v1526 = vsel %vm1520, %v1396, 0.0
      %v1527 = vadd.f32 %v1525, %v1526
      %v1528 = vsel %vm1520, %v1398, 0.0
      %v1529 = vadd.f32 %v1527, %v1528
      %v1530 = vsel %vm1520, %v1400, 0.0
      %v1531 = vadd.f32 %v1529, %v1530
      %v1532 = vsel %vm1520, %v1402, 0.0
      %v1533 = vadd.f32 %v1531, %v1532
      %v1534 = vsel %vm1520, %v1404, 0.0
      %v1535 = vadd.f32 %v1533, %v1534
      %v1536 = vsel %vm1520, %v1406, 0.0
      %v1537 = vadd.f32 %v1535, %v1536
      %v1538 = vsel %vm1520, %v1408, 0.0
      %v1539 = vadd.f32 %v1537, %v1538
      %v1540 = vsel %vm1520, %v1410, 0.0
      %v1541 = vadd.f32 %v1539, %v1540
      %v1542 = vsel %vm1520, %v1412, 0.0
      %v1543 = vadd.f32 %v1541, %v1542
      %v1544 = vsel %vm1520, %v1414, 0.0
      %v1545 = vadd.f32 %v1543, %v1544
      %v1546 = vsel %vm1520, %v1416, 0.0
      %v1547 = vadd.f32 %v1545, %v1546
      %v1548 = vsel %vm1520, %v1418, 0.0
      %v1549 = vadd.f32 %v1547, %v1548
      %v1550 = vsel %vm1520, %v1420, 0.0
      %v1551 = vadd.f32 %v1549, %v1550
      %v1552 = vsel %vm1520, %v1422, 0.0
      %v1553 = vadd.f32 %v1551, %v1552
      %v1554 = vsel %vm1520, %v1424, 0.0
      %v1555 = vadd.f32 %v1553, %v1554
      %v1556 = vsel %vm1520, %v1426, 0.0
      %v1557 = vadd.f32 %v1555, %v1556
      %v1558 = vsel %vm1520, %v1428, 0.0
      %v1559 = vadd.f32 %v1557, %v1558
      %v1560 = vsel %vm1520, %v1430, 0.0
      %v1561 = vadd.f32 %v1559, %v1560
      %v1562 = vsel %vm1520, %v1432, 0.0
      %v1563 = vadd.f32 %v1561, %v1562
      %v1564 = vsel %vm1520, %v1434, 0.0
      %v1565 = vadd.f32 %v1563, %v1564
      %v1566 = vsel %vm1520, %v1436, 0.0
      %v1567 = vadd.f32 %v1565, %v1566
      %v1568 = vsel %vm1520, %v1438, 0.0
      %v1569 = vadd.f32 %v1567, %v1568
      %v1570 = vsel %vm1520, %v1440, 0.0
      %v1571 = vadd.f32 %v1569, %v1570
      %v1572 = vsel %vm1520, %v1442, 0.0
      %v1573 = vadd.f32 %v1571, %v1572
      %v1574 = vsel %vm1520, %v1444, 0.0
      %v1575 = vadd.f32 %v1573, %v1574
      %v1576 = vsel %vm1520, %v1446, 0.0
      %v1577 = vadd.f32 %v1575, %v1576
      %v1578 = vsel %vm1520, %v1448, 0.0
      %v1579 = vadd.f32 %v1577, %v1578
      %v1580 = vsel %vm1520, %v1450, 0.0
      %v1581 = vadd.f32 %v1579, %v1580
      %v1582 = vsel %vm1520, %v1452, 0.0
      %v1583 = vadd.f32 %v1581, %v1582
      %v1584 = vsel %vm1520, %v1454, 0.0
      %v1585 = vadd.f32 %v1583, %v1584
      %v1586 = vsel %vm1520, %v1456, 0.0
      %v1587 = vadd.f32 %v1585, %v1586
      %v1588 = vsel %vm1520, %v1458, 0.0
      %v1589 = vadd.f32 %v1587, %v1588
      %v1590 = vsel %vm1520, %v1460, 0.0
      %v1591 = vadd.f32 %v1589, %v1590
      %v1592 = vsel %vm1520, %v1462, 0.0
      %v1593 = vadd.f32 %v1591, %v1592
      %v1594 = vsel %vm1520, %v1464, 0.0
      %v1595 = vadd.f32 %v1593, %v1594
      %v1596 = vsel %vm1520, %v1466, 0.0
      %v1597 = vadd.f32 %v1595, %v1596
      %v1598 = vsel %vm1520, %v1468, 0.0
      %v1599 = vadd.f32 %v1597, %v1598
      %v1600 = vsel %vm1520, %v1470, 0.0
      %v1601 = vadd.f32 %v1599, %v1600
      %v1602 = vsel %vm1520, %v1472, 0.0
      %v1603 = vadd.f32 %v1601, %v1602
      %v1604 = vsel %vm1520, %v1474, 0.0
      %v1605 = vadd.f32 %v1603, %v1604
      %v1606 = vsel %vm1520, %v1476, 0.0
      %v1607 = vadd.f32 %v1605, %v1606
      %v1608 = vsel %vm1520, %v1478, 0.0
      %v1609 = vadd.f32 %v1607, %v1608
      %v1610 = vsel %vm1520, %v1480, 0.0
      %v1611 = vadd.f32 %v1609, %v1610
      %v1612 = vsel %vm1520, %v1482, 0.0
      %v1613 = vadd.f32 %v1611, %v1612
      %v1614 = vsel %vm1520, %v1484, 0.0
      %v1615 = vadd.f32 %v1613, %v1614
      %v1616 = vsel %vm1520, %v1486, 0.0
      %v1617 = vadd.f32 %v1615, %v1616
      %v1618 = vsel %vm1520, %v1488, 0.0
      %v1619 = vadd.f32 %v1617, %v1618
      %v1620 = vsel %vm1520, %v1490, 0.0
      %v1621 = vadd.f32 %v1619, %v1620
      %v1622 = vsel %vm1520, %v1492, 0.0
      %v1623 = vadd.f32 %v1621, %v1622
      %v1624 = vsel %vm1520, %v1494, 0.0
      %v1625 = vadd.f32 %v1623, %v1624
      %v1626 = vsel %vm1520, %v1496, 0.0
      %v1627 = vadd.f32 %v1625, %v1626
      %v1628 = vsel %vm1520, %v1498, 0.0
      %v1629 = vadd.f32 %v1627, %v1628
      %v1630 = vsel %vm1520, %v1500, 0.0
      %v1631 = vadd.f32 %v1629, %v1630
      %v1632 = vsel %vm1520, %v1502, 0.0
      %v1633 = vadd.f32 %v1631, %v1632
      %v1634 = vsel %vm1520, %v1504, 0.0
      %v1635 = vadd.f32 %v1633, %v1634
      %v1636 = vsel %vm1520, %v1506, 0.0
      %v1637 = vadd.f32 %v1635, %v1636
      %v1638 = vsel %vm1520, %v1508, 0.0
      %v1639 = vadd.f32 %v1637, %v1638
      %v1640 = vsel %vm1520, %v1510, 0.0
      %v1641 = vadd.f32 %v1639, %v1640
      %v1642 = vsel %vm1520, %v1512, 0.0
      %v1643 = vadd.f32 %v1641, %v1642
      %v1644 = vsel %vm1520, %v1514, 0.0
      %v1645 = vadd.f32 %v1643, %v1644
      %v1646 = vsel %vm1520, %v1516, 0.0
      %v1647 = vadd.f32 %v1645, %v1646
      %v1648 = vsel %vm1520, %v1518, 0.0
      %v1649 = vadd.f32 %v1647, %v1648
      %v1650 = vsel %vm1520, %v1391, 0.0
      %v1651 = vsel %vm1520, %v1393, 0.0
      %v1652 = vadd.f32 %v1650, %v1651
      %v1653 = vsel %vm1520, %v1395, 0.0
      %v1654 = vadd.f32 %v1652, %v1653
      %v1655 = vsel %vm1520, %v1397, 0.0
      %v1656 = vadd.f32 %v1654, %v1655
      %v1657 = vsel %vm1520, %v1399, 0.0
      %v1658 = vadd.f32 %v1656, %v1657
      %v1659 = vsel %vm1520, %v1401, 0.0
      %v1660 = vadd.f32 %v1658, %v1659
      %v1661 = vsel %vm1520, %v1403, 0.0
      %v1662 = vadd.f32 %v1660, %v1661
      %v1663 = vsel %vm1520, %v1405, 0.0
      %v1664 = vadd.f32 %v1662, %v1663
      %v1665 = vsel %vm1520, %v1407, 0.0
      %v1666 = vadd.f32 %v1664, %v1665
      %v1667 = vsel %vm1520, %v1409, 0.0
      %v1668 = vadd.f32 %v1666, %v1667
      %v1669 = vsel %vm1520, %v1411, 0.0
      %v1670 = vadd.f32 %v1668, %v1669
      %v1671 = vsel %vm1520, %v1413, 0.0
      %v1672 = vadd.f32 %v1670, %v1671
      %v1673 = vsel %vm1520, %v1415, 0.0
      %v1674 = vadd.f32 %v1672, %v1673
      %v1675 = vsel %vm1520, %v1417, 0.0
      %v1676 = vadd.f32 %v1674, %v1675
      %v1677 = vsel %vm1520, %v1419, 0.0
      %v1678 = vadd.f32 %v1676, %v1677
      %v1679 = vsel %vm1520, %v1421, 0.0
      %v1680 = vadd.f32 %v1678, %v1679
      %v1681 = vsel %vm1520, %v1423, 0.0
      %v1682 = vadd.f32 %v1680, %v1681
      %v1683 = vsel %vm1520, %v1425, 0.0
      %v1684 = vadd.f32 %v1682, %v1683
      %v1685 = vsel %vm1520, %v1427, 0.0
      %v1686 = vadd.f32 %v1684, %v1685
      %v1687 = vsel %vm1520, %v1429, 0.0
      %v1688 = vadd.f32 %v1686, %v1687
      %v1689 = vsel %vm1520, %v1431, 0.0
      %v1690 = vadd.f32 %v1688, %v1689
      %v1691 = vsel %vm1520, %v1433, 0.0
      %v1692 = vadd.f32 %v1690, %v1691
      %v1693 = vsel %vm1520, %v1435, 0.0
      %v1694 = vadd.f32 %v1692, %v1693
      %v1695 = vsel %vm1520, %v1437, 0.0
      %v1696 = vadd.f32 %v1694, %v1695
      %v1697 = vsel %vm1520, %v1439, 0.0
      %v1698 = vadd.f32 %v1696, %v1697
      %v1699 = vsel %vm1520, %v1441, 0.0
      %v1700 = vadd.f32 %v1698, %v1699
      %v1701 = vsel %vm1520, %v1443, 0.0
      %v1702 = vadd.f32 %v1700, %v1701
      %v1703 = vsel %vm1520, %v1445, 0.0
      %v1704 = vadd.f32 %v1702, %v1703
      %v1705 = vsel %vm1520, %v1447, 0.0
      %v1706 = vadd.f32 %v1704, %v1705
      %v1707 = vsel %vm1520, %v1449, 0.0
      %v1708 = vadd.f32 %v1706, %v1707
      %v1709 = vsel %vm1520, %v1451, 0.0
      %v1710 = vadd.f32 %v1708, %v1709
      %v1711 = vsel %vm1520, %v1453, 0.0
      %v1712 = vadd.f32 %v1710, %v1711
      %v1713 = vsel %vm1520, %v1455, 0.0
      %v1714 = vadd.f32 %v1712, %v1713
      %v1715 = vsel %vm1520, %v1457, 0.0
      %v1716 = vadd.f32 %v1714, %v1715
      %v1717 = vsel %vm1520, %v1459, 0.0
      %v1718 = vadd.f32 %v1716, %v1717
      %v1719 = vsel %vm1520, %v1461, 0.0
      %v1720 = vadd.f32 %v1718, %v1719
      %v1721 = vsel %vm1520, %v1463, 0.0
      %v1722 = vadd.f32 %v1720, %v1721
      %v1723 = vsel %vm1520, %v1465, 0.0
      %v1724 = vadd.f32 %v1722, %v1723
      %v1725 = vsel %vm1520, %v1467, 0.0
      %v1726 = vadd.f32 %v1724, %v1725
      %v1727 = vsel %vm1520, %v1469, 0.0
      %v1728 = vadd.f32 %v1726, %v1727
      %v1729 = vsel %vm1520, %v1471, 0.0
      %v1730 = vadd.f32 %v1728, %v1729
      %v1731 = vsel %vm1520, %v1473, 0.0
      %v1732 = vadd.f32 %v1730, %v1731
      %v1733 = vsel %vm1520, %v1475, 0.0
      %v1734 = vadd.f32 %v1732, %v1733
      %v1735 = vsel %vm1520, %v1477, 0.0
      %v1736 = vadd.f32 %v1734, %v1735
      %v1737 = vsel %vm1520, %v1479, 0.0
      %v1738 = vadd.f32 %v1736, %v1737
      %v1739 = vsel %vm1520, %v1481, 0.0
      %v1740 = vadd.f32 %v1738, %v1739
      %v1741 = vsel %vm1520, %v1483, 0.0
      %v1742 = vadd.f32 %v1740, %v1741
      %v1743 = vsel %vm1520, %v1485, 0.0
      %v1744 = vadd.f32 %v1742, %v1743
      %v1745 = vsel %vm1520, %v1487, 0.0
      %v1746 = vadd.f32 %v1744, %v1745
      %v1747 = vsel %vm1520, %v1489, 0.0
      %v1748 = vadd.f32 %v1746, %v1747
      %v1749 = vsel %vm1520, %v1491, 0.0
      %v1750 = vadd.f32 %v1748, %v1749
      %v1751 = vsel %vm1520, %v1493, 0.0
      %v1752 = vadd.f32 %v1750, %v1751
      %v1753 = vsel %vm1520, %v1495, 0.0
      %v1754 = vadd.f32 %v1752, %v1753
      %v1755 = vsel %vm1520, %v1497, 0.0
      %v1756 = vadd.f32 %v1754, %v1755
      %v1757 = vsel %vm1520, %v1499, 0.0
      %v1758 = vadd.f32 %v1756, %v1757
      %v1759 = vsel %vm1520, %v1501, 0.0
      %v1760 = vadd.f32 %v1758, %v1759
      %v1761 = vsel %vm1520, %v1503, 0.0
      %v1762 = vadd.f32 %v1760, %v1761
      %v1763 = vsel %vm1520, %v1505, 0.0
      %v1764 = vadd.f32 %v1762, %v1763
      %v1765 = vsel %vm1520, %v1507, 0.0
      %v1766 = vadd.f32 %v1764, %v1765
      %v1767 = vsel %vm1520, %v1509, 0.0
      %v1768 = vadd.f32 %v1766, %v1767
      %v1769 = vsel %vm1520, %v1511, 0.0
      %v1770 = vadd.f32 %v1768, %v1769
      %v1771 = vsel %vm1520, %v1513, 0.0
      %v1772 = vadd.f32 %v1770, %v1771
      %v1773 = vsel %vm1520, %v1515, 0.0
      %v1774 = vadd.f32 %v1772, %v1773
      %v1775 = vsel %vm1520, %v1517, 0.0
      %v1776 = vadd.f32 %v1774, %v1775
      %v1777 = vsel %vm1520, %v1519, 0.0
      %v1778 = vadd.f32 %v1776, %v1777
      %1781 = vrot.lane.b32.xlu0 %v1649, 127
      %v1782 = vpop.permute.xlu0 %1781
      %1783 = vrot.lane.b32.xlu0 %v1778, 127
      %v1784 = vpop.permute.xlu0 %1783
      %v1787 = vadd.f32 %v1063, %v1782
      %v1788 = vadd.f32 %v1064, %v1784
      %1789 = vrot.lane.b32.xlu0 %v349, 126
      %v1790 = vpop.permute.xlu0 %1789
      %1791 = vrot.lane.b32.xlu0 %v350, 126
      %v1792 = vpop.permute.xlu0 %1791
      %1793 = vrot.lane.b32.xlu0 %v351, 126
      %v1794 = vpop.permute.xlu0 %1793
      %1795 = vrot.lane.b32.xlu0 %v352, 126
      %v1796 = vpop.permute.xlu0 %1795
      %1797 = vrot.lane.b32.xlu0 %v353, 126
      %v1798 = vpop.permute.xlu0 %1797
      %1799 = vrot.lane.b32.xlu0 %v354, 126
      %v1800 = vpop.permute.xlu0 %1799
      %1801 = vrot.lane.b32.xlu0 %v355, 126
      %v1802 = vpop.permute.xlu0 %1801
      %1803 = vrot.lane.b32.xlu0 %v356, 126
      %v1804 = vpop.permute.xlu0 %1803
      %1805 = vrot.lane.b32.xlu0 %v357, 126
      %v1806 = vpop.permute.xlu0 %1805
      %1807 = vrot.lane.b32.xlu0 %v358, 126
      %v1808 = vpop.permute.xlu0 %1807
      %1809 = vrot.lane.b32.xlu0 %v359, 126
      %v1810 = vpop.permute.xlu0 %1809
      %1811 = vrot.lane.b32.xlu0 %v360, 126
      %v1812 = vpop.permute.xlu0 %1811
      %1813 = vrot.lane.b32.xlu0 %v361, 126
      %v1814 = vpop.permute.xlu0 %1813
      %1815 = vrot.lane.b32.xlu0 %v362, 126
      %v1816 = vpop.permute.xlu0 %1815
      %1817 = vrot.lane.b32.xlu0 %v363, 126
      %v1818 = vpop.permute.xlu0 %1817
      %1819 = vrot.lane.b32.xlu0 %v364, 126
      %v1820 = vpop.permute.xlu0 %1819
      %1821 = vrot.lane.b32.xlu0 %v365, 126
      %v1822 = vpop.permute.xlu0 %1821
      %1823 = vrot.lane.b32.xlu0 %v366, 126
      %v1824 = vpop.permute.xlu0 %1823
      %1825 = vrot.lane.b32.xlu0 %v367, 126
      %v1826 = vpop.permute.xlu0 %1825
      %1827 = vrot.lane.b32.xlu0 %v368, 126
      %v1828 = vpop.permute.xlu0 %1827
      %1829 = vrot.lane.b32.xlu0 %v369, 126
      %v1830 = vpop.permute.xlu0 %1829
      %1831 = vrot.lane.b32.xlu0 %v370, 126
      %v1832 = vpop.permute.xlu0 %1831
      %1833 = vrot.lane.b32.xlu0 %v371, 126
      %v1834 = vpop.permute.xlu0 %1833
      %1835 = vrot.lane.b32.xlu0 %v372, 126
      %v1836 = vpop.permute.xlu0 %1835
      %1837 = vrot.lane.b32.xlu0 %v373, 126
      %v1838 = vpop.permute.xlu0 %1837
      %1839 = vrot.lane.b32.xlu0 %v374, 126
      %v1840 = vpop.permute.xlu0 %1839
      %1841 = vrot.lane.b32.xlu0 %v375, 126
      %v1842 = vpop.permute.xlu0 %1841
      %1843 = vrot.lane.b32.xlu0 %v376, 126
      %v1844 = vpop.permute.xlu0 %1843
      %1845 = vrot.lane.b32.xlu0 %v377, 126
      %v1846 = vpop.permute.xlu0 %1845
      %1847 = vrot.lane.b32.xlu0 %v378, 126
      %v1848 = vpop.permute.xlu0 %1847
      %1849 = vrot.lane.b32.xlu0 %v379, 126
      %v1850 = vpop.permute.xlu0 %1849
      %1851 = vrot.lane.b32.xlu0 %v380, 126
      %v1852 = vpop.permute.xlu0 %1851
      %1853 = vrot.lane.b32.xlu0 %v381, 126
      %v1854 = vpop.permute.xlu0 %1853
      %1855 = vrot.lane.b32.xlu0 %v382, 126
      %v1856 = vpop.permute.xlu0 %1855
      %1857 = vrot.lane.b32.xlu0 %v383, 126
      %v1858 = vpop.permute.xlu0 %1857
      %1859 = vrot.lane.b32.xlu0 %v384, 126
      %v1860 = vpop.permute.xlu0 %1859
      %1861 = vrot.lane.b32.xlu0 %v385, 126
      %v1862 = vpop.permute.xlu0 %1861
      %1863 = vrot.lane.b32.xlu0 %v386, 126
      %v1864 = vpop.permute.xlu0 %1863
      %1865 = vrot.lane.b32.xlu0 %v387, 126
      %v1866 = vpop.permute.xlu0 %1865
      %1867 = vrot.lane.b32.xlu0 %v388, 126
      %v1868 = vpop.permute.xlu0 %1867
      %1869 = vrot.lane.b32.xlu0 %v389, 126
      %v1870 = vpop.permute.xlu0 %1869
      %1871 = vrot.lane.b32.xlu0 %v390, 126
      %v1872 = vpop.permute.xlu0 %1871
      %1873 = vrot.lane.b32.xlu0 %v391, 126
      %v1874 = vpop.permute.xlu0 %1873
      %1875 = vrot.lane.b32.xlu0 %v392, 126
      %v1876 = vpop.permute.xlu0 %1875
      %1877 = vrot.lane.b32.xlu0 %v393, 126
      %v1878 = vpop.permute.xlu0 %1877
      %1879 = vrot.lane.b32.xlu0 %v394, 126
      %v1880 = vpop.permute.xlu0 %1879
      %1881 = vrot.lane.b32.xlu0 %v395, 126
      %v1882 = vpop.permute.xlu0 %1881
      %1883 = vrot.lane.b32.xlu0 %v396, 126
      %v1884 = vpop.permute.xlu0 %1883
      %1885 = vrot.lane.b32.xlu0 %v397, 126
      %v1886 = vpop.permute.xlu0 %1885
      %1887 = vrot.lane.b32.xlu0 %v398, 126
      %v1888 = vpop.permute.xlu0 %1887
      %1889 = vrot.lane.b32.xlu0 %v399, 126
      %v1890 = vpop.permute.xlu0 %1889
      %1891 = vrot.lane.b32.xlu0 %v400, 126
      %v1892 = vpop.permute.xlu0 %1891
      %1893 = vrot.lane.b32.xlu0 %v401, 126
      %v1894 = vpop.permute.xlu0 %1893
      %1895 = vrot.lane.b32.xlu0 %v402, 126
      %v1896 = vpop.permute.xlu0 %1895
      %1897 = vrot.lane.b32.xlu0 %v403, 126
      %v1898 = vpop.permute.xlu0 %1897
      %1899 = vrot.lane.b32.xlu0 %v404, 126
      %v1900 = vpop.permute.xlu0 %1899
      %1901 = vrot.lane.b32.xlu0 %v405, 126
      %v1902 = vpop.permute.xlu0 %1901
      %1903 = vrot.lane.b32.xlu0 %v406, 126
      %v1904 = vpop.permute.xlu0 %1903
      %1905 = vrot.lane.b32.xlu0 %v407, 126
      %v1906 = vpop.permute.xlu0 %1905
      %1907 = vrot.lane.b32.xlu0 %v408, 126
      %v1908 = vpop.permute.xlu0 %1907
      %1909 = vrot.lane.b32.xlu0 %v409, 126
      %v1910 = vpop.permute.xlu0 %1909
      %1911 = vrot.lane.b32.xlu0 %v410, 126
      %v1912 = vpop.permute.xlu0 %1911
      %1913 = vrot.lane.b32.xlu0 %v411, 126
      %v1914 = vpop.permute.xlu0 %1913
      %1915 = vrot.lane.b32.xlu0 %v412, 126
      %v1916 = vpop.permute.xlu0 %1915
      %1917 = vrot.lane.b32.xlu0 %v413, 126
      %v1918 = vpop.permute.xlu0 %1917
      %s1919 = vtos %v1790
      %v1920 = vstv %s1919
      %s1922 = vtos %v1792
      %v1923 = vstv %s1922
      %s1925 = vtos %v1794
      %v1926 = vstv %s1925
      %s1928 = vtos %v1796
      %v1929 = vstv %s1928
      %s1931 = vtos %v1798
      %v1932 = vstv %s1931
      %s1934 = vtos %v1800
      %v1935 = vstv %s1934
      %s1937 = vtos %v1802
      %v1938 = vstv %s1937
      %s1940 = vtos %v1804
      %v1941 = vstv %s1940
      %s1943 = vtos %v1806
      %v1944 = vstv %s1943
      %s1946 = vtos %v1808
      %v1947 = vstv %s1946
      %s1949 = vtos %v1810
      %v1950 = vstv %s1949
      %s1952 = vtos %v1812
      %v1953 = vstv %s1952
      %s1955 = vtos %v1814
      %v1956 = vstv %s1955
      %s1958 = vtos %v1816
      %v1959 = vstv %s1958
      %s1961 = vtos %v1818
      %v1962 = vstv %s1961
      %s1964 = vtos %v1820
      %v1965 = vstv %s1964
      %s1967 = vtos %v1822
      %v1968 = vstv %s1967
      %s1970 = vtos %v1824
      %v1971 = vstv %s1970
      %s1973 = vtos %v1826
      %v1974 = vstv %s1973
      %s1976 = vtos %v1828
      %v1977 = vstv %s1976
      %s1979 = vtos %v1830
      %v1980 = vstv %s1979
      %s1982 = vtos %v1832
      %v1983 = vstv %s1982
      %s1985 = vtos %v1834
      %v1986 = vstv %s1985
      %s1988 = vtos %v1836
      %v1989 = vstv %s1988
      %s1991 = vtos %v1838
      %v1992 = vstv %s1991
      %s1994 = vtos %v1840
      %v1995 = vstv %s1994
      %s1997 = vtos %v1842
      %v1998 = vstv %s1997
      %s2000 = vtos %v1844
      %v2001 = vstv %s2000
      %s2003 = vtos %v1846
      %v2004 = vstv %s2003
      %s2006 = vtos %v1848
      %v2007 = vstv %s2006
      %s2009 = vtos %v1850
      %v2010 = vstv %s2009
      %s2012 = vtos %v1852
      %v2013 = vstv %s2012
      %s2015 = vtos %v1854
      %v2016 = vstv %s2015
      %s2018 = vtos %v1856
      %v2019 = vstv %s2018
      %s2021 = vtos %v1858
      %v2022 = vstv %s2021
      %s2024 = vtos %v1860
      %v2025 = vstv %s2024
      %s2027 = vtos %v1862
      %v2028 = vstv %s2027
      %s2030 = vtos %v1864
      %v2031 = vstv %s2030
      %s2033 = vtos %v1866
      %v2034 = vstv %s2033
      %s2036 = vtos %v1868
      %v2037 = vstv %s2036
      %s2039 = vtos %v1870
      %v2040 = vstv %s2039
      %s2042 = vtos %v1872
      %v2043 = vstv %s2042
      %s2045 = vtos %v1874
      %v2046 = vstv %s2045
      %s2048 = vtos %v1876
      %v2049 = vstv %s2048
      %s2051 = vtos %v1878
      %v2052 = vstv %s2051
      %s2054 = vtos %v1880
      %v2055 = vstv %s2054
      %s2057 = vtos %v1882
      %v2058 = vstv %s2057
      %s2060 = vtos %v1884
      %v2061 = vstv %s2060
      %s2063 = vtos %v1886
      %v2064 = vstv %s2063
      %s2066 = vtos %v1888
      %v2067 = vstv %s2066
      %s2069 = vtos %v1890
      %v2070 = vstv %s2069
      %s2072 = vtos %v1892
      %v2073 = vstv %s2072
      %s2075 = vtos %v1894
      %v2076 = vstv %s2075
      %s2078 = vtos %v1896
      %v2079 = vstv %s2078
      %s2081 = vtos %v1898
      %v2082 = vstv %s2081
      %s2084 = vtos %v1900
      %v2085 = vstv %s2084
      %s2087 = vtos %v1902
      %v2088 = vstv %s2087
      %s2090 = vtos %v1904
      %v2091 = vstv %s2090
      %s2093 = vtos %v1906
      %v2094 = vstv %s2093
      %s2096 = vtos %v1908
      %v2097 = vstv %s2096
      %s2099 = vtos %v1910
      %v2100 = vstv %s2099
      %s2102 = vtos %v1912
      %v2103 = vstv %s2102
      %s2105 = vtos %v1914
      %v2106 = vstv %s2105
      %s2108 = vtos %v1916
      %v2109 = vstv %s2108
      %s2111 = vtos %v1918
      %v2112 = vstv %s2111
      %v2114 = vmul.f32 %v219, %v1920
      %v2115 = vmul.f32 %v220, %v1920
      %v2116 = vmul.f32 %v221, %v1923
      %v2117 = vmul.f32 %v222, %v1923
      %v2118 = vmul.f32 %v223, %v1926
      %v2119 = vmul.f32 %v224, %v1926
      %v2120 = vmul.f32 %v225, %v1929
      %v2121 = vmul.f32 %v226, %v1929
      %v2122 = vmul.f32 %v227, %v1932
      %v2123 = vmul.f32 %v228, %v1932
      %v2124 = vmul.f32 %v229, %v1935
      %v2125 = vmul.f32 %v230, %v1935
      %v2126 = vmul.f32 %v231, %v1938
      %v2127 = vmul.f32 %v232, %v1938
      %v2128 = vmul.f32 %v233, %v1941
      %v2129 = vmul.f32 %v234, %v1941
      %v2130 = vmul.f32 %v235, %v1944
      %v2131 = vmul.f32 %v236, %v1944
      %v2132 = vmul.f32 %v237, %v1947
      %v2133 = vmul.f32 %v238, %v1947
      %v2134 = vmul.f32 %v239, %v1950
      %v2135 = vmul.f32 %v240, %v1950
      %v2136 = vmul.f32 %v241, %v1953
      %v2137 = vmul.f32 %v242, %v1953
      %v2138 = vmul.f32 %v243, %v1956
      %v2139 = vmul.f32 %v244, %v1956
      %v2140 = vmul.f32 %v245, %v1959
      %v2141 = vmul.f32 %v246, %v1959
      %v2142 = vmul.f32 %v247, %v1962
      %v2143 = vmul.f32 %v248, %v1962
      %v2144 = vmul.f32 %v249, %v1965
      %v2145 = vmul.f32 %v250, %v1965
      %v2146 = vmul.f32 %v251, %v1968
      %v2147 = vmul.f32 %v252, %v1968
      %v2148 = vmul.f32 %v253, %v1971
      %v2149 = vmul.f32 %v254, %v1971
      %v2150 = vmul.f32 %v255, %v1974
      %v2151 = vmul.f32 %v256, %v1974
      %v2152 = vmul.f32 %v257, %v1977
      %v2153 = vmul.f32 %v258, %v1977
      %v2154 = vmul.f32 %v259, %v1980
      %v2155 = vmul.f32 %v260, %v1980
      %v2156 = vmul.f32 %v261, %v1983
      %v2157 = vmul.f32 %v262, %v1983
      %v2158 = vmul.f32 %v263, %v1986
      %v2159 = vmul.f32 %v264, %v1986
      %v2160 = vmul.f32 %v265, %v1989
      %v2161 = vmul.f32 %v266, %v1989
      %v2162 = vmul.f32 %v267, %v1992
      %v2163 = vmul.f32 %v268, %v1992
      %v2164 = vmul.f32 %v269, %v1995
      %v2165 = vmul.f32 %v270, %v1995
      %v2166 = vmul.f32 %v271, %v1998
      %v2167 = vmul.f32 %v272, %v1998
      %v2168 = vmul.f32 %v273, %v2001
      %v2169 = vmul.f32 %v274, %v2001
      %v2170 = vmul.f32 %v275, %v2004
      %v2171 = vmul.f32 %v276, %v2004
      %v2172 = vmul.f32 %v277, %v2007
      %v2173 = vmul.f32 %v278, %v2007
      %v2174 = vmul.f32 %v279, %v2010
      %v2175 = vmul.f32 %v280, %v2010
      %v2176 = vmul.f32 %v281, %v2013
      %v2177 = vmul.f32 %v282, %v2013
      %v2178 = vmul.f32 %v283, %v2016
      %v2179 = vmul.f32 %v284, %v2016
      %v2180 = vmul.f32 %v285, %v2019
      %v2181 = vmul.f32 %v286, %v2019
      %v2182 = vmul.f32 %v287, %v2022
      %v2183 = vmul.f32 %v288, %v2022
      %v2184 = vmul.f32 %v289, %v2025
      %v2185 = vmul.f32 %v290, %v2025
      %v2186 = vmul.f32 %v291, %v2028
      %v2187 = vmul.f32 %v292, %v2028
      %v2188 = vmul.f32 %v293, %v2031
      %v2189 = vmul.f32 %v294, %v2031
      %v2190 = vmul.f32 %v295, %v2034
      %v2191 = vmul.f32 %v296, %v2034
      %v2192 = vmul.f32 %v297, %v2037
      %v2193 = vmul.f32 %v298, %v2037
      %v2194 = vmul.f32 %v299, %v2040
      %v2195 = vmul.f32 %v300, %v2040
      %v2196 = vmul.f32 %v301, %v2043
      %v2197 = vmul.f32 %v302, %v2043
      %v2198 = vmul.f32 %v303, %v2046
      %v2199 = vmul.f32 %v304, %v2046
      %v2200 = vmul.f32 %v305, %v2049
      %v2201 = vmul.f32 %v306, %v2049
      %v2202 = vmul.f32 %v307, %v2052
      %v2203 = vmul.f32 %v308, %v2052
      %v2204 = vmul.f32 %v309, %v2055
      %v2205 = vmul.f32 %v310, %v2055
      %v2206 = vmul.f32 %v311, %v2058
      %v2207 = vmul.f32 %v312, %v2058
      %v2208 = vmul.f32 %v313, %v2061
      %v2209 = vmul.f32 %v314, %v2061
      %v2210 = vmul.f32 %v315, %v2064
      %v2211 = vmul.f32 %v316, %v2064
      %v2212 = vmul.f32 %v317, %v2067
      %v2213 = vmul.f32 %v318, %v2067
      %v2214 = vmul.f32 %v319, %v2070
      %v2215 = vmul.f32 %v320, %v2070
      %v2216 = vmul.f32 %v321, %v2073
      %v2217 = vmul.f32 %v322, %v2073
      %v2218 = vmul.f32 %v323, %v2076
      %v2219 = vmul.f32 %v324, %v2076
      %v2220 = vmul.f32 %v325, %v2079
      %v2221 = vmul.f32 %v326, %v2079
      %v2222 = vmul.f32 %v327, %v2082
      %v2223 = vmul.f32 %v328, %v2082
      %v2224 = vmul.f32 %v329, %v2085
      %v2225 = vmul.f32 %v330, %v2085
      %v2226 = vmul.f32 %v331, %v2088
      %v2227 = vmul.f32 %v332, %v2088
      %v2228 = vmul.f32 %v333, %v2091
      %v2229 = vmul.f32 %v334, %v2091
      %v2230 = vmul.f32 %v335, %v2094
      %v2231 = vmul.f32 %v336, %v2094
      %v2232 = vmul.f32 %v337, %v2097
      %v2233 = vmul.f32 %v338, %v2097
      %v2234 = vmul.f32 %v339, %v2100
      %v2235 = vmul.f32 %v340, %v2100
      %v2236 = vmul.f32 %v341, %v2103
      %v2237 = vmul.f32 %v342, %v2103
      %v2238 = vmul.f32 %v343, %v2106
      %v2239 = vmul.f32 %v344, %v2106
      %v2240 = vmul.f32 %v345, %v2109
      %v2241 = vmul.f32 %v346, %v2109
      %v2242 = vmul.f32 %v347, %v2112
      %v2243 = vmul.f32 %v348, %v2112
      %vm2244 = vcmask 146448
      %v2245 = vsel %vm2244, %v2114, 0.0
      %v2246 = vsel %vm2244, %v2116, 0.0
      %v2247 = vadd.f32 %v2245, %v2246
      %v2248 = vsel %vm2244, %v2118, 0.0
      %v2249 = vadd.f32 %v2247, %v2248
      %v2250 = vsel %vm2244, %v2120, 0.0
      %v2251 = vadd.f32 %v2249, %v2250
      %v2252 = vsel %vm2244, %v2122, 0.0
      %v2253 = vadd.f32 %v2251, %v2252
      %v2254 = vsel %vm2244, %v2124, 0.0
      %v2255 = vadd.f32 %v2253, %v2254
      %v2256 = vsel %vm2244, %v2126, 0.0
      %v2257 = vadd.f32 %v2255, %v2256
      %v2258 = vsel %vm2244, %v2128, 0.0
      %v2259 = vadd.f32 %v2257, %v2258
      %v2260 = vsel %vm2244, %v2130, 0.0
      %v2261 = vadd.f32 %v2259, %v2260
      %v2262 = vsel %vm2244, %v2132, 0.0
      %v2263 = vadd.f32 %v2261, %v2262
      %v2264 = vsel %vm2244, %v2134, 0.0
      %v2265 = vadd.f32 %v2263, %v2264
      %v2266 = vsel %vm2244, %v2136, 0.0
      %v2267 = vadd.f32 %v2265, %v2266
      %v2268 = vsel %vm2244, %v2138, 0.0
      %v2269 = vadd.f32 %v2267, %v2268
      %v2270 = vsel %vm2244, %v2140, 0.0
      %v2271 = vadd.f32 %v2269, %v2270
      %v2272 = vsel %vm2244, %v2142, 0.0
      %v2273 = vadd.f32 %v2271, %v2272
      %v2274 = vsel %vm2244, %v2144, 0.0
      %v2275 = vadd.f32 %v2273, %v2274
      %v2276 = vsel %vm2244, %v2146, 0.0
      %v2277 = vadd.f32 %v2275, %v2276
      %v2278 = vsel %vm2244, %v2148, 0.0
      %v2279 = vadd.f32 %v2277, %v2278
      %v2280 = vsel %vm2244, %v2150, 0.0
      %v2281 = vadd.f32 %v2279, %v2280
      %v2282 = vsel %vm2244, %v2152, 0.0
      %v2283 = vadd.f32 %v2281, %v2282
      %v2284 = vsel %vm2244, %v2154, 0.0
      %v2285 = vadd.f32 %v2283, %v2284
      %v2286 = vsel %vm2244, %v2156, 0.0
      %v2287 = vadd.f32 %v2285, %v2286
      %v2288 = vsel %vm2244, %v2158, 0.0
      %v2289 = vadd.f32 %v2287, %v2288
      %v2290 = vsel %vm2244, %v2160, 0.0
      %v2291 = vadd.f32 %v2289, %v2290
      %v2292 = vsel %vm2244, %v2162, 0.0
      %v2293 = vadd.f32 %v2291, %v2292
      %v2294 = vsel %vm2244, %v2164, 0.0
      %v2295 = vadd.f32 %v2293, %v2294
      %v2296 = vsel %vm2244, %v2166, 0.0
      %v2297 = vadd.f32 %v2295, %v2296
      %v2298 = vsel %vm2244, %v2168, 0.0
      %v2299 = vadd.f32 %v2297, %v2298
      %v2300 = vsel %vm2244, %v2170, 0.0
      %v2301 = vadd.f32 %v2299, %v2300
      %v2302 = vsel %vm2244, %v2172, 0.0
      %v2303 = vadd.f32 %v2301, %v2302
      %v2304 = vsel %vm2244, %v2174, 0.0
      %v2305 = vadd.f32 %v2303, %v2304
      %v2306 = vsel %vm2244, %v2176, 0.0
      %v2307 = vadd.f32 %v2305, %v2306
      %v2308 = vsel %vm2244, %v2178, 0.0
      %v2309 = vadd.f32 %v2307, %v2308
      %v2310 = vsel %vm2244, %v2180, 0.0
      %v2311 = vadd.f32 %v2309, %v2310
      %v2312 = vsel %vm2244, %v2182, 0.0
      %v2313 = vadd.f32 %v2311, %v2312
      %v2314 = vsel %vm2244, %v2184, 0.0
      %v2315 = vadd.f32 %v2313, %v2314
      %v2316 = vsel %vm2244, %v2186, 0.0
      %v2317 = vadd.f32 %v2315, %v2316
      %v2318 = vsel %vm2244, %v2188, 0.0
      %v2319 = vadd.f32 %v2317, %v2318
      %v2320 = vsel %vm2244, %v2190, 0.0
      %v2321 = vadd.f32 %v2319, %v2320
      %v2322 = vsel %vm2244, %v2192, 0.0
      %v2323 = vadd.f32 %v2321, %v2322
      %v2324 = vsel %vm2244, %v2194, 0.0
      %v2325 = vadd.f32 %v2323, %v2324
      %v2326 = vsel %vm2244, %v2196, 0.0
      %v2327 = vadd.f32 %v2325, %v2326
      %v2328 = vsel %vm2244, %v2198, 0.0
      %v2329 = vadd.f32 %v2327, %v2328
      %v2330 = vsel %vm2244, %v2200, 0.0
      %v2331 = vadd.f32 %v2329, %v2330
      %v2332 = vsel %vm2244, %v2202, 0.0
      %v2333 = vadd.f32 %v2331, %v2332
      %v2334 = vsel %vm2244, %v2204, 0.0
      %v2335 = vadd.f32 %v2333, %v2334
      %v2336 = vsel %vm2244, %v2206, 0.0
      %v2337 = vadd.f32 %v2335, %v2336
      %v2338 = vsel %vm2244, %v2208, 0.0
      %v2339 = vadd.f32 %v2337, %v2338
      %v2340 = vsel %vm2244, %v2210, 0.0
      %v2341 = vadd.f32 %v2339, %v2340
      %v2342 = vsel %vm2244, %v2212, 0.0
      %v2343 = vadd.f32 %v2341, %v2342
      %v2344 = vsel %vm2244, %v2214, 0.0
      %v2345 = vadd.f32 %v2343, %v2344
      %v2346 = vsel %vm2244, %v2216, 0.0
      %v2347 = vadd.f32 %v2345, %v2346
      %v2348 = vsel %vm2244, %v2218, 0.0
      %v2349 = vadd.f32 %v2347, %v2348
      %v2350 = vsel %vm2244, %v2220, 0.0
      %v2351 = vadd.f32 %v2349, %v2350
      %v2352 = vsel %vm2244, %v2222, 0.0
      %v2353 = vadd.f32 %v2351, %v2352
      %v2354 = vsel %vm2244, %v2224, 0.0
      %v2355 = vadd.f32 %v2353, %v2354
      %v2356 = vsel %vm2244, %v2226, 0.0
      %v2357 = vadd.f32 %v2355, %v2356
      %v2358 = vsel %vm2244, %v2228, 0.0
      %v2359 = vadd.f32 %v2357, %v2358
      %v2360 = vsel %vm2244, %v2230, 0.0
      %v2361 = vadd.f32 %v2359, %v2360
      %v2362 = vsel %vm2244, %v2232, 0.0
      %v2363 = vadd.f32 %v2361, %v2362
      %v2364 = vsel %vm2244, %v2234, 0.0
      %v2365 = vadd.f32 %v2363, %v2364
      %v2366 = vsel %vm2244, %v2236, 0.0
      %v2367 = vadd.f32 %v2365, %v2366
      %v2368 = vsel %vm2244, %v2238, 0.0
      %v2369 = vadd.f32 %v2367, %v2368
      %v2370 = vsel %vm2244, %v2240, 0.0
      %v2371 = vadd.f32 %v2369, %v2370
      %v2372 = vsel %vm2244, %v2242, 0.0
      %v2373 = vadd.f32 %v2371, %v2372
      %v2374 = vsel %vm2244, %v2115, 0.0
      %v2375 = vsel %vm2244, %v2117, 0.0
      %v2376 = vadd.f32 %v2374, %v2375
      %v2377 = vsel %vm2244, %v2119, 0.0
      %v2378 = vadd.f32 %v2376, %v2377
      %v2379 = vsel %vm2244, %v2121, 0.0
      %v2380 = vadd.f32 %v2378, %v2379
      %v2381 = vsel %vm2244, %v2123, 0.0
      %v2382 = vadd.f32 %v2380, %v2381
      %v2383 = vsel %vm2244, %v2125, 0.0
      %v2384 = vadd.f32 %v2382, %v2383
      %v2385 = vsel %vm2244, %v2127, 0.0
      %v2386 = vadd.f32 %v2384, %v2385
      %v2387 = vsel %vm2244, %v2129, 0.0
      %v2388 = vadd.f32 %v2386, %v2387
      %v2389 = vsel %vm2244, %v2131, 0.0
      %v2390 = vadd.f32 %v2388, %v2389
      %v2391 = vsel %vm2244, %v2133, 0.0
      %v2392 = vadd.f32 %v2390, %v2391
      %v2393 = vsel %vm2244, %v2135, 0.0
      %v2394 = vadd.f32 %v2392, %v2393
      %v2395 = vsel %vm2244, %v2137, 0.0
      %v2396 = vadd.f32 %v2394, %v2395
      %v2397 = vsel %vm2244, %v2139, 0.0
      %v2398 = vadd.f32 %v2396, %v2397
      %v2399 = vsel %vm2244, %v2141, 0.0
      %v2400 = vadd.f32 %v2398, %v2399
      %v2401 = vsel %vm2244, %v2143, 0.0
      %v2402 = vadd.f32 %v2400, %v2401
      %v2403 = vsel %vm2244, %v2145, 0.0
      %v2404 = vadd.f32 %v2402, %v2403
      %v2405 = vsel %vm2244, %v2147, 0.0
      %v2406 = vadd.f32 %v2404, %v2405
      %v2407 = vsel %vm2244, %v2149, 0.0
      %v2408 = vadd.f32 %v2406, %v2407
      %v2409 = vsel %vm2244, %v2151, 0.0
      %v2410 = vadd.f32 %v2408, %v2409
      %v2411 = vsel %vm2244, %v2153, 0.0
      %v2412 = vadd.f32 %v2410, %v2411
      %v2413 = vsel %vm2244, %v2155, 0.0
      %v2414 = vadd.f32 %v2412, %v2413
      %v2415 = vsel %vm2244, %v2157, 0.0
      %v2416 = vadd.f32 %v2414, %v2415
      %v2417 = vsel %vm2244, %v2159, 0.0
      %v2418 = vadd.f32 %v2416, %v2417
      %v2419 = vsel %vm2244, %v2161, 0.0
      %v2420 = vadd.f32 %v2418, %v2419
      %v2421 = vsel %vm2244, %v2163, 0.0
      %v2422 = vadd.f32 %v2420, %v2421
      %v2423 = vsel %vm2244, %v2165, 0.0
      %v2424 = vadd.f32 %v2422, %v2423
      %v2425 = vsel %vm2244, %v2167, 0.0
      %v2426 = vadd.f32 %v2424, %v2425
      %v2427 = vsel %vm2244, %v2169, 0.0
      %v2428 = vadd.f32 %v2426, %v2427
      %v2429 = vsel %vm2244, %v2171, 0.0
      %v2430 = vadd.f32 %v2428, %v2429
      %v2431 = vsel %vm2244, %v2173, 0.0
      %v2432 = vadd.f32 %v2430, %v2431
      %v2433 = vsel %vm2244, %v2175, 0.0
      %v2434 = vadd.f32 %v2432, %v2433
      %v2435 = vsel %vm2244, %v2177, 0.0
      %v2436 = vadd.f32 %v2434, %v2435
      %v2437 = vsel %vm2244, %v2179, 0.0
      %v2438 = vadd.f32 %v2436, %v2437
      %v2439 = vsel %vm2244, %v2181, 0.0
      %v2440 = vadd.f32 %v2438, %v2439
      %v2441 = vsel %vm2244, %v2183, 0.0
      %v2442 = vadd.f32 %v2440, %v2441
      %v2443 = vsel %vm2244, %v2185, 0.0
      %v2444 = vadd.f32 %v2442, %v2443
      %v2445 = vsel %vm2244, %v2187, 0.0
      %v2446 = vadd.f32 %v2444, %v2445
      %v2447 = vsel %vm2244, %v2189, 0.0
      %v2448 = vadd.f32 %v2446, %v2447
      %v2449 = vsel %vm2244, %v2191, 0.0
      %v2450 = vadd.f32 %v2448, %v2449
      %v2451 = vsel %vm2244, %v2193, 0.0
      %v2452 = vadd.f32 %v2450, %v2451
      %v2453 = vsel %vm2244, %v2195, 0.0
      %v2454 = vadd.f32 %v2452, %v2453
      %v2455 = vsel %vm2244, %v2197, 0.0
      %v2456 = vadd.f32 %v2454, %v2455
      %v2457 = vsel %vm2244, %v2199, 0.0
      %v2458 = vadd.f32 %v2456, %v2457
      %v2459 = vsel %vm2244, %v2201, 0.0
      %v2460 = vadd.f32 %v2458, %v2459
      %v2461 = vsel %vm2244, %v2203, 0.0
      %v2462 = vadd.f32 %v2460, %v2461
      %v2463 = vsel %vm2244, %v2205, 0.0
      %v2464 = vadd.f32 %v2462, %v2463
      %v2465 = vsel %vm2244, %v2207, 0.0
      %v2466 = vadd.f32 %v2464, %v2465
      %v2467 = vsel %vm2244, %v2209, 0.0
      %v2468 = vadd.f32 %v2466, %v2467
      %v2469 = vsel %vm2244, %v2211, 0.0
      %v2470 = vadd.f32 %v2468, %v2469
      %v2471 = vsel %vm2244, %v2213, 0.0
      %v2472 = vadd.f32 %v2470, %v2471
      %v2473 = vsel %vm2244, %v2215, 0.0
      %v2474 = vadd.f32 %v2472, %v2473
      %v2475 = vsel %vm2244, %v2217, 0.0
      %v2476 = vadd.f32 %v2474, %v2475
      %v2477 = vsel %vm2244, %v2219, 0.0
      %v2478 = vadd.f32 %v2476, %v2477
      %v2479 = vsel %vm2244, %v2221, 0.0
      %v2480 = vadd.f32 %v2478, %v2479
      %v2481 = vsel %vm2244, %v2223, 0.0
      %v2482 = vadd.f32 %v2480, %v2481
      %v2483 = vsel %vm2244, %v2225, 0.0
      %v2484 = vadd.f32 %v2482, %v2483
      %v2485 = vsel %vm2244, %v2227, 0.0
      %v2486 = vadd.f32 %v2484, %v2485
      %v2487 = vsel %vm2244, %v2229, 0.0
      %v2488 = vadd.f32 %v2486, %v2487
      %v2489 = vsel %vm2244, %v2231, 0.0
      %v2490 = vadd.f32 %v2488, %v2489
      %v2491 = vsel %vm2244, %v2233, 0.0
      %v2492 = vadd.f32 %v2490, %v2491
      %v2493 = vsel %vm2244, %v2235, 0.0
      %v2494 = vadd.f32 %v2492, %v2493
      %v2495 = vsel %vm2244, %v2237, 0.0
      %v2496 = vadd.f32 %v2494, %v2495
      %v2497 = vsel %vm2244, %v2239, 0.0
      %v2498 = vadd.f32 %v2496, %v2497
      %v2499 = vsel %vm2244, %v2241, 0.0
      %v2500 = vadd.f32 %v2498, %v2499
      %v2501 = vsel %vm2244, %v2243, 0.0
      %v2502 = vadd.f32 %v2500, %v2501
      %2505 = vrot.lane.b32.xlu0 %v2373, 126
      %v2506 = vpop.permute.xlu0 %2505
      %2507 = vrot.lane.b32.xlu0 %v2502, 126
      %v2508 = vpop.permute.xlu0 %2507
      %v2511 = vadd.f32 %v1787, %v2506
      %v2512 = vadd.f32 %v1788, %v2508
      %v2513 = vld [vmem:[%s208 + $0x1] sm:$0xff]
      %v2514 = vld [vmem:[%s208 + $0x9] sm:$0xff]
      %v2515 = vld [vmem:[%s208 + $0x19] sm:$0xff]
      %v2516 = vld [vmem:[%s208 + $0x21] sm:$0xff]
      %v2517 = vld [vmem:[%s208 + $0x31] sm:$0xff]
      %v2518 = vld [vmem:[%s208 + $0x39] sm:$0xff]
      %v2519 = vld [vmem:[%s208 + $0x49] sm:$0xff]
      %v2520 = vld [vmem:[%s208 + $0x51] sm:$0xff]
      %v2521 = vld [vmem:[%s208 + $0x61] sm:$0xff]
      %v2522 = vld [vmem:[%s208 + $0x69] sm:$0xff]
      %v2523 = vld [vmem:[%s208 + $0x79] sm:$0xff]
      %v2524 = vld [vmem:[%s208 + $0x81] sm:$0xff]
      %v2525 = vld [vmem:[%s208 + $0x91] sm:$0xff]
      %v2526 = vld [vmem:[%s208 + $0x99] sm:$0xff]
      %v2527 = vld [vmem:[%s208 + $0xa9] sm:$0xff]
      %v2528 = vld [vmem:[%s208 + $0xb1] sm:$0xff]
      %v2529 = vld [vmem:[%s208 + $0xc1] sm:$0xff]
      %v2530 = vld [vmem:[%s208 + $0xc9] sm:$0xff]
      %v2531 = vld [vmem:[%s208 + $0xd9] sm:$0xff]
      %v2532 = vld [vmem:[%s208 + $0xe1] sm:$0xff]
      %v2533 = vld [vmem:[%s208 + $0xf1] sm:$0xff]
      %v2534 = vld [vmem:[%s208 + $0xf9] sm:$0xff]
      %v2535 = vld [vmem:[%s208 + $0x109] sm:$0xff]
      %v2536 = vld [vmem:[%s208 + $0x111] sm:$0xff]
      %v2537 = vld [vmem:[%s208 + $0x121] sm:$0xff]
      %v2538 = vld [vmem:[%s208 + $0x129] sm:$0xff]
      %v2539 = vld [vmem:[%s208 + $0x139] sm:$0xff]
      %v2540 = vld [vmem:[%s208 + $0x141] sm:$0xff]
      %v2541 = vld [vmem:[%s208 + $0x151] sm:$0xff]
      %v2542 = vld [vmem:[%s208 + $0x159] sm:$0xff]
      %v2543 = vld [vmem:[%s208 + $0x169] sm:$0xff]
      %v2544 = vld [vmem:[%s208 + $0x171] sm:$0xff]
      %v2545 = vld [vmem:[%s208 + $0x181] sm:$0xff]
      %v2546 = vld [vmem:[%s208 + $0x189] sm:$0xff]
      %v2547 = vld [vmem:[%s208 + $0x199] sm:$0xff]
      %v2548 = vld [vmem:[%s208 + $0x1a1] sm:$0xff]
      %v2549 = vld [vmem:[%s208 + $0x1b1] sm:$0xff]
      %v2550 = vld [vmem:[%s208 + $0x1b9] sm:$0xff]
      %v2551 = vld [vmem:[%s208 + $0x1c9] sm:$0xff]
      %v2552 = vld [vmem:[%s208 + $0x1d1] sm:$0xff]
      %v2553 = vld [vmem:[%s208 + $0x1e1] sm:$0xff]
      %v2554 = vld [vmem:[%s208 + $0x1e9] sm:$0xff]
      %v2555 = vld [vmem:[%s208 + $0x1f9] sm:$0xff]
      %v2556 = vld [vmem:[%s208 + $0x201] sm:$0xff]
      %v2557 = vld [vmem:[%s208 + $0x211] sm:$0xff]
      %v2558 = vld [vmem:[%s208 + $0x219] sm:$0xff]
      %v2559 = vld [vmem:[%s208 + $0x229] sm:$0xff]
      %v2560 = vld [vmem:[%s208 + $0x231] sm:$0xff]
      %v2561 = vld [vmem:[%s208 + $0x241] sm:$0xff]
      %v2562 = vld [vmem:[%s208 + $0x249] sm:$0xff]
      %v2563 = vld [vmem:[%s208 + $0x259] sm:$0xff]
      %v2564 = vld [vmem:[%s208 + $0x261] sm:$0xff]
      %v2565 = vld [vmem:[%s208 + $0x271] sm:$0xff]
      %v2566 = vld [vmem:[%s208 + $0x279] sm:$0xff]
      %v2567 = vld [vmem:[%s208 + $0x289] sm:$0xff]
      %v2568 = vld [vmem:[%s208 + $0x291] sm:$0xff]
      %v2569 = vld [vmem:[%s208 + $0x2a1] sm:$0xff]
      %v2570 = vld [vmem:[%s208 + $0x2a9] sm:$0xff]
      %v2571 = vld [vmem:[%s208 + $0x2b9] sm:$0xff]
      %v2572 = vld [vmem:[%s208 + $0x2c1] sm:$0xff]
      %v2573 = vld [vmem:[%s208 + $0x2d1] sm:$0xff]
      %v2574 = vld [vmem:[%s208 + $0x2d9] sm:$0xff]
      %v2575 = vld [vmem:[%s208 + $0x2e9] sm:$0xff]
      %v2576 = vld [vmem:[%s208 + $0x2f1] sm:$0xff]
      %v2577 = vld [vmem:[%s208 + $0x301] sm:$0xff]
      %v2578 = vld [vmem:[%s208 + $0x309] sm:$0xff]
      %v2579 = vld [vmem:[%s208 + $0x319] sm:$0xff]
      %v2580 = vld [vmem:[%s208 + $0x321] sm:$0xff]
      %v2581 = vld [vmem:[%s208 + $0x331] sm:$0xff]
      %v2582 = vld [vmem:[%s208 + $0x339] sm:$0xff]
      %v2583 = vld [vmem:[%s208 + $0x349] sm:$0xff]
      %v2584 = vld [vmem:[%s208 + $0x351] sm:$0xff]
      %v2585 = vld [vmem:[%s208 + $0x361] sm:$0xff]
      %v2586 = vld [vmem:[%s208 + $0x369] sm:$0xff]
      %v2587 = vld [vmem:[%s208 + $0x379] sm:$0xff]
      %v2588 = vld [vmem:[%s208 + $0x381] sm:$0xff]
      %v2589 = vld [vmem:[%s208 + $0x391] sm:$0xff]
      %v2590 = vld [vmem:[%s208 + $0x399] sm:$0xff]
      %v2591 = vld [vmem:[%s208 + $0x3a9] sm:$0xff]
      %v2592 = vld [vmem:[%s208 + $0x3b1] sm:$0xff]
      %v2593 = vld [vmem:[%s208 + $0x3c1] sm:$0xff]
      %v2594 = vld [vmem:[%s208 + $0x3c9] sm:$0xff]
      %v2595 = vld [vmem:[%s208 + $0x3d9] sm:$0xff]
      %v2596 = vld [vmem:[%s208 + $0x3e1] sm:$0xff]
      %v2597 = vld [vmem:[%s208 + $0x3f1] sm:$0xff]
      %v2598 = vld [vmem:[%s208 + $0x3f9] sm:$0xff]
      %v2599 = vld [vmem:[%s208 + $0x409] sm:$0xff]
      %v2600 = vld [vmem:[%s208 + $0x411] sm:$0xff]
      %v2601 = vld [vmem:[%s208 + $0x421] sm:$0xff]
      %v2602 = vld [vmem:[%s208 + $0x429] sm:$0xff]
      %v2603 = vld [vmem:[%s208 + $0x439] sm:$0xff]
      %v2604 = vld [vmem:[%s208 + $0x441] sm:$0xff]
      %v2605 = vld [vmem:[%s208 + $0x451] sm:$0xff]
      %v2606 = vld [vmem:[%s208 + $0x459] sm:$0xff]
      %v2607 = vld [vmem:[%s208 + $0x469] sm:$0xff]
      %v2608 = vld [vmem:[%s208 + $0x471] sm:$0xff]
      %v2609 = vld [vmem:[%s208 + $0x481] sm:$0xff]
      %v2610 = vld [vmem:[%s208 + $0x489] sm:$0xff]
      %v2611 = vld [vmem:[%s208 + $0x499] sm:$0xff]
      %v2612 = vld [vmem:[%s208 + $0x4a1] sm:$0xff]
      %v2613 = vld [vmem:[%s208 + $0x4b1] sm:$0xff]
      %v2614 = vld [vmem:[%s208 + $0x4b9] sm:$0xff]
      %v2615 = vld [vmem:[%s208 + $0x4c9] sm:$0xff]
      %v2616 = vld [vmem:[%s208 + $0x4d1] sm:$0xff]
      %v2617 = vld [vmem:[%s208 + $0x4e1] sm:$0xff]
      %v2618 = vld [vmem:[%s208 + $0x4e9] sm:$0xff]
      %v2619 = vld [vmem:[%s208 + $0x4f9] sm:$0xff]
      %v2620 = vld [vmem:[%s208 + $0x501] sm:$0xff]
      %v2621 = vld [vmem:[%s208 + $0x511] sm:$0xff]
      %v2622 = vld [vmem:[%s208 + $0x519] sm:$0xff]
      %v2623 = vld [vmem:[%s208 + $0x529] sm:$0xff]
      %v2624 = vld [vmem:[%s208 + $0x531] sm:$0xff]
      %v2625 = vld [vmem:[%s208 + $0x541] sm:$0xff]
      %v2626 = vld [vmem:[%s208 + $0x549] sm:$0xff]
      %v2627 = vld [vmem:[%s208 + $0x559] sm:$0xff]
      %v2628 = vld [vmem:[%s208 + $0x561] sm:$0xff]
      %v2629 = vld [vmem:[%s208 + $0x571] sm:$0xff]
      %v2630 = vld [vmem:[%s208 + $0x579] sm:$0xff]
      %v2631 = vld [vmem:[%s208 + $0x589] sm:$0xff]
      %v2632 = vld [vmem:[%s208 + $0x591] sm:$0xff]
      %v2633 = vld [vmem:[%s208 + $0x5a1] sm:$0xff]
      %v2634 = vld [vmem:[%s208 + $0x5a9] sm:$0xff]
      %v2635 = vld [vmem:[%s208 + $0x5b9] sm:$0xff]
      %v2636 = vld [vmem:[%s208 + $0x5c1] sm:$0xff]
      %v2637 = vld [vmem:[%s208 + $0x5d1] sm:$0xff]
      %v2638 = vld [vmem:[%s208 + $0x5d9] sm:$0xff]
      %v2639 = vld [vmem:[%s208 + $0x5e9] sm:$0xff]
      %v2640 = vld [vmem:[%s208 + $0x5f1] sm:$0xff]
      %v2641 = vld [vmem:[%s208 + $0x601] sm:$0xff]
      %v2642 = vld [vmem:[%s208 + $0x609] sm:$0xff]
      %v2643 = vld [vmem:[%s1 + $0x1] sm:$0x1]
      %v2644 = vld [vmem:[%s1 + $0x5] sm:$0x1]
      %v2645 = vld [vmem:[%s1 + $0x9] sm:$0x1]
      %v2646 = vld [vmem:[%s1 + $0xd] sm:$0x1]
      %v2647 = vld [vmem:[%s1 + $0x11] sm:$0x1]
      %v2648 = vld [vmem:[%s1 + $0x15] sm:$0x1]
      %v2649 = vld [vmem:[%s1 + $0x19] sm:$0x1]
      %v2650 = vld [vmem:[%s1 + $0x1d] sm:$0x1]
      %v2651 = vld [vmem:[%s1 + $0x21] sm:$0x1]
      %v2652 = vld [vmem:[%s1 + $0x25] sm:$0x1]
      %v2653 = vld [vmem:[%s1 + $0x29] sm:$0x1]
      %v2654 = vld [vmem:[%s1 + $0x2d] sm:$0x1]
      %v2655 = vld [vmem:[%s1 + $0x31] sm:$0x1]
      %v2656 = vld [vmem:[%s1 + $0x35] sm:$0x1]
      %v2657 = vld [vmem:[%s1 + $0x39] sm:$0x1]
      %v2658 = vld [vmem:[%s1 + $0x3d] sm:$0x1]
      %v2659 = vld [vmem:[%s1 + $0x41] sm:$0x1]
      %v2660 = vld [vmem:[%s1 + $0x45] sm:$0x1]
      %v2661 = vld [vmem:[%s1 + $0x49] sm:$0x1]
      %v2662 = vld [vmem:[%s1 + $0x4d] sm:$0x1]
      %v2663 = vld [vmem:[%s1 + $0x51] sm:$0x1]
      %v2664 = vld [vmem:[%s1 + $0x55] sm:$0x1]
      %v2665 = vld [vmem:[%s1 + $0x59] sm:$0x1]
      %v2666 = vld [vmem:[%s1 + $0x5d] sm:$0x1]
      %v2667 = vld [vmem:[%s1 + $0x61] sm:$0x1]
      %v2668 = vld [vmem:[%s1 + $0x65] sm:$0x1]
      %v2669 = vld [vmem:[%s1 + $0x69] sm:$0x1]
      %v2670 = vld [vmem:[%s1 + $0x6d] sm:$0x1]
      %v2671 = vld [vmem:[%s1 + $0x71] sm:$0x1]
      %v2672 = vld [vmem:[%s1 + $0x75] sm:$0x1]
      %v2673 = vld [vmem:[%s1 + $0x79] sm:$0x1]
      %v2674 = vld [vmem:[%s1 + $0x7d] sm:$0x1]
      %v2675 = vld [vmem:[%s1 + $0x81] sm:$0x1]
      %v2676 = vld [vmem:[%s1 + $0x85] sm:$0x1]
      %v2677 = vld [vmem:[%s1 + $0x89] sm:$0x1]
      %v2678 = vld [vmem:[%s1 + $0x8d] sm:$0x1]
      %v2679 = vld [vmem:[%s1 + $0x91] sm:$0x1]
      %v2680 = vld [vmem:[%s1 + $0x95] sm:$0x1]
      %v2681 = vld [vmem:[%s1 + $0x99] sm:$0x1]
      %v2682 = vld [vmem:[%s1 + $0x9d] sm:$0x1]
      %v2683 = vld [vmem:[%s1 + $0xa1] sm:$0x1]
      %v2684 = vld [vmem:[%s1 + $0xa5] sm:$0x1]
      %v2685 = vld [vmem:[%s1 + $0xa9] sm:$0x1]
      %v2686 = vld [vmem:[%s1 + $0xad] sm:$0x1]
      %v2687 = vld [vmem:[%s1 + $0xb1] sm:$0x1]
      %v2688 = vld [vmem:[%s1 + $0xb5] sm:$0x1]
      %v2689 = vld [vmem:[%s1 + $0xb9] sm:$0x1]
      %v2690 = vld [vmem:[%s1 + $0xbd] sm:$0x1]
      %v2691 = vld [vmem:[%s1 + $0xc1] sm:$0x1]
      %v2692 = vld [vmem:[%s1 + $0xc5] sm:$0x1]
      %v2693 = vld [vmem:[%s1 + $0xc9] sm:$0x1]
      %v2694 = vld [vmem:[%s1 + $0xcd] sm:$0x1]
      %v2695 = vld [vmem:[%s1 + $0xd1] sm:$0x1]
      %v2696 = vld [vmem:[%s1 + $0xd5] sm:$0x1]
      %v2697 = vld [vmem:[%s1 + $0xd9] sm:$0x1]
      %v2698 = vld [vmem:[%s1 + $0xdd] sm:$0x1]
      %v2699 = vld [vmem:[%s1 + $0xe1] sm:$0x1]
      %v2700 = vld [vmem:[%s1 + $0xe5] sm:$0x1]
      %v2701 = vld [vmem:[%s1 + $0xe9] sm:$0x1]
      %v2702 = vld [vmem:[%s1 + $0xed] sm:$0x1]
      %v2703 = vld [vmem:[%s1 + $0xf1] sm:$0x1]
      %v2704 = vld [vmem:[%s1 + $0xf5] sm:$0x1]
      %v2705 = vld [vmem:[%s1 + $0xf9] sm:$0x1]
      %v2706 = vld [vmem:[%s1 + $0xfd] sm:$0x1]
      %v2707 = vld [vmem:[%s1 + $0x101] sm:$0x1]
      %s2709 = vtos %v2643
      %v2710 = vstv %s2709
      %s2713 = vtos %v2644
      %v2714 = vstv %s2713
      %s2717 = vtos %v2645
      %v2718 = vstv %s2717
      %s2721 = vtos %v2646
      %v2722 = vstv %s2721
      %s2725 = vtos %v2647
      %v2726 = vstv %s2725
      %s2729 = vtos %v2648
      %v2730 = vstv %s2729
      %s2733 = vtos %v2649
      %v2734 = vstv %s2733
      %s2737 = vtos %v2650
      %v2738 = vstv %s2737
      %s2741 = vtos %v2651
      %v2742 = vstv %s2741
      %s2745 = vtos %v2652
      %v2746 = vstv %s2745
      %s2749 = vtos %v2653
      %v2750 = vstv %s2749
      %s2753 = vtos %v2654
      %v2754 = vstv %s2753
      %s2757 = vtos %v2655
      %v2758 = vstv %s2757
      %s2761 = vtos %v2656
      %v2762 = vstv %s2761
      %s2765 = vtos %v2657
      %v2766 = vstv %s2765
      %s2769 = vtos %v2658
      %v2770 = vstv %s2769
      %s2773 = vtos %v2659
      %v2774 = vstv %s2773
      %s2777 = vtos %v2660
      %v2778 = vstv %s2777
      %s2781 = vtos %v2661
      %v2782 = vstv %s2781
      %s2785 = vtos %v2662
      %v2786 = vstv %s2785
      %s2789 = vtos %v2663
      %v2790 = vstv %s2789
      %s2793 = vtos %v2664
      %v2794 = vstv %s2793
      %s2797 = vtos %v2665
      %v2798 = vstv %s2797
      %s2801 = vtos %v2666
      %v2802 = vstv %s2801
      %s2805 = vtos %v2667
      %v2806 = vstv %s2805
      %s2809 = vtos %v2668
      %v2810 = vstv %s2809
      %s2813 = vtos %v2669
      %v2814 = vstv %s2813
      %s2817 = vtos %v2670
      %v2818 = vstv %s2817
      %s2821 = vtos %v2671
      %v2822 = vstv %s2821
      %s2825 = vtos %v2672
      %v2826 = vstv %s2825
      %s2829 = vtos %v2673
      %v2830 = vstv %s2829
      %s2833 = vtos %v2674
      %v2834 = vstv %s2833
      %s2837 = vtos %v2675
      %v2838 = vstv %s2837
      %s2841 = vtos %v2676
      %v2842 = vstv %s2841
      %s2845 = vtos %v2677
      %v2846 = vstv %s2845
      %s2849 = vtos %v2678
      %v2850 = vstv %s2849
      %s2853 = vtos %v2679
      %v2854 = vstv %s2853
      %s2857 = vtos %v2680
      %v2858 = vstv %s2857
      %s2861 = vtos %v2681
      %v2862 = vstv %s2861
      %s2865 = vtos %v2682
      %v2866 = vstv %s2865
      %s2869 = vtos %v2683
      %v2870 = vstv %s2869
      %s2873 = vtos %v2684
      %v2874 = vstv %s2873
      %s2877 = vtos %v2685
      %v2878 = vstv %s2877
      %s2881 = vtos %v2686
      %v2882 = vstv %s2881
      %s2885 = vtos %v2687
      %v2886 = vstv %s2885
      %s2889 = vtos %v2688
      %v2890 = vstv %s2889
      %s2893 = vtos %v2689
      %v2894 = vstv %s2893
      %s2897 = vtos %v2690
      %v2898 = vstv %s2897
      %s2901 = vtos %v2691
      %v2902 = vstv %s2901
      %s2905 = vtos %v2692
      %v2906 = vstv %s2905
      %s2909 = vtos %v2693
      %v2910 = vstv %s2909
      %s2913 = vtos %v2694
      %v2914 = vstv %s2913
      %s2917 = vtos %v2695
      %v2918 = vstv %s2917
      %s2921 = vtos %v2696
      %v2922 = vstv %s2921
      %s2925 = vtos %v2697
      %v2926 = vstv %s2925
      %s2929 = vtos %v2698
      %v2930 = vstv %s2929
      %s2933 = vtos %v2699
      %v2934 = vstv %s2933
      %s2937 = vtos %v2700
      %v2938 = vstv %s2937
      %s2941 = vtos %v2701
      %v2942 = vstv %s2941
      %s2945 = vtos %v2702
      %v2946 = vstv %s2945
      %s2949 = vtos %v2703
      %v2950 = vstv %s2949
      %s2953 = vtos %v2704
      %v2954 = vstv %s2953
      %s2957 = vtos %v2705
      %v2958 = vstv %s2957
      %s2961 = vtos %v2706
      %v2962 = vstv %s2961
      %s2965 = vtos %v2707
      %v2966 = vstv %s2965
      %v2968 = vmul.f32 %v2513, %v2710
      %v2969 = vmul.f32 %v2514, %v2710
      %v2970 = vmul.f32 %v2515, %v2714
      %v2971 = vmul.f32 %v2516, %v2714
      %v2972 = vmul.f32 %v2517, %v2718
      %v2973 = vmul.f32 %v2518, %v2718
      %v2974 = vmul.f32 %v2519, %v2722
      %v2975 = vmul.f32 %v2520, %v2722
      %v2976 = vmul.f32 %v2521, %v2726
      %v2977 = vmul.f32 %v2522, %v2726
      %v2978 = vmul.f32 %v2523, %v2730
      %v2979 = vmul.f32 %v2524, %v2730
      %v2980 = vmul.f32 %v2525, %v2734
      %v2981 = vmul.f32 %v2526, %v2734
      %v2982 = vmul.f32 %v2527, %v2738
      %v2983 = vmul.f32 %v2528, %v2738
      %v2984 = vmul.f32 %v2529, %v2742
      %v2985 = vmul.f32 %v2530, %v2742
      %v2986 = vmul.f32 %v2531, %v2746
      %v2987 = vmul.f32 %v2532, %v2746
      %v2988 = vmul.f32 %v2533, %v2750
      %v2989 = vmul.f32 %v2534, %v2750
      %v2990 = vmul.f32 %v2535, %v2754
      %v2991 = vmul.f32 %v2536, %v2754
      %v2992 = vmul.f32 %v2537, %v2758
      %v2993 = vmul.f32 %v2538, %v2758
      %v2994 = vmul.f32 %v2539, %v2762
      %v2995 = vmul.f32 %v2540, %v2762
      %v2996 = vmul.f32 %v2541, %v2766
      %v2997 = vmul.f32 %v2542, %v2766
      %v2998 = vmul.f32 %v2543, %v2770
      %v2999 = vmul.f32 %v2544, %v2770
      %v3000 = vmul.f32 %v2545, %v2774
      %v3001 = vmul.f32 %v2546, %v2774
      %v3002 = vmul.f32 %v2547, %v2778
      %v3003 = vmul.f32 %v2548, %v2778
      %v3004 = vmul.f32 %v2549, %v2782
      %v3005 = vmul.f32 %v2550, %v2782
      %v3006 = vmul.f32 %v2551, %v2786
      %v3007 = vmul.f32 %v2552, %v2786
      %v3008 = vmul.f32 %v2553, %v2790
      %v3009 = vmul.f32 %v2554, %v2790
      %v3010 = vmul.f32 %v2555, %v2794
      %v3011 = vmul.f32 %v2556, %v2794
      %v3012 = vmul.f32 %v2557, %v2798
      %v3013 = vmul.f32 %v2558, %v2798
      %v3014 = vmul.f32 %v2559, %v2802
      %v3015 = vmul.f32 %v2560, %v2802
      %v3016 = vmul.f32 %v2561, %v2806
      %v3017 = vmul.f32 %v2562, %v2806
      %v3018 = vmul.f32 %v2563, %v2810
      %v3019 = vmul.f32 %v2564, %v2810
      %v3020 = vmul.f32 %v2565, %v2814
      %v3021 = vmul.f32 %v2566, %v2814
      %v3022 = vmul.f32 %v2567, %v2818
      %v3023 = vmul.f32 %v2568, %v2818
      %v3024 = vmul.f32 %v2569, %v2822
      %v3025 = vmul.f32 %v2570, %v2822
      %v3026 = vmul.f32 %v2571, %v2826
      %v3027 = vmul.f32 %v2572, %v2826
      %v3028 = vmul.f32 %v2573, %v2830
      %v3029 = vmul.f32 %v2574, %v2830
      %v3030 = vmul.f32 %v2575, %v2834
      %v3031 = vmul.f32 %v2576, %v2834
      %v3032 = vmul.f32 %v2577, %v2838
      %v3033 = vmul.f32 %v2578, %v2838
      %v3034 = vmul.f32 %v2579, %v2842
      %v3035 = vmul.f32 %v2580, %v2842
      %v3036 = vmul.f32 %v2581, %v2846
      %v3037 = vmul.f32 %v2582, %v2846
      %v3038 = vmul.f32 %v2583, %v2850
      %v3039 = vmul.f32 %v2584, %v2850
      %v3040 = vmul.f32 %v2585, %v2854
      %v3041 = vmul.f32 %v2586, %v2854
      %v3042 = vmul.f32 %v2587, %v2858
      %v3043 = vmul.f32 %v2588, %v2858
      %v3044 = vmul.f32 %v2589, %v2862
      %v3045 = vmul.f32 %v2590, %v2862
      %v3046 = vmul.f32 %v2591, %v2866
      %v3047 = vmul.f32 %v2592, %v2866
      %v3048 = vmul.f32 %v2593, %v2870
      %v3049 = vmul.f32 %v2594, %v2870
      %v3050 = vmul.f32 %v2595, %v2874
      %v3051 = vmul.f32 %v2596, %v2874
      %v3052 = vmul.f32 %v2597, %v2878
      %v3053 = vmul.f32 %v2598, %v2878
      %v3054 = vmul.f32 %v2599, %v2882
      %v3055 = vmul.f32 %v2600, %v2882
      %v3056 = vmul.f32 %v2601, %v2886
      %v3057 = vmul.f32 %v2602, %v2886
      %v3058 = vmul.f32 %v2603, %v2890
      %v3059 = vmul.f32 %v2604, %v2890
      %v3060 = vmul.f32 %v2605, %v2894
      %v3061 = vmul.f32 %v2606, %v2894
      %v3062 = vmul.f32 %v2607, %v2898
      %v3063 = vmul.f32 %v2608, %v2898
      %v3064 = vmul.f32 %v2609, %v2902
      %v3065 = vmul.f32 %v2610, %v2902
      %v3066 = vmul.f32 %v2611, %v2906
      %v3067 = vmul.f32 %v2612, %v2906
      %v3068 = vmul.f32 %v2613, %v2910
      %v3069 = vmul.f32 %v2614, %v2910
      %v3070 = vmul.f32 %v2615, %v2914
      %v3071 = vmul.f32 %v2616, %v2914
      %v3072 = vmul.f32 %v2617, %v2918
      %v3073 = vmul.f32 %v2618, %v2918
      %v3074 = vmul.f32 %v2619, %v2922
      %v3075 = vmul.f32 %v2620, %v2922
      %v3076 = vmul.f32 %v2621, %v2926
      %v3077 = vmul.f32 %v2622, %v2926
      %v3078 = vmul.f32 %v2623, %v2930
      %v3079 = vmul.f32 %v2624, %v2930
      %v3080 = vmul.f32 %v2625, %v2934
      %v3081 = vmul.f32 %v2626, %v2934
      %v3082 = vmul.f32 %v2627, %v2938
      %v3083 = vmul.f32 %v2628, %v2938
      %v3084 = vmul.f32 %v2629, %v2942
      %v3085 = vmul.f32 %v2630, %v2942
      %v3086 = vmul.f32 %v2631, %v2946
      %v3087 = vmul.f32 %v2632, %v2946
      %v3088 = vmul.f32 %v2633, %v2950
      %v3089 = vmul.f32 %v2634, %v2950
      %v3090 = vmul.f32 %v2635, %v2954
      %v3091 = vmul.f32 %v2636, %v2954
      %v3092 = vmul.f32 %v2637, %v2958
      %v3093 = vmul.f32 %v2638, %v2958
      %v3094 = vmul.f32 %v2639, %v2962
      %v3095 = vmul.f32 %v2640, %v2962
      %v3096 = vmul.f32 %v2641, %v2966
      %v3097 = vmul.f32 %v2642, %v2966
      %v3098 = vsel %vm804, %v2968, 0.0
      %v3099 = vsel %vm804, %v2970, 0.0
      %v3100 = vadd.f32 %v3098, %v3099
      %v3101 = vsel %vm804, %v2972, 0.0
      %v3102 = vadd.f32 %v3100, %v3101
      %v3103 = vsel %vm804, %v2974, 0.0
      %v3104 = vadd.f32 %v3102, %v3103
      %v3105 = vsel %vm804, %v2976, 0.0
      %v3106 = vadd.f32 %v3104, %v3105
      %v3107 = vsel %vm804, %v2978, 0.0
      %v3108 = vadd.f32 %v3106, %v3107
      %v3109 = vsel %vm804, %v2980, 0.0
      %v3110 = vadd.f32 %v3108, %v3109
      %v3111 = vsel %vm804, %v2982, 0.0
      %v3112 = vadd.f32 %v3110, %v3111
      %v3113 = vsel %vm804, %v2984, 0.0
      %v3114 = vadd.f32 %v3112, %v3113
      %v3115 = vsel %vm804, %v2986, 0.0
      %v3116 = vadd.f32 %v3114, %v3115
      %v3117 = vsel %vm804, %v2988, 0.0
      %v3118 = vadd.f32 %v3116, %v3117
      %v3119 = vsel %vm804, %v2990, 0.0
      %v3120 = vadd.f32 %v3118, %v3119
      %v3121 = vsel %vm804, %v2992, 0.0
      %v3122 = vadd.f32 %v3120, %v3121
      %v3123 = vsel %vm804, %v2994, 0.0
      %v3124 = vadd.f32 %v3122, %v3123
      %v3125 = vsel %vm804, %v2996, 0.0
      %v3126 = vadd.f32 %v3124, %v3125
      %v3127 = vsel %vm804, %v2998, 0.0
      %v3128 = vadd.f32 %v3126, %v3127
      %v3129 = vsel %vm804, %v3000, 0.0
      %v3130 = vadd.f32 %v3128, %v3129
      %v3131 = vsel %vm804, %v3002, 0.0
      %v3132 = vadd.f32 %v3130, %v3131
      %v3133 = vsel %vm804, %v3004, 0.0
      %v3134 = vadd.f32 %v3132, %v3133
      %v3135 = vsel %vm804, %v3006, 0.0
      %v3136 = vadd.f32 %v3134, %v3135
      %v3137 = vsel %vm804, %v3008, 0.0
      %v3138 = vadd.f32 %v3136, %v3137
      %v3139 = vsel %vm804, %v3010, 0.0
      %v3140 = vadd.f32 %v3138, %v3139
      %v3141 = vsel %vm804, %v3012, 0.0
      %v3142 = vadd.f32 %v3140, %v3141
      %v3143 = vsel %vm804, %v3014, 0.0
      %v3144 = vadd.f32 %v3142, %v3143
      %v3145 = vsel %vm804, %v3016, 0.0
      %v3146 = vadd.f32 %v3144, %v3145
      %v3147 = vsel %vm804, %v3018, 0.0
      %v3148 = vadd.f32 %v3146, %v3147
      %v3149 = vsel %vm804, %v3020, 0.0
      %v3150 = vadd.f32 %v3148, %v3149
      %v3151 = vsel %vm804, %v3022, 0.0
      %v3152 = vadd.f32 %v3150, %v3151
      %v3153 = vsel %vm804, %v3024, 0.0
      %v3154 = vadd.f32 %v3152, %v3153
      %v3155 = vsel %vm804, %v3026, 0.0
      %v3156 = vadd.f32 %v3154, %v3155
      %v3157 = vsel %vm804, %v3028, 0.0
      %v3158 = vadd.f32 %v3156, %v3157
      %v3159 = vsel %vm804, %v3030, 0.0
      %v3160 = vadd.f32 %v3158, %v3159
      %v3161 = vsel %vm804, %v3032, 0.0
      %v3162 = vadd.f32 %v3160, %v3161
      %v3163 = vsel %vm804, %v3034, 0.0
      %v3164 = vadd.f32 %v3162, %v3163
      %v3165 = vsel %vm804, %v3036, 0.0
      %v3166 = vadd.f32 %v3164, %v3165
      %v3167 = vsel %vm804, %v3038, 0.0
      %v3168 = vadd.f32 %v3166, %v3167
      %v3169 = vsel %vm804, %v3040, 0.0
      %v3170 = vadd.f32 %v3168, %v3169
      %v3171 = vsel %vm804, %v3042, 0.0
      %v3172 = vadd.f32 %v3170, %v3171
      %v3173 = vsel %vm804, %v3044, 0.0
      %v3174 = vadd.f32 %v3172, %v3173
      %v3175 = vsel %vm804, %v3046, 0.0
      %v3176 = vadd.f32 %v3174, %v3175
      %v3177 = vsel %vm804, %v3048, 0.0
      %v3178 = vadd.f32 %v3176, %v3177
      %v3179 = vsel %vm804, %v3050, 0.0
      %v3180 = vadd.f32 %v3178, %v3179
      %v3181 = vsel %vm804, %v3052, 0.0
      %v3182 = vadd.f32 %v3180, %v3181
      %v3183 = vsel %vm804, %v3054, 0.0
      %v3184 = vadd.f32 %v3182, %v3183
      %v3185 = vsel %vm804, %v3056, 0.0
      %v3186 = vadd.f32 %v3184, %v3185
      %v3187 = vsel %vm804, %v3058, 0.0
      %v3188 = vadd.f32 %v3186, %v3187
      %v3189 = vsel %vm804, %v3060, 0.0
      %v3190 = vadd.f32 %v3188, %v3189
      %v3191 = vsel %vm804, %v3062, 0.0
      %v3192 = vadd.f32 %v3190, %v3191
      %v3193 = vsel %vm804, %v3064, 0.0
      %v3194 = vadd.f32 %v3192, %v3193
      %v3195 = vsel %vm804, %v3066, 0.0
      %v3196 = vadd.f32 %v3194, %v3195
      %v3197 = vsel %vm804, %v3068, 0.0
      %v3198 = vadd.f32 %v3196, %v3197
      %v3199 = vsel %vm804, %v3070, 0.0
      %v3200 = vadd.f32 %v3198, %v3199
      %v3201 = vsel %vm804, %v3072, 0.0
      %v3202 = vadd.f32 %v3200, %v3201
      %v3203 = vsel %vm804, %v3074, 0.0
      %v3204 = vadd.f32 %v3202, %v3203
      %v3205 = vsel %vm804, %v3076, 0.0
      %v3206 = vadd.f32 %v3204, %v3205
      %v3207 = vsel %vm804, %v3078, 0.0
      %v3208 = vadd.f32 %v3206, %v3207
      %v3209 = vsel %vm804, %v3080, 0.0
      %v3210 = vadd.f32 %v3208, %v3209
      %v3211 = vsel %vm804, %v3082, 0.0
      %v3212 = vadd.f32 %v3210, %v3211
      %v3213 = vsel %vm804, %v3084, 0.0
      %v3214 = vadd.f32 %v3212, %v3213
      %v3215 = vsel %vm804, %v3086, 0.0
      %v3216 = vadd.f32 %v3214, %v3215
      %v3217 = vsel %vm804, %v3088, 0.0
      %v3218 = vadd.f32 %v3216, %v3217
      %v3219 = vsel %vm804, %v3090, 0.0
      %v3220 = vadd.f32 %v3218, %v3219
      %v3221 = vsel %vm804, %v3092, 0.0
      %v3222 = vadd.f32 %v3220, %v3221
      %v3223 = vsel %vm804, %v3094, 0.0
      %v3224 = vadd.f32 %v3222, %v3223
      %v3225 = vsel %vm804, %v3096, 0.0
      %v3226 = vadd.f32 %v3224, %v3225
      %v3227 = vsel %vm804, %v2969, 0.0
      %v3228 = vsel %vm804, %v2971, 0.0
      %v3229 = vadd.f32 %v3227, %v3228
      %v3230 = vsel %vm804, %v2973, 0.0
      %v3231 = vadd.f32 %v3229, %v3230
      %v3232 = vsel %vm804, %v2975, 0.0
      %v3233 = vadd.f32 %v3231, %v3232
      %v3234 = vsel %vm804, %v2977, 0.0
      %v3235 = vadd.f32 %v3233, %v3234
      %v3236 = vsel %vm804, %v2979, 0.0
      %v3237 = vadd.f32 %v3235, %v3236
      %v3238 = vsel %vm804, %v2981, 0.0
      %v3239 = vadd.f32 %v3237, %v3238
      %v3240 = vsel %vm804, %v2983, 0.0
      %v3241 = vadd.f32 %v3239, %v3240
      %v3242 = vsel %vm804, %v2985, 0.0
      %v3243 = vadd.f32 %v3241, %v3242
      %v3244 = vsel %vm804, %v2987, 0.0
      %v3245 = vadd.f32 %v3243, %v3244
      %v3246 = vsel %vm804, %v2989, 0.0
      %v3247 = vadd.f32 %v3245, %v3246
      %v3248 = vsel %vm804, %v2991, 0.0
      %v3249 = vadd.f32 %v3247, %v3248
      %v3250 = vsel %vm804, %v2993, 0.0
      %v3251 = vadd.f32 %v3249, %v3250
      %v3252 = vsel %vm804, %v2995, 0.0
      %v3253 = vadd.f32 %v3251, %v3252
      %v3254 = vsel %vm804, %v2997, 0.0
      %v3255 = vadd.f32 %v3253, %v3254
      %v3256 = vsel %vm804, %v2999, 0.0
      %v3257 = vadd.f32 %v3255, %v3256
      %v3258 = vsel %vm804, %v3001, 0.0
      %v3259 = vadd.f32 %v3257, %v3258
      %v3260 = vsel %vm804, %v3003, 0.0
      %v3261 = vadd.f32 %v3259, %v3260
      %v3262 = vsel %vm804, %v3005, 0.0
      %v3263 = vadd.f32 %v3261, %v3262
      %v3264 = vsel %vm804, %v3007, 0.0
      %v3265 = vadd.f32 %v3263, %v3264
      %v3266 = vsel %vm804, %v3009, 0.0
      %v3267 = vadd.f32 %v3265, %v3266
      %v3268 = vsel %vm804, %v3011, 0.0
      %v3269 = vadd.f32 %v3267, %v3268
      %v3270 = vsel %vm804, %v3013, 0.0
      %v3271 = vadd.f32 %v3269, %v3270
      %v3272 = vsel %vm804, %v3015, 0.0
      %v3273 = vadd.f32 %v3271, %v3272
      %v3274 = vsel %vm804, %v3017, 0.0
      %v3275 = vadd.f32 %v3273, %v3274
      %v3276 = vsel %vm804, %v3019, 0.0
      %v3277 = vadd.f32 %v3275, %v3276
      %v3278 = vsel %vm804, %v3021, 0.0
      %v3279 = vadd.f32 %v3277, %v3278
      %v3280 = vsel %vm804, %v3023, 0.0
      %v3281 = vadd.f32 %v3279, %v3280
      %v3282 = vsel %vm804, %v3025, 0.0
      %v3283 = vadd.f32 %v3281, %v3282
      %v3284 = vsel %vm804, %v3027, 0.0
      %v3285 = vadd.f32 %v3283, %v3284
      %v3286 = vsel %vm804, %v3029, 0.0
      %v3287 = vadd.f32 %v3285, %v3286
      %v3288 = vsel %vm804, %v3031, 0.0
      %v3289 = vadd.f32 %v3287, %v3288
      %v3290 = vsel %vm804, %v3033, 0.0
      %v3291 = vadd.f32 %v3289, %v3290
      %v3292 = vsel %vm804, %v3035, 0.0
      %v3293 = vadd.f32 %v3291, %v3292
      %v3294 = vsel %vm804, %v3037, 0.0
      %v3295 = vadd.f32 %v3293, %v3294
      %v3296 = vsel %vm804, %v3039, 0.0
      %v3297 = vadd.f32 %v3295, %v3296
      %v3298 = vsel %vm804, %v3041, 0.0
      %v3299 = vadd.f32 %v3297, %v3298
      %v3300 = vsel %vm804, %v3043, 0.0
      %v3301 = vadd.f32 %v3299, %v3300
      %v3302 = vsel %vm804, %v3045, 0.0
      %v3303 = vadd.f32 %v3301, %v3302
      %v3304 = vsel %vm804, %v3047, 0.0
      %v3305 = vadd.f32 %v3303, %v3304
      %v3306 = vsel %vm804, %v3049, 0.0
      %v3307 = vadd.f32 %v3305, %v3306
      %v3308 = vsel %vm804, %v3051, 0.0
      %v3309 = vadd.f32 %v3307, %v3308
      %v3310 = vsel %vm804, %v3053, 0.0
      %v3311 = vadd.f32 %v3309, %v3310
      %v3312 = vsel %vm804, %v3055, 0.0
      %v3313 = vadd.f32 %v3311, %v3312
      %v3314 = vsel %vm804, %v3057, 0.0
      %v3315 = vadd.f32 %v3313, %v3314
      %v3316 = vsel %vm804, %v3059, 0.0
      %v3317 = vadd.f32 %v3315, %v3316
      %v3318 = vsel %vm804, %v3061, 0.0
      %v3319 = vadd.f32 %v3317, %v3318
      %v3320 = vsel %vm804, %v3063, 0.0
      %v3321 = vadd.f32 %v3319, %v3320
      %v3322 = vsel %vm804, %v3065, 0.0
      %v3323 = vadd.f32 %v3321, %v3322
      %v3324 = vsel %vm804, %v3067, 0.0
      %v3325 = vadd.f32 %v3323, %v3324
      %v3326 = vsel %vm804, %v3069, 0.0
      %v3327 = vadd.f32 %v3325, %v3326
      %v3328 = vsel %vm804, %v3071, 0.0
      %v3329 = vadd.f32 %v3327, %v3328
      %v3330 = vsel %vm804, %v3073, 0.0
      %v3331 = vadd.f32 %v3329, %v3330
      %v3332 = vsel %vm804, %v3075, 0.0
      %v3333 = vadd.f32 %v3331, %v3332
      %v3334 = vsel %vm804, %v3077, 0.0
      %v3335 = vadd.f32 %v3333, %v3334
      %v3336 = vsel %vm804, %v3079, 0.0
      %v3337 = vadd.f32 %v3335, %v3336
      %v3338 = vsel %vm804, %v3081, 0.0
      %v3339 = vadd.f32 %v3337, %v3338
      %v3340 = vsel %vm804, %v3083, 0.0
      %v3341 = vadd.f32 %v3339, %v3340
      %v3342 = vsel %vm804, %v3085, 0.0
      %v3343 = vadd.f32 %v3341, %v3342
      %v3344 = vsel %vm804, %v3087, 0.0
      %v3345 = vadd.f32 %v3343, %v3344
      %v3346 = vsel %vm804, %v3089, 0.0
      %v3347 = vadd.f32 %v3345, %v3346
      %v3348 = vsel %vm804, %v3091, 0.0
      %v3349 = vadd.f32 %v3347, %v3348
      %v3350 = vsel %vm804, %v3093, 0.0
      %v3351 = vadd.f32 %v3349, %v3350
      %v3352 = vsel %vm804, %v3095, 0.0
      %v3353 = vadd.f32 %v3351, %v3352
      %v3354 = vsel %vm804, %v3097, 0.0
      %v3355 = vadd.f32 %v3353, %v3354
      %v3356 = vadd.f32 %v2511, %v3226
      %v3357 = vadd.f32 %v2512, %v3355
      %3358 = vrot.lane.b32.xlu0 %v2643, 127
      %v3359 = vpop.permute.xlu0 %3358
      %3360 = vrot.lane.b32.xlu0 %v2644, 127
      %v3361 = vpop.permute.xlu0 %3360
      %3362 = vrot.lane.b32.xlu0 %v2645, 127
      %v3363 = vpop.permute.xlu0 %3362
      %3364 = vrot.lane.b32.xlu0 %v2646, 127
      %v3365 = vpop.permute.xlu0 %3364
      %3366 = vrot.lane.b32.xlu0 %v2647, 127
      %v3367 = vpop.permute.xlu0 %3366
      %3368 = vrot.lane.b32.xlu0 %v2648, 127
      %v3369 = vpop.permute.xlu0 %3368
      %3370 = vrot.lane.b32.xlu0 %v2649, 127
      %v3371 = vpop.permute.xlu0 %3370
      %3372 = vrot.lane.b32.xlu0 %v2650, 127
      %v3373 = vpop.permute.xlu0 %3372
      %3374 = vrot.lane.b32.xlu0 %v2651, 127
      %v3375 = vpop.permute.xlu0 %3374
      %3376 = vrot.lane.b32.xlu0 %v2652, 127
      %v3377 = vpop.permute.xlu0 %3376
      %3378 = vrot.lane.b32.xlu0 %v2653, 127
      %v3379 = vpop.permute.xlu0 %3378
      %3380 = vrot.lane.b32.xlu0 %v2654, 127
      %v3381 = vpop.permute.xlu0 %3380
      %3382 = vrot.lane.b32.xlu0 %v2655, 127
      %v3383 = vpop.permute.xlu0 %3382
      %3384 = vrot.lane.b32.xlu0 %v2656, 127
      %v3385 = vpop.permute.xlu0 %3384
      %3386 = vrot.lane.b32.xlu0 %v2657, 127
      %v3387 = vpop.permute.xlu0 %3386
      %3388 = vrot.lane.b32.xlu0 %v2658, 127
      %v3389 = vpop.permute.xlu0 %3388
      %3390 = vrot.lane.b32.xlu0 %v2659, 127
      %v3391 = vpop.permute.xlu0 %3390
      %3392 = vrot.lane.b32.xlu0 %v2660, 127
      %v3393 = vpop.permute.xlu0 %3392
      %3394 = vrot.lane.b32.xlu0 %v2661, 127
      %v3395 = vpop.permute.xlu0 %3394
      %3396 = vrot.lane.b32.xlu0 %v2662, 127
      %v3397 = vpop.permute.xlu0 %3396
      %3398 = vrot.lane.b32.xlu0 %v2663, 127
      %v3399 = vpop.permute.xlu0 %3398
      %3400 = vrot.lane.b32.xlu0 %v2664, 127
      %v3401 = vpop.permute.xlu0 %3400
      %3402 = vrot.lane.b32.xlu0 %v2665, 127
      %v3403 = vpop.permute.xlu0 %3402
      %3404 = vrot.lane.b32.xlu0 %v2666, 127
      %v3405 = vpop.permute.xlu0 %3404
      %3406 = vrot.lane.b32.xlu0 %v2667, 127
      %v3407 = vpop.permute.xlu0 %3406
      %3408 = vrot.lane.b32.xlu0 %v2668, 127
      %v3409 = vpop.permute.xlu0 %3408
      %3410 = vrot.lane.b32.xlu0 %v2669, 127
      %v3411 = vpop.permute.xlu0 %3410
      %3412 = vrot.lane.b32.xlu0 %v2670, 127
      %v3413 = vpop.permute.xlu0 %3412
      %3414 = vrot.lane.b32.xlu0 %v2671, 127
      %v3415 = vpop.permute.xlu0 %3414
      %3416 = vrot.lane.b32.xlu0 %v2672, 127
      %v3417 = vpop.permute.xlu0 %3416
      %3418 = vrot.lane.b32.xlu0 %v2673, 127
      %v3419 = vpop.permute.xlu0 %3418
      %3420 = vrot.lane.b32.xlu0 %v2674, 127
      %v3421 = vpop.permute.xlu0 %3420
      %3422 = vrot.lane.b32.xlu0 %v2675, 127
      %v3423 = vpop.permute.xlu0 %3422
      %3424 = vrot.lane.b32.xlu0 %v2676, 127
      %v3425 = vpop.permute.xlu0 %3424
      %3426 = vrot.lane.b32.xlu0 %v2677, 127
      %v3427 = vpop.permute.xlu0 %3426
      %3428 = vrot.lane.b32.xlu0 %v2678, 127
      %v3429 = vpop.permute.xlu0 %3428
      %3430 = vrot.lane.b32.xlu0 %v2679, 127
      %v3431 = vpop.permute.xlu0 %3430
      %3432 = vrot.lane.b32.xlu0 %v2680, 127
      %v3433 = vpop.permute.xlu0 %3432
      %3434 = vrot.lane.b32.xlu0 %v2681, 127
      %v3435 = vpop.permute.xlu0 %3434
      %3436 = vrot.lane.b32.xlu0 %v2682, 127
      %v3437 = vpop.permute.xlu0 %3436
      %3438 = vrot.lane.b32.xlu0 %v2683, 127
      %v3439 = vpop.permute.xlu0 %3438
      %3440 = vrot.lane.b32.xlu0 %v2684, 127
      %v3441 = vpop.permute.xlu0 %3440
      %3442 = vrot.lane.b32.xlu0 %v2685, 127
      %v3443 = vpop.permute.xlu0 %3442
      %3444 = vrot.lane.b32.xlu0 %v2686, 127
      %v3445 = vpop.permute.xlu0 %3444
      %3446 = vrot.lane.b32.xlu0 %v2687, 127
      %v3447 = vpop.permute.xlu0 %3446
      %3448 = vrot.lane.b32.xlu0 %v2688, 127
      %v3449 = vpop.permute.xlu0 %3448
      %3450 = vrot.lane.b32.xlu0 %v2689, 127
      %v3451 = vpop.permute.xlu0 %3450
      %3452 = vrot.lane.b32.xlu0 %v2690, 127
      %v3453 = vpop.permute.xlu0 %3452
      %3454 = vrot.lane.b32.xlu0 %v2691, 127
      %v3455 = vpop.permute.xlu0 %3454
      %3456 = vrot.lane.b32.xlu0 %v2692, 127
      %v3457 = vpop.permute.xlu0 %3456
      %3458 = vrot.lane.b32.xlu0 %v2693, 127
      %v3459 = vpop.permute.xlu0 %3458
      %3460 = vrot.lane.b32.xlu0 %v2694, 127
      %v3461 = vpop.permute.xlu0 %3460
      %3462 = vrot.lane.b32.xlu0 %v2695, 127
      %v3463 = vpop.permute.xlu0 %3462
      %3464 = vrot.lane.b32.xlu0 %v2696, 127
      %v3465 = vpop.permute.xlu0 %3464
      %3466 = vrot.lane.b32.xlu0 %v2697, 127
      %v3467 = vpop.permute.xlu0 %3466
      %3468 = vrot.lane.b32.xlu0 %v2698, 127
      %v3469 = vpop.permute.xlu0 %3468
      %3470 = vrot.lane.b32.xlu0 %v2699, 127
      %v3471 = vpop.permute.xlu0 %3470
      %3472 = vrot.lane.b32.xlu0 %v2700, 127
      %v3473 = vpop.permute.xlu0 %3472
      %3474 = vrot.lane.b32.xlu0 %v2701, 127
      %v3475 = vpop.permute.xlu0 %3474
      %3476 = vrot.lane.b32.xlu0 %v2702, 127
      %v3477 = vpop.permute.xlu0 %3476
      %3478 = vrot.lane.b32.xlu0 %v2703, 127
      %v3479 = vpop.permute.xlu0 %3478
      %3480 = vrot.lane.b32.xlu0 %v2704, 127
      %v3481 = vpop.permute.xlu0 %3480
      %3482 = vrot.lane.b32.xlu0 %v2705, 127
      %v3483 = vpop.permute.xlu0 %3482
      %3484 = vrot.lane.b32.xlu0 %v2706, 127
      %v3485 = vpop.permute.xlu0 %3484
      %3486 = vrot.lane.b32.xlu0 %v2707, 127
      %v3487 = vpop.permute.xlu0 %3486
      %s3488 = vtos %v3359
      %v3489 = vstv %s3488
      %s3491 = vtos %v3361
      %v3492 = vstv %s3491
      %s3494 = vtos %v3363
      %v3495 = vstv %s3494
      %s3497 = vtos %v3365
      %v3498 = vstv %s3497
      %s3500 = vtos %v3367
      %v3501 = vstv %s3500
      %s3503 = vtos %v3369
      %v3504 = vstv %s3503
      %s3506 = vtos %v3371
      %v3507 = vstv %s3506
      %s3509 = vtos %v3373
      %v3510 = vstv %s3509
      %s3512 = vtos %v3375
      %v3513 = vstv %s3512
      %s3515 = vtos %v3377
      %v3516 = vstv %s3515
      %s3518 = vtos %v3379
      %v3519 = vstv %s3518
      %s3521 = vtos %v3381
      %v3522 = vstv %s3521
      %s3524 = vtos %v3383
      %v3525 = vstv %s3524
      %s3527 = vtos %v3385
      %v3528 = vstv %s3527
      %s3530 = vtos %v3387
      %v3531 = vstv %s3530
      %s3533 = vtos %v3389
      %v3534 = vstv %s3533
      %s3536 = vtos %v3391
      %v3537 = vstv %s3536
      %s3539 = vtos %v3393
      %v3540 = vstv %s3539
      %s3542 = vtos %v3395
      %v3543 = vstv %s3542
      %s3545 = vtos %v3397
      %v3546 = vstv %s3545
      %s3548 = vtos %v3399
      %v3549 = vstv %s3548
      %s3551 = vtos %v3401
      %v3552 = vstv %s3551
      %s3554 = vtos %v3403
      %v3555 = vstv %s3554
      %s3557 = vtos %v3405
      %v3558 = vstv %s3557
      %s3560 = vtos %v3407
      %v3561 = vstv %s3560
      %s3563 = vtos %v3409
      %v3564 = vstv %s3563
      %s3566 = vtos %v3411
      %v3567 = vstv %s3566
      %s3569 = vtos %v3413
      %v3570 = vstv %s3569
      %s3572 = vtos %v3415
      %v3573 = vstv %s3572
      %s3575 = vtos %v3417
      %v3576 = vstv %s3575
      %s3578 = vtos %v3419
      %v3579 = vstv %s3578
      %s3581 = vtos %v3421
      %v3582 = vstv %s3581
      %s3584 = vtos %v3423
      %v3585 = vstv %s3584
      %s3587 = vtos %v3425
      %v3588 = vstv %s3587
      %s3590 = vtos %v3427
      %v3591 = vstv %s3590
      %s3593 = vtos %v3429
      %v3594 = vstv %s3593
      %s3596 = vtos %v3431
      %v3597 = vstv %s3596
      %s3599 = vtos %v3433
      %v3600 = vstv %s3599
      %s3602 = vtos %v3435
      %v3603 = vstv %s3602
      %s3605 = vtos %v3437
      %v3606 = vstv %s3605
      %s3608 = vtos %v3439
      %v3609 = vstv %s3608
      %s3611 = vtos %v3441
      %v3612 = vstv %s3611
      %s3614 = vtos %v3443
      %v3615 = vstv %s3614
      %s3617 = vtos %v3445
      %v3618 = vstv %s3617
      %s3620 = vtos %v3447
      %v3621 = vstv %s3620
      %s3623 = vtos %v3449
      %v3624 = vstv %s3623
      %s3626 = vtos %v3451
      %v3627 = vstv %s3626
      %s3629 = vtos %v3453
      %v3630 = vstv %s3629
      %s3632 = vtos %v3455
      %v3633 = vstv %s3632
      %s3635 = vtos %v3457
      %v3636 = vstv %s3635
      %s3638 = vtos %v3459
      %v3639 = vstv %s3638
      %s3641 = vtos %v3461
      %v3642 = vstv %s3641
      %s3644 = vtos %v3463
      %v3645 = vstv %s3644
      %s3647 = vtos %v3465
      %v3648 = vstv %s3647
      %s3650 = vtos %v3467
      %v3651 = vstv %s3650
      %s3653 = vtos %v3469
      %v3654 = vstv %s3653
      %s3656 = vtos %v3471
      %v3657 = vstv %s3656
      %s3659 = vtos %v3473
      %v3660 = vstv %s3659
      %s3662 = vtos %v3475
      %v3663 = vstv %s3662
      %s3665 = vtos %v3477
      %v3666 = vstv %s3665
      %s3668 = vtos %v3479
      %v3669 = vstv %s3668
      %s3671 = vtos %v3481
      %v3672 = vstv %s3671
      %s3674 = vtos %v3483
      %v3675 = vstv %s3674
      %s3677 = vtos %v3485
      %v3678 = vstv %s3677
      %s3680 = vtos %v3487
      %v3681 = vstv %s3680
      %v3683 = vmul.f32 %v2513, %v3489
      %v3684 = vmul.f32 %v2514, %v3489
      %v3685 = vmul.f32 %v2515, %v3492
      %v3686 = vmul.f32 %v2516, %v3492
      %v3687 = vmul.f32 %v2517, %v3495
      %v3688 = vmul.f32 %v2518, %v3495
      %v3689 = vmul.f32 %v2519, %v3498
      %v3690 = vmul.f32 %v2520, %v3498
      %v3691 = vmul.f32 %v2521, %v3501
      %v3692 = vmul.f32 %v2522, %v3501
      %v3693 = vmul.f32 %v2523, %v3504
      %v3694 = vmul.f32 %v2524, %v3504
      %v3695 = vmul.f32 %v2525, %v3507
      %v3696 = vmul.f32 %v2526, %v3507
      %v3697 = vmul.f32 %v2527, %v3510
      %v3698 = vmul.f32 %v2528, %v3510
      %v3699 = vmul.f32 %v2529, %v3513
      %v3700 = vmul.f32 %v2530, %v3513
      %v3701 = vmul.f32 %v2531, %v3516
      %v3702 = vmul.f32 %v2532, %v3516
      %v3703 = vmul.f32 %v2533, %v3519
      %v3704 = vmul.f32 %v2534, %v3519
      %v3705 = vmul.f32 %v2535, %v3522
      %v3706 = vmul.f32 %v2536, %v3522
      %v3707 = vmul.f32 %v2537, %v3525
      %v3708 = vmul.f32 %v2538, %v3525
      %v3709 = vmul.f32 %v2539, %v3528
      %v3710 = vmul.f32 %v2540, %v3528
      %v3711 = vmul.f32 %v2541, %v3531
      %v3712 = vmul.f32 %v2542, %v3531
      %v3713 = vmul.f32 %v2543, %v3534
      %v3714 = vmul.f32 %v2544, %v3534
      %v3715 = vmul.f32 %v2545, %v3537
      %v3716 = vmul.f32 %v2546, %v3537
      %v3717 = vmul.f32 %v2547, %v3540
      %v3718 = vmul.f32 %v2548, %v3540
      %v3719 = vmul.f32 %v2549, %v3543
      %v3720 = vmul.f32 %v2550, %v3543
      %v3721 = vmul.f32 %v2551, %v3546
      %v3722 = vmul.f32 %v2552, %v3546
      %v3723 = vmul.f32 %v2553, %v3549
      %v3724 = vmul.f32 %v2554, %v3549
      %v3725 = vmul.f32 %v2555, %v3552
      %v3726 = vmul.f32 %v2556, %v3552
      %v3727 = vmul.f32 %v2557, %v3555
      %v3728 = vmul.f32 %v2558, %v3555
      %v3729 = vmul.f32 %v2559, %v3558
      %v3730 = vmul.f32 %v2560, %v3558
      %v3731 = vmul.f32 %v2561, %v3561
      %v3732 = vmul.f32 %v2562, %v3561
      %v3733 = vmul.f32 %v2563, %v3564
      %v3734 = vmul.f32 %v2564, %v3564
      %v3735 = vmul.f32 %v2565, %v3567
      %v3736 = vmul.f32 %v2566, %v3567
      %v3737 = vmul.f32 %v2567, %v3570
      %v3738 = vmul.f32 %v2568, %v3570
      %v3739 = vmul.f32 %v2569, %v3573
      %v3740 = vmul.f32 %v2570, %v3573
      %v3741 = vmul.f32 %v2571, %v3576
      %v3742 = vmul.f32 %v2572, %v3576
      %v3743 = vmul.f32 %v2573, %v3579
      %v3744 = vmul.f32 %v2574, %v3579
      %v3745 = vmul.f32 %v2575, %v3582
      %v3746 = vmul.f32 %v2576, %v3582
      %v3747 = vmul.f32 %v2577, %v3585
      %v3748 = vmul.f32 %v2578, %v3585
      %v3749 = vmul.f32 %v2579, %v3588
      %v3750 = vmul.f32 %v2580, %v3588
      %v3751 = vmul.f32 %v2581, %v3591
      %v3752 = vmul.f32 %v2582, %v3591
      %v3753 = vmul.f32 %v2583, %v3594
      %v3754 = vmul.f32 %v2584, %v3594
      %v3755 = vmul.f32 %v2585, %v3597
      %v3756 = vmul.f32 %v2586, %v3597
      %v3757 = vmul.f32 %v2587, %v3600
      %v3758 = vmul.f32 %v2588, %v3600
      %v3759 = vmul.f32 %v2589, %v3603
      %v3760 = vmul.f32 %v2590, %v3603
      %v3761 = vmul.f32 %v2591, %v3606
      %v3762 = vmul.f32 %v2592, %v3606
      %v3763 = vmul.f32 %v2593, %v3609
      %v3764 = vmul.f32 %v2594, %v3609
      %v3765 = vmul.f32 %v2595, %v3612
      %v3766 = vmul.f32 %v2596, %v3612
      %v3767 = vmul.f32 %v2597, %v3615
      %v3768 = vmul.f32 %v2598, %v3615
      %v3769 = vmul.f32 %v2599, %v3618
      %v3770 = vmul.f32 %v2600, %v3618
      %v3771 = vmul.f32 %v2601, %v3621
      %v3772 = vmul.f32 %v2602, %v3621
      %v3773 = vmul.f32 %v2603, %v3624
      %v3774 = vmul.f32 %v2604, %v3624
      %v3775 = vmul.f32 %v2605, %v3627
      %v3776 = vmul.f32 %v2606, %v3627
      %v3777 = vmul.f32 %v2607, %v3630
      %v3778 = vmul.f32 %v2608, %v3630
      %v3779 = vmul.f32 %v2609, %v3633
      %v3780 = vmul.f32 %v2610, %v3633
      %v3781 = vmul.f32 %v2611, %v3636
      %v3782 = vmul.f32 %v2612, %v3636
      %v3783 = vmul.f32 %v2613, %v3639
      %v3784 = vmul.f32 %v2614, %v3639
      %v3785 = vmul.f32 %v2615, %v3642
      %v3786 = vmul.f32 %v2616, %v3642
      %v3787 = vmul.f32 %v2617, %v3645
      %v3788 = vmul.f32 %v2618, %v3645
      %v3789 = vmul.f32 %v2619, %v3648
      %v3790 = vmul.f32 %v2620, %v3648
      %v3791 = vmul.f32 %v2621, %v3651
      %v3792 = vmul.f32 %v2622, %v3651
      %v3793 = vmul.f32 %v2623, %v3654
      %v3794 = vmul.f32 %v2624, %v3654
      %v3795 = vmul.f32 %v2625, %v3657
      %v3796 = vmul.f32 %v2626, %v3657
      %v3797 = vmul.f32 %v2627, %v3660
      %v3798 = vmul.f32 %v2628, %v3660
      %v3799 = vmul.f32 %v2629, %v3663
      %v3800 = vmul.f32 %v2630, %v3663
      %v3801 = vmul.f32 %v2631, %v3666
      %v3802 = vmul.f32 %v2632, %v3666
      %v3803 = vmul.f32 %v2633, %v3669
      %v3804 = vmul.f32 %v2634, %v3669
      %v3805 = vmul.f32 %v2635, %v3672
      %v3806 = vmul.f32 %v2636, %v3672
      %v3807 = vmul.f32 %v2637, %v3675
      %v3808 = vmul.f32 %v2638, %v3675
      %v3809 = vmul.f32 %v2639, %v3678
      %v3810 = vmul.f32 %v2640, %v3678
      %v3811 = vmul.f32 %v2641, %v3681
      %v3812 = vmul.f32 %v2642, %v3681
      %v3813 = vsel %vm1520, %v3683, 0.0
      %v3814 = vsel %vm1520, %v3685, 0.0
      %v3815 = vadd.f32 %v3813, %v3814
      %v3816 = vsel %vm1520, %v3687, 0.0
      %v3817 = vadd.f32 %v3815, %v3816
      %v3818 = vsel %vm1520, %v3689, 0.0
      %v3819 = vadd.f32 %v3817, %v3818
      %v3820 = vsel %vm1520, %v3691, 0.0
      %v3821 = vadd.f32 %v3819, %v3820
      %v3822 = vsel %vm1520, %v3693, 0.0
      %v3823 = vadd.f32 %v3821, %v3822
      %v3824 = vsel %vm1520, %v3695, 0.0
      %v3825 = vadd.f32 %v3823, %v3824
      %v3826 = vsel %vm1520, %v3697, 0.0
      %v3827 = vadd.f32 %v3825, %v3826
      %v3828 = vsel %vm1520, %v3699, 0.0
      %v3829 = vadd.f32 %v3827, %v3828
      %v3830 = vsel %vm1520, %v3701, 0.0
      %v3831 = vadd.f32 %v3829, %v3830
      %v3832 = vsel %vm1520, %v3703, 0.0
      %v3833 = vadd.f32 %v3831, %v3832
      %v3834 = vsel %vm1520, %v3705, 0.0
      %v3835 = vadd.f32 %v3833, %v3834
      %v3836 = vsel %vm1520, %v3707, 0.0
      %v3837 = vadd.f32 %v3835, %v3836
      %v3838 = vsel %vm1520, %v3709, 0.0
      %v3839 = vadd.f32 %v3837, %v3838
      %v3840 = vsel %vm1520, %v3711, 0.0
      %v3841 = vadd.f32 %v3839, %v3840
      %v3842 = vsel %vm1520, %v3713, 0.0
      %v3843 = vadd.f32 %v3841, %v3842
      %v3844 = vsel %vm1520, %v3715, 0.0
      %v3845 = vadd.f32 %v3843, %v3844
      %v3846 = vsel %vm1520, %v3717, 0.0
      %v3847 = vadd.f32 %v3845, %v3846
      %v3848 = vsel %vm1520, %v3719, 0.0
      %v3849 = vadd.f32 %v3847, %v3848
      %v3850 = vsel %vm1520, %v3721, 0.0
      %v3851 = vadd.f32 %v3849, %v3850
      %v3852 = vsel %vm1520, %v3723, 0.0
      %v3853 = vadd.f32 %v3851, %v3852
      %v3854 = vsel %vm1520, %v3725, 0.0
      %v3855 = vadd.f32 %v3853, %v3854
      %v3856 = vsel %vm1520, %v3727, 0.0
      %v3857 = vadd.f32 %v3855, %v3856
      %v3858 = vsel %vm1520, %v3729, 0.0
      %v3859 = vadd.f32 %v3857, %v3858
      %v3860 = vsel %vm1520, %v3731, 0.0
      %v3861 = vadd.f32 %v3859, %v3860
      %v3862 = vsel %vm1520, %v3733, 0.0
      %v3863 = vadd.f32 %v3861, %v3862
      %v3864 = vsel %vm1520, %v3735, 0.0
      %v3865 = vadd.f32 %v3863, %v3864
      %v3866 = vsel %vm1520, %v3737, 0.0
      %v3867 = vadd.f32 %v3865, %v3866
      %v3868 = vsel %vm1520, %v3739, 0.0
      %v3869 = vadd.f32 %v3867, %v3868
      %v3870 = vsel %vm1520, %v3741, 0.0
      %v3871 = vadd.f32 %v3869, %v3870
      %v3872 = vsel %vm1520, %v3743, 0.0
      %v3873 = vadd.f32 %v3871, %v3872
      %v3874 = vsel %vm1520, %v3745, 0.0
      %v3875 = vadd.f32 %v3873, %v3874
      %v3876 = vsel %vm1520, %v3747, 0.0
      %v3877 = vadd.f32 %v3875, %v3876
      %v3878 = vsel %vm1520, %v3749, 0.0
      %v3879 = vadd.f32 %v3877, %v3878
      %v3880 = vsel %vm1520, %v3751, 0.0
      %v3881 = vadd.f32 %v3879, %v3880
      %v3882 = vsel %vm1520, %v3753, 0.0
      %v3883 = vadd.f32 %v3881, %v3882
      %v3884 = vsel %vm1520, %v3755, 0.0
      %v3885 = vadd.f32 %v3883, %v3884
      %v3886 = vsel %vm1520, %v3757, 0.0
      %v3887 = vadd.f32 %v3885, %v3886
      %v3888 = vsel %vm1520, %v3759, 0.0
      %v3889 = vadd.f32 %v3887, %v3888
      %v3890 = vsel %vm1520, %v3761, 0.0
      %v3891 = vadd.f32 %v3889, %v3890
      %v3892 = vsel %vm1520, %v3763, 0.0
      %v3893 = vadd.f32 %v3891, %v3892
      %v3894 = vsel %vm1520, %v3765, 0.0
      %v3895 = vadd.f32 %v3893, %v3894
      %v3896 = vsel %vm1520, %v3767, 0.0
      %v3897 = vadd.f32 %v3895, %v3896
      %v3898 = vsel %vm1520, %v3769, 0.0
      %v3899 = vadd.f32 %v3897, %v3898
      %v3900 = vsel %vm1520, %v3771, 0.0
      %v3901 = vadd.f32 %v3899, %v3900
      %v3902 = vsel %vm1520, %v3773, 0.0
      %v3903 = vadd.f32 %v3901, %v3902
      %v3904 = vsel %vm1520, %v3775, 0.0
      %v3905 = vadd.f32 %v3903, %v3904
      %v3906 = vsel %vm1520, %v3777, 0.0
      %v3907 = vadd.f32 %v3905, %v3906
      %v3908 = vsel %vm1520, %v3779, 0.0
      %v3909 = vadd.f32 %v3907, %v3908
      %v3910 = vsel %vm1520, %v3781, 0.0
      %v3911 = vadd.f32 %v3909, %v3910
      %v3912 = vsel %vm1520, %v3783, 0.0
      %v3913 = vadd.f32 %v3911, %v3912
      %v3914 = vsel %vm1520, %v3785, 0.0
      %v3915 = vadd.f32 %v3913, %v3914
      %v3916 = vsel %vm1520, %v3787, 0.0
      %v3917 = vadd.f32 %v3915, %v3916
      %v3918 = vsel %vm1520, %v3789, 0.0
      %v3919 = vadd.f32 %v3917, %v3918
      %v3920 = vsel %vm1520, %v3791, 0.0
      %v3921 = vadd.f32 %v3919, %v3920
      %v3922 = vsel %vm1520, %v3793, 0.0
      %v3923 = vadd.f32 %v3921, %v3922
      %v3924 = vsel %vm1520, %v3795, 0.0
      %v3925 = vadd.f32 %v3923, %v3924
      %v3926 = vsel %vm1520, %v3797, 0.0
      %v3927 = vadd.f32 %v3925, %v3926
      %v3928 = vsel %vm1520, %v3799, 0.0
      %v3929 = vadd.f32 %v3927, %v3928
      %v3930 = vsel %vm1520, %v3801, 0.0
      %v3931 = vadd.f32 %v3929, %v3930
      %v3932 = vsel %vm1520, %v3803, 0.0
      %v3933 = vadd.f32 %v3931, %v3932
      %v3934 = vsel %vm1520, %v3805, 0.0
      %v3935 = vadd.f32 %v3933, %v3934
      %v3936 = vsel %vm1520, %v3807, 0.0
      %v3937 = vadd.f32 %v3935, %v3936
      %v3938 = vsel %vm1520, %v3809, 0.0
      %v3939 = vadd.f32 %v3937, %v3938
      %v3940 = vsel %vm1520, %v3811, 0.0
      %v3941 = vadd.f32 %v3939, %v3940
      %v3942 = vsel %vm1520, %v3684, 0.0
      %v3943 = vsel %vm1520, %v3686, 0.0
      %v3944 = vadd.f32 %v3942, %v3943
      %v3945 = vsel %vm1520, %v3688, 0.0
      %v3946 = vadd.f32 %v3944, %v3945
      %v3947 = vsel %vm1520, %v3690, 0.0
      %v3948 = vadd.f32 %v3946, %v3947
      %v3949 = vsel %vm1520, %v3692, 0.0
      %v3950 = vadd.f32 %v3948, %v3949
      %v3951 = vsel %vm1520, %v3694, 0.0
      %v3952 = vadd.f32 %v3950, %v3951
      %v3953 = vsel %vm1520, %v3696, 0.0
      %v3954 = vadd.f32 %v3952, %v3953
      %v3955 = vsel %vm1520, %v3698, 0.0
      %v3956 = vadd.f32 %v3954, %v3955
      %v3957 = vsel %vm1520, %v3700, 0.0
      %v3958 = vadd.f32 %v3956, %v3957
      %v3959 = vsel %vm1520, %v3702, 0.0
      %v3960 = vadd.f32 %v3958, %v3959
      %v3961 = vsel %vm1520, %v3704, 0.0
      %v3962 = vadd.f32 %v3960, %v3961
      %v3963 = vsel %vm1520, %v3706, 0.0
      %v3964 = vadd.f32 %v3962, %v3963
      %v3965 = vsel %vm1520, %v3708, 0.0
      %v3966 = vadd.f32 %v3964, %v3965
      %v3967 = vsel %vm1520, %v3710, 0.0
      %v3968 = vadd.f32 %v3966, %v3967
      %v3969 = vsel %vm1520, %v3712, 0.0
      %v3970 = vadd.f32 %v3968, %v3969
      %v3971 = vsel %vm1520, %v3714, 0.0
      %v3972 = vadd.f32 %v3970, %v3971
      %v3973 = vsel %vm1520, %v3716, 0.0
      %v3974 = vadd.f32 %v3972, %v3973
      %v3975 = vsel %vm1520, %v3718, 0.0
      %v3976 = vadd.f32 %v3974, %v3975
      %v3977 = vsel %vm1520, %v3720, 0.0
      %v3978 = vadd.f32 %v3976, %v3977
      %v3979 = vsel %vm1520, %v3722, 0.0
      %v3980 = vadd.f32 %v3978, %v3979
      %v3981 = vsel %vm1520, %v3724, 0.0
      %v3982 = vadd.f32 %v3980, %v3981
      %v3983 = vsel %vm1520, %v3726, 0.0
      %v3984 = vadd.f32 %v3982, %v3983
      %v3985 = vsel %vm1520, %v3728, 0.0
      %v3986 = vadd.f32 %v3984, %v3985
      %v3987 = vsel %vm1520, %v3730, 0.0
      %v3988 = vadd.f32 %v3986, %v3987
      %v3989 = vsel %vm1520, %v3732, 0.0
      %v3990 = vadd.f32 %v3988, %v3989
      %v3991 = vsel %vm1520, %v3734, 0.0
      %v3992 = vadd.f32 %v3990, %v3991
      %v3993 = vsel %vm1520, %v3736, 0.0
      %v3994 = vadd.f32 %v3992, %v3993
      %v3995 = vsel %vm1520, %v3738, 0.0
      %v3996 = vadd.f32 %v3994, %v3995
      %v3997 = vsel %vm1520, %v3740, 0.0
      %v3998 = vadd.f32 %v3996, %v3997
      %v3999 = vsel %vm1520, %v3742, 0.0
      %v4000 = vadd.f32 %v3998, %v3999
      %v4001 = vsel %vm1520, %v3744, 0.0
      %v4002 = vadd.f32 %v4000, %v4001
      %v4003 = vsel %vm1520, %v3746, 0.0
      %v4004 = vadd.f32 %v4002, %v4003
      %v4005 = vsel %vm1520, %v3748, 0.0
      %v4006 = vadd.f32 %v4004, %v4005
      %v4007 = vsel %vm1520, %v3750, 0.0
      %v4008 = vadd.f32 %v4006, %v4007
      %v4009 = vsel %vm1520, %v3752, 0.0
      %v4010 = vadd.f32 %v4008, %v4009
      %v4011 = vsel %vm1520, %v3754, 0.0
      %v4012 = vadd.f32 %v4010, %v4011
      %v4013 = vsel %vm1520, %v3756, 0.0
      %v4014 = vadd.f32 %v4012, %v4013
      %v4015 = vsel %vm1520, %v3758, 0.0
      %v4016 = vadd.f32 %v4014, %v4015
      %v4017 = vsel %vm1520, %v3760, 0.0
      %v4018 = vadd.f32 %v4016, %v4017
      %v4019 = vsel %vm1520, %v3762, 0.0
      %v4020 = vadd.f32 %v4018, %v4019
      %v4021 = vsel %vm1520, %v3764, 0.0
      %v4022 = vadd.f32 %v4020, %v4021
      %v4023 = vsel %vm1520, %v3766, 0.0
      %v4024 = vadd.f32 %v4022, %v4023
      %v4025 = vsel %vm1520, %v3768, 0.0
      %v4026 = vadd.f32 %v4024, %v4025
      %v4027 = vsel %vm1520, %v3770, 0.0
      %v4028 = vadd.f32 %v4026, %v4027
      %v4029 = vsel %vm1520, %v3772, 0.0
      %v4030 = vadd.f32 %v4028, %v4029
      %v4031 = vsel %vm1520, %v3774, 0.0
      %v4032 = vadd.f32 %v4030, %v4031
      %v4033 = vsel %vm1520, %v3776, 0.0
      %v4034 = vadd.f32 %v4032, %v4033
      %v4035 = vsel %vm1520, %v3778, 0.0
      %v4036 = vadd.f32 %v4034, %v4035
      %v4037 = vsel %vm1520, %v3780, 0.0
      %v4038 = vadd.f32 %v4036, %v4037
      %v4039 = vsel %vm1520, %v3782, 0.0
      %v4040 = vadd.f32 %v4038, %v4039
      %v4041 = vsel %vm1520, %v3784, 0.0
      %v4042 = vadd.f32 %v4040, %v4041
      %v4043 = vsel %vm1520, %v3786, 0.0
      %v4044 = vadd.f32 %v4042, %v4043
      %v4045 = vsel %vm1520, %v3788, 0.0
      %v4046 = vadd.f32 %v4044, %v4045
      %v4047 = vsel %vm1520, %v3790, 0.0
      %v4048 = vadd.f32 %v4046, %v4047
      %v4049 = vsel %vm1520, %v3792, 0.0
      %v4050 = vadd.f32 %v4048, %v4049
      %v4051 = vsel %vm1520, %v3794, 0.0
      %v4052 = vadd.f32 %v4050, %v4051
      %v4053 = vsel %vm1520, %v3796, 0.0
      %v4054 = vadd.f32 %v4052, %v4053
      %v4055 = vsel %vm1520, %v3798, 0.0
      %v4056 = vadd.f32 %v4054, %v4055
      %v4057 = vsel %vm1520, %v3800, 0.0
      %v4058 = vadd.f32 %v4056, %v4057
      %v4059 = vsel %vm1520, %v3802, 0.0
      %v4060 = vadd.f32 %v4058, %v4059
      %v4061 = vsel %vm1520, %v3804, 0.0
      %v4062 = vadd.f32 %v4060, %v4061
      %v4063 = vsel %vm1520, %v3806, 0.0
      %v4064 = vadd.f32 %v4062, %v4063
      %v4065 = vsel %vm1520, %v3808, 0.0
      %v4066 = vadd.f32 %v4064, %v4065
      %v4067 = vsel %vm1520, %v3810, 0.0
      %v4068 = vadd.f32 %v4066, %v4067
      %v4069 = vsel %vm1520, %v3812, 0.0
      %v4070 = vadd.f32 %v4068, %v4069
      %4073 = vrot.lane.b32.xlu0 %v3941, 127
      %v4074 = vpop.permute.xlu0 %4073
      %4075 = vrot.lane.b32.xlu0 %v4070, 127
      %v4076 = vpop.permute.xlu0 %4075
      %v4079 = vadd.f32 %v3356, %v4074
      %v4080 = vadd.f32 %v3357, %v4076
      %4081 = vrot.lane.b32.xlu0 %v2643, 126
      %v4082 = vpop.permute.xlu0 %4081
      %4083 = vrot.lane.b32.xlu0 %v2644, 126
      %v4084 = vpop.permute.xlu0 %4083
      %4085 = vrot.lane.b32.xlu0 %v2645, 126
      %v4086 = vpop.permute.xlu0 %4085
      %4087 = vrot.lane.b32.xlu0 %v2646, 126
      %v4088 = vpop.permute.xlu0 %4087
      %4089 = vrot.lane.b32.xlu0 %v2647, 126
      %v4090 = vpop.permute.xlu0 %4089
      %4091 = vrot.lane.b32.xlu0 %v2648, 126
      %v4092 = vpop.permute.xlu0 %4091
      %4093 = vrot.lane.b32.xlu0 %v2649, 126
      %v4094 = vpop.permute.xlu0 %4093
      %4095 = vrot.lane.b32.xlu0 %v2650, 126
      %v4096 = vpop.permute.xlu0 %4095
      %4097 = vrot.lane.b32.xlu0 %v2651, 126
      %v4098 = vpop.permute.xlu0 %4097
      %4099 = vrot.lane.b32.xlu0 %v2652, 126
      %v4100 = vpop.permute.xlu0 %4099
      %4101 = vrot.lane.b32.xlu0 %v2653, 126
      %v4102 = vpop.permute.xlu0 %4101
      %4103 = vrot.lane.b32.xlu0 %v2654, 126
      %v4104 = vpop.permute.xlu0 %4103
      %4105 = vrot.lane.b32.xlu0 %v2655, 126
      %v4106 = vpop.permute.xlu0 %4105
      %4107 = vrot.lane.b32.xlu0 %v2656, 126
      %v4108 = vpop.permute.xlu0 %4107
      %4109 = vrot.lane.b32.xlu0 %v2657, 126
      %v4110 = vpop.permute.xlu0 %4109
      %4111 = vrot.lane.b32.xlu0 %v2658, 126
      %v4112 = vpop.permute.xlu0 %4111
      %4113 = vrot.lane.b32.xlu0 %v2659, 126
      %v4114 = vpop.permute.xlu0 %4113
      %4115 = vrot.lane.b32.xlu0 %v2660, 126
      %v4116 = vpop.permute.xlu0 %4115
      %4117 = vrot.lane.b32.xlu0 %v2661, 126
      %v4118 = vpop.permute.xlu0 %4117
      %4119 = vrot.lane.b32.xlu0 %v2662, 126
      %v4120 = vpop.permute.xlu0 %4119
      %4121 = vrot.lane.b32.xlu0 %v2663, 126
      %v4122 = vpop.permute.xlu0 %4121
      %4123 = vrot.lane.b32.xlu0 %v2664, 126
      %v4124 = vpop.permute.xlu0 %4123
      %4125 = vrot.lane.b32.xlu0 %v2665, 126
      %v4126 = vpop.permute.xlu0 %4125
      %4127 = vrot.lane.b32.xlu0 %v2666, 126
      %v4128 = vpop.permute.xlu0 %4127
      %4129 = vrot.lane.b32.xlu0 %v2667, 126
      %v4130 = vpop.permute.xlu0 %4129
      %4131 = vrot.lane.b32.xlu0 %v2668, 126
      %v4132 = vpop.permute.xlu0 %4131
      %4133 = vrot.lane.b32.xlu0 %v2669, 126
      %v4134 = vpop.permute.xlu0 %4133
      %4135 = vrot.lane.b32.xlu0 %v2670, 126
      %v4136 = vpop.permute.xlu0 %4135
      %4137 = vrot.lane.b32.xlu0 %v2671, 126
      %v4138 = vpop.permute.xlu0 %4137
      %4139 = vrot.lane.b32.xlu0 %v2672, 126
      %v4140 = vpop.permute.xlu0 %4139
      %4141 = vrot.lane.b32.xlu0 %v2673, 126
      %v4142 = vpop.permute.xlu0 %4141
      %4143 = vrot.lane.b32.xlu0 %v2674, 126
      %v4144 = vpop.permute.xlu0 %4143
      %4145 = vrot.lane.b32.xlu0 %v2675, 126
      %v4146 = vpop.permute.xlu0 %4145
      %4147 = vrot.lane.b32.xlu0 %v2676, 126
      %v4148 = vpop.permute.xlu0 %4147
      %4149 = vrot.lane.b32.xlu0 %v2677, 126
      %v4150 = vpop.permute.xlu0 %4149
      %4151 = vrot.lane.b32.xlu0 %v2678, 126
      %v4152 = vpop.permute.xlu0 %4151
      %4153 = vrot.lane.b32.xlu0 %v2679, 126
      %v4154 = vpop.permute.xlu0 %4153
      %4155 = vrot.lane.b32.xlu0 %v2680, 126
      %v4156 = vpop.permute.xlu0 %4155
      %4157 = vrot.lane.b32.xlu0 %v2681, 126
      %v4158 = vpop.permute.xlu0 %4157
      %4159 = vrot.lane.b32.xlu0 %v2682, 126
      %v4160 = vpop.permute.xlu0 %4159
      %4161 = vrot.lane.b32.xlu0 %v2683, 126
      %v4162 = vpop.permute.xlu0 %4161
      %4163 = vrot.lane.b32.xlu0 %v2684, 126
      %v4164 = vpop.permute.xlu0 %4163
      %4165 = vrot.lane.b32.xlu0 %v2685, 126
      %v4166 = vpop.permute.xlu0 %4165
      %4167 = vrot.lane.b32.xlu0 %v2686, 126
      %v4168 = vpop.permute.xlu0 %4167
      %4169 = vrot.lane.b32.xlu0 %v2687, 126
      %v4170 = vpop.permute.xlu0 %4169
      %4171 = vrot.lane.b32.xlu0 %v2688, 126
      %v4172 = vpop.permute.xlu0 %4171
      %4173 = vrot.lane.b32.xlu0 %v2689, 126
      %v4174 = vpop.permute.xlu0 %4173
      %4175 = vrot.lane.b32.xlu0 %v2690, 126
      %v4176 = vpop.permute.xlu0 %4175
      %4177 = vrot.lane.b32.xlu0 %v2691, 126
      %v4178 = vpop.permute.xlu0 %4177
      %4179 = vrot.lane.b32.xlu0 %v2692, 126
      %v4180 = vpop.permute.xlu0 %4179
      %4181 = vrot.lane.b32.xlu0 %v2693, 126
      %v4182 = vpop.permute.xlu0 %4181
      %4183 = vrot.lane.b32.xlu0 %v2694, 126
      %v4184 = vpop.permute.xlu0 %4183
      %4185 = vrot.lane.b32.xlu0 %v2695, 126
      %v4186 = vpop.permute.xlu0 %4185
      %4187 = vrot.lane.b32.xlu0 %v2696, 126
      %v4188 = vpop.permute.xlu0 %4187
      %4189 = vrot.lane.b32.xlu0 %v2697, 126
      %v4190 = vpop.permute.xlu0 %4189
      %4191 = vrot.lane.b32.xlu0 %v2698, 126
      %v4192 = vpop.permute.xlu0 %4191
      %4193 = vrot.lane.b32.xlu0 %v2699, 126
      %v4194 = vpop.permute.xlu0 %4193
      %4195 = vrot.lane.b32.xlu0 %v2700, 126
      %v4196 = vpop.permute.xlu0 %4195
      %4197 = vrot.lane.b32.xlu0 %v2701, 126
      %v4198 = vpop.permute.xlu0 %4197
      %4199 = vrot.lane.b32.xlu0 %v2702, 126
      %v4200 = vpop.permute.xlu0 %4199
      %4201 = vrot.lane.b32.xlu0 %v2703, 126
      %v4202 = vpop.permute.xlu0 %4201
      %4203 = vrot.lane.b32.xlu0 %v2704, 126
      %v4204 = vpop.permute.xlu0 %4203
      %4205 = vrot.lane.b32.xlu0 %v2705, 126
      %v4206 = vpop.permute.xlu0 %4205
      %4207 = vrot.lane.b32.xlu0 %v2706, 126
      %v4208 = vpop.permute.xlu0 %4207
      %4209 = vrot.lane.b32.xlu0 %v2707, 126
      %v4210 = vpop.permute.xlu0 %4209
      %s4211 = vtos %v4082
      %v4212 = vstv %s4211
      %s4214 = vtos %v4084
      %v4215 = vstv %s4214
      %s4217 = vtos %v4086
      %v4218 = vstv %s4217
      %s4220 = vtos %v4088
      %v4221 = vstv %s4220
      %s4223 = vtos %v4090
      %v4224 = vstv %s4223
      %s4226 = vtos %v4092
      %v4227 = vstv %s4226
      %s4229 = vtos %v4094
      %v4230 = vstv %s4229
      %s4232 = vtos %v4096
      %v4233 = vstv %s4232
      %s4235 = vtos %v4098
      %v4236 = vstv %s4235
      %s4238 = vtos %v4100
      %v4239 = vstv %s4238
      %s4241 = vtos %v4102
      %v4242 = vstv %s4241
      %s4244 = vtos %v4104
      %v4245 = vstv %s4244
      %s4247 = vtos %v4106
      %v4248 = vstv %s4247
      %s4250 = vtos %v4108
      %v4251 = vstv %s4250
      %s4253 = vtos %v4110
      %v4254 = vstv %s4253
      %s4256 = vtos %v4112
      %v4257 = vstv %s4256
      %s4259 = vtos %v4114
      %v4260 = vstv %s4259
      %s4262 = vtos %v4116
      %v4263 = vstv %s4262
      %s4265 = vtos %v4118
      %v4266 = vstv %s4265
      %s4268 = vtos %v4120
      %v4269 = vstv %s4268
      %s4271 = vtos %v4122
      %v4272 = vstv %s4271
      %s4274 = vtos %v4124
      %v4275 = vstv %s4274
      %s4277 = vtos %v4126
      %v4278 = vstv %s4277
      %s4280 = vtos %v4128
      %v4281 = vstv %s4280
      %s4283 = vtos %v4130
      %v4284 = vstv %s4283
      %s4286 = vtos %v4132
      %v4287 = vstv %s4286
      %s4289 = vtos %v4134
      %v4290 = vstv %s4289
      %s4292 = vtos %v4136
      %v4293 = vstv %s4292
      %s4295 = vtos %v4138
      %v4296 = vstv %s4295
      %s4298 = vtos %v4140
      %v4299 = vstv %s4298
      %s4301 = vtos %v4142
      %v4302 = vstv %s4301
      %s4304 = vtos %v4144
      %v4305 = vstv %s4304
      %s4307 = vtos %v4146
      %v4308 = vstv %s4307
      %s4310 = vtos %v4148
      %v4311 = vstv %s4310
      %s4313 = vtos %v4150
      %v4314 = vstv %s4313
      %s4316 = vtos %v4152
      %v4317 = vstv %s4316
      %s4319 = vtos %v4154
      %v4320 = vstv %s4319
      %s4322 = vtos %v4156
      %v4323 = vstv %s4322
      %s4325 = vtos %v4158
      %v4326 = vstv %s4325
      %s4328 = vtos %v4160
      %v4329 = vstv %s4328
      %s4331 = vtos %v4162
      %v4332 = vstv %s4331
      %s4334 = vtos %v4164
      %v4335 = vstv %s4334
      %s4337 = vtos %v4166
      %v4338 = vstv %s4337
      %s4340 = vtos %v4168
      %v4341 = vstv %s4340
      %s4343 = vtos %v4170
      %v4344 = vstv %s4343
      %s4346 = vtos %v4172
      %v4347 = vstv %s4346
      %s4349 = vtos %v4174
      %v4350 = vstv %s4349
      %s4352 = vtos %v4176
      %v4353 = vstv %s4352
      %s4355 = vtos %v4178
      %v4356 = vstv %s4355
      %s4358 = vtos %v4180
      %v4359 = vstv %s4358
      %s4361 = vtos %v4182
      %v4362 = vstv %s4361
      %s4364 = vtos %v4184
      %v4365 = vstv %s4364
      %s4367 = vtos %v4186
      %v4368 = vstv %s4367
      %s4370 = vtos %v4188
      %v4371 = vstv %s4370
      %s4373 = vtos %v4190
      %v4374 = vstv %s4373
      %s4376 = vtos %v4192
      %v4377 = vstv %s4376
      %s4379 = vtos %v4194
      %v4380 = vstv %s4379
      %s4382 = vtos %v4196
      %v4383 = vstv %s4382
      %s4385 = vtos %v4198
      %v4386 = vstv %s4385
      %s4388 = vtos %v4200
      %v4389 = vstv %s4388
      %s4391 = vtos %v4202
      %v4392 = vstv %s4391
      %s4394 = vtos %v4204
      %v4395 = vstv %s4394
      %s4397 = vtos %v4206
      %v4398 = vstv %s4397
      %s4400 = vtos %v4208
      %v4401 = vstv %s4400
      %s4403 = vtos %v4210
      %v4404 = vstv %s4403
      %v4406 = vmul.f32 %v2513, %v4212
      %v4407 = vmul.f32 %v2514, %v4212
      %v4408 = vmul.f32 %v2515, %v4215
      %v4409 = vmul.f32 %v2516, %v4215
      %v4410 = vmul.f32 %v2517, %v4218
      %v4411 = vmul.f32 %v2518, %v4218
      %v4412 = vmul.f32 %v2519, %v4221
      %v4413 = vmul.f32 %v2520, %v4221
      %v4414 = vmul.f32 %v2521, %v4224
      %v4415 = vmul.f32 %v2522, %v4224
      %v4416 = vmul.f32 %v2523, %v4227
      %v4417 = vmul.f32 %v2524, %v4227
      %v4418 = vmul.f32 %v2525, %v4230
      %v4419 = vmul.f32 %v2526, %v4230
      %v4420 = vmul.f32 %v2527, %v4233
      %v4421 = vmul.f32 %v2528, %v4233
      %v4422 = vmul.f32 %v2529, %v4236
      %v4423 = vmul.f32 %v2530, %v4236
      %v4424 = vmul.f32 %v2531, %v4239
      %v4425 = vmul.f32 %v2532, %v4239
      %v4426 = vmul.f32 %v2533, %v4242
      %v4427 = vmul.f32 %v2534, %v4242
      %v4428 = vmul.f32 %v2535, %v4245
      %v4429 = vmul.f32 %v2536, %v4245
      %v4430 = vmul.f32 %v2537, %v4248
      %v4431 = vmul.f32 %v2538, %v4248
      %v4432 = vmul.f32 %v2539, %v4251
      %v4433 = vmul.f32 %v2540, %v4251
      %v4434 = vmul.f32 %v2541, %v4254
      %v4435 = vmul.f32 %v2542, %v4254
      %v4436 = vmul.f32 %v2543, %v4257
      %v4437 = vmul.f32 %v2544, %v4257
      %v4438 = vmul.f32 %v2545, %v4260
      %v4439 = vmul.f32 %v2546, %v4260
      %v4440 = vmul.f32 %v2547, %v4263
      %v4441 = vmul.f32 %v2548, %v4263
      %v4442 = vmul.f32 %v2549, %v4266
      %v4443 = vmul.f32 %v2550, %v4266
      %v4444 = vmul.f32 %v2551, %v4269
      %v4445 = vmul.f32 %v2552, %v4269
      %v4446 = vmul.f32 %v2553, %v4272
      %v4447 = vmul.f32 %v2554, %v4272
      %v4448 = vmul.f32 %v2555, %v4275
      %v4449 = vmul.f32 %v2556, %v4275
      %v4450 = vmul.f32 %v2557, %v4278
      %v4451 = vmul.f32 %v2558, %v4278
      %v4452 = vmul.f32 %v2559, %v4281
      %v4453 = vmul.f32 %v2560, %v4281
      %v4454 = vmul.f32 %v2561, %v4284
      %v4455 = vmul.f32 %v2562, %v4284
      %v4456 = vmul.f32 %v2563, %v4287
      %v4457 = vmul.f32 %v2564, %v4287
      %v4458 = vmul.f32 %v2565, %v4290
      %v4459 = vmul.f32 %v2566, %v4290
      %v4460 = vmul.f32 %v2567, %v4293
      %v4461 = vmul.f32 %v2568, %v4293
      %v4462 = vmul.f32 %v2569, %v4296
      %v4463 = vmul.f32 %v2570, %v4296
      %v4464 = vmul.f32 %v2571, %v4299
      %v4465 = vmul.f32 %v2572, %v4299
      %v4466 = vmul.f32 %v2573, %v4302
      %v4467 = vmul.f32 %v2574, %v4302
      %v4468 = vmul.f32 %v2575, %v4305
      %v4469 = vmul.f32 %v2576, %v4305
      %v4470 = vmul.f32 %v2577, %v4308
      %v4471 = vmul.f32 %v2578, %v4308
      %v4472 = vmul.f32 %v2579, %v4311
      %v4473 = vmul.f32 %v2580, %v4311
      %v4474 = vmul.f32 %v2581, %v4314
      %v4475 = vmul.f32 %v2582, %v4314
      %v4476 = vmul.f32 %v2583, %v4317
      %v4477 = vmul.f32 %v2584, %v4317
      %v4478 = vmul.f32 %v2585, %v4320
      %v4479 = vmul.f32 %v2586, %v4320
      %v4480 = vmul.f32 %v2587, %v4323
      %v4481 = vmul.f32 %v2588, %v4323
      %v4482 = vmul.f32 %v2589, %v4326
      %v4483 = vmul.f32 %v2590, %v4326
      %v4484 = vmul.f32 %v2591, %v4329
      %v4485 = vmul.f32 %v2592, %v4329
      %v4486 = vmul.f32 %v2593, %v4332
      %v4487 = vmul.f32 %v2594, %v4332
      %v4488 = vmul.f32 %v2595, %v4335
      %v4489 = vmul.f32 %v2596, %v4335
      %v4490 = vmul.f32 %v2597, %v4338
      %v4491 = vmul.f32 %v2598, %v4338
      %v4492 = vmul.f32 %v2599, %v4341
      %v4493 = vmul.f32 %v2600, %v4341
      %v4494 = vmul.f32 %v2601, %v4344
      %v4495 = vmul.f32 %v2602, %v4344
      %v4496 = vmul.f32 %v2603, %v4347
      %v4497 = vmul.f32 %v2604, %v4347
      %v4498 = vmul.f32 %v2605, %v4350
      %v4499 = vmul.f32 %v2606, %v4350
      %v4500 = vmul.f32 %v2607, %v4353
      %v4501 = vmul.f32 %v2608, %v4353
      %v4502 = vmul.f32 %v2609, %v4356
      %v4503 = vmul.f32 %v2610, %v4356
      %v4504 = vmul.f32 %v2611, %v4359
      %v4505 = vmul.f32 %v2612, %v4359
      %v4506 = vmul.f32 %v2613, %v4362
      %v4507 = vmul.f32 %v2614, %v4362
      %v4508 = vmul.f32 %v2615, %v4365
      %v4509 = vmul.f32 %v2616, %v4365
      %v4510 = vmul.f32 %v2617, %v4368
      %v4511 = vmul.f32 %v2618, %v4368
      %v4512 = vmul.f32 %v2619, %v4371
      %v4513 = vmul.f32 %v2620, %v4371
      %v4514 = vmul.f32 %v2621, %v4374
      %v4515 = vmul.f32 %v2622, %v4374
      %v4516 = vmul.f32 %v2623, %v4377
      %v4517 = vmul.f32 %v2624, %v4377
      %v4518 = vmul.f32 %v2625, %v4380
      %v4519 = vmul.f32 %v2626, %v4380
      %v4520 = vmul.f32 %v2627, %v4383
      %v4521 = vmul.f32 %v2628, %v4383
      %v4522 = vmul.f32 %v2629, %v4386
      %v4523 = vmul.f32 %v2630, %v4386
      %v4524 = vmul.f32 %v2631, %v4389
      %v4525 = vmul.f32 %v2632, %v4389
      %v4526 = vmul.f32 %v2633, %v4392
      %v4527 = vmul.f32 %v2634, %v4392
      %v4528 = vmul.f32 %v2635, %v4395
      %v4529 = vmul.f32 %v2636, %v4395
      %v4530 = vmul.f32 %v2637, %v4398
      %v4531 = vmul.f32 %v2638, %v4398
      %v4532 = vmul.f32 %v2639, %v4401
      %v4533 = vmul.f32 %v2640, %v4401
      %v4534 = vmul.f32 %v2641, %v4404
      %v4535 = vmul.f32 %v2642, %v4404
      %v4536 = vsel %vm2244, %v4406, 0.0
      %v4537 = vsel %vm2244, %v4408, 0.0
      %v4538 = vadd.f32 %v4536, %v4537
      %v4539 = vsel %vm2244, %v4410, 0.0
      %v4540 = vadd.f32 %v4538, %v4539
      %v4541 = vsel %vm2244, %v4412, 0.0
      %v4542 = vadd.f32 %v4540, %v4541
      %v4543 = vsel %vm2244, %v4414, 0.0
      %v4544 = vadd.f32 %v4542, %v4543
      %v4545 = vsel %vm2244, %v4416, 0.0
      %v4546 = vadd.f32 %v4544, %v4545
      %v4547 = vsel %vm2244, %v4418, 0.0
      %v4548 = vadd.f32 %v4546, %v4547
      %v4549 = vsel %vm2244, %v4420, 0.0
      %v4550 = vadd.f32 %v4548, %v4549
      %v4551 = vsel %vm2244, %v4422, 0.0
      %v4552 = vadd.f32 %v4550, %v4551
      %v4553 = vsel %vm2244, %v4424, 0.0
      %v4554 = vadd.f32 %v4552, %v4553
      %v4555 = vsel %vm2244, %v4426, 0.0
      %v4556 = vadd.f32 %v4554, %v4555
      %v4557 = vsel %vm2244, %v4428, 0.0
      %v4558 = vadd.f32 %v4556, %v4557
      %v4559 = vsel %vm2244, %v4430, 0.0
      %v4560 = vadd.f32 %v4558, %v4559
      %v4561 = vsel %vm2244, %v4432, 0.0
      %v4562 = vadd.f32 %v4560, %v4561
      %v4563 = vsel %vm2244, %v4434, 0.0
      %v4564 = vadd.f32 %v4562, %v4563
      %v4565 = vsel %vm2244, %v4436, 0.0
      %v4566 = vadd.f32 %v4564, %v4565
      %v4567 = vsel %vm2244, %v4438, 0.0
      %v4568 = vadd.f32 %v4566, %v4567
      %v4569 = vsel %vm2244, %v4440, 0.0
      %v4570 = vadd.f32 %v4568, %v4569
      %v4571 = vsel %vm2244, %v4442, 0.0
      %v4572 = vadd.f32 %v4570, %v4571
      %v4573 = vsel %vm2244, %v4444, 0.0
      %v4574 = vadd.f32 %v4572, %v4573
      %v4575 = vsel %vm2244, %v4446, 0.0
      %v4576 = vadd.f32 %v4574, %v4575
      %v4577 = vsel %vm2244, %v4448, 0.0
      %v4578 = vadd.f32 %v4576, %v4577
      %v4579 = vsel %vm2244, %v4450, 0.0
      %v4580 = vadd.f32 %v4578, %v4579
      %v4581 = vsel %vm2244, %v4452, 0.0
      %v4582 = vadd.f32 %v4580, %v4581
      %v4583 = vsel %vm2244, %v4454, 0.0
      %v4584 = vadd.f32 %v4582, %v4583
      %v4585 = vsel %vm2244, %v4456, 0.0
      %v4586 = vadd.f32 %v4584, %v4585
      %v4587 = vsel %vm2244, %v4458, 0.0
      %v4588 = vadd.f32 %v4586, %v4587
      %v4589 = vsel %vm2244, %v4460, 0.0
      %v4590 = vadd.f32 %v4588, %v4589
      %v4591 = vsel %vm2244, %v4462, 0.0
      %v4592 = vadd.f32 %v4590, %v4591
      %v4593 = vsel %vm2244, %v4464, 0.0
      %v4594 = vadd.f32 %v4592, %v4593
      %v4595 = vsel %vm2244, %v4466, 0.0
      %v4596 = vadd.f32 %v4594, %v4595
      %v4597 = vsel %vm2244, %v4468, 0.0
      %v4598 = vadd.f32 %v4596, %v4597
      %v4599 = vsel %vm2244, %v4470, 0.0
      %v4600 = vadd.f32 %v4598, %v4599
      %v4601 = vsel %vm2244, %v4472, 0.0
      %v4602 = vadd.f32 %v4600, %v4601
      %v4603 = vsel %vm2244, %v4474, 0.0
      %v4604 = vadd.f32 %v4602, %v4603
      %v4605 = vsel %vm2244, %v4476, 0.0
      %v4606 = vadd.f32 %v4604, %v4605
      %v4607 = vsel %vm2244, %v4478, 0.0
      %v4608 = vadd.f32 %v4606, %v4607
      %v4609 = vsel %vm2244, %v4480, 0.0
      %v4610 = vadd.f32 %v4608, %v4609
      %v4611 = vsel %vm2244, %v4482, 0.0
      %v4612 = vadd.f32 %v4610, %v4611
      %v4613 = vsel %vm2244, %v4484, 0.0
      %v4614 = vadd.f32 %v4612, %v4613
      %v4615 = vsel %vm2244, %v4486, 0.0
      %v4616 = vadd.f32 %v4614, %v4615
      %v4617 = vsel %vm2244, %v4488, 0.0
      %v4618 = vadd.f32 %v4616, %v4617
      %v4619 = vsel %vm2244, %v4490, 0.0
      %v4620 = vadd.f32 %v4618, %v4619
      %v4621 = vsel %vm2244, %v4492, 0.0
      %v4622 = vadd.f32 %v4620, %v4621
      %v4623 = vsel %vm2244, %v4494, 0.0
      %v4624 = vadd.f32 %v4622, %v4623
      %v4625 = vsel %vm2244, %v4496, 0.0
      %v4626 = vadd.f32 %v4624, %v4625
      %v4627 = vsel %vm2244, %v4498, 0.0
      %v4628 = vadd.f32 %v4626, %v4627
      %v4629 = vsel %vm2244, %v4500, 0.0
      %v4630 = vadd.f32 %v4628, %v4629
      %v4631 = vsel %vm2244, %v4502, 0.0
      %v4632 = vadd.f32 %v4630, %v4631
      %v4633 = vsel %vm2244, %v4504, 0.0
      %v4634 = vadd.f32 %v4632, %v4633
      %v4635 = vsel %vm2244, %v4506, 0.0
      %v4636 = vadd.f32 %v4634, %v4635
      %v4637 = vsel %vm2244, %v4508, 0.0
      %v4638 = vadd.f32 %v4636, %v4637
      %v4639 = vsel %vm2244, %v4510, 0.0
      %v4640 = vadd.f32 %v4638, %v4639
      %v4641 = vsel %vm2244, %v4512, 0.0
      %v4642 = vadd.f32 %v4640, %v4641
      %v4643 = vsel %vm2244, %v4514, 0.0
      %v4644 = vadd.f32 %v4642, %v4643
      %v4645 = vsel %vm2244, %v4516, 0.0
      %v4646 = vadd.f32 %v4644, %v4645
      %v4647 = vsel %vm2244, %v4518, 0.0
      %v4648 = vadd.f32 %v4646, %v4647
      %v4649 = vsel %vm2244, %v4520, 0.0
      %v4650 = vadd.f32 %v4648, %v4649
      %v4651 = vsel %vm2244, %v4522, 0.0
      %v4652 = vadd.f32 %v4650, %v4651
      %v4653 = vsel %vm2244, %v4524, 0.0
      %v4654 = vadd.f32 %v4652, %v4653
      %v4655 = vsel %vm2244, %v4526, 0.0
      %v4656 = vadd.f32 %v4654, %v4655
      %v4657 = vsel %vm2244, %v4528, 0.0
      %v4658 = vadd.f32 %v4656, %v4657
      %v4659 = vsel %vm2244, %v4530, 0.0
      %v4660 = vadd.f32 %v4658, %v4659
      %v4661 = vsel %vm2244, %v4532, 0.0
      %v4662 = vadd.f32 %v4660, %v4661
      %v4663 = vsel %vm2244, %v4534, 0.0
      %v4664 = vadd.f32 %v4662, %v4663
      %v4665 = vsel %vm2244, %v4407, 0.0
      %v4666 = vsel %vm2244, %v4409, 0.0
      %v4667 = vadd.f32 %v4665, %v4666
      %v4668 = vsel %vm2244, %v4411, 0.0
      %v4669 = vadd.f32 %v4667, %v4668
      %v4670 = vsel %vm2244, %v4413, 0.0
      %v4671 = vadd.f32 %v4669, %v4670
      %v4672 = vsel %vm2244, %v4415, 0.0
      %v4673 = vadd.f32 %v4671, %v4672
      %v4674 = vsel %vm2244, %v4417, 0.0
      %v4675 = vadd.f32 %v4673, %v4674
      %v4676 = vsel %vm2244, %v4419, 0.0
      %v4677 = vadd.f32 %v4675, %v4676
      %v4678 = vsel %vm2244, %v4421, 0.0
      %v4679 = vadd.f32 %v4677, %v4678
      %v4680 = vsel %vm2244, %v4423, 0.0
      %v4681 = vadd.f32 %v4679, %v4680
      %v4682 = vsel %vm2244, %v4425, 0.0
      %v4683 = vadd.f32 %v4681, %v4682
      %v4684 = vsel %vm2244, %v4427, 0.0
      %v4685 = vadd.f32 %v4683, %v4684
      %v4686 = vsel %vm2244, %v4429, 0.0
      %v4687 = vadd.f32 %v4685, %v4686
      %v4688 = vsel %vm2244, %v4431, 0.0
      %v4689 = vadd.f32 %v4687, %v4688
      %v4690 = vsel %vm2244, %v4433, 0.0
      %v4691 = vadd.f32 %v4689, %v4690
      %v4692 = vsel %vm2244, %v4435, 0.0
      %v4693 = vadd.f32 %v4691, %v4692
      %v4694 = vsel %vm2244, %v4437, 0.0
      %v4695 = vadd.f32 %v4693, %v4694
      %v4696 = vsel %vm2244, %v4439, 0.0
      %v4697 = vadd.f32 %v4695, %v4696
      %v4698 = vsel %vm2244, %v4441, 0.0
      %v4699 = vadd.f32 %v4697, %v4698
      %v4700 = vsel %vm2244, %v4443, 0.0
      %v4701 = vadd.f32 %v4699, %v4700
      %v4702 = vsel %vm2244, %v4445, 0.0
      %v4703 = vadd.f32 %v4701, %v4702
      %v4704 = vsel %vm2244, %v4447, 0.0
      %v4705 = vadd.f32 %v4703, %v4704
      %v4706 = vsel %vm2244, %v4449, 0.0
      %v4707 = vadd.f32 %v4705, %v4706
      %v4708 = vsel %vm2244, %v4451, 0.0
      %v4709 = vadd.f32 %v4707, %v4708
      %v4710 = vsel %vm2244, %v4453, 0.0
      %v4711 = vadd.f32 %v4709, %v4710
      %v4712 = vsel %vm2244, %v4455, 0.0
      %v4713 = vadd.f32 %v4711, %v4712
      %v4714 = vsel %vm2244, %v4457, 0.0
      %v4715 = vadd.f32 %v4713, %v4714
      %v4716 = vsel %vm2244, %v4459, 0.0
      %v4717 = vadd.f32 %v4715, %v4716
      %v4718 = vsel %vm2244, %v4461, 0.0
      %v4719 = vadd.f32 %v4717, %v4718
      %v4720 = vsel %vm2244, %v4463, 0.0
      %v4721 = vadd.f32 %v4719, %v4720
      %v4722 = vsel %vm2244, %v4465, 0.0
      %v4723 = vadd.f32 %v4721, %v4722
      %v4724 = vsel %vm2244, %v4467, 0.0
      %v4725 = vadd.f32 %v4723, %v4724
      %v4726 = vsel %vm2244, %v4469, 0.0
      %v4727 = vadd.f32 %v4725, %v4726
      %v4728 = vsel %vm2244, %v4471, 0.0
      %v4729 = vadd.f32 %v4727, %v4728
      %v4730 = vsel %vm2244, %v4473, 0.0
      %v4731 = vadd.f32 %v4729, %v4730
      %v4732 = vsel %vm2244, %v4475, 0.0
      %v4733 = vadd.f32 %v4731, %v4732
      %v4734 = vsel %vm2244, %v4477, 0.0
      %v4735 = vadd.f32 %v4733, %v4734
      %v4736 = vsel %vm2244, %v4479, 0.0
      %v4737 = vadd.f32 %v4735, %v4736
      %v4738 = vsel %vm2244, %v4481, 0.0
      %v4739 = vadd.f32 %v4737, %v4738
      %v4740 = vsel %vm2244, %v4483, 0.0
      %v4741 = vadd.f32 %v4739, %v4740
      %v4742 = vsel %vm2244, %v4485, 0.0
      %v4743 = vadd.f32 %v4741, %v4742
      %v4744 = vsel %vm2244, %v4487, 0.0
      %v4745 = vadd.f32 %v4743, %v4744
      %v4746 = vsel %vm2244, %v4489, 0.0
      %v4747 = vadd.f32 %v4745, %v4746
      %v4748 = vsel %vm2244, %v4491, 0.0
      %v4749 = vadd.f32 %v4747, %v4748
      %v4750 = vsel %vm2244, %v4493, 0.0
      %v4751 = vadd.f32 %v4749, %v4750
      %v4752 = vsel %vm2244, %v4495, 0.0
      %v4753 = vadd.f32 %v4751, %v4752
      %v4754 = vsel %vm2244, %v4497, 0.0
      %v4755 = vadd.f32 %v4753, %v4754
      %v4756 = vsel %vm2244, %v4499, 0.0
      %v4757 = vadd.f32 %v4755, %v4756
      %v4758 = vsel %vm2244, %v4501, 0.0
      %v4759 = vadd.f32 %v4757, %v4758
      %v4760 = vsel %vm2244, %v4503, 0.0
      %v4761 = vadd.f32 %v4759, %v4760
      %v4762 = vsel %vm2244, %v4505, 0.0
      %v4763 = vadd.f32 %v4761, %v4762
      %v4764 = vsel %vm2244, %v4507, 0.0
      %v4765 = vadd.f32 %v4763, %v4764
      %v4766 = vsel %vm2244, %v4509, 0.0
      %v4767 = vadd.f32 %v4765, %v4766
      %v4768 = vsel %vm2244, %v4511, 0.0
      %v4769 = vadd.f32 %v4767, %v4768
      %v4770 = vsel %vm2244, %v4513, 0.0
      %v4771 = vadd.f32 %v4769, %v4770
      %v4772 = vsel %vm2244, %v4515, 0.0
      %v4773 = vadd.f32 %v4771, %v4772
      %v4774 = vsel %vm2244, %v4517, 0.0
      %v4775 = vadd.f32 %v4773, %v4774
      %v4776 = vsel %vm2244, %v4519, 0.0
      %v4777 = vadd.f32 %v4775, %v4776
      %v4778 = vsel %vm2244, %v4521, 0.0
      %v4779 = vadd.f32 %v4777, %v4778
      %v4780 = vsel %vm2244, %v4523, 0.0
      %v4781 = vadd.f32 %v4779, %v4780
      %v4782 = vsel %vm2244, %v4525, 0.0
      %v4783 = vadd.f32 %v4781, %v4782
      %v4784 = vsel %vm2244, %v4527, 0.0
      %v4785 = vadd.f32 %v4783, %v4784
      %v4786 = vsel %vm2244, %v4529, 0.0
      %v4787 = vadd.f32 %v4785, %v4786
      %v4788 = vsel %vm2244, %v4531, 0.0
      %v4789 = vadd.f32 %v4787, %v4788
      %v4790 = vsel %vm2244, %v4533, 0.0
      %v4791 = vadd.f32 %v4789, %v4790
      %v4792 = vsel %vm2244, %v4535, 0.0
      %v4793 = vadd.f32 %v4791, %v4792
      %4796 = vrot.lane.b32.xlu0 %v4664, 126
      %v4797 = vpop.permute.xlu0 %4796
      %4798 = vrot.lane.b32.xlu0 %v4793, 126
      %v4799 = vpop.permute.xlu0 %4798
      %v4802 = vadd.f32 %v4079, %v4797
      %v4803 = vadd.f32 %v4080, %v4799
      %v4804 = vld [vmem:[%s208 + $0x2] sm:$0xff]
      %v4805 = vld [vmem:[%s208 + $0xa] sm:$0xff]
      %v4806 = vld [vmem:[%s208 + $0x1a] sm:$0xff]
      %v4807 = vld [vmem:[%s208 + $0x22] sm:$0xff]
      %v4808 = vld [vmem:[%s208 + $0x32] sm:$0xff]
      %v4809 = vld [vmem:[%s208 + $0x3a] sm:$0xff]
      %v4810 = vld [vmem:[%s208 + $0x4a] sm:$0xff]
      %v4811 = vld [vmem:[%s208 + $0x52] sm:$0xff]
      %v4812 = vld [vmem:[%s208 + $0x62] sm:$0xff]
      %v4813 = vld [vmem:[%s208 + $0x6a] sm:$0xff]
      %v4814 = vld [vmem:[%s208 + $0x7a] sm:$0xff]
      %v4815 = vld [vmem:[%s208 + $0x82] sm:$0xff]
      %v4816 = vld [vmem:[%s208 + $0x92] sm:$0xff]
      %v4817 = vld [vmem:[%s208 + $0x9a] sm:$0xff]
      %v4818 = vld [vmem:[%s208 + $0xaa] sm:$0xff]
      %v4819 = vld [vmem:[%s208 + $0xb2] sm:$0xff]
      %v4820 = vld [vmem:[%s208 + $0xc2] sm:$0xff]
      %v4821 = vld [vmem:[%s208 + $0xca] sm:$0xff]
      %v4822 = vld [vmem:[%s208 + $0xda] sm:$0xff]
      %v4823 = vld [vmem:[%s208 + $0xe2] sm:$0xff]
      %v4824 = vld [vmem:[%s208 + $0xf2] sm:$0xff]
      %v4825 = vld [vmem:[%s208 + $0xfa] sm:$0xff]
      %v4826 = vld [vmem:[%s208 + $0x10a] sm:$0xff]
      %v4827 = vld [vmem:[%s208 + $0x112] sm:$0xff]
      %v4828 = vld [vmem:[%s208 + $0x122] sm:$0xff]
      %v4829 = vld [vmem:[%s208 + $0x12a] sm:$0xff]
      %v4830 = vld [vmem:[%s208 + $0x13a] sm:$0xff]
      %v4831 = vld [vmem:[%s208 + $0x142] sm:$0xff]
      %v4832 = vld [vmem:[%s208 + $0x152] sm:$0xff]
      %v4833 = vld [vmem:[%s208 + $0x15a] sm:$0xff]
      %v4834 = vld [vmem:[%s208 + $0x16a] sm:$0xff]
      %v4835 = vld [vmem:[%s208 + $0x172] sm:$0xff]
      %v4836 = vld [vmem:[%s208 + $0x182] sm:$0xff]
      %v4837 = vld [vmem:[%s208 + $0x18a] sm:$0xff]
      %v4838 = vld [vmem:[%s208 + $0x19a] sm:$0xff]
      %v4839 = vld [vmem:[%s208 + $0x1a2] sm:$0xff]
      %v4840 = vld [vmem:[%s208 + $0x1b2] sm:$0xff]
      %v4841 = vld [vmem:[%s208 + $0x1ba] sm:$0xff]
      %v4842 = vld [vmem:[%s208 + $0x1ca] sm:$0xff]
      %v4843 = vld [vmem:[%s208 + $0x1d2] sm:$0xff]
      %v4844 = vld [vmem:[%s208 + $0x1e2] sm:$0xff]
      %v4845 = vld [vmem:[%s208 + $0x1ea] sm:$0xff]
      %v4846 = vld [vmem:[%s208 + $0x1fa] sm:$0xff]
      %v4847 = vld [vmem:[%s208 + $0x202] sm:$0xff]
      %v4848 = vld [vmem:[%s208 + $0x212] sm:$0xff]
      %v4849 = vld [vmem:[%s208 + $0x21a] sm:$0xff]
      %v4850 = vld [vmem:[%s208 + $0x22a] sm:$0xff]
      %v4851 = vld [vmem:[%s208 + $0x232] sm:$0xff]
      %v4852 = vld [vmem:[%s208 + $0x242] sm:$0xff]
      %v4853 = vld [vmem:[%s208 + $0x24a] sm:$0xff]
      %v4854 = vld [vmem:[%s208 + $0x25a] sm:$0xff]
      %v4855 = vld [vmem:[%s208 + $0x262] sm:$0xff]
      %v4856 = vld [vmem:[%s208 + $0x272] sm:$0xff]
      %v4857 = vld [vmem:[%s208 + $0x27a] sm:$0xff]
      %v4858 = vld [vmem:[%s208 + $0x28a] sm:$0xff]
      %v4859 = vld [vmem:[%s208 + $0x292] sm:$0xff]
      %v4860 = vld [vmem:[%s208 + $0x2a2] sm:$0xff]
      %v4861 = vld [vmem:[%s208 + $0x2aa] sm:$0xff]
      %v4862 = vld [vmem:[%s208 + $0x2ba] sm:$0xff]
      %v4863 = vld [vmem:[%s208 + $0x2c2] sm:$0xff]
      %v4864 = vld [vmem:[%s208 + $0x2d2] sm:$0xff]
      %v4865 = vld [vmem:[%s208 + $0x2da] sm:$0xff]
      %v4866 = vld [vmem:[%s208 + $0x2ea] sm:$0xff]
      %v4867 = vld [vmem:[%s208 + $0x2f2] sm:$0xff]
      %v4868 = vld [vmem:[%s208 + $0x302] sm:$0xff]
      %v4869 = vld [vmem:[%s208 + $0x30a] sm:$0xff]
      %v4870 = vld [vmem:[%s208 + $0x31a] sm:$0xff]
      %v4871 = vld [vmem:[%s208 + $0x322] sm:$0xff]
      %v4872 = vld [vmem:[%s208 + $0x332] sm:$0xff]
      %v4873 = vld [vmem:[%s208 + $0x33a] sm:$0xff]
      %v4874 = vld [vmem:[%s208 + $0x34a] sm:$0xff]
      %v4875 = vld [vmem:[%s208 + $0x352] sm:$0xff]
      %v4876 = vld [vmem:[%s208 + $0x362] sm:$0xff]
      %v4877 = vld [vmem:[%s208 + $0x36a] sm:$0xff]
      %v4878 = vld [vmem:[%s208 + $0x37a] sm:$0xff]
      %v4879 = vld [vmem:[%s208 + $0x382] sm:$0xff]
      %v4880 = vld [vmem:[%s208 + $0x392] sm:$0xff]
      %v4881 = vld [vmem:[%s208 + $0x39a] sm:$0xff]
      %v4882 = vld [vmem:[%s208 + $0x3aa] sm:$0xff]
      %v4883 = vld [vmem:[%s208 + $0x3b2] sm:$0xff]
      %v4884 = vld [vmem:[%s208 + $0x3c2] sm:$0xff]
      %v4885 = vld [vmem:[%s208 + $0x3ca] sm:$0xff]
      %v4886 = vld [vmem:[%s208 + $0x3da] sm:$0xff]
      %v4887 = vld [vmem:[%s208 + $0x3e2] sm:$0xff]
      %v4888 = vld [vmem:[%s208 + $0x3f2] sm:$0xff]
      %v4889 = vld [vmem:[%s208 + $0x3fa] sm:$0xff]
      %v4890 = vld [vmem:[%s208 + $0x40a] sm:$0xff]
      %v4891 = vld [vmem:[%s208 + $0x412] sm:$0xff]
      %v4892 = vld [vmem:[%s208 + $0x422] sm:$0xff]
      %v4893 = vld [vmem:[%s208 + $0x42a] sm:$0xff]
      %v4894 = vld [vmem:[%s208 + $0x43a] sm:$0xff]
      %v4895 = vld [vmem:[%s208 + $0x442] sm:$0xff]
      %v4896 = vld [vmem:[%s208 + $0x452] sm:$0xff]
      %v4897 = vld [vmem:[%s208 + $0x45a] sm:$0xff]
      %v4898 = vld [vmem:[%s208 + $0x46a] sm:$0xff]
      %v4899 = vld [vmem:[%s208 + $0x472] sm:$0xff]
      %v4900 = vld [vmem:[%s208 + $0x482] sm:$0xff]
      %v4901 = vld [vmem:[%s208 + $0x48a] sm:$0xff]
      %v4902 = vld [vmem:[%s208 + $0x49a] sm:$0xff]
      %v4903 = vld [vmem:[%s208 + $0x4a2] sm:$0xff]
      %v4904 = vld [vmem:[%s208 + $0x4b2] sm:$0xff]
      %v4905 = vld [vmem:[%s208 + $0x4ba] sm:$0xff]
      %v4906 = vld [vmem:[%s208 + $0x4ca] sm:$0xff]
      %v4907 = vld [vmem:[%s208 + $0x4d2] sm:$0xff]
      %v4908 = vld [vmem:[%s208 + $0x4e2] sm:$0xff]
      %v4909 = vld [vmem:[%s208 + $0x4ea] sm:$0xff]
      %v4910 = vld [vmem:[%s208 + $0x4fa] sm:$0xff]
      %v4911 = vld [vmem:[%s208 + $0x502] sm:$0xff]
      %v4912 = vld [vmem:[%s208 + $0x512] sm:$0xff]
      %v4913 = vld [vmem:[%s208 + $0x51a] sm:$0xff]
      %v4914 = vld [vmem:[%s208 + $0x52a] sm:$0xff]
      %v4915 = vld [vmem:[%s208 + $0x532] sm:$0xff]
      %v4916 = vld [vmem:[%s208 + $0x542] sm:$0xff]
      %v4917 = vld [vmem:[%s208 + $0x54a] sm:$0xff]
      %v4918 = vld [vmem:[%s208 + $0x55a] sm:$0xff]
      %v4919 = vld [vmem:[%s208 + $0x562] sm:$0xff]
      %v4920 = vld [vmem:[%s208 + $0x572] sm:$0xff]
      %v4921 = vld [vmem:[%s208 + $0x57a] sm:$0xff]
      %v4922 = vld [vmem:[%s208 + $0x58a] sm:$0xff]
      %v4923 = vld [vmem:[%s208 + $0x592] sm:$0xff]
      %v4924 = vld [vmem:[%s208 + $0x5a2] sm:$0xff]
      %v4925 = vld [vmem:[%s208 + $0x5aa] sm:$0xff]
      %v4926 = vld [vmem:[%s208 + $0x5ba] sm:$0xff]
      %v4927 = vld [vmem:[%s208 + $0x5c2] sm:$0xff]
      %v4928 = vld [vmem:[%s208 + $0x5d2] sm:$0xff]
      %v4929 = vld [vmem:[%s208 + $0x5da] sm:$0xff]
      %v4930 = vld [vmem:[%s208 + $0x5ea] sm:$0xff]
      %v4931 = vld [vmem:[%s208 + $0x5f2] sm:$0xff]
      %v4932 = vld [vmem:[%s208 + $0x602] sm:$0xff]
      %v4933 = vld [vmem:[%s208 + $0x60a] sm:$0xff]
      %v4934 = vld [vmem:[%s1 + $0x2] sm:$0x1]
      %v4935 = vld [vmem:[%s1 + $0x6] sm:$0x1]
      %v4936 = vld [vmem:[%s1 + $0xa] sm:$0x1]
      %v4937 = vld [vmem:[%s1 + $0xe] sm:$0x1]
      %v4938 = vld [vmem:[%s1 + $0x12] sm:$0x1]
      %v4939 = vld [vmem:[%s1 + $0x16] sm:$0x1]
      %v4940 = vld [vmem:[%s1 + $0x1a] sm:$0x1]
      %v4941 = vld [vmem:[%s1 + $0x1e] sm:$0x1]
      %v4942 = vld [vmem:[%s1 + $0x22] sm:$0x1]
      %v4943 = vld [vmem:[%s1 + $0x26] sm:$0x1]
      %v4944 = vld [vmem:[%s1 + $0x2a] sm:$0x1]
      %v4945 = vld [vmem:[%s1 + $0x2e] sm:$0x1]
      %v4946 = vld [vmem:[%s1 + $0x32] sm:$0x1]
      %v4947 = vld [vmem:[%s1 + $0x36] sm:$0x1]
      %v4948 = vld [vmem:[%s1 + $0x3a] sm:$0x1]
      %v4949 = vld [vmem:[%s1 + $0x3e] sm:$0x1]
      %v4950 = vld [vmem:[%s1 + $0x42] sm:$0x1]
      %v4951 = vld [vmem:[%s1 + $0x46] sm:$0x1]
      %v4952 = vld [vmem:[%s1 + $0x4a] sm:$0x1]
      %v4953 = vld [vmem:[%s1 + $0x4e] sm:$0x1]
      %v4954 = vld [vmem:[%s1 + $0x52] sm:$0x1]
      %v4955 = vld [vmem:[%s1 + $0x56] sm:$0x1]
      %v4956 = vld [vmem:[%s1 + $0x5a] sm:$0x1]
      %v4957 = vld [vmem:[%s1 + $0x5e] sm:$0x1]
      %v4958 = vld [vmem:[%s1 + $0x62] sm:$0x1]
      %v4959 = vld [vmem:[%s1 + $0x66] sm:$0x1]
      %v4960 = vld [vmem:[%s1 + $0x6a] sm:$0x1]
      %v4961 = vld [vmem:[%s1 + $0x6e] sm:$0x1]
      %v4962 = vld [vmem:[%s1 + $0x72] sm:$0x1]
      %v4963 = vld [vmem:[%s1 + $0x76] sm:$0x1]
      %v4964 = vld [vmem:[%s1 + $0x7a] sm:$0x1]
      %v4965 = vld [vmem:[%s1 + $0x7e] sm:$0x1]
      %v4966 = vld [vmem:[%s1 + $0x82] sm:$0x1]
      %v4967 = vld [vmem:[%s1 + $0x86] sm:$0x1]
      %v4968 = vld [vmem:[%s1 + $0x8a] sm:$0x1]
      %v4969 = vld [vmem:[%s1 + $0x8e] sm:$0x1]
      %v4970 = vld [vmem:[%s1 + $0x92] sm:$0x1]
      %v4971 = vld [vmem:[%s1 + $0x96] sm:$0x1]
      %v4972 = vld [vmem:[%s1 + $0x9a] sm:$0x1]
      %v4973 = vld [vmem:[%s1 + $0x9e] sm:$0x1]
      %v4974 = vld [vmem:[%s1 + $0xa2] sm:$0x1]
      %v4975 = vld [vmem:[%s1 + $0xa6] sm:$0x1]
      %v4976 = vld [vmem:[%s1 + $0xaa] sm:$0x1]
      %v4977 = vld [vmem:[%s1 + $0xae] sm:$0x1]
      %v4978 = vld [vmem:[%s1 + $0xb2] sm:$0x1]
      %v4979 = vld [vmem:[%s1 + $0xb6] sm:$0x1]
      %v4980 = vld [vmem:[%s1 + $0xba] sm:$0x1]
      %v4981 = vld [vmem:[%s1 + $0xbe] sm:$0x1]
      %v4982 = vld [vmem:[%s1 + $0xc2] sm:$0x1]
      %v4983 = vld [vmem:[%s1 + $0xc6] sm:$0x1]
      %v4984 = vld [vmem:[%s1 + $0xca] sm:$0x1]
      %v4985 = vld [vmem:[%s1 + $0xce] sm:$0x1]
      %v4986 = vld [vmem:[%s1 + $0xd2] sm:$0x1]
      %v4987 = vld [vmem:[%s1 + $0xd6] sm:$0x1]
      %v4988 = vld [vmem:[%s1 + $0xda] sm:$0x1]
      %v4989 = vld [vmem:[%s1 + $0xde] sm:$0x1]
      %v4990 = vld [vmem:[%s1 + $0xe2] sm:$0x1]
      %v4991 = vld [vmem:[%s1 + $0xe6] sm:$0x1]
      %v4992 = vld [vmem:[%s1 + $0xea] sm:$0x1]
      %v4993 = vld [vmem:[%s1 + $0xee] sm:$0x1]
      %v4994 = vld [vmem:[%s1 + $0xf2] sm:$0x1]
      %v4995 = vld [vmem:[%s1 + $0xf6] sm:$0x1]
      %v4996 = vld [vmem:[%s1 + $0xfa] sm:$0x1]
      %v4997 = vld [vmem:[%s1 + $0xfe] sm:$0x1]
      %v4998 = vld [vmem:[%s1 + $0x102] sm:$0x1]
      %s5000 = vtos %v4934
      %v5001 = vstv %s5000
      %s5004 = vtos %v4935
      %v5005 = vstv %s5004
      %s5008 = vtos %v4936
      %v5009 = vstv %s5008
      %s5012 = vtos %v4937
      %v5013 = vstv %s5012
      %s5016 = vtos %v4938
      %v5017 = vstv %s5016
      %s5020 = vtos %v4939
      %v5021 = vstv %s5020
      %s5024 = vtos %v4940
      %v5025 = vstv %s5024
      %s5028 = vtos %v4941
      %v5029 = vstv %s5028
      %s5032 = vtos %v4942
      %v5033 = vstv %s5032
      %s5036 = vtos %v4943
      %v5037 = vstv %s5036
      %s5040 = vtos %v4944
      %v5041 = vstv %s5040
      %s5044 = vtos %v4945
      %v5045 = vstv %s5044
      %s5048 = vtos %v4946
      %v5049 = vstv %s5048
      %s5052 = vtos %v4947
      %v5053 = vstv %s5052
      %s5056 = vtos %v4948
      %v5057 = vstv %s5056
      %s5060 = vtos %v4949
      %v5061 = vstv %s5060
      %s5064 = vtos %v4950
      %v5065 = vstv %s5064
      %s5068 = vtos %v4951
      %v5069 = vstv %s5068
      %s5072 = vtos %v4952
      %v5073 = vstv %s5072
      %s5076 = vtos %v4953
      %v5077 = vstv %s5076
      %s5080 = vtos %v4954
      %v5081 = vstv %s5080
      %s5084 = vtos %v4955
      %v5085 = vstv %s5084
      %s5088 = vtos %v4956
      %v5089 = vstv %s5088
      %s5092 = vtos %v4957
      %v5093 = vstv %s5092
      %s5096 = vtos %v4958
      %v5097 = vstv %s5096
      %s5100 = vtos %v4959
      %v5101 = vstv %s5100
      %s5104 = vtos %v4960
      %v5105 = vstv %s5104
      %s5108 = vtos %v4961
      %v5109 = vstv %s5108
      %s5112 = vtos %v4962
      %v5113 = vstv %s5112
      %s5116 = vtos %v4963
      %v5117 = vstv %s5116
      %s5120 = vtos %v4964
      %v5121 = vstv %s5120
      %s5124 = vtos %v4965
      %v5125 = vstv %s5124
      %s5128 = vtos %v4966
      %v5129 = vstv %s5128
      %s5132 = vtos %v4967
      %v5133 = vstv %s5132
      %s5136 = vtos %v4968
      %v5137 = vstv %s5136
      %s5140 = vtos %v4969
      %v5141 = vstv %s5140
      %s5144 = vtos %v4970
      %v5145 = vstv %s5144
      %s5148 = vtos %v4971
      %v5149 = vstv %s5148
      %s5152 = vtos %v4972
      %v5153 = vstv %s5152
      %s5156 = vtos %v4973
      %v5157 = vstv %s5156
      %s5160 = vtos %v4974
      %v5161 = vstv %s5160
      %s5164 = vtos %v4975
      %v5165 = vstv %s5164
      %s5168 = vtos %v4976
      %v5169 = vstv %s5168
      %s5172 = vtos %v4977
      %v5173 = vstv %s5172
      %s5176 = vtos %v4978
      %v5177 = vstv %s5176
      %s5180 = vtos %v4979
      %v5181 = vstv %s5180
      %s5184 = vtos %v4980
      %v5185 = vstv %s5184
      %s5188 = vtos %v4981
      %v5189 = vstv %s5188
      %s5192 = vtos %v4982
      %v5193 = vstv %s5192
      %s5196 = vtos %v4983
      %v5197 = vstv %s5196
      %s5200 = vtos %v4984
      %v5201 = vstv %s5200
      %s5204 = vtos %v4985
      %v5205 = vstv %s5204
      %s5208 = vtos %v4986
      %v5209 = vstv %s5208
      %s5212 = vtos %v4987
      %v5213 = vstv %s5212
      %s5216 = vtos %v4988
      %v5217 = vstv %s5216
      %s5220 = vtos %v4989
      %v5221 = vstv %s5220
      %s5224 = vtos %v4990
      %v5225 = vstv %s5224
      %s5228 = vtos %v4991
      %v5229 = vstv %s5228
      %s5232 = vtos %v4992
      %v5233 = vstv %s5232
      %s5236 = vtos %v4993
      %v5237 = vstv %s5236
      %s5240 = vtos %v4994
      %v5241 = vstv %s5240
      %s5244 = vtos %v4995
      %v5245 = vstv %s5244
      %s5248 = vtos %v4996
      %v5249 = vstv %s5248
      %s5252 = vtos %v4997
      %v5253 = vstv %s5252
      %s5256 = vtos %v4998
      %v5257 = vstv %s5256
      %v5259 = vmul.f32 %v4804, %v5001
      %v5260 = vmul.f32 %v4805, %v5001
      %v5261 = vmul.f32 %v4806, %v5005
      %v5262 = vmul.f32 %v4807, %v5005
      %v5263 = vmul.f32 %v4808, %v5009
      %v5264 = vmul.f32 %v4809, %v5009
      %v5265 = vmul.f32 %v4810, %v5013
      %v5266 = vmul.f32 %v4811, %v5013
      %v5267 = vmul.f32 %v4812, %v5017
      %v5268 = vmul.f32 %v4813, %v5017
      %v5269 = vmul.f32 %v4814, %v5021
      %v5270 = vmul.f32 %v4815, %v5021
      %v5271 = vmul.f32 %v4816, %v5025
      %v5272 = vmul.f32 %v4817, %v5025
      %v5273 = vmul.f32 %v4818, %v5029
      %v5274 = vmul.f32 %v4819, %v5029
      %v5275 = vmul.f32 %v4820, %v5033
      %v5276 = vmul.f32 %v4821, %v5033
      %v5277 = vmul.f32 %v4822, %v5037
      %v5278 = vmul.f32 %v4823, %v5037
      %v5279 = vmul.f32 %v4824, %v5041
      %v5280 = vmul.f32 %v4825, %v5041
      %v5281 = vmul.f32 %v4826, %v5045
      %v5282 = vmul.f32 %v4827, %v5045
      %v5283 = vmul.f32 %v4828, %v5049
      %v5284 = vmul.f32 %v4829, %v5049
      %v5285 = vmul.f32 %v4830, %v5053
      %v5286 = vmul.f32 %v4831, %v5053
      %v5287 = vmul.f32 %v4832, %v5057
      %v5288 = vmul.f32 %v4833, %v5057
      %v5289 = vmul.f32 %v4834, %v5061
      %v5290 = vmul.f32 %v4835, %v5061
      %v5291 = vmul.f32 %v4836, %v5065
      %v5292 = vmul.f32 %v4837, %v5065
      %v5293 = vmul.f32 %v4838, %v5069
      %v5294 = vmul.f32 %v4839, %v5069
      %v5295 = vmul.f32 %v4840, %v5073
      %v5296 = vmul.f32 %v4841, %v5073
      %v5297 = vmul.f32 %v4842, %v5077
      %v5298 = vmul.f32 %v4843, %v5077
      %v5299 = vmul.f32 %v4844, %v5081
      %v5300 = vmul.f32 %v4845, %v5081
      %v5301 = vmul.f32 %v4846, %v5085
      %v5302 = vmul.f32 %v4847, %v5085
      %v5303 = vmul.f32 %v4848, %v5089
      %v5304 = vmul.f32 %v4849, %v5089
      %v5305 = vmul.f32 %v4850, %v5093
      %v5306 = vmul.f32 %v4851, %v5093
      %v5307 = vmul.f32 %v4852, %v5097
      %v5308 = vmul.f32 %v4853, %v5097
      %v5309 = vmul.f32 %v4854, %v5101
      %v5310 = vmul.f32 %v4855, %v5101
      %v5311 = vmul.f32 %v4856, %v5105
      %v5312 = vmul.f32 %v4857, %v5105
      %v5313 = vmul.f32 %v4858, %v5109
      %v5314 = vmul.f32 %v4859, %v5109
      %v5315 = vmul.f32 %v4860, %v5113
      %v5316 = vmul.f32 %v4861, %v5113
      %v5317 = vmul.f32 %v4862, %v5117
      %v5318 = vmul.f32 %v4863, %v5117
      %v5319 = vmul.f32 %v4864, %v5121
      %v5320 = vmul.f32 %v4865, %v5121
      %v5321 = vmul.f32 %v4866, %v5125
      %v5322 = vmul.f32 %v4867, %v5125
      %v5323 = vmul.f32 %v4868, %v5129
      %v5324 = vmul.f32 %v4869, %v5129
      %v5325 = vmul.f32 %v4870, %v5133
      %v5326 = vmul.f32 %v4871, %v5133
      %v5327 = vmul.f32 %v4872, %v5137
      %v5328 = vmul.f32 %v4873, %v5137
      %v5329 = vmul.f32 %v4874, %v5141
      %v5330 = vmul.f32 %v4875, %v5141
      %v5331 = vmul.f32 %v4876, %v5145
      %v5332 = vmul.f32 %v4877, %v5145
      %v5333 = vmul.f32 %v4878, %v5149
      %v5334 = vmul.f32 %v4879, %v5149
      %v5335 = vmul.f32 %v4880, %v5153
      %v5336 = vmul.f32 %v4881, %v5153
      %v5337 = vmul.f32 %v4882, %v5157
      %v5338 = vmul.f32 %v4883, %v5157
      %v5339 = vmul.f32 %v4884, %v5161
      %v5340 = vmul.f32 %v4885, %v5161
      %v5341 = vmul.f32 %v4886, %v5165
      %v5342 = vmul.f32 %v4887, %v5165
      %v5343 = vmul.f32 %v4888, %v5169
      %v5344 = vmul.f32 %v4889, %v5169
      %v5345 = vmul.f32 %v4890, %v5173
      %v5346 = vmul.f32 %v4891, %v5173
      %v5347 = vmul.f32 %v4892, %v5177
      %v5348 = vmul.f32 %v4893, %v5177
      %v5349 = vmul.f32 %v4894, %v5181
      %v5350 = vmul.f32 %v4895, %v5181
      %v5351 = vmul.f32 %v4896, %v5185
      %v5352 = vmul.f32 %v4897, %v5185
      %v5353 = vmul.f32 %v4898, %v5189
      %v5354 = vmul.f32 %v4899, %v5189
      %v5355 = vmul.f32 %v4900, %v5193
      %v5356 = vmul.f32 %v4901, %v5193
      %v5357 = vmul.f32 %v4902, %v5197
      %v5358 = vmul.f32 %v4903, %v5197
      %v5359 = vmul.f32 %v4904, %v5201
      %v5360 = vmul.f32 %v4905, %v5201
      %v5361 = vmul.f32 %v4906, %v5205
      %v5362 = vmul.f32 %v4907, %v5205
      %v5363 = vmul.f32 %v4908, %v5209
      %v5364 = vmul.f32 %v4909, %v5209
      %v5365 = vmul.f32 %v4910, %v5213
      %v5366 = vmul.f32 %v4911, %v5213
      %v5367 = vmul.f32 %v4912, %v5217
      %v5368 = vmul.f32 %v4913, %v5217
      %v5369 = vmul.f32 %v4914, %v5221
      %v5370 = vmul.f32 %v4915, %v5221
      %v5371 = vmul.f32 %v4916, %v5225
      %v5372 = vmul.f32 %v4917, %v5225
      %v5373 = vmul.f32 %v4918, %v5229
      %v5374 = vmul.f32 %v4919, %v5229
      %v5375 = vmul.f32 %v4920, %v5233
      %v5376 = vmul.f32 %v4921, %v5233
      %v5377 = vmul.f32 %v4922, %v5237
      %v5378 = vmul.f32 %v4923, %v5237
      %v5379 = vmul.f32 %v4924, %v5241
      %v5380 = vmul.f32 %v4925, %v5241
      %v5381 = vmul.f32 %v4926, %v5245
      %v5382 = vmul.f32 %v4927, %v5245
      %v5383 = vmul.f32 %v4928, %v5249
      %v5384 = vmul.f32 %v4929, %v5249
      %v5385 = vmul.f32 %v4930, %v5253
      %v5386 = vmul.f32 %v4931, %v5253
      %v5387 = vmul.f32 %v4932, %v5257
      %v5388 = vmul.f32 %v4933, %v5257
      %v5389 = vsel %vm804, %v5259, 0.0
      %v5390 = vsel %vm804, %v5261, 0.0
      %v5391 = vadd.f32 %v5389, %v5390
      %v5392 = vsel %vm804, %v5263, 0.0
      %v5393 = vadd.f32 %v5391, %v5392
      %v5394 = vsel %vm804, %v5265, 0.0
      %v5395 = vadd.f32 %v5393, %v5394
      %v5396 = vsel %vm804, %v5267, 0.0
      %v5397 = vadd.f32 %v5395, %v5396
      %v5398 = vsel %vm804, %v5269, 0.0
      %v5399 = vadd.f32 %v5397, %v5398
      %v5400 = vsel %vm804, %v5271, 0.0
      %v5401 = vadd.f32 %v5399, %v5400
      %v5402 = vsel %vm804, %v5273, 0.0
      %v5403 = vadd.f32 %v5401, %v5402
      %v5404 = vsel %vm804, %v5275, 0.0
      %v5405 = vadd.f32 %v5403, %v5404
      %v5406 = vsel %vm804, %v5277, 0.0
      %v5407 = vadd.f32 %v5405, %v5406
      %v5408 = vsel %vm804, %v5279, 0.0
      %v5409 = vadd.f32 %v5407, %v5408
      %v5410 = vsel %vm804, %v5281, 0.0
      %v5411 = vadd.f32 %v5409, %v5410
      %v5412 = vsel %vm804, %v5283, 0.0
      %v5413 = vadd.f32 %v5411, %v5412
      %v5414 = vsel %vm804, %v5285, 0.0
      %v5415 = vadd.f32 %v5413, %v5414
      %v5416 = vsel %vm804, %v5287, 0.0
      %v5417 = vadd.f32 %v5415, %v5416
      %v5418 = vsel %vm804, %v5289, 0.0
      %v5419 = vadd.f32 %v5417, %v5418
      %v5420 = vsel %vm804, %v5291, 0.0
      %v5421 = vadd.f32 %v5419, %v5420
      %v5422 = vsel %vm804, %v5293, 0.0
      %v5423 = vadd.f32 %v5421, %v5422
      %v5424 = vsel %vm804, %v5295, 0.0
      %v5425 = vadd.f32 %v5423, %v5424
      %v5426 = vsel %vm804, %v5297, 0.0
      %v5427 = vadd.f32 %v5425, %v5426
      %v5428 = vsel %vm804, %v5299, 0.0
      %v5429 = vadd.f32 %v5427, %v5428
      %v5430 = vsel %vm804, %v5301, 0.0
      %v5431 = vadd.f32 %v5429, %v5430
      %v5432 = vsel %vm804, %v5303, 0.0
      %v5433 = vadd.f32 %v5431, %v5432
      %v5434 = vsel %vm804, %v5305, 0.0
      %v5435 = vadd.f32 %v5433, %v5434
      %v5436 = vsel %vm804, %v5307, 0.0
      %v5437 = vadd.f32 %v5435, %v5436
      %v5438 = vsel %vm804, %v5309, 0.0
      %v5439 = vadd.f32 %v5437, %v5438
      %v5440 = vsel %vm804, %v5311, 0.0
      %v5441 = vadd.f32 %v5439, %v5440
      %v5442 = vsel %vm804, %v5313, 0.0
      %v5443 = vadd.f32 %v5441, %v5442
      %v5444 = vsel %vm804, %v5315, 0.0
      %v5445 = vadd.f32 %v5443, %v5444
      %v5446 = vsel %vm804, %v5317, 0.0
      %v5447 = vadd.f32 %v5445, %v5446
      %v5448 = vsel %vm804, %v5319, 0.0
      %v5449 = vadd.f32 %v5447, %v5448
      %v5450 = vsel %vm804, %v5321, 0.0
      %v5451 = vadd.f32 %v5449, %v5450
      %v5452 = vsel %vm804, %v5323, 0.0
      %v5453 = vadd.f32 %v5451, %v5452
      %v5454 = vsel %vm804, %v5325, 0.0
      %v5455 = vadd.f32 %v5453, %v5454
      %v5456 = vsel %vm804, %v5327, 0.0
      %v5457 = vadd.f32 %v5455, %v5456
      %v5458 = vsel %vm804, %v5329, 0.0
      %v5459 = vadd.f32 %v5457, %v5458
      %v5460 = vsel %vm804, %v5331, 0.0
      %v5461 = vadd.f32 %v5459, %v5460
      %v5462 = vsel %vm804, %v5333, 0.0
      %v5463 = vadd.f32 %v5461, %v5462
      %v5464 = vsel %vm804, %v5335, 0.0
      %v5465 = vadd.f32 %v5463, %v5464
      %v5466 = vsel %vm804, %v5337, 0.0
      %v5467 = vadd.f32 %v5465, %v5466
      %v5468 = vsel %vm804, %v5339, 0.0
      %v5469 = vadd.f32 %v5467, %v5468
      %v5470 = vsel %vm804, %v5341, 0.0
      %v5471 = vadd.f32 %v5469, %v5470
      %v5472 = vsel %vm804, %v5343, 0.0
      %v5473 = vadd.f32 %v5471, %v5472
      %v5474 = vsel %vm804, %v5345, 0.0
      %v5475 = vadd.f32 %v5473, %v5474
      %v5476 = vsel %vm804, %v5347, 0.0
      %v5477 = vadd.f32 %v5475, %v5476
      %v5478 = vsel %vm804, %v5349, 0.0
      %v5479 = vadd.f32 %v5477, %v5478
      %v5480 = vsel %vm804, %v5351, 0.0
      %v5481 = vadd.f32 %v5479, %v5480
      %v5482 = vsel %vm804, %v5353, 0.0
      %v5483 = vadd.f32 %v5481, %v5482
      %v5484 = vsel %vm804, %v5355, 0.0
      %v5485 = vadd.f32 %v5483, %v5484
      %v5486 = vsel %vm804, %v5357, 0.0
      %v5487 = vadd.f32 %v5485, %v5486
      %v5488 = vsel %vm804, %v5359, 0.0
      %v5489 = vadd.f32 %v5487, %v5488
      %v5490 = vsel %vm804, %v5361, 0.0
      %v5491 = vadd.f32 %v5489, %v5490
      %v5492 = vsel %vm804, %v5363, 0.0
      %v5493 = vadd.f32 %v5491, %v5492
      %v5494 = vsel %vm804, %v5365, 0.0
      %v5495 = vadd.f32 %v5493, %v5494
      %v5496 = vsel %vm804, %v5367, 0.0
      %v5497 = vadd.f32 %v5495, %v5496
      %v5498 = vsel %vm804, %v5369, 0.0
      %v5499 = vadd.f32 %v5497, %v5498
      %v5500 = vsel %vm804, %v5371, 0.0
      %v5501 = vadd.f32 %v5499, %v5500
      %v5502 = vsel %vm804, %v5373, 0.0
      %v5503 = vadd.f32 %v5501, %v5502
      %v5504 = vsel %vm804, %v5375, 0.0
      %v5505 = vadd.f32 %v5503, %v5504
      %v5506 = vsel %vm804, %v5377, 0.0
      %v5507 = vadd.f32 %v5505, %v5506
      %v5508 = vsel %vm804, %v5379, 0.0
      %v5509 = vadd.f32 %v5507, %v5508
      %v5510 = vsel %vm804, %v5381, 0.0
      %v5511 = vadd.f32 %v5509, %v5510
      %v5512 = vsel %vm804, %v5383, 0.0
      %v5513 = vadd.f32 %v5511, %v5512
      %v5514 = vsel %vm804, %v5385, 0.0
      %v5515 = vadd.f32 %v5513, %v5514
      %v5516 = vsel %vm804, %v5387, 0.0
      %v5517 = vadd.f32 %v5515, %v5516
      %v5518 = vsel %vm804, %v5260, 0.0
      %v5519 = vsel %vm804, %v5262, 0.0
      %v5520 = vadd.f32 %v5518, %v5519
      %v5521 = vsel %vm804, %v5264, 0.0
      %v5522 = vadd.f32 %v5520, %v5521
      %v5523 = vsel %vm804, %v5266, 0.0
      %v5524 = vadd.f32 %v5522, %v5523
      %v5525 = vsel %vm804, %v5268, 0.0
      %v5526 = vadd.f32 %v5524, %v5525
      %v5527 = vsel %vm804, %v5270, 0.0
      %v5528 = vadd.f32 %v5526, %v5527
      %v5529 = vsel %vm804, %v5272, 0.0
      %v5530 = vadd.f32 %v5528, %v5529
      %v5531 = vsel %vm804, %v5274, 0.0
      %v5532 = vadd.f32 %v5530, %v5531
      %v5533 = vsel %vm804, %v5276, 0.0
      %v5534 = vadd.f32 %v5532, %v5533
      %v5535 = vsel %vm804, %v5278, 0.0
      %v5536 = vadd.f32 %v5534, %v5535
      %v5537 = vsel %vm804, %v5280, 0.0
      %v5538 = vadd.f32 %v5536, %v5537
      %v5539 = vsel %vm804, %v5282, 0.0
      %v5540 = vadd.f32 %v5538, %v5539
      %v5541 = vsel %vm804, %v5284, 0.0
      %v5542 = vadd.f32 %v5540, %v5541
      %v5543 = vsel %vm804, %v5286, 0.0
      %v5544 = vadd.f32 %v5542, %v5543
      %v5545 = vsel %vm804, %v5288, 0.0
      %v5546 = vadd.f32 %v5544, %v5545
      %v5547 = vsel %vm804, %v5290, 0.0
      %v5548 = vadd.f32 %v5546, %v5547
      %v5549 = vsel %vm804, %v5292, 0.0
      %v5550 = vadd.f32 %v5548, %v5549
      %v5551 = vsel %vm804, %v5294, 0.0
      %v5552 = vadd.f32 %v5550, %v5551
      %v5553 = vsel %vm804, %v5296, 0.0
      %v5554 = vadd.f32 %v5552, %v5553
      %v5555 = vsel %vm804, %v5298, 0.0
      %v5556 = vadd.f32 %v5554, %v5555
      %v5557 = vsel %vm804, %v5300, 0.0
      %v5558 = vadd.f32 %v5556, %v5557
      %v5559 = vsel %vm804, %v5302, 0.0
      %v5560 = vadd.f32 %v5558, %v5559
      %v5561 = vsel %vm804, %v5304, 0.0
      %v5562 = vadd.f32 %v5560, %v5561
      %v5563 = vsel %vm804, %v5306, 0.0
      %v5564 = vadd.f32 %v5562, %v5563
      %v5565 = vsel %vm804, %v5308, 0.0
      %v5566 = vadd.f32 %v5564, %v5565
      %v5567 = vsel %vm804, %v5310, 0.0
      %v5568 = vadd.f32 %v5566, %v5567
      %v5569 = vsel %vm804, %v5312, 0.0
      %v5570 = vadd.f32 %v5568, %v5569
      %v5571 = vsel %vm804, %v5314, 0.0
      %v5572 = vadd.f32 %v5570, %v5571
      %v5573 = vsel %vm804, %v5316, 0.0
      %v5574 = vadd.f32 %v5572, %v5573
      %v5575 = vsel %vm804, %v5318, 0.0
      %v5576 = vadd.f32 %v5574, %v5575
      %v5577 = vsel %vm804, %v5320, 0.0
      %v5578 = vadd.f32 %v5576, %v5577
      %v5579 = vsel %vm804, %v5322, 0.0
      %v5580 = vadd.f32 %v5578, %v5579
      %v5581 = vsel %vm804, %v5324, 0.0
      %v5582 = vadd.f32 %v5580, %v5581
      %v5583 = vsel %vm804, %v5326, 0.0
      %v5584 = vadd.f32 %v5582, %v5583
      %v5585 = vsel %vm804, %v5328, 0.0
      %v5586 = vadd.f32 %v5584, %v5585
      %v5587 = vsel %vm804, %v5330, 0.0
      %v5588 = vadd.f32 %v5586, %v5587
      %v5589 = vsel %vm804, %v5332, 0.0
      %v5590 = vadd.f32 %v5588, %v5589
      %v5591 = vsel %vm804, %v5334, 0.0
      %v5592 = vadd.f32 %v5590, %v5591
      %v5593 = vsel %vm804, %v5336, 0.0
      %v5594 = vadd.f32 %v5592, %v5593
      %v5595 = vsel %vm804, %v5338, 0.0
      %v5596 = vadd.f32 %v5594, %v5595
      %v5597 = vsel %vm804, %v5340, 0.0
      %v5598 = vadd.f32 %v5596, %v5597
      %v5599 = vsel %vm804, %v5342, 0.0
      %v5600 = vadd.f32 %v5598, %v5599
      %v5601 = vsel %vm804, %v5344, 0.0
      %v5602 = vadd.f32 %v5600, %v5601
      %v5603 = vsel %vm804, %v5346, 0.0
      %v5604 = vadd.f32 %v5602, %v5603
      %v5605 = vsel %vm804, %v5348, 0.0
      %v5606 = vadd.f32 %v5604, %v5605
      %v5607 = vsel %vm804, %v5350, 0.0
      %v5608 = vadd.f32 %v5606, %v5607
      %v5609 = vsel %vm804, %v5352, 0.0
      %v5610 = vadd.f32 %v5608, %v5609
      %v5611 = vsel %vm804, %v5354, 0.0
      %v5612 = vadd.f32 %v5610, %v5611
      %v5613 = vsel %vm804, %v5356, 0.0
      %v5614 = vadd.f32 %v5612, %v5613
      %v5615 = vsel %vm804, %v5358, 0.0
      %v5616 = vadd.f32 %v5614, %v5615
      %v5617 = vsel %vm804, %v5360, 0.0
      %v5618 = vadd.f32 %v5616, %v5617
      %v5619 = vsel %vm804, %v5362, 0.0
      %v5620 = vadd.f32 %v5618, %v5619
      %v5621 = vsel %vm804, %v5364, 0.0
      %v5622 = vadd.f32 %v5620, %v5621
      %v5623 = vsel %vm804, %v5366, 0.0
      %v5624 = vadd.f32 %v5622, %v5623
      %v5625 = vsel %vm804, %v5368, 0.0
      %v5626 = vadd.f32 %v5624, %v5625
      %v5627 = vsel %vm804, %v5370, 0.0
      %v5628 = vadd.f32 %v5626, %v5627
      %v5629 = vsel %vm804, %v5372, 0.0
      %v5630 = vadd.f32 %v5628, %v5629
      %v5631 = vsel %vm804, %v5374, 0.0
      %v5632 = vadd.f32 %v5630, %v5631
      %v5633 = vsel %vm804, %v5376, 0.0
      %v5634 = vadd.f32 %v5632, %v5633
      %v5635 = vsel %vm804, %v5378, 0.0
      %v5636 = vadd.f32 %v5634, %v5635
      %v5637 = vsel %vm804, %v5380, 0.0
      %v5638 = vadd.f32 %v5636, %v5637
      %v5639 = vsel %vm804, %v5382, 0.0
      %v5640 = vadd.f32 %v5638, %v5639
      %v5641 = vsel %vm804, %v5384, 0.0
      %v5642 = vadd.f32 %v5640, %v5641
      %v5643 = vsel %vm804, %v5386, 0.0
      %v5644 = vadd.f32 %v5642, %v5643
      %v5645 = vsel %vm804, %v5388, 0.0
      %v5646 = vadd.f32 %v5644, %v5645
      %v5647 = vadd.f32 %v4802, %v5517
      %v5648 = vadd.f32 %v4803, %v5646
      %5649 = vrot.lane.b32.xlu0 %v4934, 127
      %v5650 = vpop.permute.xlu0 %5649
      %5651 = vrot.lane.b32.xlu0 %v4935, 127
      %v5652 = vpop.permute.xlu0 %5651
      %5653 = vrot.lane.b32.xlu0 %v4936, 127
      %v5654 = vpop.permute.xlu0 %5653
      %5655 = vrot.lane.b32.xlu0 %v4937, 127
      %v5656 = vpop.permute.xlu0 %5655
      %5657 = vrot.lane.b32.xlu0 %v4938, 127
      %v5658 = vpop.permute.xlu0 %5657
      %5659 = vrot.lane.b32.xlu0 %v4939, 127
      %v5660 = vpop.permute.xlu0 %5659
      %5661 = vrot.lane.b32.xlu0 %v4940, 127
      %v5662 = vpop.permute.xlu0 %5661
      %5663 = vrot.lane.b32.xlu0 %v4941, 127
      %v5664 = vpop.permute.xlu0 %5663
      %5665 = vrot.lane.b32.xlu0 %v4942, 127
      %v5666 = vpop.permute.xlu0 %5665
      %5667 = vrot.lane.b32.xlu0 %v4943, 127
      %v5668 = vpop.permute.xlu0 %5667
      %5669 = vrot.lane.b32.xlu0 %v4944, 127
      %v5670 = vpop.permute.xlu0 %5669
      %5671 = vrot.lane.b32.xlu0 %v4945, 127
      %v5672 = vpop.permute.xlu0 %5671
      %5673 = vrot.lane.b32.xlu0 %v4946, 127
      %v5674 = vpop.permute.xlu0 %5673
      %5675 = vrot.lane.b32.xlu0 %v4947, 127
      %v5676 = vpop.permute.xlu0 %5675
      %5677 = vrot.lane.b32.xlu0 %v4948, 127
      %v5678 = vpop.permute.xlu0 %5677
      %5679 = vrot.lane.b32.xlu0 %v4949, 127
      %v5680 = vpop.permute.xlu0 %5679
      %5681 = vrot.lane.b32.xlu0 %v4950, 127
      %v5682 = vpop.permute.xlu0 %5681
      %5683 = vrot.lane.b32.xlu0 %v4951, 127
      %v5684 = vpop.permute.xlu0 %5683
      %5685 = vrot.lane.b32.xlu0 %v4952, 127
      %v5686 = vpop.permute.xlu0 %5685
      %5687 = vrot.lane.b32.xlu0 %v4953, 127
      %v5688 = vpop.permute.xlu0 %5687
      %5689 = vrot.lane.b32.xlu0 %v4954, 127
      %v5690 = vpop.permute.xlu0 %5689
      %5691 = vrot.lane.b32.xlu0 %v4955, 127
      %v5692 = vpop.permute.xlu0 %5691
      %5693 = vrot.lane.b32.xlu0 %v4956, 127
      %v5694 = vpop.permute.xlu0 %5693
      %5695 = vrot.lane.b32.xlu0 %v4957, 127
      %v5696 = vpop.permute.xlu0 %5695
      %5697 = vrot.lane.b32.xlu0 %v4958, 127
      %v5698 = vpop.permute.xlu0 %5697
      %5699 = vrot.lane.b32.xlu0 %v4959, 127
      %v5700 = vpop.permute.xlu0 %5699
      %5701 = vrot.lane.b32.xlu0 %v4960, 127
      %v5702 = vpop.permute.xlu0 %5701
      %5703 = vrot.lane.b32.xlu0 %v4961, 127
      %v5704 = vpop.permute.xlu0 %5703
      %5705 = vrot.lane.b32.xlu0 %v4962, 127
      %v5706 = vpop.permute.xlu0 %5705
      %5707 = vrot.lane.b32.xlu0 %v4963, 127
      %v5708 = vpop.permute.xlu0 %5707
      %5709 = vrot.lane.b32.xlu0 %v4964, 127
      %v5710 = vpop.permute.xlu0 %5709
      %5711 = vrot.lane.b32.xlu0 %v4965, 127
      %v5712 = vpop.permute.xlu0 %5711
      %5713 = vrot.lane.b32.xlu0 %v4966, 127
      %v5714 = vpop.permute.xlu0 %5713
      %5715 = vrot.lane.b32.xlu0 %v4967, 127
      %v5716 = vpop.permute.xlu0 %5715
      %5717 = vrot.lane.b32.xlu0 %v4968, 127
      %v5718 = vpop.permute.xlu0 %5717
      %5719 = vrot.lane.b32.xlu0 %v4969, 127
      %v5720 = vpop.permute.xlu0 %5719
      %5721 = vrot.lane.b32.xlu0 %v4970, 127
      %v5722 = vpop.permute.xlu0 %5721
      %5723 = vrot.lane.b32.xlu0 %v4971, 127
      %v5724 = vpop.permute.xlu0 %5723
      %5725 = vrot.lane.b32.xlu0 %v4972, 127
      %v5726 = vpop.permute.xlu0 %5725
      %5727 = vrot.lane.b32.xlu0 %v4973, 127
      %v5728 = vpop.permute.xlu0 %5727
      %5729 = vrot.lane.b32.xlu0 %v4974, 127
      %v5730 = vpop.permute.xlu0 %5729
      %5731 = vrot.lane.b32.xlu0 %v4975, 127
      %v5732 = vpop.permute.xlu0 %5731
      %5733 = vrot.lane.b32.xlu0 %v4976, 127
      %v5734 = vpop.permute.xlu0 %5733
      %5735 = vrot.lane.b32.xlu0 %v4977, 127
      %v5736 = vpop.permute.xlu0 %5735
      %5737 = vrot.lane.b32.xlu0 %v4978, 127
      %v5738 = vpop.permute.xlu0 %5737
      %5739 = vrot.lane.b32.xlu0 %v4979, 127
      %v5740 = vpop.permute.xlu0 %5739
      %5741 = vrot.lane.b32.xlu0 %v4980, 127
      %v5742 = vpop.permute.xlu0 %5741
      %5743 = vrot.lane.b32.xlu0 %v4981, 127
      %v5744 = vpop.permute.xlu0 %5743
      %5745 = vrot.lane.b32.xlu0 %v4982, 127
      %v5746 = vpop.permute.xlu0 %5745
      %5747 = vrot.lane.b32.xlu0 %v4983, 127
      %v5748 = vpop.permute.xlu0 %5747
      %5749 = vrot.lane.b32.xlu0 %v4984, 127
      %v5750 = vpop.permute.xlu0 %5749
      %5751 = vrot.lane.b32.xlu0 %v4985, 127
      %v5752 = vpop.permute.xlu0 %5751
      %5753 = vrot.lane.b32.xlu0 %v4986, 127
      %v5754 = vpop.permute.xlu0 %5753
      %5755 = vrot.lane.b32.xlu0 %v4987, 127
      %v5756 = vpop.permute.xlu0 %5755
      %5757 = vrot.lane.b32.xlu0 %v4988, 127
      %v5758 = vpop.permute.xlu0 %5757
      %5759 = vrot.lane.b32.xlu0 %v4989, 127
      %v5760 = vpop.permute.xlu0 %5759
      %5761 = vrot.lane.b32.xlu0 %v4990, 127
      %v5762 = vpop.permute.xlu0 %5761
      %5763 = vrot.lane.b32.xlu0 %v4991, 127
      %v5764 = vpop.permute.xlu0 %5763
      %5765 = vrot.lane.b32.xlu0 %v4992, 127
      %v5766 = vpop.permute.xlu0 %5765
      %5767 = vrot.lane.b32.xlu0 %v4993, 127
      %v5768 = vpop.permute.xlu0 %5767
      %5769 = vrot.lane.b32.xlu0 %v4994, 127
      %v5770 = vpop.permute.xlu0 %5769
      %5771 = vrot.lane.b32.xlu0 %v4995, 127
      %v5772 = vpop.permute.xlu0 %5771
      %5773 = vrot.lane.b32.xlu0 %v4996, 127
      %v5774 = vpop.permute.xlu0 %5773
      %5775 = vrot.lane.b32.xlu0 %v4997, 127
      %v5776 = vpop.permute.xlu0 %5775
      %5777 = vrot.lane.b32.xlu0 %v4998, 127
      %v5778 = vpop.permute.xlu0 %5777
      %s5779 = vtos %v5650
      %v5780 = vstv %s5779
      %s5782 = vtos %v5652
      %v5783 = vstv %s5782
      %s5785 = vtos %v5654
      %v5786 = vstv %s5785
      %s5788 = vtos %v5656
      %v5789 = vstv %s5788
      %s5791 = vtos %v5658
      %v5792 = vstv %s5791
      %s5794 = vtos %v5660
      %v5795 = vstv %s5794
      %s5797 = vtos %v5662
      %v5798 = vstv %s5797
      %s5800 = vtos %v5664
      %v5801 = vstv %s5800
      %s5803 = vtos %v5666
      %v5804 = vstv %s5803
      %s5806 = vtos %v5668
      %v5807 = vstv %s5806
      %s5809 = vtos %v5670
      %v5810 = vstv %s5809
      %s5812 = vtos %v5672
      %v5813 = vstv %s5812
      %s5815 = vtos %v5674
      %v5816 = vstv %s5815
      %s5818 = vtos %v5676
      %v5819 = vstv %s5818
      %s5821 = vtos %v5678
      %v5822 = vstv %s5821
      %s5824 = vtos %v5680
      %v5825 = vstv %s5824
      %s5827 = vtos %v5682
      %v5828 = vstv %s5827
      %s5830 = vtos %v5684
      %v5831 = vstv %s5830
      %s5833 = vtos %v5686
      %v5834 = vstv %s5833
      %s5836 = vtos %v5688
      %v5837 = vstv %s5836
      %s5839 = vtos %v5690
      %v5840 = vstv %s5839
      %s5842 = vtos %v5692
      %v5843 = vstv %s5842
      %s5845 = vtos %v5694
      %v5846 = vstv %s5845
      %s5848 = vtos %v5696
      %v5849 = vstv %s5848
      %s5851 = vtos %v5698
      %v5852 = vstv %s5851
      %s5854 = vtos %v5700
      %v5855 = vstv %s5854
      %s5857 = vtos %v5702
      %v5858 = vstv %s5857
      %s5860 = vtos %v5704
      %v5861 = vstv %s5860
      %s5863 = vtos %v5706
      %v5864 = vstv %s5863
      %s5866 = vtos %v5708
      %v5867 = vstv %s5866
      %s5869 = vtos %v5710
      %v5870 = vstv %s5869
      %s5872 = vtos %v5712
      %v5873 = vstv %s5872
      %s5875 = vtos %v5714
      %v5876 = vstv %s5875
      %s5878 = vtos %v5716
      %v5879 = vstv %s5878
      %s5881 = vtos %v5718
      %v5882 = vstv %s5881
      %s5884 = vtos %v5720
      %v5885 = vstv %s5884
      %s5887 = vtos %v5722
      %v5888 = vstv %s5887
      %s5890 = vtos %v5724
      %v5891 = vstv %s5890
      %s5893 = vtos %v5726
      %v5894 = vstv %s5893
      %s5896 = vtos %v5728
      %v5897 = vstv %s5896
      %s5899 = vtos %v5730
      %v5900 = vstv %s5899
      %s5902 = vtos %v5732
      %v5903 = vstv %s5902
      %s5905 = vtos %v5734
      %v5906 = vstv %s5905
      %s5908 = vtos %v5736
      %v5909 = vstv %s5908
      %s5911 = vtos %v5738
      %v5912 = vstv %s5911
      %s5914 = vtos %v5740
      %v5915 = vstv %s5914
      %s5917 = vtos %v5742
      %v5918 = vstv %s5917
      %s5920 = vtos %v5744
      %v5921 = vstv %s5920
      %s5923 = vtos %v5746
      %v5924 = vstv %s5923
      %s5926 = vtos %v5748
      %v5927 = vstv %s5926
      %s5929 = vtos %v5750
      %v5930 = vstv %s5929
      %s5932 = vtos %v5752
      %v5933 = vstv %s5932
      %s5935 = vtos %v5754
      %v5936 = vstv %s5935
      %s5938 = vtos %v5756
      %v5939 = vstv %s5938
      %s5941 = vtos %v5758
      %v5942 = vstv %s5941
      %s5944 = vtos %v5760
      %v5945 = vstv %s5944
      %s5947 = vtos %v5762
      %v5948 = vstv %s5947
      %s5950 = vtos %v5764
      %v5951 = vstv %s5950
      %s5953 = vtos %v5766
      %v5954 = vstv %s5953
      %s5956 = vtos %v5768
      %v5957 = vstv %s5956
      %s5959 = vtos %v5770
      %v5960 = vstv %s5959
      %s5962 = vtos %v5772
      %v5963 = vstv %s5962
      %s5965 = vtos %v5774
      %v5966 = vstv %s5965
      %s5968 = vtos %v5776
      %v5969 = vstv %s5968
      %s5971 = vtos %v5778
      %v5972 = vstv %s5971
      %v5974 = vmul.f32 %v4804, %v5780
      %v5975 = vmul.f32 %v4805, %v5780
      %v5976 = vmul.f32 %v4806, %v5783
      %v5977 = vmul.f32 %v4807, %v5783
      %v5978 = vmul.f32 %v4808, %v5786
      %v5979 = vmul.f32 %v4809, %v5786
      %v5980 = vmul.f32 %v4810, %v5789
      %v5981 = vmul.f32 %v4811, %v5789
      %v5982 = vmul.f32 %v4812, %v5792
      %v5983 = vmul.f32 %v4813, %v5792
      %v5984 = vmul.f32 %v4814, %v5795
      %v5985 = vmul.f32 %v4815, %v5795
      %v5986 = vmul.f32 %v4816, %v5798
      %v5987 = vmul.f32 %v4817, %v5798
      %v5988 = vmul.f32 %v4818, %v5801
      %v5989 = vmul.f32 %v4819, %v5801
      %v5990 = vmul.f32 %v4820, %v5804
      %v5991 = vmul.f32 %v4821, %v5804
      %v5992 = vmul.f32 %v4822, %v5807
      %v5993 = vmul.f32 %v4823, %v5807
      %v5994 = vmul.f32 %v4824, %v5810
      %v5995 = vmul.f32 %v4825, %v5810
      %v5996 = vmul.f32 %v4826, %v5813
      %v5997 = vmul.f32 %v4827, %v5813
      %v5998 = vmul.f32 %v4828, %v5816
      %v5999 = vmul.f32 %v4829, %v5816
      %v6000 = vmul.f32 %v4830, %v5819
      %v6001 = vmul.f32 %v4831, %v5819
      %v6002 = vmul.f32 %v4832, %v5822
      %v6003 = vmul.f32 %v4833, %v5822
      %v6004 = vmul.f32 %v4834, %v5825
      %v6005 = vmul.f32 %v4835, %v5825
      %v6006 = vmul.f32 %v4836, %v5828
      %v6007 = vmul.f32 %v4837, %v5828
      %v6008 = vmul.f32 %v4838, %v5831
      %v6009 = vmul.f32 %v4839, %v5831
      %v6010 = vmul.f32 %v4840, %v5834
      %v6011 = vmul.f32 %v4841, %v5834
      %v6012 = vmul.f32 %v4842, %v5837
      %v6013 = vmul.f32 %v4843, %v5837
      %v6014 = vmul.f32 %v4844, %v5840
      %v6015 = vmul.f32 %v4845, %v5840
      %v6016 = vmul.f32 %v4846, %v5843
      %v6017 = vmul.f32 %v4847, %v5843
      %v6018 = vmul.f32 %v4848, %v5846
      %v6019 = vmul.f32 %v4849, %v5846
      %v6020 = vmul.f32 %v4850, %v5849
      %v6021 = vmul.f32 %v4851, %v5849
      %v6022 = vmul.f32 %v4852, %v5852
      %v6023 = vmul.f32 %v4853, %v5852
      %v6024 = vmul.f32 %v4854, %v5855
      %v6025 = vmul.f32 %v4855, %v5855
      %v6026 = vmul.f32 %v4856, %v5858
      %v6027 = vmul.f32 %v4857, %v5858
      %v6028 = vmul.f32 %v4858, %v5861
      %v6029 = vmul.f32 %v4859, %v5861
      %v6030 = vmul.f32 %v4860, %v5864
      %v6031 = vmul.f32 %v4861, %v5864
      %v6032 = vmul.f32 %v4862, %v5867
      %v6033 = vmul.f32 %v4863, %v5867
      %v6034 = vmul.f32 %v4864, %v5870
      %v6035 = vmul.f32 %v4865, %v5870
      %v6036 = vmul.f32 %v4866, %v5873
      %v6037 = vmul.f32 %v4867, %v5873
      %v6038 = vmul.f32 %v4868, %v5876
      %v6039 = vmul.f32 %v4869, %v5876
      %v6040 = vmul.f32 %v4870, %v5879
      %v6041 = vmul.f32 %v4871, %v5879
      %v6042 = vmul.f32 %v4872, %v5882
      %v6043 = vmul.f32 %v4873, %v5882
      %v6044 = vmul.f32 %v4874, %v5885
      %v6045 = vmul.f32 %v4875, %v5885
      %v6046 = vmul.f32 %v4876, %v5888
      %v6047 = vmul.f32 %v4877, %v5888
      %v6048 = vmul.f32 %v4878, %v5891
      %v6049 = vmul.f32 %v4879, %v5891
      %v6050 = vmul.f32 %v4880, %v5894
      %v6051 = vmul.f32 %v4881, %v5894
      %v6052 = vmul.f32 %v4882, %v5897
      %v6053 = vmul.f32 %v4883, %v5897
      %v6054 = vmul.f32 %v4884, %v5900
      %v6055 = vmul.f32 %v4885, %v5900
      %v6056 = vmul.f32 %v4886, %v5903
      %v6057 = vmul.f32 %v4887, %v5903
      %v6058 = vmul.f32 %v4888, %v5906
      %v6059 = vmul.f32 %v4889, %v5906
      %v6060 = vmul.f32 %v4890, %v5909
      %v6061 = vmul.f32 %v4891, %v5909
      %v6062 = vmul.f32 %v4892, %v5912
      %v6063 = vmul.f32 %v4893, %v5912
      %v6064 = vmul.f32 %v4894, %v5915
      %v6065 = vmul.f32 %v4895, %v5915
      %v6066 = vmul.f32 %v4896, %v5918
      %v6067 = vmul.f32 %v4897, %v5918
      %v6068 = vmul.f32 %v4898, %v5921
      %v6069 = vmul.f32 %v4899, %v5921
      %v6070 = vmul.f32 %v4900, %v5924
      %v6071 = vmul.f32 %v4901, %v5924
      %v6072 = vmul.f32 %v4902, %v5927
      %v6073 = vmul.f32 %v4903, %v5927
      %v6074 = vmul.f32 %v4904, %v5930
      %v6075 = vmul.f32 %v4905, %v5930
      %v6076 = vmul.f32 %v4906, %v5933
      %v6077 = vmul.f32 %v4907, %v5933
      %v6078 = vmul.f32 %v4908, %v5936
      %v6079 = vmul.f32 %v4909, %v5936
      %v6080 = vmul.f32 %v4910, %v5939
      %v6081 = vmul.f32 %v4911, %v5939
      %v6082 = vmul.f32 %v4912, %v5942
      %v6083 = vmul.f32 %v4913, %v5942
      %v6084 = vmul.f32 %v4914, %v5945
      %v6085 = vmul.f32 %v4915, %v5945
      %v6086 = vmul.f32 %v4916, %v5948
      %v6087 = vmul.f32 %v4917, %v5948
      %v6088 = vmul.f32 %v4918, %v5951
      %v6089 = vmul.f32 %v4919, %v5951
      %v6090 = vmul.f32 %v4920, %v5954
      %v6091 = vmul.f32 %v4921, %v5954
      %v6092 = vmul.f32 %v4922, %v5957
      %v6093 = vmul.f32 %v4923, %v5957
      %v6094 = vmul.f32 %v4924, %v5960
      %v6095 = vmul.f32 %v4925, %v5960
      %v6096 = vmul.f32 %v4926, %v5963
      %v6097 = vmul.f32 %v4927, %v5963
      %v6098 = vmul.f32 %v4928, %v5966
      %v6099 = vmul.f32 %v4929, %v5966
      %v6100 = vmul.f32 %v4930, %v5969
      %v6101 = vmul.f32 %v4931, %v5969
      %v6102 = vmul.f32 %v4932, %v5972
      %v6103 = vmul.f32 %v4933, %v5972
      %v6104 = vsel %vm1520, %v5974, 0.0
      %v6105 = vsel %vm1520, %v5976, 0.0
      %v6106 = vadd.f32 %v6104, %v6105
      %v6107 = vsel %vm1520, %v5978, 0.0
      %v6108 = vadd.f32 %v6106, %v6107
      %v6109 = vsel %vm1520, %v5980, 0.0
      %v6110 = vadd.f32 %v6108, %v6109
      %v6111 = vsel %vm1520, %v5982, 0.0
      %v6112 = vadd.f32 %v6110, %v6111
      %v6113 = vsel %vm1520, %v5984, 0.0
      %v6114 = vadd.f32 %v6112, %v6113
      %v6115 = vsel %vm1520, %v5986, 0.0
      %v6116 = vadd.f32 %v6114, %v6115
      %v6117 = vsel %vm1520, %v5988, 0.0
      %v6118 = vadd.f32 %v6116, %v6117
      %v6119 = vsel %vm1520, %v5990, 0.0
      %v6120 = vadd.f32 %v6118, %v6119
      %v6121 = vsel %vm1520, %v5992, 0.0
      %v6122 = vadd.f32 %v6120, %v6121
      %v6123 = vsel %vm1520, %v5994, 0.0
      %v6124 = vadd.f32 %v6122, %v6123
      %v6125 = vsel %vm1520, %v5996, 0.0
      %v6126 = vadd.f32 %v6124, %v6125
      %v6127 = vsel %vm1520, %v5998, 0.0
      %v6128 = vadd.f32 %v6126, %v6127
      %v6129 = vsel %vm1520, %v6000, 0.0
      %v6130 = vadd.f32 %v6128, %v6129
      %v6131 = vsel %vm1520, %v6002, 0.0
      %v6132 = vadd.f32 %v6130, %v6131
      %v6133 = vsel %vm1520, %v6004, 0.0
      %v6134 = vadd.f32 %v6132, %v6133
      %v6135 = vsel %vm1520, %v6006, 0.0
      %v6136 = vadd.f32 %v6134, %v6135
      %v6137 = vsel %vm1520, %v6008, 0.0
      %v6138 = vadd.f32 %v6136, %v6137
      %v6139 = vsel %vm1520, %v6010, 0.0
      %v6140 = vadd.f32 %v6138, %v6139
      %v6141 = vsel %vm1520, %v6012, 0.0
      %v6142 = vadd.f32 %v6140, %v6141
      %v6143 = vsel %vm1520, %v6014, 0.0
      %v6144 = vadd.f32 %v6142, %v6143
      %v6145 = vsel %vm1520, %v6016, 0.0
      %v6146 = vadd.f32 %v6144, %v6145
      %v6147 = vsel %vm1520, %v6018, 0.0
      %v6148 = vadd.f32 %v6146, %v6147
      %v6149 = vsel %vm1520, %v6020, 0.0
      %v6150 = vadd.f32 %v6148, %v6149
      %v6151 = vsel %vm1520, %v6022, 0.0
      %v6152 = vadd.f32 %v6150, %v6151
      %v6153 = vsel %vm1520, %v6024, 0.0
      %v6154 = vadd.f32 %v6152, %v6153
      %v6155 = vsel %vm1520, %v6026, 0.0
      %v6156 = vadd.f32 %v6154, %v6155
      %v6157 = vsel %vm1520, %v6028, 0.0
      %v6158 = vadd.f32 %v6156, %v6157
      %v6159 = vsel %vm1520, %v6030, 0.0
      %v6160 = vadd.f32 %v6158, %v6159
      %v6161 = vsel %vm1520, %v6032, 0.0
      %v6162 = vadd.f32 %v6160, %v6161
      %v6163 = vsel %vm1520, %v6034, 0.0
      %v6164 = vadd.f32 %v6162, %v6163
      %v6165 = vsel %vm1520, %v6036, 0.0
      %v6166 = vadd.f32 %v6164, %v6165
      %v6167 = vsel %vm1520, %v6038, 0.0
      %v6168 = vadd.f32 %v6166, %v6167
      %v6169 = vsel %vm1520, %v6040, 0.0
      %v6170 = vadd.f32 %v6168, %v6169
      %v6171 = vsel %vm1520, %v6042, 0.0
      %v6172 = vadd.f32 %v6170, %v6171
      %v6173 = vsel %vm1520, %v6044, 0.0
      %v6174 = vadd.f32 %v6172, %v6173
      %v6175 = vsel %vm1520, %v6046, 0.0
      %v6176 = vadd.f32 %v6174, %v6175
      %v6177 = vsel %vm1520, %v6048, 0.0
      %v6178 = vadd.f32 %v6176, %v6177
      %v6179 = vsel %vm1520, %v6050, 0.0
      %v6180 = vadd.f32 %v6178, %v6179
      %v6181 = vsel %vm1520, %v6052, 0.0
      %v6182 = vadd.f32 %v6180, %v6181
      %v6183 = vsel %vm1520, %v6054, 0.0
      %v6184 = vadd.f32 %v6182, %v6183
      %v6185 = vsel %vm1520, %v6056, 0.0
      %v6186 = vadd.f32 %v6184, %v6185
      %v6187 = vsel %vm1520, %v6058, 0.0
      %v6188 = vadd.f32 %v6186, %v6187
      %v6189 = vsel %vm1520, %v6060, 0.0
      %v6190 = vadd.f32 %v6188, %v6189
      %v6191 = vsel %vm1520, %v6062, 0.0
      %v6192 = vadd.f32 %v6190, %v6191
      %v6193 = vsel %vm1520, %v6064, 0.0
      %v6194 = vadd.f32 %v6192, %v6193
      %v6195 = vsel %vm1520, %v6066, 0.0
      %v6196 = vadd.f32 %v6194, %v6195
      %v6197 = vsel %vm1520, %v6068, 0.0
      %v6198 = vadd.f32 %v6196, %v6197
      %v6199 = vsel %vm1520, %v6070, 0.0
      %v6200 = vadd.f32 %v6198, %v6199
      %v6201 = vsel %vm1520, %v6072, 0.0
      %v6202 = vadd.f32 %v6200, %v6201
      %v6203 = vsel %vm1520, %v6074, 0.0
      %v6204 = vadd.f32 %v6202, %v6203
      %v6205 = vsel %vm1520, %v6076, 0.0
      %v6206 = vadd.f32 %v6204, %v6205
      %v6207 = vsel %vm1520, %v6078, 0.0
      %v6208 = vadd.f32 %v6206, %v6207
      %v6209 = vsel %vm1520, %v6080, 0.0
      %v6210 = vadd.f32 %v6208, %v6209
      %v6211 = vsel %vm1520, %v6082, 0.0
      %v6212 = vadd.f32 %v6210, %v6211
      %v6213 = vsel %vm1520, %v6084, 0.0
      %v6214 = vadd.f32 %v6212, %v6213
      %v6215 = vsel %vm1520, %v6086, 0.0
      %v6216 = vadd.f32 %v6214, %v6215
      %v6217 = vsel %vm1520, %v6088, 0.0
      %v6218 = vadd.f32 %v6216, %v6217
      %v6219 = vsel %vm1520, %v6090, 0.0
      %v6220 = vadd.f32 %v6218, %v6219
      %v6221 = vsel %vm1520, %v6092, 0.0
      %v6222 = vadd.f32 %v6220, %v6221
      %v6223 = vsel %vm1520, %v6094, 0.0
      %v6224 = vadd.f32 %v6222, %v6223
      %v6225 = vsel %vm1520, %v6096, 0.0
      %v6226 = vadd.f32 %v6224, %v6225
      %v6227 = vsel %vm1520, %v6098, 0.0
      %v6228 = vadd.f32 %v6226, %v6227
      %v6229 = vsel %vm1520, %v6100, 0.0
      %v6230 = vadd.f32 %v6228, %v6229
      %v6231 = vsel %vm1520, %v6102, 0.0
      %v6232 = vadd.f32 %v6230, %v6231
      %v6233 = vsel %vm1520, %v5975, 0.0
      %v6234 = vsel %vm1520, %v5977, 0.0
      %v6235 = vadd.f32 %v6233, %v6234
      %v6236 = vsel %vm1520, %v5979, 0.0
      %v6237 = vadd.f32 %v6235, %v6236
      %v6238 = vsel %vm1520, %v5981, 0.0
      %v6239 = vadd.f32 %v6237, %v6238
      %v6240 = vsel %vm1520, %v5983, 0.0
      %v6241 = vadd.f32 %v6239, %v6240
      %v6242 = vsel %vm1520, %v5985, 0.0
      %v6243 = vadd.f32 %v6241, %v6242
      %v6244 = vsel %vm1520, %v5987, 0.0
      %v6245 = vadd.f32 %v6243, %v6244
      %v6246 = vsel %vm1520, %v5989, 0.0
      %v6247 = vadd.f32 %v6245, %v6246
      %v6248 = vsel %vm1520, %v5991, 0.0
      %v6249 = vadd.f32 %v6247, %v6248
      %v6250 = vsel %vm1520, %v5993, 0.0
      %v6251 = vadd.f32 %v6249, %v6250
      %v6252 = vsel %vm1520, %v5995, 0.0
      %v6253 = vadd.f32 %v6251, %v6252
      %v6254 = vsel %vm1520, %v5997, 0.0
      %v6255 = vadd.f32 %v6253, %v6254
      %v6256 = vsel %vm1520, %v5999, 0.0
      %v6257 = vadd.f32 %v6255, %v6256
      %v6258 = vsel %vm1520, %v6001, 0.0
      %v6259 = vadd.f32 %v6257, %v6258
      %v6260 = vsel %vm1520, %v6003, 0.0
      %v6261 = vadd.f32 %v6259, %v6260
      %v6262 = vsel %vm1520, %v6005, 0.0
      %v6263 = vadd.f32 %v6261, %v6262
      %v6264 = vsel %vm1520, %v6007, 0.0
      %v6265 = vadd.f32 %v6263, %v6264
      %v6266 = vsel %vm1520, %v6009, 0.0
      %v6267 = vadd.f32 %v6265, %v6266
      %v6268 = vsel %vm1520, %v6011, 0.0
      %v6269 = vadd.f32 %v6267, %v6268
      %v6270 = vsel %vm1520, %v6013, 0.0
      %v6271 = vadd.f32 %v6269, %v6270
      %v6272 = vsel %vm1520, %v6015, 0.0
      %v6273 = vadd.f32 %v6271, %v6272
      %v6274 = vsel %vm1520, %v6017, 0.0
      %v6275 = vadd.f32 %v6273, %v6274
      %v6276 = vsel %vm1520, %v6019, 0.0
      %v6277 = vadd.f32 %v6275, %v6276
      %v6278 = vsel %vm1520, %v6021, 0.0
      %v6279 = vadd.f32 %v6277, %v6278
      %v6280 = vsel %vm1520, %v6023, 0.0
      %v6281 = vadd.f32 %v6279, %v6280
      %v6282 = vsel %vm1520, %v6025, 0.0
      %v6283 = vadd.f32 %v6281, %v6282
      %v6284 = vsel %vm1520, %v6027, 0.0
      %v6285 = vadd.f32 %v6283, %v6284
      %v6286 = vsel %vm1520, %v6029, 0.0
      %v6287 = vadd.f32 %v6285, %v6286
      %v6288 = vsel %vm1520, %v6031, 0.0
      %v6289 = vadd.f32 %v6287, %v6288
      %v6290 = vsel %vm1520, %v6033, 0.0
      %v6291 = vadd.f32 %v6289, %v6290
      %v6292 = vsel %vm1520, %v6035, 0.0
      %v6293 = vadd.f32 %v6291, %v6292
      %v6294 = vsel %vm1520, %v6037, 0.0
      %v6295 = vadd.f32 %v6293, %v6294
      %v6296 = vsel %vm1520, %v6039, 0.0
      %v6297 = vadd.f32 %v6295, %v6296
      %v6298 = vsel %vm1520, %v6041, 0.0
      %v6299 = vadd.f32 %v6297, %v6298
      %v6300 = vsel %vm1520, %v6043, 0.0
      %v6301 = vadd.f32 %v6299, %v6300
      %v6302 = vsel %vm1520, %v6045, 0.0
      %v6303 = vadd.f32 %v6301, %v6302
      %v6304 = vsel %vm1520, %v6047, 0.0
      %v6305 = vadd.f32 %v6303, %v6304
      %v6306 = vsel %vm1520, %v6049, 0.0
      %v6307 = vadd.f32 %v6305, %v6306
      %v6308 = vsel %vm1520, %v6051, 0.0
      %v6309 = vadd.f32 %v6307, %v6308
      %v6310 = vsel %vm1520, %v6053, 0.0
      %v6311 = vadd.f32 %v6309, %v6310
      %v6312 = vsel %vm1520, %v6055, 0.0
      %v6313 = vadd.f32 %v6311, %v6312
      %v6314 = vsel %vm1520, %v6057, 0.0
      %v6315 = vadd.f32 %v6313, %v6314
      %v6316 = vsel %vm1520, %v6059, 0.0
      %v6317 = vadd.f32 %v6315, %v6316
      %v6318 = vsel %vm1520, %v6061, 0.0
      %v6319 = vadd.f32 %v6317, %v6318
      %v6320 = vsel %vm1520, %v6063, 0.0
      %v6321 = vadd.f32 %v6319, %v6320
      %v6322 = vsel %vm1520, %v6065, 0.0
      %v6323 = vadd.f32 %v6321, %v6322
      %v6324 = vsel %vm1520, %v6067, 0.0
      %v6325 = vadd.f32 %v6323, %v6324
      %v6326 = vsel %vm1520, %v6069, 0.0
      %v6327 = vadd.f32 %v6325, %v6326
      %v6328 = vsel %vm1520, %v6071, 0.0
      %v6329 = vadd.f32 %v6327, %v6328
      %v6330 = vsel %vm1520, %v6073, 0.0
      %v6331 = vadd.f32 %v6329, %v6330
      %v6332 = vsel %vm1520, %v6075, 0.0
      %v6333 = vadd.f32 %v6331, %v6332
      %v6334 = vsel %vm1520, %v6077, 0.0
      %v6335 = vadd.f32 %v6333, %v6334
      %v6336 = vsel %vm1520, %v6079, 0.0
      %v6337 = vadd.f32 %v6335, %v6336
      %v6338 = vsel %vm1520, %v6081, 0.0
      %v6339 = vadd.f32 %v6337, %v6338
      %v6340 = vsel %vm1520, %v6083, 0.0
      %v6341 = vadd.f32 %v6339, %v6340
      %v6342 = vsel %vm1520, %v6085, 0.0
      %v6343 = vadd.f32 %v6341, %v6342
      %v6344 = vsel %vm1520, %v6087, 0.0
      %v6345 = vadd.f32 %v6343, %v6344
      %v6346 = vsel %vm1520, %v6089, 0.0
      %v6347 = vadd.f32 %v6345, %v6346
      %v6348 = vsel %vm1520, %v6091, 0.0
      %v6349 = vadd.f32 %v6347, %v6348
      %v6350 = vsel %vm1520, %v6093, 0.0
      %v6351 = vadd.f32 %v6349, %v6350
      %v6352 = vsel %vm1520, %v6095, 0.0
      %v6353 = vadd.f32 %v6351, %v6352
      %v6354 = vsel %vm1520, %v6097, 0.0
      %v6355 = vadd.f32 %v6353, %v6354
      %v6356 = vsel %vm1520, %v6099, 0.0
      %v6357 = vadd.f32 %v6355, %v6356
      %v6358 = vsel %vm1520, %v6101, 0.0
      %v6359 = vadd.f32 %v6357, %v6358
      %v6360 = vsel %vm1520, %v6103, 0.0
      %v6361 = vadd.f32 %v6359, %v6360
      %6364 = vrot.lane.b32.xlu0 %v6232, 127
      %v6365 = vpop.permute.xlu0 %6364
      %6366 = vrot.lane.b32.xlu0 %v6361, 127
      %v6367 = vpop.permute.xlu0 %6366
      %v6370 = vadd.f32 %v5647, %v6365
      %v6371 = vadd.f32 %v5648, %v6367
      %6372 = vrot.lane.b32.xlu0 %v4934, 126
      %v6373 = vpop.permute.xlu0 %6372
      %6374 = vrot.lane.b32.xlu0 %v4935, 126
      %v6375 = vpop.permute.xlu0 %6374
      %6376 = vrot.lane.b32.xlu0 %v4936, 126
      %v6377 = vpop.permute.xlu0 %6376
      %6378 = vrot.lane.b32.xlu0 %v4937, 126
      %v6379 = vpop.permute.xlu0 %6378
      %6380 = vrot.lane.b32.xlu0 %v4938, 126
      %v6381 = vpop.permute.xlu0 %6380
      %6382 = vrot.lane.b32.xlu0 %v4939, 126
      %v6383 = vpop.permute.xlu0 %6382
      %6384 = vrot.lane.b32.xlu0 %v4940, 126
      %v6385 = vpop.permute.xlu0 %6384
      %6386 = vrot.lane.b32.xlu0 %v4941, 126
      %v6387 = vpop.permute.xlu0 %6386
      %6388 = vrot.lane.b32.xlu0 %v4942, 126
      %v6389 = vpop.permute.xlu0 %6388
      %6390 = vrot.lane.b32.xlu0 %v4943, 126
      %v6391 = vpop.permute.xlu0 %6390
      %6392 = vrot.lane.b32.xlu0 %v4944, 126
      %v6393 = vpop.permute.xlu0 %6392
      %6394 = vrot.lane.b32.xlu0 %v4945, 126
      %v6395 = vpop.permute.xlu0 %6394
      %6396 = vrot.lane.b32.xlu0 %v4946, 126
      %v6397 = vpop.permute.xlu0 %6396
      %6398 = vrot.lane.b32.xlu0 %v4947, 126
      %v6399 = vpop.permute.xlu0 %6398
      %6400 = vrot.lane.b32.xlu0 %v4948, 126
      %v6401 = vpop.permute.xlu0 %6400
      %6402 = vrot.lane.b32.xlu0 %v4949, 126
      %v6403 = vpop.permute.xlu0 %6402
      %6404 = vrot.lane.b32.xlu0 %v4950, 126
      %v6405 = vpop.permute.xlu0 %6404
      %6406 = vrot.lane.b32.xlu0 %v4951, 126
      %v6407 = vpop.permute.xlu0 %6406
      %6408 = vrot.lane.b32.xlu0 %v4952, 126
      %v6409 = vpop.permute.xlu0 %6408
      %6410 = vrot.lane.b32.xlu0 %v4953, 126
      %v6411 = vpop.permute.xlu0 %6410
      %6412 = vrot.lane.b32.xlu0 %v4954, 126
      %v6413 = vpop.permute.xlu0 %6412
      %6414 = vrot.lane.b32.xlu0 %v4955, 126
      %v6415 = vpop.permute.xlu0 %6414
      %6416 = vrot.lane.b32.xlu0 %v4956, 126
      %v6417 = vpop.permute.xlu0 %6416
      %6418 = vrot.lane.b32.xlu0 %v4957, 126
      %v6419 = vpop.permute.xlu0 %6418
      %6420 = vrot.lane.b32.xlu0 %v4958, 126
      %v6421 = vpop.permute.xlu0 %6420
      %6422 = vrot.lane.b32.xlu0 %v4959, 126
      %v6423 = vpop.permute.xlu0 %6422
      %6424 = vrot.lane.b32.xlu0 %v4960, 126
      %v6425 = vpop.permute.xlu0 %6424
      %6426 = vrot.lane.b32.xlu0 %v4961, 126
      %v6427 = vpop.permute.xlu0 %6426
      %6428 = vrot.lane.b32.xlu0 %v4962, 126
      %v6429 = vpop.permute.xlu0 %6428
      %6430 = vrot.lane.b32.xlu0 %v4963, 126
      %v6431 = vpop.permute.xlu0 %6430
      %6432 = vrot.lane.b32.xlu0 %v4964, 126
      %v6433 = vpop.permute.xlu0 %6432
      %6434 = vrot.lane.b32.xlu0 %v4965, 126
      %v6435 = vpop.permute.xlu0 %6434
      %6436 = vrot.lane.b32.xlu0 %v4966, 126
      %v6437 = vpop.permute.xlu0 %6436
      %6438 = vrot.lane.b32.xlu0 %v4967, 126
      %v6439 = vpop.permute.xlu0 %6438
      %6440 = vrot.lane.b32.xlu0 %v4968, 126
      %v6441 = vpop.permute.xlu0 %6440
      %6442 = vrot.lane.b32.xlu0 %v4969, 126
      %v6443 = vpop.permute.xlu0 %6442
      %6444 = vrot.lane.b32.xlu0 %v4970, 126
      %v6445 = vpop.permute.xlu0 %6444
      %6446 = vrot.lane.b32.xlu0 %v4971, 126
      %v6447 = vpop.permute.xlu0 %6446
      %6448 = vrot.lane.b32.xlu0 %v4972, 126
      %v6449 = vpop.permute.xlu0 %6448
      %6450 = vrot.lane.b32.xlu0 %v4973, 126
      %v6451 = vpop.permute.xlu0 %6450
      %6452 = vrot.lane.b32.xlu0 %v4974, 126
      %v6453 = vpop.permute.xlu0 %6452
      %6454 = vrot.lane.b32.xlu0 %v4975, 126
      %v6455 = vpop.permute.xlu0 %6454
      %6456 = vrot.lane.b32.xlu0 %v4976, 126
      %v6457 = vpop.permute.xlu0 %6456
      %6458 = vrot.lane.b32.xlu0 %v4977, 126
      %v6459 = vpop.permute.xlu0 %6458
      %6460 = vrot.lane.b32.xlu0 %v4978, 126
      %v6461 = vpop.permute.xlu0 %6460
      %6462 = vrot.lane.b32.xlu0 %v4979, 126
      %v6463 = vpop.permute.xlu0 %6462
      %6464 = vrot.lane.b32.xlu0 %v4980, 126
      %v6465 = vpop.permute.xlu0 %6464
      %6466 = vrot.lane.b32.xlu0 %v4981, 126
      %v6467 = vpop.permute.xlu0 %6466
      %6468 = vrot.lane.b32.xlu0 %v4982, 126
      %v6469 = vpop.permute.xlu0 %6468
      %6470 = vrot.lane.b32.xlu0 %v4983, 126
      %v6471 = vpop.permute.xlu0 %6470
      %6472 = vrot.lane.b32.xlu0 %v4984, 126
      %v6473 = vpop.permute.xlu0 %6472
      %6474 = vrot.lane.b32.xlu0 %v4985, 126
      %v6475 = vpop.permute.xlu0 %6474
      %6476 = vrot.lane.b32.xlu0 %v4986, 126
      %v6477 = vpop.permute.xlu0 %6476
      %6478 = vrot.lane.b32.xlu0 %v4987, 126
      %v6479 = vpop.permute.xlu0 %6478
      %6480 = vrot.lane.b32.xlu0 %v4988, 126
      %v6481 = vpop.permute.xlu0 %6480
      %6482 = vrot.lane.b32.xlu0 %v4989, 126
      %v6483 = vpop.permute.xlu0 %6482
      %6484 = vrot.lane.b32.xlu0 %v4990, 126
      %v6485 = vpop.permute.xlu0 %6484
      %6486 = vrot.lane.b32.xlu0 %v4991, 126
      %v6487 = vpop.permute.xlu0 %6486
      %6488 = vrot.lane.b32.xlu0 %v4992, 126
      %v6489 = vpop.permute.xlu0 %6488
      %6490 = vrot.lane.b32.xlu0 %v4993, 126
      %v6491 = vpop.permute.xlu0 %6490
      %6492 = vrot.lane.b32.xlu0 %v4994, 126
      %v6493 = vpop.permute.xlu0 %6492
      %6494 = vrot.lane.b32.xlu0 %v4995, 126
      %v6495 = vpop.permute.xlu0 %6494
      %6496 = vrot.lane.b32.xlu0 %v4996, 126
      %v6497 = vpop.permute.xlu0 %6496
      %6498 = vrot.lane.b32.xlu0 %v4997, 126
      %v6499 = vpop.permute.xlu0 %6498
      %6500 = vrot.lane.b32.xlu0 %v4998, 126
      %v6501 = vpop.permute.xlu0 %6500
      %s6502 = vtos %v6373
      %v6503 = vstv %s6502
      %s6505 = vtos %v6375
      %v6506 = vstv %s6505
      %s6508 = vtos %v6377
      %v6509 = vstv %s6508
      %s6511 = vtos %v6379
      %v6512 = vstv %s6511
      %s6514 = vtos %v6381
      %v6515 = vstv %s6514
      %s6517 = vtos %v6383
      %v6518 = vstv %s6517
      %s6520 = vtos %v6385
      %v6521 = vstv %s6520
      %s6523 = vtos %v6387
      %v6524 = vstv %s6523
      %s6526 = vtos %v6389
      %v6527 = vstv %s6526
      %s6529 = vtos %v6391
      %v6530 = vstv %s6529
      %s6532 = vtos %v6393
      %v6533 = vstv %s6532
      %s6535 = vtos %v6395
      %v6536 = vstv %s6535
      %s6538 = vtos %v6397
      %v6539 = vstv %s6538
      %s6541 = vtos %v6399
      %v6542 = vstv %s6541
      %s6544 = vtos %v6401
      %v6545 = vstv %s6544
      %s6547 = vtos %v6403
      %v6548 = vstv %s6547
      %s6550 = vtos %v6405
      %v6551 = vstv %s6550
      %s6553 = vtos %v6407
      %v6554 = vstv %s6553
      %s6556 = vtos %v6409
      %v6557 = vstv %s6556
      %s6559 = vtos %v6411
      %v6560 = vstv %s6559
      %s6562 = vtos %v6413
      %v6563 = vstv %s6562
      %s6565 = vtos %v6415
      %v6566 = vstv %s6565
      %s6568 = vtos %v6417
      %v6569 = vstv %s6568
      %s6571 = vtos %v6419
      %v6572 = vstv %s6571
      %s6574 = vtos %v6421
      %v6575 = vstv %s6574
      %s6577 = vtos %v6423
      %v6578 = vstv %s6577
      %s6580 = vtos %v6425
      %v6581 = vstv %s6580
      %s6583 = vtos %v6427
      %v6584 = vstv %s6583
      %s6586 = vtos %v6429
      %v6587 = vstv %s6586
      %s6589 = vtos %v6431
      %v6590 = vstv %s6589
      %s6592 = vtos %v6433
      %v6593 = vstv %s6592
      %s6595 = vtos %v6435
      %v6596 = vstv %s6595
      %s6598 = vtos %v6437
      %v6599 = vstv %s6598
      %s6601 = vtos %v6439
      %v6602 = vstv %s6601
      %s6604 = vtos %v6441
      %v6605 = vstv %s6604
      %s6607 = vtos %v6443
      %v6608 = vstv %s6607
      %s6610 = vtos %v6445
      %v6611 = vstv %s6610
      %s6613 = vtos %v6447
      %v6614 = vstv %s6613
      %s6616 = vtos %v6449
      %v6617 = vstv %s6616
      %s6619 = vtos %v6451
      %v6620 = vstv %s6619
      %s6622 = vtos %v6453
      %v6623 = vstv %s6622
      %s6625 = vtos %v6455
      %v6626 = vstv %s6625
      %s6628 = vtos %v6457
      %v6629 = vstv %s6628
      %s6631 = vtos %v6459
      %v6632 = vstv %s6631
      %s6634 = vtos %v6461
      %v6635 = vstv %s6634
      %s6637 = vtos %v6463
      %v6638 = vstv %s6637
      %s6640 = vtos %v6465
      %v6641 = vstv %s6640
      %s6643 = vtos %v6467
      %v6644 = vstv %s6643
      %s6646 = vtos %v6469
      %v6647 = vstv %s6646
      %s6649 = vtos %v6471
      %v6650 = vstv %s6649
      %s6652 = vtos %v6473
      %v6653 = vstv %s6652
      %s6655 = vtos %v6475
      %v6656 = vstv %s6655
      %s6658 = vtos %v6477
      %v6659 = vstv %s6658
      %s6661 = vtos %v6479
      %v6662 = vstv %s6661
      %s6664 = vtos %v6481
      %v6665 = vstv %s6664
      %s6667 = vtos %v6483
      %v6668 = vstv %s6667
      %s6670 = vtos %v6485
      %v6671 = vstv %s6670
      %s6673 = vtos %v6487
      %v6674 = vstv %s6673
      %s6676 = vtos %v6489
      %v6677 = vstv %s6676
      %s6679 = vtos %v6491
      %v6680 = vstv %s6679
      %s6682 = vtos %v6493
      %v6683 = vstv %s6682
      %s6685 = vtos %v6495
      %v6686 = vstv %s6685
      %s6688 = vtos %v6497
      %v6689 = vstv %s6688
      %s6691 = vtos %v6499
      %v6692 = vstv %s6691
      %s6694 = vtos %v6501
      %v6695 = vstv %s6694
      %v6697 = vmul.f32 %v4804, %v6503
      %v6698 = vmul.f32 %v4805, %v6503
      %v6699 = vmul.f32 %v4806, %v6506
      %v6700 = vmul.f32 %v4807, %v6506
      %v6701 = vmul.f32 %v4808, %v6509
      %v6702 = vmul.f32 %v4809, %v6509
      %v6703 = vmul.f32 %v4810, %v6512
      %v6704 = vmul.f32 %v4811, %v6512
      %v6705 = vmul.f32 %v4812, %v6515
      %v6706 = vmul.f32 %v4813, %v6515
      %v6707 = vmul.f32 %v4814, %v6518
      %v6708 = vmul.f32 %v4815, %v6518
      %v6709 = vmul.f32 %v4816, %v6521
      %v6710 = vmul.f32 %v4817, %v6521
      %v6711 = vmul.f32 %v4818, %v6524
      %v6712 = vmul.f32 %v4819, %v6524
      %v6713 = vmul.f32 %v4820, %v6527
      %v6714 = vmul.f32 %v4821, %v6527
      %v6715 = vmul.f32 %v4822, %v6530
      %v6716 = vmul.f32 %v4823, %v6530
      %v6717 = vmul.f32 %v4824, %v6533
      %v6718 = vmul.f32 %v4825, %v6533
      %v6719 = vmul.f32 %v4826, %v6536
      %v6720 = vmul.f32 %v4827, %v6536
      %v6721 = vmul.f32 %v4828, %v6539
      %v6722 = vmul.f32 %v4829, %v6539
      %v6723 = vmul.f32 %v4830, %v6542
      %v6724 = vmul.f32 %v4831, %v6542
      %v6725 = vmul.f32 %v4832, %v6545
      %v6726 = vmul.f32 %v4833, %v6545
      %v6727 = vmul.f32 %v4834, %v6548
      %v6728 = vmul.f32 %v4835, %v6548
      %v6729 = vmul.f32 %v4836, %v6551
      %v6730 = vmul.f32 %v4837, %v6551
      %v6731 = vmul.f32 %v4838, %v6554
      %v6732 = vmul.f32 %v4839, %v6554
      %v6733 = vmul.f32 %v4840, %v6557
      %v6734 = vmul.f32 %v4841, %v6557
      %v6735 = vmul.f32 %v4842, %v6560
      %v6736 = vmul.f32 %v4843, %v6560
      %v6737 = vmul.f32 %v4844, %v6563
      %v6738 = vmul.f32 %v4845, %v6563
      %v6739 = vmul.f32 %v4846, %v6566
      %v6740 = vmul.f32 %v4847, %v6566
      %v6741 = vmul.f32 %v4848, %v6569
      %v6742 = vmul.f32 %v4849, %v6569
      %v6743 = vmul.f32 %v4850, %v6572
      %v6744 = vmul.f32 %v4851, %v6572
      %v6745 = vmul.f32 %v4852, %v6575
      %v6746 = vmul.f32 %v4853, %v6575
      %v6747 = vmul.f32 %v4854, %v6578
      %v6748 = vmul.f32 %v4855, %v6578
      %v6749 = vmul.f32 %v4856, %v6581
      %v6750 = vmul.f32 %v4857, %v6581
      %v6751 = vmul.f32 %v4858, %v6584
      %v6752 = vmul.f32 %v4859, %v6584
      %v6753 = vmul.f32 %v4860, %v6587
      %v6754 = vmul.f32 %v4861, %v6587
      %v6755 = vmul.f32 %v4862, %v6590
      %v6756 = vmul.f32 %v4863, %v6590
      %v6757 = vmul.f32 %v4864, %v6593
      %v6758 = vmul.f32 %v4865, %v6593
      %v6759 = vmul.f32 %v4866, %v6596
      %v6760 = vmul.f32 %v4867, %v6596
      %v6761 = vmul.f32 %v4868, %v6599
      %v6762 = vmul.f32 %v4869, %v6599
      %v6763 = vmul.f32 %v4870, %v6602
      %v6764 = vmul.f32 %v4871, %v6602
      %v6765 = vmul.f32 %v4872, %v6605
      %v6766 = vmul.f32 %v4873, %v6605
      %v6767 = vmul.f32 %v4874, %v6608
      %v6768 = vmul.f32 %v4875, %v6608
      %v6769 = vmul.f32 %v4876, %v6611
      %v6770 = vmul.f32 %v4877, %v6611
      %v6771 = vmul.f32 %v4878, %v6614
      %v6772 = vmul.f32 %v4879, %v6614
      %v6773 = vmul.f32 %v4880, %v6617
      %v6774 = vmul.f32 %v4881, %v6617
      %v6775 = vmul.f32 %v4882, %v6620
      %v6776 = vmul.f32 %v4883, %v6620
      %v6777 = vmul.f32 %v4884, %v6623
      %v6778 = vmul.f32 %v4885, %v6623
      %v6779 = vmul.f32 %v4886, %v6626
      %v6780 = vmul.f32 %v4887, %v6626
      %v6781 = vmul.f32 %v4888, %v6629
      %v6782 = vmul.f32 %v4889, %v6629
      %v6783 = vmul.f32 %v4890, %v6632
      %v6784 = vmul.f32 %v4891, %v6632
      %v6785 = vmul.f32 %v4892, %v6635
      %v6786 = vmul.f32 %v4893, %v6635
      %v6787 = vmul.f32 %v4894, %v6638
      %v6788 = vmul.f32 %v4895, %v6638
      %v6789 = vmul.f32 %v4896, %v6641
      %v6790 = vmul.f32 %v4897, %v6641
      %v6791 = vmul.f32 %v4898, %v6644
      %v6792 = vmul.f32 %v4899, %v6644
      %v6793 = vmul.f32 %v4900, %v6647
      %v6794 = vmul.f32 %v4901, %v6647
      %v6795 = vmul.f32 %v4902, %v6650
      %v6796 = vmul.f32 %v4903, %v6650
      %v6797 = vmul.f32 %v4904, %v6653
      %v6798 = vmul.f32 %v4905, %v6653
      %v6799 = vmul.f32 %v4906, %v6656
      %v6800 = vmul.f32 %v4907, %v6656
      %v6801 = vmul.f32 %v4908, %v6659
      %v6802 = vmul.f32 %v4909, %v6659
      %v6803 = vmul.f32 %v4910, %v6662
      %v6804 = vmul.f32 %v4911, %v6662
      %v6805 = vmul.f32 %v4912, %v6665
      %v6806 = vmul.f32 %v4913, %v6665
      %v6807 = vmul.f32 %v4914, %v6668
      %v6808 = vmul.f32 %v4915, %v6668
      %v6809 = vmul.f32 %v4916, %v6671
      %v6810 = vmul.f32 %v4917, %v6671
      %v6811 = vmul.f32 %v4918, %v6674
      %v6812 = vmul.f32 %v4919, %v6674
      %v6813 = vmul.f32 %v4920, %v6677
      %v6814 = vmul.f32 %v4921, %v6677
      %v6815 = vmul.f32 %v4922, %v6680
      %v6816 = vmul.f32 %v4923, %v6680
      %v6817 = vmul.f32 %v4924, %v6683
      %v6818 = vmul.f32 %v4925, %v6683
      %v6819 = vmul.f32 %v4926, %v6686
      %v6820 = vmul.f32 %v4927, %v6686
      %v6821 = vmul.f32 %v4928, %v6689
      %v6822 = vmul.f32 %v4929, %v6689
      %v6823 = vmul.f32 %v4930, %v6692
      %v6824 = vmul.f32 %v4931, %v6692
      %v6825 = vmul.f32 %v4932, %v6695
      %v6826 = vmul.f32 %v4933, %v6695
      %v6827 = vsel %vm2244, %v6697, 0.0
      %v6828 = vsel %vm2244, %v6699, 0.0
      %v6829 = vadd.f32 %v6827, %v6828
      %v6830 = vsel %vm2244, %v6701, 0.0
      %v6831 = vadd.f32 %v6829, %v6830
      %v6832 = vsel %vm2244, %v6703, 0.0
      %v6833 = vadd.f32 %v6831, %v6832
      %v6834 = vsel %vm2244, %v6705, 0.0
      %v6835 = vadd.f32 %v6833, %v6834
      %v6836 = vsel %vm2244, %v6707, 0.0
      %v6837 = vadd.f32 %v6835, %v6836
      %v6838 = vsel %vm2244, %v6709, 0.0
      %v6839 = vadd.f32 %v6837, %v6838
      %v6840 = vsel %vm2244, %v6711, 0.0
      %v6841 = vadd.f32 %v6839, %v6840
      %v6842 = vsel %vm2244, %v6713, 0.0
      %v6843 = vadd.f32 %v6841, %v6842
      %v6844 = vsel %vm2244, %v6715, 0.0
      %v6845 = vadd.f32 %v6843, %v6844
      %v6846 = vsel %vm2244, %v6717, 0.0
      %v6847 = vadd.f32 %v6845, %v6846
      %v6848 = vsel %vm2244, %v6719, 0.0
      %v6849 = vadd.f32 %v6847, %v6848
      %v6850 = vsel %vm2244, %v6721, 0.0
      %v6851 = vadd.f32 %v6849, %v6850
      %v6852 = vsel %vm2244, %v6723, 0.0
      %v6853 = vadd.f32 %v6851, %v6852
      %v6854 = vsel %vm2244, %v6725, 0.0
      %v6855 = vadd.f32 %v6853, %v6854
      %v6856 = vsel %vm2244, %v6727, 0.0
      %v6857 = vadd.f32 %v6855, %v6856
      %v6858 = vsel %vm2244, %v6729, 0.0
      %v6859 = vadd.f32 %v6857, %v6858
      %v6860 = vsel %vm2244, %v6731, 0.0
      %v6861 = vadd.f32 %v6859, %v6860
      %v6862 = vsel %vm2244, %v6733, 0.0
      %v6863 = vadd.f32 %v6861, %v6862
      %v6864 = vsel %vm2244, %v6735, 0.0
      %v6865 = vadd.f32 %v6863, %v6864
      %v6866 = vsel %vm2244, %v6737, 0.0
      %v6867 = vadd.f32 %v6865, %v6866
      %v6868 = vsel %vm2244, %v6739, 0.0
      %v6869 = vadd.f32 %v6867, %v6868
      %v6870 = vsel %vm2244, %v6741, 0.0
      %v6871 = vadd.f32 %v6869, %v6870
      %v6872 = vsel %vm2244, %v6743, 0.0
      %v6873 = vadd.f32 %v6871, %v6872
      %v6874 = vsel %vm2244, %v6745, 0.0
      %v6875 = vadd.f32 %v6873, %v6874
      %v6876 = vsel %vm2244, %v6747, 0.0
      %v6877 = vadd.f32 %v6875, %v6876
      %v6878 = vsel %vm2244, %v6749, 0.0
      %v6879 = vadd.f32 %v6877, %v6878
      %v6880 = vsel %vm2244, %v6751, 0.0
      %v6881 = vadd.f32 %v6879, %v6880
      %v6882 = vsel %vm2244, %v6753, 0.0
      %v6883 = vadd.f32 %v6881, %v6882
      %v6884 = vsel %vm2244, %v6755, 0.0
      %v6885 = vadd.f32 %v6883, %v6884
      %v6886 = vsel %vm2244, %v6757, 0.0
      %v6887 = vadd.f32 %v6885, %v6886
      %v6888 = vsel %vm2244, %v6759, 0.0
      %v6889 = vadd.f32 %v6887, %v6888
      %v6890 = vsel %vm2244, %v6761, 0.0
      %v6891 = vadd.f32 %v6889, %v6890
      %v6892 = vsel %vm2244, %v6763, 0.0
      %v6893 = vadd.f32 %v6891, %v6892
      %v6894 = vsel %vm2244, %v6765, 0.0
      %v6895 = vadd.f32 %v6893, %v6894
      %v6896 = vsel %vm2244, %v6767, 0.0
      %v6897 = vadd.f32 %v6895, %v6896
      %v6898 = vsel %vm2244, %v6769, 0.0
      %v6899 = vadd.f32 %v6897, %v6898
      %v6900 = vsel %vm2244, %v6771, 0.0
      %v6901 = vadd.f32 %v6899, %v6900
      %v6902 = vsel %vm2244, %v6773, 0.0
      %v6903 = vadd.f32 %v6901, %v6902
      %v6904 = vsel %vm2244, %v6775, 0.0
      %v6905 = vadd.f32 %v6903, %v6904
      %v6906 = vsel %vm2244, %v6777, 0.0
      %v6907 = vadd.f32 %v6905, %v6906
      %v6908 = vsel %vm2244, %v6779, 0.0
      %v6909 = vadd.f32 %v6907, %v6908
      %v6910 = vsel %vm2244, %v6781, 0.0
      %v6911 = vadd.f32 %v6909, %v6910
      %v6912 = vsel %vm2244, %v6783, 0.0
      %v6913 = vadd.f32 %v6911, %v6912
      %v6914 = vsel %vm2244, %v6785, 0.0
      %v6915 = vadd.f32 %v6913, %v6914
      %v6916 = vsel %vm2244, %v6787, 0.0
      %v6917 = vadd.f32 %v6915, %v6916
      %v6918 = vsel %vm2244, %v6789, 0.0
      %v6919 = vadd.f32 %v6917, %v6918
      %v6920 = vsel %vm2244, %v6791, 0.0
      %v6921 = vadd.f32 %v6919, %v6920
      %v6922 = vsel %vm2244, %v6793, 0.0
      %v6923 = vadd.f32 %v6921, %v6922
      %v6924 = vsel %vm2244, %v6795, 0.0
      %v6925 = vadd.f32 %v6923, %v6924
      %v6926 = vsel %vm2244, %v6797, 0.0
      %v6927 = vadd.f32 %v6925, %v6926
      %v6928 = vsel %vm2244, %v6799, 0.0
      %v6929 = vadd.f32 %v6927, %v6928
      %v6930 = vsel %vm2244, %v6801, 0.0
      %v6931 = vadd.f32 %v6929, %v6930
      %v6932 = vsel %vm2244, %v6803, 0.0
      %v6933 = vadd.f32 %v6931, %v6932
      %v6934 = vsel %vm2244, %v6805, 0.0
      %v6935 = vadd.f32 %v6933, %v6934
      %v6936 = vsel %vm2244, %v6807, 0.0
      %v6937 = vadd.f32 %v6935, %v6936
      %v6938 = vsel %vm2244, %v6809, 0.0
      %v6939 = vadd.f32 %v6937, %v6938
      %v6940 = vsel %vm2244, %v6811, 0.0
      %v6941 = vadd.f32 %v6939, %v6940
      %v6942 = vsel %vm2244, %v6813, 0.0
      %v6943 = vadd.f32 %v6941, %v6942
      %v6944 = vsel %vm2244, %v6815, 0.0
      %v6945 = vadd.f32 %v6943, %v6944
      %v6946 = vsel %vm2244, %v6817, 0.0
      %v6947 = vadd.f32 %v6945, %v6946
      %v6948 = vsel %vm2244, %v6819, 0.0
      %v6949 = vadd.f32 %v6947, %v6948
      %v6950 = vsel %vm2244, %v6821, 0.0
      %v6951 = vadd.f32 %v6949, %v6950
      %v6952 = vsel %vm2244, %v6823, 0.0
      %v6953 = vadd.f32 %v6951, %v6952
      %v6954 = vsel %vm2244, %v6825, 0.0
      %v6955 = vadd.f32 %v6953, %v6954
      %v6956 = vsel %vm2244, %v6698, 0.0
      %v6957 = vsel %vm2244, %v6700, 0.0
      %v6958 = vadd.f32 %v6956, %v6957
      %v6959 = vsel %vm2244, %v6702, 0.0
      %v6960 = vadd.f32 %v6958, %v6959
      %v6961 = vsel %vm2244, %v6704, 0.0
      %v6962 = vadd.f32 %v6960, %v6961
      %v6963 = vsel %vm2244, %v6706, 0.0
      %v6964 = vadd.f32 %v6962, %v6963
      %v6965 = vsel %vm2244, %v6708, 0.0
      %v6966 = vadd.f32 %v6964, %v6965
      %v6967 = vsel %vm2244, %v6710, 0.0
      %v6968 = vadd.f32 %v6966, %v6967
      %v6969 = vsel %vm2244, %v6712, 0.0
      %v6970 = vadd.f32 %v6968, %v6969
      %v6971 = vsel %vm2244, %v6714, 0.0
      %v6972 = vadd.f32 %v6970, %v6971
      %v6973 = vsel %vm2244, %v6716, 0.0
      %v6974 = vadd.f32 %v6972, %v6973
      %v6975 = vsel %vm2244, %v6718, 0.0
      %v6976 = vadd.f32 %v6974, %v6975
      %v6977 = vsel %vm2244, %v6720, 0.0
      %v6978 = vadd.f32 %v6976, %v6977
      %v6979 = vsel %vm2244, %v6722, 0.0
      %v6980 = vadd.f32 %v6978, %v6979
      %v6981 = vsel %vm2244, %v6724, 0.0
      %v6982 = vadd.f32 %v6980, %v6981
      %v6983 = vsel %vm2244, %v6726, 0.0
      %v6984 = vadd.f32 %v6982, %v6983
      %v6985 = vsel %vm2244, %v6728, 0.0
      %v6986 = vadd.f32 %v6984, %v6985
      %v6987 = vsel %vm2244, %v6730, 0.0
      %v6988 = vadd.f32 %v6986, %v6987
      %v6989 = vsel %vm2244, %v6732, 0.0
      %v6990 = vadd.f32 %v6988, %v6989
      %v6991 = vsel %vm2244, %v6734, 0.0
      %v6992 = vadd.f32 %v6990, %v6991
      %v6993 = vsel %vm2244, %v6736, 0.0
      %v6994 = vadd.f32 %v6992, %v6993
      %v6995 = vsel %vm2244, %v6738, 0.0
      %v6996 = vadd.f32 %v6994, %v6995
      %v6997 = vsel %vm2244, %v6740, 0.0
      %v6998 = vadd.f32 %v6996, %v6997
      %v6999 = vsel %vm2244, %v6742, 0.0
      %v7000 = vadd.f32 %v6998, %v6999
      %v7001 = vsel %vm2244, %v6744, 0.0
      %v7002 = vadd.f32 %v7000, %v7001
      %v7003 = vsel %vm2244, %v6746, 0.0
      %v7004 = vadd.f32 %v7002, %v7003
      %v7005 = vsel %vm2244, %v6748, 0.0
      %v7006 = vadd.f32 %v7004, %v7005
      %v7007 = vsel %vm2244, %v6750, 0.0
      %v7008 = vadd.f32 %v7006, %v7007
      %v7009 = vsel %vm2244, %v6752, 0.0
      %v7010 = vadd.f32 %v7008, %v7009
      %v7011 = vsel %vm2244, %v6754, 0.0
      %v7012 = vadd.f32 %v7010, %v7011
      %v7013 = vsel %vm2244, %v6756, 0.0
      %v7014 = vadd.f32 %v7012, %v7013
      %v7015 = vsel %vm2244, %v6758, 0.0
      %v7016 = vadd.f32 %v7014, %v7015
      %v7017 = vsel %vm2244, %v6760, 0.0
      %v7018 = vadd.f32 %v7016, %v7017
      %v7019 = vsel %vm2244, %v6762, 0.0
      %v7020 = vadd.f32 %v7018, %v7019
      %v7021 = vsel %vm2244, %v6764, 0.0
      %v7022 = vadd.f32 %v7020, %v7021
      %v7023 = vsel %vm2244, %v6766, 0.0
      %v7024 = vadd.f32 %v7022, %v7023
      %v7025 = vsel %vm2244, %v6768, 0.0
      %v7026 = vadd.f32 %v7024, %v7025
      %v7027 = vsel %vm2244, %v6770, 0.0
      %v7028 = vadd.f32 %v7026, %v7027
      %v7029 = vsel %vm2244, %v6772, 0.0
      %v7030 = vadd.f32 %v7028, %v7029
      %v7031 = vsel %vm2244, %v6774, 0.0
      %v7032 = vadd.f32 %v7030, %v7031
      %v7033 = vsel %vm2244, %v6776, 0.0
      %v7034 = vadd.f32 %v7032, %v7033
      %v7035 = vsel %vm2244, %v6778, 0.0
      %v7036 = vadd.f32 %v7034, %v7035
      %v7037 = vsel %vm2244, %v6780, 0.0
      %v7038 = vadd.f32 %v7036, %v7037
      %v7039 = vsel %vm2244, %v6782, 0.0
      %v7040 = vadd.f32 %v7038, %v7039
      %v7041 = vsel %vm2244, %v6784, 0.0
      %v7042 = vadd.f32 %v7040, %v7041
      %v7043 = vsel %vm2244, %v6786, 0.0
      %v7044 = vadd.f32 %v7042, %v7043
      %v7045 = vsel %vm2244, %v6788, 0.0
      %v7046 = vadd.f32 %v7044, %v7045
      %v7047 = vsel %vm2244, %v6790, 0.0
      %v7048 = vadd.f32 %v7046, %v7047
      %v7049 = vsel %vm2244, %v6792, 0.0
      %v7050 = vadd.f32 %v7048, %v7049
      %v7051 = vsel %vm2244, %v6794, 0.0
      %v7052 = vadd.f32 %v7050, %v7051
      %v7053 = vsel %vm2244, %v6796, 0.0
      %v7054 = vadd.f32 %v7052, %v7053
      %v7055 = vsel %vm2244, %v6798, 0.0
      %v7056 = vadd.f32 %v7054, %v7055
      %v7057 = vsel %vm2244, %v6800, 0.0
      %v7058 = vadd.f32 %v7056, %v7057
      %v7059 = vsel %vm2244, %v6802, 0.0
      %v7060 = vadd.f32 %v7058, %v7059
      %v7061 = vsel %vm2244, %v6804, 0.0
      %v7062 = vadd.f32 %v7060, %v7061
      %v7063 = vsel %vm2244, %v6806, 0.0
      %v7064 = vadd.f32 %v7062, %v7063
      %v7065 = vsel %vm2244, %v6808, 0.0
      %v7066 = vadd.f32 %v7064, %v7065
      %v7067 = vsel %vm2244, %v6810, 0.0
      %v7068 = vadd.f32 %v7066, %v7067
      %v7069 = vsel %vm2244, %v6812, 0.0
      %v7070 = vadd.f32 %v7068, %v7069
      %v7071 = vsel %vm2244, %v6814, 0.0
      %v7072 = vadd.f32 %v7070, %v7071
      %v7073 = vsel %vm2244, %v6816, 0.0
      %v7074 = vadd.f32 %v7072, %v7073
      %v7075 = vsel %vm2244, %v6818, 0.0
      %v7076 = vadd.f32 %v7074, %v7075
      %v7077 = vsel %vm2244, %v6820, 0.0
      %v7078 = vadd.f32 %v7076, %v7077
      %v7079 = vsel %vm2244, %v6822, 0.0
      %v7080 = vadd.f32 %v7078, %v7079
      %v7081 = vsel %vm2244, %v6824, 0.0
      %v7082 = vadd.f32 %v7080, %v7081
      %v7083 = vsel %vm2244, %v6826, 0.0
      %v7084 = vadd.f32 %v7082, %v7083
      %7087 = vrot.lane.b32.xlu0 %v6955, 126
      %v7088 = vpop.permute.xlu0 %7087
      %7089 = vrot.lane.b32.xlu0 %v7084, 126
      %v7090 = vpop.permute.xlu0 %7089
      %v7093 = vadd.f32 %v6370, %v7088
      %v7094 = vadd.f32 %v6371, %v7090
      %s7095 = sld [smem:[#allocation2]]
      %v7096 = vstv %s7095
      %v7097 = vadd.f32 %v7093, %v7096
      %v7098 = vadd.f32 %v7094, %v7096
      %v7099 = vxor.u32 %v7097, 2147483648
      %v7100 = vxor.u32 %v7098, 2147483648
      %v7101 = vmul.f32 %v7099, 1.442695
      %v7102 = vpow.pop %v7101
      %v7103 = vmul.f32 %v7100, 1.442695
      %v7104 = vpow.pop %v7103
      %v7105 = vadd.f32 %v7102, 1.0
      %v7106 = vadd.f32 %v7104, 1.0
      %v7107 = vrcp.pop %v7105
      %v7108 = vmul.f32 %v7105, %v7107
      %v7109 = vsub.f32 1.0, %v7108
      %v7110 = vmul.f32 %v7107, %v7109
      %v7111 = vadd.f32 %v7107, %v7110
      %vm7112 = vweird.f32 %v7105
      %vm7113 = vweird.f32 %v7107
      %vm7114 = vmor %vm7112, %vm7113
      %v7115 = vsel %vm7114, %v7107, %v7111
      %v7116 = vand.u32 2147483647, %v7105
      %vm7117 = vcmp.eq.f32.partialorder %v7116, 8.507059e+37
      %v7118 = vand.u32 %v7105, 2147483648
      %v7119 = vor.u32 1.1754944e-38, %v7118
      %v7120 = vsel %vm7117, %v7119, %v7115
      %v7121 = vmul.f32 1.0, %v7120
      %v7122 = vrcp.pop %v7106
      %v7123 = vmul.f32 %v7106, %v7122
      %v7124 = vsub.f32 1.0, %v7123
      %v7125 = vmul.f32 %v7122, %v7124
      %v7126 = vadd.f32 %v7122, %v7125
      %vm7127 = vweird.f32 %v7106
      %vm7128 = vweird.f32 %v7122
      %vm7129 = vmor %vm7127, %vm7128
      %v7130 = vsel %vm7129, %v7122, %v7126
      %v7131 = vand.u32 2147483647, %v7106
      %vm7132 = vcmp.eq.f32.partialorder %v7131, 8.507059e+37
      %v7133 = vand.u32 %v7106, 2147483648
      %v7134 = vor.u32 1.1754944e-38, %v7133
      %v7135 = vsel %vm7132, %v7134, %v7130
      %v7136 = vmul.f32 1.0, %v7135
      %v7137 = vld [vmem:[%s213] sm:$0xff]
      %v7138 = vld [vmem:[%s213 + $0x8] sm:$0xff]
      %v7139 = vld [vmem:[%s213 + $0x10] sm:$0xff]
      %v7140 = vld [vmem:[%s213 + $0x18] sm:$0xff]
      %v7141 = vld [vmem:[%s213 + $0x20] sm:$0xff]
      %v7142 = vld [vmem:[%s213 + $0x28] sm:$0xff]
      %v7143 = vld [vmem:[%s213 + $0x30] sm:$0xff]
      %v7144 = vld [vmem:[%s213 + $0x38] sm:$0xff]
      %v7145 = vld [vmem:[%s213 + $0x40] sm:$0xff]
      %v7146 = vld [vmem:[%s213 + $0x48] sm:$0xff]
      %v7147 = vld [vmem:[%s213 + $0x50] sm:$0xff]
      %v7148 = vld [vmem:[%s213 + $0x58] sm:$0xff]
      %v7149 = vld [vmem:[%s213 + $0x60] sm:$0xff]
      %v7150 = vld [vmem:[%s213 + $0x68] sm:$0xff]
      %v7151 = vld [vmem:[%s213 + $0x70] sm:$0xff]
      %v7152 = vld [vmem:[%s213 + $0x78] sm:$0xff]
      %v7153 = vld [vmem:[%s213 + $0x80] sm:$0xff]
      %v7154 = vld [vmem:[%s213 + $0x88] sm:$0xff]
      %v7155 = vld [vmem:[%s213 + $0x90] sm:$0xff]
      %v7156 = vld [vmem:[%s213 + $0x98] sm:$0xff]
      %v7157 = vld [vmem:[%s213 + $0xa0] sm:$0xff]
      %v7158 = vld [vmem:[%s213 + $0xa8] sm:$0xff]
      %v7159 = vld [vmem:[%s213 + $0xb0] sm:$0xff]
      %v7160 = vld [vmem:[%s213 + $0xb8] sm:$0xff]
      %v7161 = vld [vmem:[%s213 + $0xc0] sm:$0xff]
      %v7162 = vld [vmem:[%s213 + $0xc8] sm:$0xff]
      %v7163 = vld [vmem:[%s213 + $0xd0] sm:$0xff]
      %v7164 = vld [vmem:[%s213 + $0xd8] sm:$0xff]
      %v7165 = vld [vmem:[%s213 + $0xe0] sm:$0xff]
      %v7166 = vld [vmem:[%s213 + $0xe8] sm:$0xff]
      %v7167 = vld [vmem:[%s213 + $0xf0] sm:$0xff]
      %v7168 = vld [vmem:[%s213 + $0xf8] sm:$0xff]
      %v7169 = vld [vmem:[%s213 + $0x100] sm:$0xff]
      %v7170 = vld [vmem:[%s213 + $0x108] sm:$0xff]
      %v7171 = vld [vmem:[%s213 + $0x110] sm:$0xff]
      %v7172 = vld [vmem:[%s213 + $0x118] sm:$0xff]
      %v7173 = vld [vmem:[%s213 + $0x120] sm:$0xff]
      %v7174 = vld [vmem:[%s213 + $0x128] sm:$0xff]
      %v7175 = vld [vmem:[%s213 + $0x130] sm:$0xff]
      %v7176 = vld [vmem:[%s213 + $0x138] sm:$0xff]
      %v7177 = vld [vmem:[%s213 + $0x140] sm:$0xff]
      %v7178 = vld [vmem:[%s213 + $0x148] sm:$0xff]
      %v7179 = vld [vmem:[%s213 + $0x150] sm:$0xff]
      %v7180 = vld [vmem:[%s213 + $0x158] sm:$0xff]
      %v7181 = vld [vmem:[%s213 + $0x160] sm:$0xff]
      %v7182 = vld [vmem:[%s213 + $0x168] sm:$0xff]
      %v7183 = vld [vmem:[%s213 + $0x170] sm:$0xff]
      %v7184 = vld [vmem:[%s213 + $0x178] sm:$0xff]
      %v7185 = vld [vmem:[%s213 + $0x180] sm:$0xff]
      %v7186 = vld [vmem:[%s213 + $0x188] sm:$0xff]
      %v7187 = vld [vmem:[%s213 + $0x190] sm:$0xff]
      %v7188 = vld [vmem:[%s213 + $0x198] sm:$0xff]
      %v7189 = vld [vmem:[%s213 + $0x1a0] sm:$0xff]
      %v7190 = vld [vmem:[%s213 + $0x1a8] sm:$0xff]
      %v7191 = vld [vmem:[%s213 + $0x1b0] sm:$0xff]
      %v7192 = vld [vmem:[%s213 + $0x1b8] sm:$0xff]
      %v7193 = vld [vmem:[%s213 + $0x1c0] sm:$0xff]
      %v7194 = vld [vmem:[%s213 + $0x1c8] sm:$0xff]
      %v7195 = vld [vmem:[%s213 + $0x1d0] sm:$0xff]
      %v7196 = vld [vmem:[%s213 + $0x1d8] sm:$0xff]
      %v7197 = vld [vmem:[%s213 + $0x1e0] sm:$0xff]
      %v7198 = vld [vmem:[%s213 + $0x1e8] sm:$0xff]
      %v7199 = vld [vmem:[%s213 + $0x1f0] sm:$0xff]
      %v7200 = vld [vmem:[%s213 + $0x1f8] sm:$0xff]
      %v7201 = vld [vmem:[%s213 + $0x200] sm:$0xff]
      %v7202 = vld [vmem:[%s213 + $0x208] sm:$0xff]
      %v7203 = vld [vmem:[%s213 + $0x210] sm:$0xff]
      %v7204 = vld [vmem:[%s213 + $0x218] sm:$0xff]
      %v7205 = vld [vmem:[%s213 + $0x220] sm:$0xff]
      %v7206 = vld [vmem:[%s213 + $0x228] sm:$0xff]
      %v7207 = vld [vmem:[%s213 + $0x230] sm:$0xff]
      %v7208 = vld [vmem:[%s213 + $0x238] sm:$0xff]
      %v7209 = vld [vmem:[%s213 + $0x240] sm:$0xff]
      %v7210 = vld [vmem:[%s213 + $0x248] sm:$0xff]
      %v7211 = vld [vmem:[%s213 + $0x250] sm:$0xff]
      %v7212 = vld [vmem:[%s213 + $0x258] sm:$0xff]
      %v7213 = vld [vmem:[%s213 + $0x260] sm:$0xff]
      %v7214 = vld [vmem:[%s213 + $0x268] sm:$0xff]
      %v7215 = vld [vmem:[%s213 + $0x270] sm:$0xff]
      %v7216 = vld [vmem:[%s213 + $0x278] sm:$0xff]
      %v7217 = vld [vmem:[%s213 + $0x280] sm:$0xff]
      %v7218 = vld [vmem:[%s213 + $0x288] sm:$0xff]
      %v7219 = vld [vmem:[%s213 + $0x290] sm:$0xff]
      %v7220 = vld [vmem:[%s213 + $0x298] sm:$0xff]
      %v7221 = vld [vmem:[%s213 + $0x2a0] sm:$0xff]
      %v7222 = vld [vmem:[%s213 + $0x2a8] sm:$0xff]
      %v7223 = vld [vmem:[%s213 + $0x2b0] sm:$0xff]
      %v7224 = vld [vmem:[%s213 + $0x2b8] sm:$0xff]
      %v7225 = vld [vmem:[%s213 + $0x2c0] sm:$0xff]
      %v7226 = vld [vmem:[%s213 + $0x2c8] sm:$0xff]
      %v7227 = vld [vmem:[%s213 + $0x2d0] sm:$0xff]
      %v7228 = vld [vmem:[%s213 + $0x2d8] sm:$0xff]
      %v7229 = vld [vmem:[%s213 + $0x2e0] sm:$0xff]
      %v7230 = vld [vmem:[%s213 + $0x2e8] sm:$0xff]
      %v7231 = vld [vmem:[%s213 + $0x2f0] sm:$0xff]
      %v7232 = vld [vmem:[%s213 + $0x2f8] sm:$0xff]
      %v7233 = vld [vmem:[%s213 + $0x300] sm:$0xff]
      %v7234 = vld [vmem:[%s213 + $0x308] sm:$0xff]
      %v7235 = vld [vmem:[%s213 + $0x310] sm:$0xff]
      %v7236 = vld [vmem:[%s213 + $0x318] sm:$0xff]
      %v7237 = vld [vmem:[%s213 + $0x320] sm:$0xff]
      %v7238 = vld [vmem:[%s213 + $0x328] sm:$0xff]
      %v7239 = vld [vmem:[%s213 + $0x330] sm:$0xff]
      %v7240 = vld [vmem:[%s213 + $0x338] sm:$0xff]
      %v7241 = vld [vmem:[%s213 + $0x340] sm:$0xff]
      %v7242 = vld [vmem:[%s213 + $0x348] sm:$0xff]
      %v7243 = vld [vmem:[%s213 + $0x350] sm:$0xff]
      %v7244 = vld [vmem:[%s213 + $0x358] sm:$0xff]
      %v7245 = vld [vmem:[%s213 + $0x360] sm:$0xff]
      %v7246 = vld [vmem:[%s213 + $0x368] sm:$0xff]
      %v7247 = vld [vmem:[%s213 + $0x370] sm:$0xff]
      %v7248 = vld [vmem:[%s213 + $0x378] sm:$0xff]
      %v7249 = vld [vmem:[%s213 + $0x380] sm:$0xff]
      %v7250 = vld [vmem:[%s213 + $0x388] sm:$0xff]
      %v7251 = vld [vmem:[%s213 + $0x390] sm:$0xff]
      %v7252 = vld [vmem:[%s213 + $0x398] sm:$0xff]
      %v7253 = vld [vmem:[%s213 + $0x3a0] sm:$0xff]
      %v7254 = vld [vmem:[%s213 + $0x3a8] sm:$0xff]
      %v7255 = vld [vmem:[%s213 + $0x3b0] sm:$0xff]
      %v7256 = vld [vmem:[%s213 + $0x3b8] sm:$0xff]
      %v7257 = vld [vmem:[%s213 + $0x3c0] sm:$0xff]
      %v7258 = vld [vmem:[%s213 + $0x3c8] sm:$0xff]
      %v7259 = vld [vmem:[%s213 + $0x3d0] sm:$0xff]
      %v7260 = vld [vmem:[%s213 + $0x3d8] sm:$0xff]
      %v7261 = vld [vmem:[%s213 + $0x3e0] sm:$0xff]
      %v7262 = vld [vmem:[%s213 + $0x3e8] sm:$0xff]
      %v7263 = vld [vmem:[%s213 + $0x3f0] sm:$0xff]
      %v7264 = vld [vmem:[%s213 + $0x3f8] sm:$0xff]
      %v7265 = vmul.f32 %v7137, %v7121
      %v7266 = vmul.f32 %v7138, %v7136
      %v7267 = vmul.f32 %v7139, %v7121
      %v7268 = vmul.f32 %v7140, %v7136
      %v7269 = vmul.f32 %v7141, %v7121
      %v7270 = vmul.f32 %v7142, %v7136
      %v7271 = vmul.f32 %v7143, %v7121
      %v7272 = vmul.f32 %v7144, %v7136
      %v7273 = vmul.f32 %v7145, %v7121
      %v7274 = vmul.f32 %v7146, %v7136
      %v7275 = vmul.f32 %v7147, %v7121
      %v7276 = vmul.f32 %v7148, %v7136
      %v7277 = vmul.f32 %v7149, %v7121
      %v7278 = vmul.f32 %v7150, %v7136
      %v7279 = vmul.f32 %v7151, %v7121
      %v7280 = vmul.f32 %v7152, %v7136
      %v7281 = vmul.f32 %v7153, %v7121
      %v7282 = vmul.f32 %v7154, %v7136
      %v7283 = vmul.f32 %v7155, %v7121
      %v7284 = vmul.f32 %v7156, %v7136
      %v7285 = vmul.f32 %v7157, %v7121
      %v7286 = vmul.f32 %v7158, %v7136
      %v7287 = vmul.f32 %v7159, %v7121
      %v7288 = vmul.f32 %v7160, %v7136
      %v7289 = vmul.f32 %v7161, %v7121
      %v7290 = vmul.f32 %v7162, %v7136
      %v7291 = vmul.f32 %v7163, %v7121
      %v7292 = vmul.f32 %v7164, %v7136
      %v7293 = vmul.f32 %v7165, %v7121
      %v7294 = vmul.f32 %v7166, %v7136
      %v7295 = vmul.f32 %v7167, %v7121
      %v7296 = vmul.f32 %v7168, %v7136
      %v7297 = vmul.f32 %v7169, %v7121
      %v7298 = vmul.f32 %v7170, %v7136
      %v7299 = vmul.f32 %v7171, %v7121
      %v7300 = vmul.f32 %v7172, %v7136
      %v7301 = vmul.f32 %v7173, %v7121
      %v7302 = vmul.f32 %v7174, %v7136
      %v7303 = vmul.f32 %v7175, %v7121
      %v7304 = vmul.f32 %v7176, %v7136
      %v7305 = vmul.f32 %v7177, %v7121
      %v7306 = vmul.f32 %v7178, %v7136
      %v7307 = vmul.f32 %v7179, %v7121
      %v7308 = vmul.f32 %v7180, %v7136
      %v7309 = vmul.f32 %v7181, %v7121
      %v7310 = vmul.f32 %v7182, %v7136
      %v7311 = vmul.f32 %v7183, %v7121
      %v7312 = vmul.f32 %v7184, %v7136
      %v7313 = vmul.f32 %v7185, %v7121
      %v7314 = vmul.f32 %v7186, %v7136
      %v7315 = vmul.f32 %v7187, %v7121
      %v7316 = vmul.f32 %v7188, %v7136
      %v7317 = vmul.f32 %v7189, %v7121
      %v7318 = vmul.f32 %v7190, %v7136
      %v7319 = vmul.f32 %v7191, %v7121
      %v7320 = vmul.f32 %v7192, %v7136
      %v7321 = vmul.f32 %v7193, %v7121
      %v7322 = vmul.f32 %v7194, %v7136
      %v7323 = vmul.f32 %v7195, %v7121
      %v7324 = vmul.f32 %v7196, %v7136
      %v7325 = vmul.f32 %v7197, %v7121
      %v7326 = vmul.f32 %v7198, %v7136
      %v7327 = vmul.f32 %v7199, %v7121
      %v7328 = vmul.f32 %v7200, %v7136
      %v7329 = vmul.f32 %v7201, %v7121
      %v7330 = vmul.f32 %v7202, %v7136
      %v7331 = vmul.f32 %v7203, %v7121
      %v7332 = vmul.f32 %v7204, %v7136
      %v7333 = vmul.f32 %v7205, %v7121
      %v7334 = vmul.f32 %v7206, %v7136
      %v7335 = vmul.f32 %v7207, %v7121
      %v7336 = vmul.f32 %v7208, %v7136
      %v7337 = vmul.f32 %v7209, %v7121
      %v7338 = vmul.f32 %v7210, %v7136
      %v7339 = vmul.f32 %v7211, %v7121
      %v7340 = vmul.f32 %v7212, %v7136
      %v7341 = vmul.f32 %v7213, %v7121
      %v7342 = vmul.f32 %v7214, %v7136
      %v7343 = vmul.f32 %v7215, %v7121
      %v7344 = vmul.f32 %v7216, %v7136
      %v7345 = vmul.f32 %v7217, %v7121
      %v7346 = vmul.f32 %v7218, %v7136
      %v7347 = vmul.f32 %v7219, %v7121
      %v7348 = vmul.f32 %v7220, %v7136
      %v7349 = vmul.f32 %v7221, %v7121
      %v7350 = vmul.f32 %v7222, %v7136
      %v7351 = vmul.f32 %v7223, %v7121
      %v7352 = vmul.f32 %v7224, %v7136
      %v7353 = vmul.f32 %v7225, %v7121
      %v7354 = vmul.f32 %v7226, %v7136
      %v7355 = vmul.f32 %v7227, %v7121
      %v7356 = vmul.f32 %v7228, %v7136
      %v7357 = vmul.f32 %v7229, %v7121
      %v7358 = vmul.f32 %v7230, %v7136
      %v7359 = vmul.f32 %v7231, %v7121
      %v7360 = vmul.f32 %v7232, %v7136
      %v7361 = vmul.f32 %v7233, %v7121
      %v7362 = vmul.f32 %v7234, %v7136
      %v7363 = vmul.f32 %v7235, %v7121
      %v7364 = vmul.f32 %v7236, %v7136
      %v7365 = vmul.f32 %v7237, %v7121
      %v7366 = vmul.f32 %v7238, %v7136
      %v7367 = vmul.f32 %v7239, %v7121
      %v7368 = vmul.f32 %v7240, %v7136
      %v7369 = vmul.f32 %v7241, %v7121
      %v7370 = vmul.f32 %v7242, %v7136
      %v7371 = vmul.f32 %v7243, %v7121
      %v7372 = vmul.f32 %v7244, %v7136
      %v7373 = vmul.f32 %v7245, %v7121
      %v7374 = vmul.f32 %v7246, %v7136
      %v7375 = vmul.f32 %v7247, %v7121
      %v7376 = vmul.f32 %v7248, %v7136
      %v7377 = vmul.f32 %v7249, %v7121
      %v7378 = vmul.f32 %v7250, %v7136
      %v7379 = vmul.f32 %v7251, %v7121
      %v7380 = vmul.f32 %v7252, %v7136
      %v7381 = vmul.f32 %v7253, %v7121
      %v7382 = vmul.f32 %v7254, %v7136
      %v7383 = vmul.f32 %v7255, %v7121
      %v7384 = vmul.f32 %v7256, %v7136
      %v7385 = vmul.f32 %v7257, %v7121
      %v7386 = vmul.f32 %v7258, %v7136
      %v7387 = vmul.f32 %v7259, %v7121
      %v7388 = vmul.f32 %v7260, %v7136
      %v7389 = vmul.f32 %v7261, %v7121
      %v7390 = vmul.f32 %v7262, %v7136
      %v7391 = vmul.f32 %v7263, %v7121
      %v7392 = vmul.f32 %v7264, %v7136
      %7393 = vst.msk [vmem:[%s218] sm:$0xff] %vm804, %v7265
      %7394 = vst.msk [vmem:[%s218 + $0x8] sm:$0xff] %vm804, %v7266
      %7395 = vst.msk [vmem:[%s218 + $0x10] sm:$0xff] %vm804, %v7267
      %7396 = vst.msk [vmem:[%s218 + $0x18] sm:$0xff] %vm804, %v7268
      %7397 = vst.msk [vmem:[%s218 + $0x20] sm:$0xff] %vm804, %v7269
      %7398 = vst.msk [vmem:[%s218 + $0x28] sm:$0xff] %vm804, %v7270
      %7399 = vst.msk [vmem:[%s218 + $0x30] sm:$0xff] %vm804, %v7271
      %7400 = vst.msk [vmem:[%s218 + $0x38] sm:$0xff] %vm804, %v7272
      %7401 = vst.msk [vmem:[%s218 + $0x40] sm:$0xff] %vm804, %v7273
      %7402 = vst.msk [vmem:[%s218 + $0x48] sm:$0xff] %vm804, %v7274
      %7403 = vst.msk [vmem:[%s218 + $0x50] sm:$0xff] %vm804, %v7275
      %7404 = vst.msk [vmem:[%s218 + $0x58] sm:$0xff] %vm804, %v7276
      %7405 = vst.msk [vmem:[%s218 + $0x60] sm:$0xff] %vm804, %v7277
      %7406 = vst.msk [vmem:[%s218 + $0x68] sm:$0xff] %vm804, %v7278
      %7407 = vst.msk [vmem:[%s218 + $0x70] sm:$0xff] %vm804, %v7279
      %7408 = vst.msk [vmem:[%s218 + $0x78] sm:$0xff] %vm804, %v7280
      %7409 = vst.msk [vmem:[%s218 + $0x80] sm:$0xff] %vm804, %v7281
      %7410 = vst.msk [vmem:[%s218 + $0x88] sm:$0xff] %vm804, %v7282
      %7411 = vst.msk [vmem:[%s218 + $0x90] sm:$0xff] %vm804, %v7283
      %7412 = vst.msk [vmem:[%s218 + $0x98] sm:$0xff] %vm804, %v7284
      %7413 = vst.msk [vmem:[%s218 + $0xa0] sm:$0xff] %vm804, %v7285
      %7414 = vst.msk [vmem:[%s218 + $0xa8] sm:$0xff] %vm804, %v7286
      %7415 = vst.msk [vmem:[%s218 + $0xb0] sm:$0xff] %vm804, %v7287
      %7416 = vst.msk [vmem:[%s218 + $0xb8] sm:$0xff] %vm804, %v7288
      %7417 = vst.msk [vmem:[%s218 + $0xc0] sm:$0xff] %vm804, %v7289
      %7418 = vst.msk [vmem:[%s218 + $0xc8] sm:$0xff] %vm804, %v7290
      %7419 = vst.msk [vmem:[%s218 + $0xd0] sm:$0xff] %vm804, %v7291
      %7420 = vst.msk [vmem:[%s218 + $0xd8] sm:$0xff] %vm804, %v7292
      %7421 = vst.msk [vmem:[%s218 + $0xe0] sm:$0xff] %vm804, %v7293
      %7422 = vst.msk [vmem:[%s218 + $0xe8] sm:$0xff] %vm804, %v7294
      %7423 = vst.msk [vmem:[%s218 + $0xf0] sm:$0xff] %vm804, %v7295
      %7424 = vst.msk [vmem:[%s218 + $0xf8] sm:$0xff] %vm804, %v7296
      %7425 = vst.msk [vmem:[%s218 + $0x100] sm:$0xff] %vm804, %v7297
      %7426 = vst.msk [vmem:[%s218 + $0x108] sm:$0xff] %vm804, %v7298
      %7427 = vst.msk [vmem:[%s218 + $0x110] sm:$0xff] %vm804, %v7299
      %7428 = vst.msk [vmem:[%s218 + $0x118] sm:$0xff] %vm804, %v7300
      %7429 = vst.msk [vmem:[%s218 + $0x120] sm:$0xff] %vm804, %v7301
      %7430 = vst.msk [vmem:[%s218 + $0x128] sm:$0xff] %vm804, %v7302
      %7431 = vst.msk [vmem:[%s218 + $0x130] sm:$0xff] %vm804, %v7303
      %7432 = vst.msk [vmem:[%s218 + $0x138] sm:$0xff] %vm804, %v7304
      %7433 = vst.msk [vmem:[%s218 + $0x140] sm:$0xff] %vm804, %v7305
      %7434 = vst.msk [vmem:[%s218 + $0x148] sm:$0xff] %vm804, %v7306
      %7435 = vst.msk [vmem:[%s218 + $0x150] sm:$0xff] %vm804, %v7307
      %7436 = vst.msk [vmem:[%s218 + $0x158] sm:$0xff] %vm804, %v7308
      %7437 = vst.msk [vmem:[%s218 + $0x160] sm:$0xff] %vm804, %v7309
      %7438 = vst.msk [vmem:[%s218 + $0x168] sm:$0xff] %vm804, %v7310
      %7439 = vst.msk [vmem:[%s218 + $0x170] sm:$0xff] %vm804, %v7311
      %7440 = vst.msk [vmem:[%s218 + $0x178] sm:$0xff] %vm804, %v7312
      %7441 = vst.msk [vmem:[%s218 + $0x180] sm:$0xff] %vm804, %v7313
      %7442 = vst.msk [vmem:[%s218 + $0x188] sm:$0xff] %vm804, %v7314
      %7443 = vst.msk [vmem:[%s218 + $0x190] sm:$0xff] %vm804, %v7315
      %7444 = vst.msk [vmem:[%s218 + $0x198] sm:$0xff] %vm804, %v7316
      %7445 = vst.msk [vmem:[%s218 + $0x1a0] sm:$0xff] %vm804, %v7317
      %7446 = vst.msk [vmem:[%s218 + $0x1a8] sm:$0xff] %vm804, %v7318
      %7447 = vst.msk [vmem:[%s218 + $0x1b0] sm:$0xff] %vm804, %v7319
      %7448 = vst.msk [vmem:[%s218 + $0x1b8] sm:$0xff] %vm804, %v7320
      %7449 = vst.msk [vmem:[%s218 + $0x1c0] sm:$0xff] %vm804, %v7321
      %7450 = vst.msk [vmem:[%s218 + $0x1c8] sm:$0xff] %vm804, %v7322
      %7451 = vst.msk [vmem:[%s218 + $0x1d0] sm:$0xff] %vm804, %v7323
      %7452 = vst.msk [vmem:[%s218 + $0x1d8] sm:$0xff] %vm804, %v7324
      %7453 = vst.msk [vmem:[%s218 + $0x1e0] sm:$0xff] %vm804, %v7325
      %7454 = vst.msk [vmem:[%s218 + $0x1e8] sm:$0xff] %vm804, %v7326
      %7455 = vst.msk [vmem:[%s218 + $0x1f0] sm:$0xff] %vm804, %v7327
      %7456 = vst.msk [vmem:[%s218 + $0x1f8] sm:$0xff] %vm804, %v7328
      %7457 = vst.msk [vmem:[%s218 + $0x200] sm:$0xff] %vm804, %v7329
      %7458 = vst.msk [vmem:[%s218 + $0x208] sm:$0xff] %vm804, %v7330
      %7459 = vst.msk [vmem:[%s218 + $0x210] sm:$0xff] %vm804, %v7331
      %7460 = vst.msk [vmem:[%s218 + $0x218] sm:$0xff] %vm804, %v7332
      %7461 = vst.msk [vmem:[%s218 + $0x220] sm:$0xff] %vm804, %v7333
      %7462 = vst.msk [vmem:[%s218 + $0x228] sm:$0xff] %vm804, %v7334
      %7463 = vst.msk [vmem:[%s218 + $0x230] sm:$0xff] %vm804, %v7335
      %7464 = vst.msk [vmem:[%s218 + $0x238] sm:$0xff] %vm804, %v7336
      %7465 = vst.msk [vmem:[%s218 + $0x240] sm:$0xff] %vm804, %v7337
      %7466 = vst.msk [vmem:[%s218 + $0x248] sm:$0xff] %vm804, %v7338
      %7467 = vst.msk [vmem:[%s218 + $0x250] sm:$0xff] %vm804, %v7339
      %7468 = vst.msk [vmem:[%s218 + $0x258] sm:$0xff] %vm804, %v7340
      %7469 = vst.msk [vmem:[%s218 + $0x260] sm:$0xff] %vm804, %v7341
      %7470 = vst.msk [vmem:[%s218 + $0x268] sm:$0xff] %vm804, %v7342
      %7471 = vst.msk [vmem:[%s218 + $0x270] sm:$0xff] %vm804, %v7343
      %7472 = vst.msk [vmem:[%s218 + $0x278] sm:$0xff] %vm804, %v7344
      %7473 = vst.msk [vmem:[%s218 + $0x280] sm:$0xff] %vm804, %v7345
      %7474 = vst.msk [vmem:[%s218 + $0x288] sm:$0xff] %vm804, %v7346
      %7475 = vst.msk [vmem:[%s218 + $0x290] sm:$0xff] %vm804, %v7347
      %7476 = vst.msk [vmem:[%s218 + $0x298] sm:$0xff] %vm804, %v7348
      %7477 = vst.msk [vmem:[%s218 + $0x2a0] sm:$0xff] %vm804, %v7349
      %7478 = vst.msk [vmem:[%s218 + $0x2a8] sm:$0xff] %vm804, %v7350
      %7479 = vst.msk [vmem:[%s218 + $0x2b0] sm:$0xff] %vm804, %v7351
      %7480 = vst.msk [vmem:[%s218 + $0x2b8] sm:$0xff] %vm804, %v7352
      %7481 = vst.msk [vmem:[%s218 + $0x2c0] sm:$0xff] %vm804, %v7353
      %7482 = vst.msk [vmem:[%s218 + $0x2c8] sm:$0xff] %vm804, %v7354
      %7483 = vst.msk [vmem:[%s218 + $0x2d0] sm:$0xff] %vm804, %v7355
      %7484 = vst.msk [vmem:[%s218 + $0x2d8] sm:$0xff] %vm804, %v7356
      %7485 = vst.msk [vmem:[%s218 + $0x2e0] sm:$0xff] %vm804, %v7357
      %7486 = vst.msk [vmem:[%s218 + $0x2e8] sm:$0xff] %vm804, %v7358
      %7487 = vst.msk [vmem:[%s218 + $0x2f0] sm:$0xff] %vm804, %v7359
      %7488 = vst.msk [vmem:[%s218 + $0x2f8] sm:$0xff] %vm804, %v7360
      %7489 = vst.msk [vmem:[%s218 + $0x300] sm:$0xff] %vm804, %v7361
      %7490 = vst.msk [vmem:[%s218 + $0x308] sm:$0xff] %vm804, %v7362
      %7491 = vst.msk [vmem:[%s218 + $0x310] sm:$0xff] %vm804, %v7363
      %7492 = vst.msk [vmem:[%s218 + $0x318] sm:$0xff] %vm804, %v7364
      %7493 = vst.msk [vmem:[%s218 + $0x320] sm:$0xff] %vm804, %v7365
      %7494 = vst.msk [vmem:[%s218 + $0x328] sm:$0xff] %vm804, %v7366
      %7495 = vst.msk [vmem:[%s218 + $0x330] sm:$0xff] %vm804, %v7367
      %7496 = vst.msk [vmem:[%s218 + $0x338] sm:$0xff] %vm804, %v7368
      %7497 = vst.msk [vmem:[%s218 + $0x340] sm:$0xff] %vm804, %v7369
      %7498 = vst.msk [vmem:[%s218 + $0x348] sm:$0xff] %vm804, %v7370
      %7499 = vst.msk [vmem:[%s218 + $0x350] sm:$0xff] %vm804, %v7371
      %7500 = vst.msk [vmem:[%s218 + $0x358] sm:$0xff] %vm804, %v7372
      %7501 = vst.msk [vmem:[%s218 + $0x360] sm:$0xff] %vm804, %v7373
      %7502 = vst.msk [vmem:[%s218 + $0x368] sm:$0xff] %vm804, %v7374
      %7503 = vst.msk [vmem:[%s218 + $0x370] sm:$0xff] %vm804, %v7375
      %7504 = vst.msk [vmem:[%s218 + $0x378] sm:$0xff] %vm804, %v7376
      %7505 = vst.msk [vmem:[%s218 + $0x380] sm:$0xff] %vm804, %v7377
      %7506 = vst.msk [vmem:[%s218 + $0x388] sm:$0xff] %vm804, %v7378
      %7507 = vst.msk [vmem:[%s218 + $0x390] sm:$0xff] %vm804, %v7379
      %7508 = vst.msk [vmem:[%s218 + $0x398] sm:$0xff] %vm804, %v7380
      %7509 = vst.msk [vmem:[%s218 + $0x3a0] sm:$0xff] %vm804, %v7381
      %7510 = vst.msk [vmem:[%s218 + $0x3a8] sm:$0xff] %vm804, %v7382
      %7511 = vst.msk [vmem:[%s218 + $0x3b0] sm:$0xff] %vm804, %v7383
      %7512 = vst.msk [vmem:[%s218 + $0x3b8] sm:$0xff] %vm804, %v7384
      %7513 = vst.msk [vmem:[%s218 + $0x3c0] sm:$0xff] %vm804, %v7385
      %7514 = vst.msk [vmem:[%s218 + $0x3c8] sm:$0xff] %vm804, %v7386
      %7515 = vst.msk [vmem:[%s218 + $0x3d0] sm:$0xff] %vm804, %v7387
      %7516 = vst.msk [vmem:[%s218 + $0x3d8] sm:$0xff] %vm804, %v7388
      %7517 = vst.msk [vmem:[%s218 + $0x3e0] sm:$0xff] %vm804, %v7389
      %7518 = vst.msk [vmem:[%s218 + $0x3e8] sm:$0xff] %vm804, %v7390
      %7519 = vst.msk [vmem:[%s218 + $0x3f0] sm:$0xff] %vm804, %v7391
      %7520 = vst.msk [vmem:[%s218 + $0x3f8] sm:$0xff] %vm804, %v7392
      %p7521 = scmp.lt.s32.totalorder %s16, 1
      %s7522 = scalar_select %p7521, %s16, 1
      %s7523 = smul.addr %s7522, 128
      %s7524 = smul.addr %s7523, 8
      %s7525 = scalar_lea.vmem %s4, %s7524
      // Predicated region
      $region37: #{tpu_custom_call.1} parent=35 // pred_check
        %p7526 = pneg %p128
      $region38: #{tpu_custom_call.1} parent=35 // pred_check_branch
        %7528 = sbr.rel (%p7526) target = $region40
      $region39: #{tpu_custom_call.1} parent=35 // pred_region
        _
      $region40: #{tpu_custom_call.1} parent=35 // pred_fallthru
        _
    $region36: #{tpu_custom_call.1} parent=5 // pred_fallthru
      _
    %p7529 = scmp.le.s32.totalorder 2, %s11
    // Predicated region
    $region41: #{tpu_custom_call.1} parent=5 // pred_check
      %p7530 = pneg %p7529
    $region42: #{tpu_custom_call.1} parent=5 // pred_check_branch
      %7532 = sbr.rel (%p7530) target = $region44
    $region43: #{tpu_custom_call.1} parent=5 // pred_region
      %s7533 = ssub.s32 %s11, 2
      // Predicated region
      $region45: #{tpu_custom_call.1} parent=43 // pred_check
        %p7534 = pneg %p134
      $region46: #{tpu_custom_call.1} parent=43 // pred_check_branch
        %7536 = sbr.rel (%p7534) target = $region48
      $region47: #{tpu_custom_call.1} parent=43 // pred_region
        %p7537 = scmp.lt.s32.totalorder %s17, 1
        %s7538 = scalar_select %p7537, %s17, 1
        %s7539 = smul.addr %s7538, 128
        %s7540 = smul.addr %s7539, 8
        %s7541 = scalar_lea.vmem %s4, %s7540
      $region48: #{tpu_custom_call.1} parent=43 // pred_fallthru
        _
    $region44: #{tpu_custom_call.1} parent=5 // pred_fallthru
      _
  $region6: #{tpu_custom_call.1} parent=0 // loop_footer
    %s15 = sadd.s32 1, %s11
  $region7: #{tpu_custom_call.1} parent=0 // loop_footer_branch
    %10 = sbr.rel target = $region3
  $region8: #{tpu_custom_call.1} parent=0 // loop_exit
    _

</llo_original>
